<compile_context>
chip_gen: v6e
topology: v6e:2x2x1
jax: 0.10.0
libtpu: 0.0.40
codegen_flags: <defaults>
</compile_context>

<pallas_src>
import jax
import jax.numpy as jnp
from jax import lax
from jax.experimental import pallas as pl
from jax.experimental.pallas import tpu as pltpu


HIDDEN = 512


def _disc_kernel(z_ref, w1_ref, wh_ref, wo_ref, bh_ref, b5_ref, out_ref):
    """Fused 5-layer MLP for one batch tile.

    z_ref  : (TB, z_dim)   f32   -- batch-tiled input (pipelined)
    w1_ref : (z_dim, 512)  bf16  -- resident
    wh_ref : (3, 512, 512) bf16  -- resident, stacked weights of layers 2-4
    wo_ref : (1, 512)      bf16  -- resident, final layer weight as a row
    bh_ref : (4, 512)      f32   -- resident, biases of layers 1-4
    b5_ref : (1, 1)        f32   -- SMEM scalar, final bias
    out_ref: (1, TB)       f32   -- lane-dense sigmoid probabilities
    """
    # Layer 1: (TB, z_dim) @ (z_dim, 512); activations carried in bf16, acc in f32.
    x = z_ref[...].astype(jnp.bfloat16)
    h = jnp.dot(x, w1_ref[...], preferred_element_type=jnp.float32)
    h = jnp.maximum(h + bh_ref[0:1, :], 0.0).astype(jnp.bfloat16)

    # Layers 2-4: three resident 512x512 matmuls.
    for k in range(3):
        h = jnp.dot(h, wh_ref[k], preferred_element_type=jnp.float32)
        h = jnp.maximum(h + bh_ref[k + 1:k + 2, :], 0.0).astype(jnp.bfloat16)

    # Final 512 -> 1 layer computed lane-dense: (1,512) x (TB,512)^T -> (1, TB),
    # so the output store is a full-width vst instead of a 1-of-128-lane masked store.
    logits = lax.dot_general(
        wo_ref[...], h,
        dimension_numbers=(((1,), (1,)), ((), ())),
        preferred_element_type=jnp.float32,
    ) + b5_ref[0, 0]

    # Exact sigmoid (EUP is idle; no reason for an approximate reciprocal).
    out_ref[...] = 1.0 / (1.0 + jnp.exp(-logits))


def _round_up(x, m):
    return (x + m - 1) // m * m


def discriminator_forward(z, params, *, batch_tile=None):
    """z: (B, z_dim) f32.  params = (w1, wh, wo, bh, b5) from init_params.
    Returns (B, 1) f32 sigmoid probabilities (same semantics as the torch module).

    If batch_tile is given it must be a multiple of 128 (or >= B)."""
    w1, wh, wo, bh, b5 = params
    B, z_dim = z.shape

    # Tile selection: the kernel is dominated by the one-time ~1.6 MiB weight fetch and
    # fixed per-grid-step overhead, so use as few, as large tiles as possible.
    #   B <= 256 : single grid step over the whole (padded) batch.
    #   B  > 256 : 256-row tiles -- matches the 256-wide MXU on v6e/v7x, keeps the grid
    #              >= 2 steps so both TensorCores get work on megacore parts, and keeps
    #              z/out DMAs pipelined against MXU work.
    if batch_tile is None:
        TB = _round_up(B, 8) if B <= 256 else 256
    else:
        TB = batch_tile if batch_tile < B else _round_up(B, 8)
    Bp = _round_up(B, TB)
    if Bp != B:
        z = jnp.pad(z, ((0, Bp - B), (0, 0)))
    grid = (Bp // TB,)

    weight_bytes = sum(int(p.size) * p.dtype.itemsize for p in (w1, wh, wo, bh, b5))
    cost = pl.CostEstimate(
        flops=2 * Bp * (z_dim * HIDDEN + 3 * HIDDEN * HIDDEN + HIDDEN),
        transcendentals=Bp,
        bytes_accessed=weight_bytes + Bp * z_dim * 4 + Bp * 4,
    )

    def run(single_buffer_weights):
        # Constant-index weights/biases stay VMEM-resident across all grid steps;
        # the second pipeline buffer is dead weight, so request single buffering.
        resident = (
            dict(pipeline_mode=pl.Buffered(1)) if single_buffer_weights else {}
        )
        in_specs = [
            pl.BlockSpec((TB, z_dim), lambda i: (i, 0)),                 # pipelined
            pl.BlockSpec(w1.shape, lambda i: (0, 0), **resident),
            pl.BlockSpec(wh.shape, lambda i: (0, 0, 0), **resident),
            pl.BlockSpec(wo.shape, lambda i: (0, 0), **resident),
            pl.BlockSpec(bh.shape, lambda i: (0, 0), **resident),
            pl.BlockSpec(memory_space=pltpu.MemorySpace.SMEM),           # b5 scalar
        ]
        out_spec = pl.BlockSpec((1, TB), lambda i: (0, i))               # lane-dense

        return pl.pallas_call(
            _disc_kernel,
            out_shape=jax.ShapeDtypeStruct((1, Bp), jnp.float32),
            grid=grid,
            in_specs=in_specs,
            out_specs=out_spec,
            compiler_params=pltpu.CompilerParams(
                dimension_semantics=("parallel",),    # shard batch tiles across TCs
                vmem_limit_bytes=16 << 20,            # true footprint < 5 MiB
            ),
            cost_estimate=cost,
        )(z, w1, wh, wo, bh, b5)

    try:
        out = run(single_buffer_weights=True)
    except Exception:
        # Fallback if this jax build's TPU pipeline rejects pipeline_mode=Buffered(1);
        # double-buffered resident weights still fit comfortably in VMEM.
        out = run(single_buffer_weights=False)

    return out[0, :B, None]


def init_params(key, z_dim=10, hidden=512):
    """kaiming_normal_ (fan_in, gain=sqrt(2)) init, zero biases, laid out for the kernel:
       w1 (z_dim, hidden) bf16, wh (3, hidden, hidden) bf16 (layers 2-4),
       wo (1, hidden) bf16 (final layer as a row), bh (4, hidden) f32, b5 (1, 1) f32."""
    k1, k2, k3 = jax.random.split(key, 3)
    std_in = (2.0 / z_dim) ** 0.5
    std_h = (2.0 / hidden) ** 0.5
    w1 = (std_in * jax.random.normal(k1, (z_dim, hidden), jnp.float32)).astype(jnp.bfloat16)
    wh = (std_h * jax.random.normal(k2, (3, hidden, hidden), jnp.float32)).astype(jnp.bfloat16)
    wo = (std_h * jax.random.normal(k3, (1, hidden), jnp.float32)).astype(jnp.bfloat16)
    bh = jnp.zeros((4, hidden), jnp.float32)
    b5 = jnp.zeros((1, 1), jnp.float32)
    return (w1, wh, wo, bh, b5)


def reference_forward(z, params):
    """Pure-JAX reference mirroring the kernel's bf16-weight / bf16-activation /
    f32-accumulate math."""
    w1, wh, wo, bh, b5 = params

    def dense_relu(x_bf16, w_bf16, b_f32):
        y = jnp.dot(x_bf16, w_bf16, preferred_element_type=jnp.float32) + b_f32
        return jnp.maximum(y, 0.0).astype(jnp.bfloat16)

    h = dense_relu(z.astype(jnp.bfloat16), w1, bh[0:1, :])
    for k in range(3):
        h = dense_relu(h, wh[k], bh[k + 1:k + 2, :])
    logits = jnp.dot(h, wo.T, preferred_element_type=jnp.float32) + b5[0, 0]
    return jax.nn.sigmoid(logits)


if __name__ == "__main__":
    z_dim = 10

    key = jax.random.PRNGKey(0)
    kz1, kz2, kp = jax.random.split(key, 3)
    params = init_params(kp, z_dim=z_dim, hidden=HIDDEN)

    # Case 1: small batch -> single grid step covering the whole batch.
    z1 = jax.random.normal(kz1, (64, z_dim), dtype=jnp.float32)
    out1 = jax.block_until_ready(discriminator_forward(z1, params))
    ref1 = reference_forward(z1, params)
    assert out1.shape == (64, 1), out1.shape
    assert jnp.allclose(out1, ref1, atol=5e-3, rtol=5e-3), \
        f"mismatch (small): max abs err {jnp.max(jnp.abs(out1 - ref1))}"

    # Case 2: non-multiple batch -> 256-row tiles, 2 pipelined grid steps, pad + slice.
    z2 = jax.random.normal(kz2, (300, z_dim), dtype=jnp.float32)
    out2 = jax.block_until_ready(discriminator_forward(z2, params))
    ref2 = reference_forward(z2, params)
    assert out2.shape == (300, 1), out2.shape
    assert jnp.allclose(out2, ref2, atol=5e-3, rtol=5e-3), \
        f"mismatch (tiled): max abs err {jnp.max(jnp.abs(out2 - ref2))}"

    print("KERNEL_OK")
</pallas_src>

<mosaic_0001>
module attributes {stable_mosaic.version = 11 : i64} {
  func.func @_disc_kernel(%arg0: i32, %arg1: memref<64x10xf32, #tpu.memory_space<vmem>>, %arg2: memref<10x512xbf16, #tpu.memory_space<vmem>>, %arg3: memref<3x512x512xbf16, #tpu.memory_space<vmem>>, %arg4: memref<1x512xbf16, #tpu.memory_space<vmem>>, %arg5: memref<4x512xf32, #tpu.memory_space<vmem>>, %arg6: memref<1x1xf32, #tpu.memory_space<smem>>, %arg7: memref<1x64xf32, #tpu.memory_space<vmem>>) attributes {dimension_semantics = [#tpu.dimension_semantics<parallel>], iteration_bounds = array<i64: 1>, scalar_prefetch = 0 : i64, scratch_operands = 0 : i64, tpu.core_type = #tpu.core_type<tc>, window_params = [{transform_indices = @transform_0, window_bounds = array<i64: 64, 10>}, {pipeline_mode = #tpu.pipeline_mode<synchronous>, transform_indices = @transform_1, window_bounds = array<i64: 10, 512>}, {pipeline_mode = #tpu.pipeline_mode<synchronous>, transform_indices = @transform_2, window_bounds = array<i64: 3, 512, 512>}, {pipeline_mode = #tpu.pipeline_mode<synchronous>, transform_indices = @transform_3, window_bounds = array<i64: 1, 512>}, {pipeline_mode = #tpu.pipeline_mode<synchronous>, transform_indices = @transform_4, window_bounds = array<i64: 4, 512>}, {transform_indices = @transform_5, window_bounds = array<i64: 1, 1>}, {transform_indices = @transform_6, window_bounds = array<i64: 1, 64>}]} {
    %c0 = arith.constant 0 : index
    %c0_0 = arith.constant 0 : index
    %0 = vector.load %arg1[%c0, %c0_0] : memref<64x10xf32, #tpu.memory_space<vmem>>, vector<64x10xf32>
    %1 = arith.truncf %0 : vector<64x10xf32> to vector<64x10xbf16>
    %c0_1 = arith.constant 0 : index
    %c0_2 = arith.constant 0 : index
    %2 = vector.load %arg2[%c0_1, %c0_2] : memref<10x512xbf16, #tpu.memory_space<vmem>>, vector<10x512xbf16>
    %cst = arith.constant dense<0.000000e+00> : vector<64x512xf32>
    %3 = tpu.matmul %1, %2, %cst {dimension_numbers = #tpu.dot_dimension_numbers<[1], [0], [0], [1], [0, 0, 1, 1], [], []>} : vector<64x10xbf16>, vector<10x512xbf16>, vector<64x512xf32> -> vector<64x512xf32>
    %c0_3 = arith.constant 0 : index
    %c0_4 = arith.constant 0 : index
    %4 = vector.load %arg5[%c0_3, %c0_4] : memref<4x512xf32, #tpu.memory_space<vmem>>, vector<1x512xf32>
    %5 = vector.broadcast %4 : vector<1x512xf32> to vector<64x512xf32>
    %6 = arith.addf %3, %5 : vector<64x512xf32>
    %cst_5 = arith.constant 0.000000e+00 : f32
    %7 = vector.broadcast %cst_5 : f32 to vector<64x512xf32>
    %8 = arith.maximumf %6, %7 : vector<64x512xf32>
    %9 = arith.truncf %8 : vector<64x512xf32> to vector<64x512xbf16>
    %c0_6 = arith.constant 0 : index
    %c0_7 = arith.constant 0 : index
    %c0_8 = arith.constant 0 : index
    %10 = vector.load %arg3[%c0_6, %c0_7, %c0_8] : memref<3x512x512xbf16, #tpu.memory_space<vmem>>, vector<1x512x512xbf16>
    %11 = vector.shape_cast %10 : vector<1x512x512xbf16> to vector<512x512xbf16>
    %cst_9 = arith.constant dense<0.000000e+00> : vector<64x512xf32>
    %12 = tpu.matmul %9, %11, %cst_9 {dimension_numbers = #tpu.dot_dimension_numbers<[1], [0], [0], [1], [0, 0, 1, 1], [], []>} : vector<64x512xbf16>, vector<512x512xbf16>, vector<64x512xf32> -> vector<64x512xf32>
    %c1 = arith.constant 1 : index
    %c0_10 = arith.constant 0 : index
    %13 = vector.load %arg5[%c1, %c0_10] : memref<4x512xf32, #tpu.memory_space<vmem>>, vector<1x512xf32>
    %14 = vector.broadcast %13 : vector<1x512xf32> to vector<64x512xf32>
    %15 = arith.addf %12, %14 : vector<64x512xf32>
    %cst_11 = arith.constant 0.000000e+00 : f32
    %16 = vector.broadcast %cst_11 : f32 to vector<64x512xf32>
    %17 = arith.maximumf %15, %16 : vector<64x512xf32>
    %18 = arith.truncf %17 : vector<64x512xf32> to vector<64x512xbf16>
    %c1_12 = arith.constant 1 : index
    %c0_13 = arith.constant 0 : index
    %c0_14 = arith.constant 0 : index
    %19 = vector.load %arg3[%c1_12, %c0_13, %c0_14] : memref<3x512x512xbf16, #tpu.memory_space<vmem>>, vector<1x512x512xbf16>
    %20 = vector.shape_cast %19 : vector<1x512x512xbf16> to vector<512x512xbf16>
    %cst_15 = arith.constant dense<0.000000e+00> : vector<64x512xf32>
    %21 = tpu.matmul %18, %20, %cst_15 {dimension_numbers = #tpu.dot_dimension_numbers<[1], [0], [0], [1], [0, 0, 1, 1], [], []>} : vector<64x512xbf16>, vector<512x512xbf16>, vector<64x512xf32> -> vector<64x512xf32>
    %c2 = arith.constant 2 : index
    %c0_16 = arith.constant 0 : index
    %22 = vector.load %arg5[%c2, %c0_16] : memref<4x512xf32, #tpu.memory_space<vmem>>, vector<1x512xf32>
    %23 = vector.broadcast %22 : vector<1x512xf32> to vector<64x512xf32>
    %24 = arith.addf %21, %23 : vector<64x512xf32>
    %cst_17 = arith.constant 0.000000e+00 : f32
    %25 = vector.broadcast %cst_17 : f32 to vector<64x512xf32>
    %26 = arith.maximumf %24, %25 : vector<64x512xf32>
    %27 = arith.truncf %26 : vector<64x512xf32> to vector<64x512xbf16>
    %c2_18 = arith.constant 2 : index
    %c0_19 = arith.constant 0 : index
    %c0_20 = arith.constant 0 : index
    %28 = vector.load %arg3[%c2_18, %c0_19, %c0_20] : memref<3x512x512xbf16, #tpu.memory_space<vmem>>, vector<1x512x512xbf16>
    %29 = vector.shape_cast %28 : vector<1x512x512xbf16> to vector<512x512xbf16>
    %cst_21 = arith.constant dense<0.000000e+00> : vector<64x512xf32>
    %30 = tpu.matmul %27, %29, %cst_21 {dimension_numbers = #tpu.dot_dimension_numbers<[1], [0], [0], [1], [0, 0, 1, 1], [], []>} : vector<64x512xbf16>, vector<512x512xbf16>, vector<64x512xf32> -> vector<64x512xf32>
    %c3 = arith.constant 3 : index
    %c0_22 = arith.constant 0 : index
    %31 = vector.load %arg5[%c3, %c0_22] : memref<4x512xf32, #tpu.memory_space<vmem>>, vector<1x512xf32>
    %32 = vector.broadcast %31 : vector<1x512xf32> to vector<64x512xf32>
    %33 = arith.addf %30, %32 : vector<64x512xf32>
    %cst_23 = arith.constant 0.000000e+00 : f32
    %34 = vector.broadcast %cst_23 : f32 to vector<64x512xf32>
    %35 = arith.maximumf %33, %34 : vector<64x512xf32>
    %36 = arith.truncf %35 : vector<64x512xf32> to vector<64x512xbf16>
    %c0_24 = arith.constant 0 : index
    %c0_25 = arith.constant 0 : index
    %37 = vector.load %arg4[%c0_24, %c0_25] : memref<1x512xbf16, #tpu.memory_space<vmem>>, vector<1x512xbf16>
    %cst_26 = arith.constant dense<0.000000e+00> : vector<1x64xf32>
    %38 = tpu.matmul %37, %36, %cst_26 {dimension_numbers = #tpu.dot_dimension_numbers<[1], [1], [0], [0], [0, 0, 1, 0], [], []>} : vector<1x512xbf16>, vector<64x512xbf16>, vector<1x64xf32> -> vector<1x64xf32>
    %c0_27 = arith.constant 0 : index
    %c0_28 = arith.constant 0 : index
    %39 = memref.load %arg6[%c0_27, %c0_28] : memref<1x1xf32, #tpu.memory_space<smem>>
    %40 = vector.broadcast %39 : f32 to vector<1x64xf32>
    %41 = arith.addf %38, %40 : vector<1x64xf32>
    %cst_29 = arith.constant 0.000000e+00 : f32
    %42 = vector.broadcast %cst_29 : f32 to vector<1x64xf32>
    %43 = arith.subf %42, %41 : vector<1x64xf32>
    %44 = math.exp %43 : vector<1x64xf32>
    %cst_30 = arith.constant 1.000000e+00 : f32
    %45 = vector.broadcast %cst_30 : f32 to vector<1x64xf32>
    %46 = arith.addf %45, %44 : vector<1x64xf32>
    %cst_31 = arith.constant 1.000000e+00 : f32
    %47 = vector.broadcast %cst_31 : f32 to vector<1x64xf32>
    %48 = arith.divf %47, %46 : vector<1x64xf32>
    %c0_32 = arith.constant 0 : index
    %c0_33 = arith.constant 0 : index
    %49 = vector.load %arg7[%c0_32, %c0_33] : memref<1x64xf32, #tpu.memory_space<vmem>>, vector<1x64xf32>
    tpu.vector_store %arg7[%c0_32, %c0_33], %48 {strides = array<i32>} : memref<1x64xf32, #tpu.memory_space<vmem>>, vector<1x64xf32>,
    return
  }
  func.func @transform_0(%arg0: i32) -> (i32, i32) {
    %c0_i32 = arith.constant 0 : i32
    %c0_i32_0 = arith.constant 0 : i32
    return %arg0, %c0_i32 : i32, i32
  }
  func.func @transform_1(%arg0: i32) -> (i32, i32) {
    %c0_i32 = arith.constant 0 : i32
    %c0_i32_0 = arith.constant 0 : i32
    %c0_i32_1 = arith.constant 0 : i32
    return %c0_i32, %c0_i32_0 : i32, i32
  }
  func.func @transform_2(%arg0: i32) -> (i32, i32, i32) {
    %c0_i32 = arith.constant 0 : i32
    %c0_i32_0 = arith.constant 0 : i32
    %c0_i32_1 = arith.constant 0 : i32
    %c0_i32_2 = arith.constant 0 : i32
    return %c0_i32, %c0_i32_0, %c0_i32_1 : i32, i32, i32
  }
  func.func @transform_3(%arg0: i32) -> (i32, i32) {
    %c0_i32 = arith.constant 0 : i32
    %c0_i32_0 = arith.constant 0 : i32
    %c0_i32_1 = arith.constant 0 : i32
    return %c0_i32, %c0_i32_0 : i32, i32
  }
  func.func @transform_4(%arg0: i32) -> (i32, i32) {
    %c0_i32 = arith.constant 0 : i32
    %c0_i32_0 = arith.constant 0 : i32
    %c0_i32_1 = arith.constant 0 : i32
    return %c0_i32, %c0_i32_0 : i32, i32
  }
  func.func @transform_5(%arg0: i32) -> (i32, i32) {
    %c0_i32 = arith.constant 0 : i32
    %c0_i32_0 = arith.constant 0 : i32
    %c0_i32_1 = arith.constant 0 : i32
    return %c0_i32, %c0_i32_0 : i32, i32
  }
  func.func @transform_6(%arg0: i32) -> (i32, i32) {
    %c0_i32 = arith.constant 0 : i32
    %c0_i32_0 = arith.constant 0 : i32
    return %c0_i32, %arg0 : i32, i32
  }
}

module attributes {stable_mosaic.version = 11 : i64} {
  func.func @_disc_kernel(%arg0: i32, %arg1: memref<64x10xf32, #tpu.memory_space<vmem>>, %arg2: memref<10x512xbf16, #tpu.memory_space<vmem>>, %arg3: memref<3x512x512xbf16, #tpu.memory_space<vmem>>, %arg4: memref<1x512xbf16, #tpu.memory_space<vmem>>, %arg5: memref<4x512xf32, #tpu.memory_space<vmem>>, %arg6: memref<1x1xf32, #tpu.memory_space<smem>>, %arg7: memref<1x64xf32, #tpu.memory_space<vmem>>) attributes {dimension_semantics = [#tpu.dimension_semantics<parallel>], iteration_bounds = array<i64: 1>, scalar_prefetch = 0 : i64, scratch_operands = 0 : i64, tpu.core_type = #tpu.core_type<tc>, window_params = [{transform_indices = @transform_0, window_bounds = array<i64: 64, 10>}, {pipeline_mode = #tpu.pipeline_mode<synchronous>, transform_indices = @transform_1, window_bounds = array<i64: 10, 512>}, {pipeline_mode = #tpu.pipeline_mode<synchronous>, transform_indices = @transform_2, window_bounds = array<i64: 3, 512, 512>}, {pipeline_mode = #tpu.pipeline_mode<synchronous>, transform_indices = @transform_3, window_bounds = array<i64: 1, 512>}, {pipeline_mode = #tpu.pipeline_mode<synchronous>, transform_indices = @transform_4, window_bounds = array<i64: 4, 512>}, {transform_indices = @transform_5, window_bounds = array<i64: 1, 1>}, {transform_indices = @transform_6, window_bounds = array<i64: 1, 64>}]} {
    %c0 = arith.constant 0 : index
    %c0_0 = arith.constant 0 : index
    %0 = vector.load %arg1[%c0, %c0_0] : memref<64x10xf32, #tpu.memory_space<vmem>>, vector<64x10xf32>
    %1 = arith.truncf %0 : vector<64x10xf32> to vector<64x10xbf16>
    %c0_1 = arith.constant 0 : index
    %c0_2 = arith.constant 0 : index
    %2 = vector.load %arg2[%c0_1, %c0_2] : memref<10x512xbf16, #tpu.memory_space<vmem>>, vector<10x512xbf16>
    %cst = arith.constant dense<0.000000e+00> : vector<64x512xf32>
    %3 = tpu.matmul %1, %2, %cst {dimension_numbers = #tpu.dot_dimension_numbers<[1], [0], [0], [1], [0, 0, 1, 1], [], []>} : vector<64x10xbf16>, vector<10x512xbf16>, vector<64x512xf32> -> vector<64x512xf32>
    %c0_3 = arith.constant 0 : index
    %c0_4 = arith.constant 0 : index
    %4 = vector.load %arg5[%c0_3, %c0_4] : memref<4x512xf32, #tpu.memory_space<vmem>>, vector<1x512xf32>
    %5 = vector.broadcast %4 : vector<1x512xf32> to vector<64x512xf32>
    %6 = arith.addf %3, %5 : vector<64x512xf32>
    %cst_5 = arith.constant 0.000000e+00 : f32
    %7 = vector.broadcast %cst_5 : f32 to vector<64x512xf32>
    %8 = arith.maximumf %6, %7 : vector<64x512xf32>
    %9 = arith.truncf %8 : vector<64x512xf32> to vector<64x512xbf16>
    %c0_6 = arith.constant 0 : index
    %c0_7 = arith.constant 0 : index
    %c0_8 = arith.constant 0 : index
    %10 = vector.load %arg3[%c0_6, %c0_7, %c0_8] : memref<3x512x512xbf16, #tpu.memory_space<vmem>>, vector<1x512x512xbf16>
    %11 = vector.shape_cast %10 : vector<1x512x512xbf16> to vector<512x512xbf16>
    %cst_9 = arith.constant dense<0.000000e+00> : vector<64x512xf32>
    %12 = tpu.matmul %9, %11, %cst_9 {dimension_numbers = #tpu.dot_dimension_numbers<[1], [0], [0], [1], [0, 0, 1, 1], [], []>} : vector<64x512xbf16>, vector<512x512xbf16>, vector<64x512xf32> -> vector<64x512xf32>
    %c1 = arith.constant 1 : index
    %c0_10 = arith.constant 0 : index
    %13 = vector.load %arg5[%c1, %c0_10] : memref<4x512xf32, #tpu.memory_space<vmem>>, vector<1x512xf32>
    %14 = vector.broadcast %13 : vector<1x512xf32> to vector<64x512xf32>
    %15 = arith.addf %12, %14 : vector<64x512xf32>
    %cst_11 = arith.constant 0.000000e+00 : f32
    %16 = vector.broadcast %cst_11 : f32 to vector<64x512xf32>
    %17 = arith.maximumf %15, %16 : vector<64x512xf32>
    %18 = arith.truncf %17 : vector<64x512xf32> to vector<64x512xbf16>
    %c1_12 = arith.constant 1 : index
    %c0_13 = arith.constant 0 : index
    %c0_14 = arith.constant 0 : index
    %19 = vector.load %arg3[%c1_12, %c0_13, %c0_14] : memref<3x512x512xbf16, #tpu.memory_space<vmem>>, vector<1x512x512xbf16>
    %20 = vector.shape_cast %19 : vector<1x512x512xbf16> to vector<512x512xbf16>
    %cst_15 = arith.constant dense<0.000000e+00> : vector<64x512xf32>
    %21 = tpu.matmul %18, %20, %cst_15 {dimension_numbers = #tpu.dot_dimension_numbers<[1], [0], [0], [1], [0, 0, 1, 1], [], []>} : vector<64x512xbf16>, vector<512x512xbf16>, vector<64x512xf32> -> vector<64x512xf32>
    %c2 = arith.constant 2 : index
    %c0_16 = arith.constant 0 : index
    %22 = vector.load %arg5[%c2, %c0_16] : memref<4x512xf32, #tpu.memory_space<vmem>>, vector<1x512xf32>
    %23 = vector.broadcast %22 : vector<1x512xf32> to vector<64x512xf32>
    %24 = arith.addf %21, %23 : vector<64x512xf32>
    %cst_17 = arith.constant 0.000000e+00 : f32
    %25 = vector.broadcast %cst_17 : f32 to vector<64x512xf32>
    %26 = arith.maximumf %24, %25 : vector<64x512xf32>
    %27 = arith.truncf %26 : vector<64x512xf32> to vector<64x512xbf16>
    %c2_18 = arith.constant 2 : index
    %c0_19 = arith.constant 0 : index
    %c0_20 = arith.constant 0 : index
    %28 = vector.load %arg3[%c2_18, %c0_19, %c0_20] : memref<3x512x512xbf16, #tpu.memory_space<vmem>>, vector<1x512x512xbf16>
    %29 = vector.shape_cast %28 : vector<1x512x512xbf16> to vector<512x512xbf16>
    %cst_21 = arith.constant dense<0.000000e+00> : vector<64x512xf32>
    %30 = tpu.matmul %27, %29, %cst_21 {dimension_numbers = #tpu.dot_dimension_numbers<[1], [0], [0], [1], [0, 0, 1, 1], [], []>} : vector<64x512xbf16>, vector<512x512xbf16>, vector<64x512xf32> -> vector<64x512xf32>
    %c3 = arith.constant 3 : index
    %c0_22 = arith.constant 0 : index
    %31 = vector.load %arg5[%c3, %c0_22] : memref<4x512xf32, #tpu.memory_space<vmem>>, vector<1x512xf32>
    %32 = vector.broadcast %31 : vector<1x512xf32> to vector<64x512xf32>
    %33 = arith.addf %30, %32 : vector<64x512xf32>
    %cst_23 = arith.constant 0.000000e+00 : f32
    %34 = vector.broadcast %cst_23 : f32 to vector<64x512xf32>
    %35 = arith.maximumf %33, %34 : vector<64x512xf32>
    %36 = arith.truncf %35 : vector<64x512xf32> to vector<64x512xbf16>
    %c0_24 = arith.constant 0 : index
    %c0_25 = arith.constant 0 : index
    %37 = vector.load %arg4[%c0_24, %c0_25] : memref<1x512xbf16, #tpu.memory_space<vmem>>, vector<1x512xbf16>
    %cst_26 = arith.constant dense<0.000000e+00> : vector<1x64xf32>
    %38 = tpu.matmul %37, %36, %cst_26 {dimension_numbers = #tpu.dot_dimension_numbers<[1], [1], [0], [0], [0, 0, 1, 0], [], []>} : vector<1x512xbf16>, vector<64x512xbf16>, vector<1x64xf32> -> vector<1x64xf32>
    %c0_27 = arith.constant 0 : index
    %c0_28 = arith.constant 0 : index
    %39 = memref.load %arg6[%c0_27, %c0_28] : memref<1x1xf32, #tpu.memory_space<smem>>
    %40 = vector.broadcast %39 : f32 to vector<1x64xf32>
    %41 = arith.addf %38, %40 : vector<1x64xf32>
    %cst_29 = arith.constant 0.000000e+00 : f32
    %42 = vector.broadcast %cst_29 : f32 to vector<1x64xf32>
    %43 = arith.subf %42, %41 : vector<1x64xf32>
    %44 = math.exp %43 : vector<1x64xf32>
    %cst_30 = arith.constant 1.000000e+00 : f32
    %45 = vector.broadcast %cst_30 : f32 to vector<1x64xf32>
    %46 = arith.addf %45, %44 : vector<1x64xf32>
    %cst_31 = arith.constant 1.000000e+00 : f32
    %47 = vector.broadcast %cst_31 : f32 to vector<1x64xf32>
    %48 = arith.divf %47, %46 : vector<1x64xf32>
    %c0_32 = arith.constant 0 : index
    %c0_33 = arith.constant 0 : index
    %49 = vector.load %arg7[%c0_32, %c0_33] : memref<1x64xf32, #tpu.memory_space<vmem>>, vector<1x64xf32>
    tpu.vector_store %arg7[%c0_32, %c0_33], %48 {strides = array<i32>} : memref<1x64xf32, #tpu.memory_space<vmem>>, vector<1x64xf32>,
    return
  }
  func.func @transform_0(%arg0: i32) -> (i32, i32) {
    %c0_i32 = arith.constant 0 : i32
    %c0_i32_0 = arith.constant 0 : i32
    return %arg0, %c0_i32 : i32, i32
  }
  func.func @transform_1(%arg0: i32) -> (i32, i32) {
    %c0_i32 = arith.constant 0 : i32
    %c0_i32_0 = arith.constant 0 : i32
    %c0_i32_1 = arith.constant 0 : i32
    return %c0_i32, %c0_i32_0 : i32, i32
  }
  func.func @transform_2(%arg0: i32) -> (i32, i32, i32) {
    %c0_i32 = arith.constant 0 : i32
    %c0_i32_0 = arith.constant 0 : i32
    %c0_i32_1 = arith.constant 0 : i32
    %c0_i32_2 = arith.constant 0 : i32
    return %c0_i32, %c0_i32_0, %c0_i32_1 : i32, i32, i32
  }
  func.func @transform_3(%arg0: i32) -> (i32, i32) {
    %c0_i32 = arith.constant 0 : i32
    %c0_i32_0 = arith.constant 0 : i32
    %c0_i32_1 = arith.constant 0 : i32
    return %c0_i32, %c0_i32_0 : i32, i32
  }
  func.func @transform_4(%arg0: i32) -> (i32, i32) {
    %c0_i32 = arith.constant 0 : i32
    %c0_i32_0 = arith.constant 0 : i32
    %c0_i32_1 = arith.constant 0 : i32
    return %c0_i32, %c0_i32_0 : i32, i32
  }
  func.func @transform_5(%arg0: i32) -> (i32, i32) {
    %c0_i32 = arith.constant 0 : i32
    %c0_i32_0 = arith.constant 0 : i32
    %c0_i32_1 = arith.constant 0 : i32
    return %c0_i32, %c0_i32_0 : i32, i32
  }
  func.func @transform_6(%arg0: i32) -> (i32, i32) {
    %c0_i32 = arith.constant 0 : i32
    %c0_i32_0 = arith.constant 0 : i32
    return %c0_i32, %arg0 : i32, i32
  }
}

</mosaic_0001>

<llo_original>
// kernel: tpu_custom_call.1
$region0: #{tpu_custom_call.1}
  #allocation0 [shape = 'u32[]', space=smem, size = 0x4, offset = 0x4, fixed_abs, tag = 'smem constant byte address 0x4 - core index']
  #allocation1 [shape = 'u32[144,128]{1,0:T(1,128)}', space=vmem, size = 0x12000, scoped, tag = 'internal scratch']
  #allocation2 [shape = 'f32[1,1]{1,0:T(1,128)S(6)}', space=smem, size = 0x200, scoped, tag = 'scoped memory for tpu_custom_call.1']
  %s0 = inlined_call_operand.vmem [shape: f32[64,10], index: 0, kind: input, shape index: {}]
  %s1 = inlined_call_operand.hbm [shape: bf16[10,512], index: 1, kind: input, shape index: {}]
  %s2 = inlined_call_operand.hbm [shape: bf16[3,512,512], index: 2, kind: input, shape index: {}]
  %s3 = inlined_call_operand.hbm [shape: bf16[1,512], index: 3, kind: input, shape index: {}]
  %s4 = inlined_call_operand.hbm [shape: f32[4,512], index: 4, kind: input, shape index: {}]
  %s5 = inlined_call_operand.<no memory space> [shape: f32[1,1], index: 5, kind: input, shape index: {}]
  %s6 = inlined_call_operand.hbm [shape: f32[1,64], index: 6, kind: output, shape index: {}]
  %s7 = sld [smem:[#allocation0]]
  $region50: #{tpu_custom_call.1} parent=0
    _
  %s9 = ssub.s32 1, %s7
  %s10 = scalar_select 0, %s9, %s7
  %11 = sst [smem:[#allocation2]] %s5
  $region1: #{tpu_custom_call.1} parent=0
    #allocation3 [shape = 'u8[16384]{0}', space=vmem, size = 0x4000, scoped, tag = 'input window, operand 1, single buffered']
    #allocation4 [shape = 's32[1]{0}', space=sflag, size = 0x4, scoped, tag = 'scoped memory for tpu_custom_call.1']
    #allocation5 [shape = 's32[1]{0}', space=sflag, size = 0x4, scoped, tag = 'scoped memory for tpu_custom_call.1']
    #allocation6 [shape = 'u8[1572864]{0}', space=vmem, size = 0x180000, scoped, tag = 'input window, operand 2, single buffered']
    #allocation7 [shape = 's32[1]{0}', space=sflag, size = 0x4, scoped, tag = 'scoped memory for tpu_custom_call.1']
    #allocation8 [shape = 'u8[2048]{0}', space=vmem, size = 0x800, scoped, tag = 'input window, operand 3, single buffered']
    #allocation9 [shape = 'u8[8192]{0}', space=vmem, size = 0x2000, scoped, tag = 'input window, operand 4, single buffered']
    #allocation10 [shape = 's32[1]{0}', space=sflag, size = 0x4, scoped, tag = 'scoped memory for tpu_custom_call.1']
    #allocation11 [shape = 'u8[512]{0}', space=vmem, size = 0x400, scoped, tag = 'output window, operand 0, single buffered']
    %12 = vsyncpa [#allocation4], 0
    %13 = vsyncpa [#allocation7], 0
    %14 = vsyncpa [#allocation10], 0
    %15 = vsyncpa [#allocation5], 0
    // Predicated region
    $region2: #{tpu_custom_call.1} parent=1 // pred_check
      _
    $region3: #{tpu_custom_call.1} parent=1 // pred_check_branch
      %17 = sbr.rel (0) target = $region5
    $region4: #{tpu_custom_call.1} parent=1 // pred_region
      _
    $region5: #{tpu_custom_call.1} parent=1 // pred_fallthru
      _
    // Predicated region
    $region6: #{tpu_custom_call.1} parent=1 // pred_check
      _
    $region7: #{tpu_custom_call.1} parent=1 // pred_check_branch
      %19 = sbr.rel (0) target = $region9
    $region8: #{tpu_custom_call.1} parent=1 // pred_region
      %s21 = ssub.s32 512, 512
      %22 = vsyncadd [#allocation4], %s21
      %s23 = sshll.u32 [#allocation3], 4
      %s24 = int_to_ptr.vmem [resolvable:$true] %s23
      %29 = dma.hbm_to_vmem [thread:$0]  %s1, 512, %s24, [#allocation4], 256, 256, 16
    $region9: #{tpu_custom_call.1} parent=1 // pred_fallthru
      _
    // Predicated region
    $region10: #{tpu_custom_call.1} parent=1 // pred_check
      _
    $region11: #{tpu_custom_call.1} parent=1 // pred_check_branch
      %31 = sbr.rel (0) target = $region13
    $region12: #{tpu_custom_call.1} parent=1 // pred_region
      %s33 = ssub.s32 49152, 49152
      %34 = vsyncadd [#allocation7], %s33
      %s35 = sshll.u32 [#allocation6], 4
      %s36 = int_to_ptr.vmem [resolvable:$true] %s35
      %41 = dma.hbm_to_vmem [thread:$0]  %s2, 49152, %s36, [#allocation7], 256, 256, 16
    $region13: #{tpu_custom_call.1} parent=1 // pred_fallthru
      _
    // Predicated region
    $region14: #{tpu_custom_call.1} parent=1 // pred_check
      _
    $region15: #{tpu_custom_call.1} parent=1 // pred_check_branch
      %43 = sbr.rel (0) target = $region17
    $region16: #{tpu_custom_call.1} parent=1 // pred_region
      %s45 = ssub.s32 64, 64
      %46 = vsyncadd [#allocation7], %s45
      %s48 = sshll.u32 [#allocation8], 4
      %s49 = int_to_ptr.vmem [resolvable:$true] %s48
      %51 = dma.hbm_to_vmem [thread:$0]  %s3, 64, %s49, [#allocation7]
    $region17: #{tpu_custom_call.1} parent=1 // pred_fallthru
      _
    // Predicated region
    $region18: #{tpu_custom_call.1} parent=1 // pred_check
      _
    $region19: #{tpu_custom_call.1} parent=1 // pred_check_branch
      %53 = sbr.rel (0) target = $region21
    $region20: #{tpu_custom_call.1} parent=1 // pred_region
      %s55 = ssub.s32 256, 256
      %56 = vsyncadd [#allocation10], %s55
      %s58 = sshll.u32 [#allocation9], 4
      %s59 = int_to_ptr.vmem [resolvable:$true] %s58
      %61 = dma.hbm_to_vmem [thread:$0]  %s4, 256, %s59, [#allocation10]
    $region21: #{tpu_custom_call.1} parent=1 // pred_fallthru
      _
    // Predicated region
    $region22: #{tpu_custom_call.1} parent=1 // pred_check
      _
    $region23: #{tpu_custom_call.1} parent=1 // pred_check_branch
      %63 = sbr.rel (0) target = $region25
    $region24: #{tpu_custom_call.1} parent=1 // pred_region
      _
    $region25: #{tpu_custom_call.1} parent=1 // pred_fallthru
      _
    // Predicated region
    $region26: #{tpu_custom_call.1} parent=1 // pred_check
      _
    $region27: #{tpu_custom_call.1} parent=1 // pred_check_branch
      %65 = sbr.rel (0) target = $region29
    $region28: #{tpu_custom_call.1} parent=1 // pred_region
      %66 = dma.done [#allocation4], 512
    $region29: #{tpu_custom_call.1} parent=1 // pred_fallthru
      _
    // Predicated region
    $region30: #{tpu_custom_call.1} parent=1 // pred_check
      _
    $region31: #{tpu_custom_call.1} parent=1 // pred_check_branch
      %68 = sbr.rel (0) target = $region33
    $region32: #{tpu_custom_call.1} parent=1 // pred_region
      %69 = dma.done [#allocation7], 49152
    $region33: #{tpu_custom_call.1} parent=1 // pred_fallthru
      _
    // Predicated region
    $region34: #{tpu_custom_call.1} parent=1 // pred_check
      _
    $region35: #{tpu_custom_call.1} parent=1 // pred_check_branch
      %71 = sbr.rel (0) target = $region37
    $region36: #{tpu_custom_call.1} parent=1 // pred_region
      %72 = dma.done [#allocation7], 64
    $region37: #{tpu_custom_call.1} parent=1 // pred_fallthru
      _
    // Predicated region
    $region38: #{tpu_custom_call.1} parent=1 // pred_check
      _
    $region39: #{tpu_custom_call.1} parent=1 // pred_check_branch
      %74 = sbr.rel (0) target = $region41
    $region40: #{tpu_custom_call.1} parent=1 // pred_region
      %75 = dma.done [#allocation10], 256
    $region41: #{tpu_custom_call.1} parent=1 // pred_fallthru
      _
    %v77 = vld [vmem:[%s0] sm:$0xff]
    %v78 = vld [vmem:[%s0 + $0x8] sm:$0xff]
    %v79 = vld [vmem:[%s0 + $0x10] sm:$0xff]
    %v80 = vld [vmem:[%s0 + $0x18] sm:$0xff]
    %v81 = vld [vmem:[%s0 + $0x20] sm:$0xff]
    %v82 = vld [vmem:[%s0 + $0x28] sm:$0xff]
    %v83 = vld [vmem:[%s0 + $0x30] sm:$0xff]
    %v84 = vld [vmem:[%s0 + $0x38] sm:$0xff]
    %v85 = vpack.c.bf16 %v78, %v77
    %v86 = vpack.c.bf16 %v80, %v79
    %v87 = vpack.c.bf16 %v82, %v81
    %v88 = vpack.c.bf16 %v84, %v83
    %v89 = vld [vmem:[#allocation3] sm:$0xff]
    %v90 = vld [vmem:[#allocation3 + $0x8] sm:$0xff]
    %v91 = vld [vmem:[#allocation3 + $0x10] sm:$0x11]
    %v92 = vld [vmem:[#allocation3 + $0x18] sm:$0x11]
    %v93 = vld [vmem:[#allocation9] ss:$4 sm:$0xf]
    %v95 = vlaneseq
    %v96 = vshrl.u32 %v95, 7
    %v97 = vsub.s32 0, %v96
    %v98 = vrot.slane %v93, %v97
    %v99 = vlaneseq
    %v100 = vshrl.u32 %v99, 7
    %v101 = vsub.s32 1, %v100
    %v102 = vrot.slane %v93, %v101
    %v103 = vlaneseq
    %v104 = vshrl.u32 %v103, 7
    %v105 = vsub.s32 2, %v104
    %v106 = vrot.slane %v93, %v105
    %v107 = vlaneseq
    %v108 = vshrl.u32 %v107, 7
    %v109 = vsub.s32 3, %v108
    %v110 = vrot.slane %v93, %v109
    %v119 = vunpack.c.l.b16 %v89
    %v120 = vunpack.c.h.b16 %v89
    %v121 = vunpack.c.l.b16 %v90
    %v122 = vunpack.c.h.b16 %v90
    %v123 = vunpack.c.l.b16 %v91
    %v124 = vunpack.c.h.b16 %v91
    %v125 = vunpack.c.l.b16 %v92
    %v126 = vunpack.c.h.b16 %v92
    %v127 = vpack.c.b16 %v123, %v119
    %v128 = vpack.c.b16 %v124, %v120
    %v129 = vpack.c.b16 %v125, %v121
    %v130 = vpack.c.b16 %v126, %v122
    %vm131 = vcmask 80896
    %v133 = vsel %vm131, %v85, 0
    %v136 = vsel %vm131, %v86, 0
    %v139 = vsel %vm131, %v87, 0
    %v142 = vsel %vm131, %v88, 0
    %vm144 = vcmask 1044480
    %v146 = vsel %vm144, %v127, 0
    %v149 = vsel %vm144, %v128, 0
    %v152 = vsel %vm144, %v129, 0
    %v155 = vsel %vm144, %v130, 0
    %157 = vmatprep.subr.bf16.mxu0 0
    %158 = vmatpush1.bf16.msra.mxu0 0
    %159 = vmatprep.subr.bf16.mxu0 0
    %160 = vmatpush1.bf16.msra.mxu0 0
    %161 = vmatprep.subr.bf16.mxu0 0
    %162 = vmatpush1.bf16.msra.mxu0 0
    %163 = vmatprep.subr.bf16.mxu0 0
    %164 = vmatpush1.bf16.msra.mxu0 0
    %165 = vmatprep.subr.bf16.mxu0 0
    %166 = vmatpush1.bf16.msra.mxu0 0
    %167 = vmatprep.subr.bf16.mxu0 0
    %168 = vmatpush1.bf16.msra.mxu0 0
    %169 = vmatprep.subr.bf16.mxu0 0
    %170 = vmatpush1.bf16.msra.mxu0 0
    %171 = vmatprep.subr.bf16.mxu0 %v149
    %172 = vmatpush1.bf16.msra.mxu0 %v146
    %173 = vmatprep.subr.bf16.mxu0 0
    %174 = vmatpush2.bf16.msra.mxu0 0
    %175 = vmatprep.subr.bf16.mxu0 0
    %176 = vmatpush2.bf16.msra.mxu0 0
    %177 = vmatprep.subr.bf16.mxu0 0
    %178 = vmatpush2.bf16.msra.mxu0 0
    %179 = vmatprep.subr.bf16.mxu0 0
    %180 = vmatpush2.bf16.msra.mxu0 0
    %181 = vmatprep.subr.bf16.mxu0 0
    %182 = vmatpush2.bf16.msra.mxu0 0
    %183 = vmatprep.subr.bf16.mxu0 0
    %184 = vmatpush2.bf16.msra.mxu0 0
    %185 = vmatprep.subr.bf16.mxu0 0
    %186 = vmatpush2.bf16.msra.mxu0 0
    %187 = vmatprep.subr.bf16.mxu0 0
    %188 = vmatpush2.bf16.msra.mxu0 0
    %189 = vmatprep.mubr.bf16.mxu0 0
    %190 = vmatmul.mubr.bf16.gmra.mxu0 %v133
    %v191 = vpop.f32.mrf.mxu0
    %v192 = vadd.f32 %v98, %v191
    %v193 = vpop.f32.mrf.mxu0
    %v194 = vadd.f32 %v102, %v193
    %v195 = vpop.f32.mrf.mxu0
    %v196 = vadd.f32 %v98, %v195
    %v197 = vpop.f32.mrf.mxu0
    %v198 = vadd.f32 %v102, %v197
    %199 = vmatprep.mubr.bf16.mxu0 0
    %200 = vmatmul.mubr.bf16.gmra.mxu0 %v136
    %v201 = vpop.f32.mrf.mxu0
    %v202 = vadd.f32 %v98, %v201
    %v203 = vpop.f32.mrf.mxu0
    %v204 = vadd.f32 %v102, %v203
    %v205 = vpop.f32.mrf.mxu0
    %v206 = vadd.f32 %v98, %v205
    %v207 = vpop.f32.mrf.mxu0
    %v208 = vadd.f32 %v102, %v207
    %209 = vmatprep.mubr.bf16.mxu0 0
    %210 = vmatmul.mubr.bf16.gmra.mxu0 %v139
    %v211 = vpop.f32.mrf.mxu0
    %v212 = vadd.f32 %v98, %v211
    %v213 = vpop.f32.mrf.mxu0
    %v214 = vadd.f32 %v102, %v213
    %v215 = vpop.f32.mrf.mxu0
    %v216 = vadd.f32 %v98, %v215
    %v217 = vpop.f32.mrf.mxu0
    %v218 = vadd.f32 %v102, %v217
    %219 = vmatprep.mubr.bf16.mxu0 0
    %220 = vmatmul.mubr.bf16.gmra.mxu0 %v142
    %v221 = vpop.f32.mrf.mxu0
    %v222 = vadd.f32 %v98, %v221
    %v223 = vpop.f32.mrf.mxu0
    %v224 = vadd.f32 %v102, %v223
    %v225 = vpop.f32.mrf.mxu0
    %v226 = vadd.f32 %v98, %v225
    %v227 = vpop.f32.mrf.mxu0
    %v228 = vadd.f32 %v102, %v227
    %229 = vdwg.mxu0
    %230 = vmatprep.subr.bf16.mxu0 0
    %231 = vmatpush1.bf16.msra.mxu0 0
    %232 = vmatprep.subr.bf16.mxu0 0
    %233 = vmatpush1.bf16.msra.mxu0 0
    %234 = vmatprep.subr.bf16.mxu0 0
    %235 = vmatpush1.bf16.msra.mxu0 0
    %236 = vmatprep.subr.bf16.mxu0 0
    %237 = vmatpush1.bf16.msra.mxu0 0
    %238 = vmatprep.subr.bf16.mxu0 0
    %239 = vmatpush1.bf16.msra.mxu0 0
    %240 = vmatprep.subr.bf16.mxu0 0
    %241 = vmatpush1.bf16.msra.mxu0 0
    %242 = vmatprep.subr.bf16.mxu0 0
    %243 = vmatpush1.bf16.msra.mxu0 0
    %244 = vmatprep.subr.bf16.mxu0 %v155
    %245 = vmatpush1.bf16.msra.mxu0 %v152
    %246 = vmatprep.subr.bf16.mxu0 0
    %247 = vmatpush2.bf16.msra.mxu0 0
    %248 = vmatprep.subr.bf16.mxu0 0
    %249 = vmatpush2.bf16.msra.mxu0 0
    %250 = vmatprep.subr.bf16.mxu0 0
    %251 = vmatpush2.bf16.msra.mxu0 0
    %252 = vmatprep.subr.bf16.mxu0 0
    %253 = vmatpush2.bf16.msra.mxu0 0
    %254 = vmatprep.subr.bf16.mxu0 0
    %255 = vmatpush2.bf16.msra.mxu0 0
    %256 = vmatprep.subr.bf16.mxu0 0
    %257 = vmatpush2.bf16.msra.mxu0 0
    %258 = vmatprep.subr.bf16.mxu0 0
    %259 = vmatpush2.bf16.msra.mxu0 0
    %260 = vmatprep.subr.bf16.mxu0 0
    %261 = vmatpush2.bf16.msra.mxu0 0
    %262 = vmatprep.mubr.bf16.mxu0 0
    %263 = vmatmul.mubr.bf16.gmra.mxu0 %v133
    %v264 = vpop.f32.mrf.mxu0
    %v265 = vadd.f32 %v106, %v264
    %v266 = vpop.f32.mrf.mxu0
    %v267 = vadd.f32 %v110, %v266
    %v268 = vpop.f32.mrf.mxu0
    %v269 = vadd.f32 %v106, %v268
    %v270 = vpop.f32.mrf.mxu0
    %v271 = vadd.f32 %v110, %v270
    %272 = vmatprep.mubr.bf16.mxu0 0
    %273 = vmatmul.mubr.bf16.gmra.mxu0 %v136
    %v274 = vpop.f32.mrf.mxu0
    %v275 = vadd.f32 %v106, %v274
    %v276 = vpop.f32.mrf.mxu0
    %v277 = vadd.f32 %v110, %v276
    %v278 = vpop.f32.mrf.mxu0
    %v279 = vadd.f32 %v106, %v278
    %v280 = vpop.f32.mrf.mxu0
    %v281 = vadd.f32 %v110, %v280
    %282 = vmatprep.mubr.bf16.mxu0 0
    %283 = vmatmul.mubr.bf16.gmra.mxu0 %v139
    %v284 = vpop.f32.mrf.mxu0
    %v285 = vadd.f32 %v106, %v284
    %v286 = vpop.f32.mrf.mxu0
    %v287 = vadd.f32 %v110, %v286
    %v288 = vpop.f32.mrf.mxu0
    %v289 = vadd.f32 %v106, %v288
    %v290 = vpop.f32.mrf.mxu0
    %v291 = vadd.f32 %v110, %v290
    %292 = vmatprep.mubr.bf16.mxu0 0
    %293 = vmatmul.mubr.bf16.gmra.mxu0 %v142
    %v294 = vpop.f32.mrf.mxu0
    %v295 = vadd.f32 %v106, %v294
    %v296 = vpop.f32.mrf.mxu0
    %v297 = vadd.f32 %v110, %v296
    %v298 = vpop.f32.mrf.mxu0
    %v299 = vadd.f32 %v106, %v298
    %v300 = vpop.f32.mrf.mxu0
    %v301 = vadd.f32 %v110, %v300
    %302 = vdwg.mxu0
    %v303 = vmax.f32 %v192, 0.0
    %v304 = vmax.f32 %v194, 0.0
    %v305 = vmax.f32 %v265, 0.0
    %v306 = vmax.f32 %v267, 0.0
    %v307 = vmax.f32 %v196, 0.0
    %v308 = vmax.f32 %v198, 0.0
    %v309 = vmax.f32 %v269, 0.0
    %v310 = vmax.f32 %v271, 0.0
    %v311 = vmax.f32 %v202, 0.0
    %v312 = vmax.f32 %v204, 0.0
    %v313 = vmax.f32 %v275, 0.0
    %v314 = vmax.f32 %v277, 0.0
    %v315 = vmax.f32 %v206, 0.0
    %v316 = vmax.f32 %v208, 0.0
    %v317 = vmax.f32 %v279, 0.0
    %v318 = vmax.f32 %v281, 0.0
    %v319 = vmax.f32 %v212, 0.0
    %v320 = vmax.f32 %v214, 0.0
    %v321 = vmax.f32 %v285, 0.0
    %v322 = vmax.f32 %v287, 0.0
    %v323 = vmax.f32 %v216, 0.0
    %v324 = vmax.f32 %v218, 0.0
    %v325 = vmax.f32 %v289, 0.0
    %v326 = vmax.f32 %v291, 0.0
    %v327 = vmax.f32 %v222, 0.0
    %v328 = vmax.f32 %v224, 0.0
    %v329 = vmax.f32 %v295, 0.0
    %v330 = vmax.f32 %v297, 0.0
    %v331 = vmax.f32 %v226, 0.0
    %v332 = vmax.f32 %v228, 0.0
    %v333 = vmax.f32 %v299, 0.0
    %v334 = vmax.f32 %v301, 0.0
    %v335 = vpack.c.bf16 %v307, %v303
    %v336 = vpack.c.bf16 %v308, %v304
    %v337 = vpack.c.bf16 %v309, %v305
    %v338 = vpack.c.bf16 %v310, %v306
    %v339 = vpack.c.bf16 %v315, %v311
    %v340 = vpack.c.bf16 %v316, %v312
    %v341 = vpack.c.bf16 %v317, %v313
    %v342 = vpack.c.bf16 %v318, %v314
    %v343 = vpack.c.bf16 %v323, %v319
    %v344 = vpack.c.bf16 %v324, %v320
    %v345 = vpack.c.bf16 %v325, %v321
    %v346 = vpack.c.bf16 %v326, %v322
    %v347 = vpack.c.bf16 %v331, %v327
    %v348 = vpack.c.bf16 %v332, %v328
    %v349 = vpack.c.bf16 %v333, %v329
    %v350 = vpack.c.bf16 %v334, %v330
    %v351 = vld [vmem:[#allocation6] sm:$0xff]
    %v352 = vld [vmem:[#allocation6 + $0x8] sm:$0xff]
    %v353 = vld [vmem:[#allocation6 + $0x10] sm:$0xff]
    %v354 = vld [vmem:[#allocation6 + $0x18] sm:$0xff]
    %v355 = vld [vmem:[#allocation6 + $0x20] sm:$0xff]
    %v356 = vld [vmem:[#allocation6 + $0x28] sm:$0xff]
    %v357 = vld [vmem:[#allocation6 + $0x30] sm:$0xff]
    %v358 = vld [vmem:[#allocation6 + $0x38] sm:$0xff]
    %v359 = vld [vmem:[#allocation6 + $0x40] sm:$0xff]
    %v360 = vld [vmem:[#allocation6 + $0x48] sm:$0xff]
    %v361 = vld [vmem:[#allocation6 + $0x50] sm:$0xff]
    %v362 = vld [vmem:[#allocation6 + $0x58] sm:$0xff]
    %v363 = vld [vmem:[#allocation6 + $0x60] sm:$0xff]
    %v364 = vld [vmem:[#allocation6 + $0x68] sm:$0xff]
    %v365 = vld [vmem:[#allocation6 + $0x70] sm:$0xff]
    %v366 = vld [vmem:[#allocation6 + $0x78] sm:$0xff]
    %v367 = vld [vmem:[#allocation6 + $0x80] sm:$0xff]
    %v368 = vld [vmem:[#allocation6 + $0x88] sm:$0xff]
    %v369 = vld [vmem:[#allocation6 + $0x90] sm:$0xff]
    %v370 = vld [vmem:[#allocation6 + $0x98] sm:$0xff]
    %v371 = vld [vmem:[#allocation6 + $0xa0] sm:$0xff]
    %v372 = vld [vmem:[#allocation6 + $0xa8] sm:$0xff]
    %v373 = vld [vmem:[#allocation6 + $0xb0] sm:$0xff]
    %v374 = vld [vmem:[#allocation6 + $0xb8] sm:$0xff]
    %v375 = vld [vmem:[#allocation6 + $0xc0] sm:$0xff]
    %v376 = vld [vmem:[#allocation6 + $0xc8] sm:$0xff]
    %v377 = vld [vmem:[#allocation6 + $0xd0] sm:$0xff]
    %v378 = vld [vmem:[#allocation6 + $0xd8] sm:$0xff]
    %v379 = vld [vmem:[#allocation6 + $0xe0] sm:$0xff]
    %v380 = vld [vmem:[#allocation6 + $0xe8] sm:$0xff]
    %v381 = vld [vmem:[#allocation6 + $0xf0] sm:$0xff]
    %v382 = vld [vmem:[#allocation6 + $0xf8] sm:$0xff]
    %v383 = vld [vmem:[#allocation6 + $0x100] sm:$0xff]
    %v384 = vld [vmem:[#allocation6 + $0x108] sm:$0xff]
    %v385 = vld [vmem:[#allocation6 + $0x110] sm:$0xff]
    %v386 = vld [vmem:[#allocation6 + $0x118] sm:$0xff]
    %v387 = vld [vmem:[#allocation6 + $0x120] sm:$0xff]
    %v388 = vld [vmem:[#allocation6 + $0x128] sm:$0xff]
    %v389 = vld [vmem:[#allocation6 + $0x130] sm:$0xff]
    %v390 = vld [vmem:[#allocation6 + $0x138] sm:$0xff]
    %v391 = vld [vmem:[#allocation6 + $0x140] sm:$0xff]
    %v392 = vld [vmem:[#allocation6 + $0x148] sm:$0xff]
    %v393 = vld [vmem:[#allocation6 + $0x150] sm:$0xff]
    %v394 = vld [vmem:[#allocation6 + $0x158] sm:$0xff]
    %v395 = vld [vmem:[#allocation6 + $0x160] sm:$0xff]
    %v396 = vld [vmem:[#allocation6 + $0x168] sm:$0xff]
    %v397 = vld [vmem:[#allocation6 + $0x170] sm:$0xff]
    %v398 = vld [vmem:[#allocation6 + $0x178] sm:$0xff]
    %v399 = vld [vmem:[#allocation6 + $0x180] sm:$0xff]
    %v400 = vld [vmem:[#allocation6 + $0x188] sm:$0xff]
    %v401 = vld [vmem:[#allocation6 + $0x190] sm:$0xff]
    %v402 = vld [vmem:[#allocation6 + $0x198] sm:$0xff]
    %v403 = vld [vmem:[#allocation6 + $0x1a0] sm:$0xff]
    %v404 = vld [vmem:[#allocation6 + $0x1a8] sm:$0xff]
    %v405 = vld [vmem:[#allocation6 + $0x1b0] sm:$0xff]
    %v406 = vld [vmem:[#allocation6 + $0x1b8] sm:$0xff]
    %v407 = vld [vmem:[#allocation6 + $0x1c0] sm:$0xff]
    %v408 = vld [vmem:[#allocation6 + $0x1c8] sm:$0xff]
    %v409 = vld [vmem:[#allocation6 + $0x1d0] sm:$0xff]
    %v410 = vld [vmem:[#allocation6 + $0x1d8] sm:$0xff]
    %v411 = vld [vmem:[#allocation6 + $0x1e0] sm:$0xff]
    %v412 = vld [vmem:[#allocation6 + $0x1e8] sm:$0xff]
    %v413 = vld [vmem:[#allocation6 + $0x1f0] sm:$0xff]
    %v414 = vld [vmem:[#allocation6 + $0x1f8] sm:$0xff]
    %v415 = vld [vmem:[#allocation6 + $0x200] sm:$0xff]
    %v416 = vld [vmem:[#allocation6 + $0x208] sm:$0xff]
    %v417 = vld [vmem:[#allocation6 + $0x210] sm:$0xff]
    %v418 = vld [vmem:[#allocation6 + $0x218] sm:$0xff]
    %v419 = vld [vmem:[#allocation6 + $0x220] sm:$0xff]
    %v420 = vld [vmem:[#allocation6 + $0x228] sm:$0xff]
    %v421 = vld [vmem:[#allocation6 + $0x230] sm:$0xff]
    %v422 = vld [vmem:[#allocation6 + $0x238] sm:$0xff]
    %v423 = vld [vmem:[#allocation6 + $0x240] sm:$0xff]
    %v424 = vld [vmem:[#allocation6 + $0x248] sm:$0xff]
    %v425 = vld [vmem:[#allocation6 + $0x250] sm:$0xff]
    %v426 = vld [vmem:[#allocation6 + $0x258] sm:$0xff]
    %v427 = vld [vmem:[#allocation6 + $0x260] sm:$0xff]
    %v428 = vld [vmem:[#allocation6 + $0x268] sm:$0xff]
    %v429 = vld [vmem:[#allocation6 + $0x270] sm:$0xff]
    %v430 = vld [vmem:[#allocation6 + $0x278] sm:$0xff]
    %v431 = vld [vmem:[#allocation6 + $0x280] sm:$0xff]
    %v432 = vld [vmem:[#allocation6 + $0x288] sm:$0xff]
    %v433 = vld [vmem:[#allocation6 + $0x290] sm:$0xff]
    %v434 = vld [vmem:[#allocation6 + $0x298] sm:$0xff]
    %v435 = vld [vmem:[#allocation6 + $0x2a0] sm:$0xff]
    %v436 = vld [vmem:[#allocation6 + $0x2a8] sm:$0xff]
    %v437 = vld [vmem:[#allocation6 + $0x2b0] sm:$0xff]
    %v438 = vld [vmem:[#allocation6 + $0x2b8] sm:$0xff]
    %v439 = vld [vmem:[#allocation6 + $0x2c0] sm:$0xff]
    %v440 = vld [vmem:[#allocation6 + $0x2c8] sm:$0xff]
    %v441 = vld [vmem:[#allocation6 + $0x2d0] sm:$0xff]
    %v442 = vld [vmem:[#allocation6 + $0x2d8] sm:$0xff]
    %v443 = vld [vmem:[#allocation6 + $0x2e0] sm:$0xff]
    %v444 = vld [vmem:[#allocation6 + $0x2e8] sm:$0xff]
    %v445 = vld [vmem:[#allocation6 + $0x2f0] sm:$0xff]
    %v446 = vld [vmem:[#allocation6 + $0x2f8] sm:$0xff]
    %v447 = vld [vmem:[#allocation6 + $0x300] sm:$0xff]
    %v448 = vld [vmem:[#allocation6 + $0x308] sm:$0xff]
    %v449 = vld [vmem:[#allocation6 + $0x310] sm:$0xff]
    %v450 = vld [vmem:[#allocation6 + $0x318] sm:$0xff]
    %v451 = vld [vmem:[#allocation6 + $0x320] sm:$0xff]
    %v452 = vld [vmem:[#allocation6 + $0x328] sm:$0xff]
    %v453 = vld [vmem:[#allocation6 + $0x330] sm:$0xff]
    %v454 = vld [vmem:[#allocation6 + $0x338] sm:$0xff]
    %v455 = vld [vmem:[#allocation6 + $0x340] sm:$0xff]
    %v456 = vld [vmem:[#allocation6 + $0x348] sm:$0xff]
    %v457 = vld [vmem:[#allocation6 + $0x350] sm:$0xff]
    %v458 = vld [vmem:[#allocation6 + $0x358] sm:$0xff]
    %v459 = vld [vmem:[#allocation6 + $0x360] sm:$0xff]
    %v460 = vld [vmem:[#allocation6 + $0x368] sm:$0xff]
    %v461 = vld [vmem:[#allocation6 + $0x370] sm:$0xff]
    %v462 = vld [vmem:[#allocation6 + $0x378] sm:$0xff]
    %v463 = vld [vmem:[#allocation6 + $0x380] sm:$0xff]
    %v464 = vld [vmem:[#allocation6 + $0x388] sm:$0xff]
    %v465 = vld [vmem:[#allocation6 + $0x390] sm:$0xff]
    %v466 = vld [vmem:[#allocation6 + $0x398] sm:$0xff]
    %v467 = vld [vmem:[#allocation6 + $0x3a0] sm:$0xff]
    %v468 = vld [vmem:[#allocation6 + $0x3a8] sm:$0xff]
    %v469 = vld [vmem:[#allocation6 + $0x3b0] sm:$0xff]
    %v470 = vld [vmem:[#allocation6 + $0x3b8] sm:$0xff]
    %v471 = vld [vmem:[#allocation6 + $0x3c0] sm:$0xff]
    %v472 = vld [vmem:[#allocation6 + $0x3c8] sm:$0xff]
    %v473 = vld [vmem:[#allocation6 + $0x3d0] sm:$0xff]
    %v474 = vld [vmem:[#allocation6 + $0x3d8] sm:$0xff]
    %v475 = vld [vmem:[#allocation6 + $0x3e0] sm:$0xff]
    %v476 = vld [vmem:[#allocation6 + $0x3e8] sm:$0xff]
    %v477 = vld [vmem:[#allocation6 + $0x3f0] sm:$0xff]
    %v478 = vld [vmem:[#allocation6 + $0x3f8] sm:$0xff]
    %s479 = scalar_lea.vmem [#allocation9], 1
    %v480 = vld [vmem:[%s479] ss:$4 sm:$0xf]
    %v482 = vlaneseq
    %v483 = vshrl.u32 %v482, 7
    %v484 = vsub.s32 0, %v483
    %v485 = vrot.slane %v480, %v484
    %v486 = vlaneseq
    %v487 = vshrl.u32 %v486, 7
    %v488 = vsub.s32 1, %v487
    %v489 = vrot.slane %v480, %v488
    %v490 = vlaneseq
    %v491 = vshrl.u32 %v490, 7
    %v492 = vsub.s32 2, %v491
    %v493 = vrot.slane %v480, %v492
    %v494 = vlaneseq
    %v495 = vshrl.u32 %v494, 7
    %v496 = vsub.s32 3, %v495
    %v497 = vrot.slane %v480, %v496
    %v630 = vunpack.c.l.b16 %v351
    %v631 = vunpack.c.h.b16 %v351
    %v632 = vunpack.c.l.b16 %v352
    %v633 = vunpack.c.h.b16 %v352
    %v634 = vunpack.c.l.b16 %v353
    %v635 = vunpack.c.h.b16 %v353
    %v636 = vunpack.c.l.b16 %v354
    %v637 = vunpack.c.h.b16 %v354
    %v638 = vunpack.c.l.b16 %v355
    %v639 = vunpack.c.h.b16 %v355
    %v640 = vunpack.c.l.b16 %v356
    %v641 = vunpack.c.h.b16 %v356
    %v642 = vunpack.c.l.b16 %v357
    %v643 = vunpack.c.h.b16 %v357
    %v644 = vunpack.c.l.b16 %v358
    %v645 = vunpack.c.h.b16 %v358
    %v646 = vunpack.c.l.b16 %v359
    %v647 = vunpack.c.h.b16 %v359
    %v648 = vunpack.c.l.b16 %v360
    %v649 = vunpack.c.h.b16 %v360
    %v650 = vunpack.c.l.b16 %v361
    %v651 = vunpack.c.h.b16 %v361
    %v652 = vunpack.c.l.b16 %v362
    %v653 = vunpack.c.h.b16 %v362
    %v654 = vunpack.c.l.b16 %v363
    %v655 = vunpack.c.h.b16 %v363
    %v656 = vunpack.c.l.b16 %v364
    %v657 = vunpack.c.h.b16 %v364
    %v658 = vunpack.c.l.b16 %v365
    %v659 = vunpack.c.h.b16 %v365
    %v660 = vunpack.c.l.b16 %v366
    %v661 = vunpack.c.h.b16 %v366
    %v662 = vunpack.c.l.b16 %v367
    %v663 = vunpack.c.h.b16 %v367
    %v664 = vunpack.c.l.b16 %v368
    %v665 = vunpack.c.h.b16 %v368
    %v666 = vunpack.c.l.b16 %v369
    %v667 = vunpack.c.h.b16 %v369
    %v668 = vunpack.c.l.b16 %v370
    %v669 = vunpack.c.h.b16 %v370
    %v670 = vunpack.c.l.b16 %v371
    %v671 = vunpack.c.h.b16 %v371
    %v672 = vunpack.c.l.b16 %v372
    %v673 = vunpack.c.h.b16 %v372
    %v674 = vunpack.c.l.b16 %v373
    %v675 = vunpack.c.h.b16 %v373
    %v676 = vunpack.c.l.b16 %v374
    %v677 = vunpack.c.h.b16 %v374
    %v678 = vunpack.c.l.b16 %v375
    %v679 = vunpack.c.h.b16 %v375
    %v680 = vunpack.c.l.b16 %v376
    %v681 = vunpack.c.h.b16 %v376
    %v682 = vunpack.c.l.b16 %v377
    %v683 = vunpack.c.h.b16 %v377
    %v684 = vunpack.c.l.b16 %v378
    %v685 = vunpack.c.h.b16 %v378
    %v686 = vunpack.c.l.b16 %v379
    %v687 = vunpack.c.h.b16 %v379
    %v688 = vunpack.c.l.b16 %v380
    %v689 = vunpack.c.h.b16 %v380
    %v690 = vunpack.c.l.b16 %v381
    %v691 = vunpack.c.h.b16 %v381
    %v692 = vunpack.c.l.b16 %v382
    %v693 = vunpack.c.h.b16 %v382
    %v694 = vunpack.c.l.b16 %v383
    %v695 = vunpack.c.h.b16 %v383
    %v696 = vunpack.c.l.b16 %v384
    %v697 = vunpack.c.h.b16 %v384
    %v698 = vunpack.c.l.b16 %v385
    %v699 = vunpack.c.h.b16 %v385
    %v700 = vunpack.c.l.b16 %v386
    %v701 = vunpack.c.h.b16 %v386
    %v702 = vunpack.c.l.b16 %v387
    %v703 = vunpack.c.h.b16 %v387
    %v704 = vunpack.c.l.b16 %v388
    %v705 = vunpack.c.h.b16 %v388
    %v706 = vunpack.c.l.b16 %v389
    %v707 = vunpack.c.h.b16 %v389
    %v708 = vunpack.c.l.b16 %v390
    %v709 = vunpack.c.h.b16 %v390
    %v710 = vunpack.c.l.b16 %v391
    %v711 = vunpack.c.h.b16 %v391
    %v712 = vunpack.c.l.b16 %v392
    %v713 = vunpack.c.h.b16 %v392
    %v714 = vunpack.c.l.b16 %v393
    %v715 = vunpack.c.h.b16 %v393
    %v716 = vunpack.c.l.b16 %v394
    %v717 = vunpack.c.h.b16 %v394
    %v718 = vunpack.c.l.b16 %v395
    %v719 = vunpack.c.h.b16 %v395
    %v720 = vunpack.c.l.b16 %v396
    %v721 = vunpack.c.h.b16 %v396
    %v722 = vunpack.c.l.b16 %v397
    %v723 = vunpack.c.h.b16 %v397
    %v724 = vunpack.c.l.b16 %v398
    %v725 = vunpack.c.h.b16 %v398
    %v726 = vunpack.c.l.b16 %v399
    %v727 = vunpack.c.h.b16 %v399
    %v728 = vunpack.c.l.b16 %v400
    %v729 = vunpack.c.h.b16 %v400
    %v730 = vunpack.c.l.b16 %v401
    %v731 = vunpack.c.h.b16 %v401
    %v732 = vunpack.c.l.b16 %v402
    %v733 = vunpack.c.h.b16 %v402
    %v734 = vunpack.c.l.b16 %v403
    %v735 = vunpack.c.h.b16 %v403
    %v736 = vunpack.c.l.b16 %v404
    %v737 = vunpack.c.h.b16 %v404
    %v738 = vunpack.c.l.b16 %v405
    %v739 = vunpack.c.h.b16 %v405
    %v740 = vunpack.c.l.b16 %v406
    %v741 = vunpack.c.h.b16 %v406
    %v742 = vunpack.c.l.b16 %v407
    %v743 = vunpack.c.h.b16 %v407
    %v744 = vunpack.c.l.b16 %v408
    %v745 = vunpack.c.h.b16 %v408
    %v746 = vunpack.c.l.b16 %v409
    %v747 = vunpack.c.h.b16 %v409
    %v748 = vunpack.c.l.b16 %v410
    %v749 = vunpack.c.h.b16 %v410
    %v750 = vunpack.c.l.b16 %v411
    %v751 = vunpack.c.h.b16 %v411
    %v752 = vunpack.c.l.b16 %v412
    %v753 = vunpack.c.h.b16 %v412
    %v754 = vunpack.c.l.b16 %v413
    %v755 = vunpack.c.h.b16 %v413
    %v756 = vunpack.c.l.b16 %v414
    %v757 = vunpack.c.h.b16 %v414
    %v758 = vunpack.c.l.b16 %v415
    %v759 = vunpack.c.h.b16 %v415
    %v760 = vunpack.c.l.b16 %v416
    %v761 = vunpack.c.h.b16 %v416
    %v762 = vunpack.c.l.b16 %v417
    %v763 = vunpack.c.h.b16 %v417
    %v764 = vunpack.c.l.b16 %v418
    %v765 = vunpack.c.h.b16 %v418
    %v766 = vunpack.c.l.b16 %v419
    %v767 = vunpack.c.h.b16 %v419
    %v768 = vunpack.c.l.b16 %v420
    %v769 = vunpack.c.h.b16 %v420
    %v770 = vunpack.c.l.b16 %v421
    %v771 = vunpack.c.h.b16 %v421
    %v772 = vunpack.c.l.b16 %v422
    %v773 = vunpack.c.h.b16 %v422
    %v774 = vunpack.c.l.b16 %v423
    %v775 = vunpack.c.h.b16 %v423
    %v776 = vunpack.c.l.b16 %v424
    %v777 = vunpack.c.h.b16 %v424
    %v778 = vunpack.c.l.b16 %v425
    %v779 = vunpack.c.h.b16 %v425
    %v780 = vunpack.c.l.b16 %v426
    %v781 = vunpack.c.h.b16 %v426
    %v782 = vunpack.c.l.b16 %v427
    %v783 = vunpack.c.h.b16 %v427
    %v784 = vunpack.c.l.b16 %v428
    %v785 = vunpack.c.h.b16 %v428
    %v786 = vunpack.c.l.b16 %v429
    %v787 = vunpack.c.h.b16 %v429
    %v788 = vunpack.c.l.b16 %v430
    %v789 = vunpack.c.h.b16 %v430
    %v790 = vunpack.c.l.b16 %v431
    %v791 = vunpack.c.h.b16 %v431
    %v792 = vunpack.c.l.b16 %v432
    %v793 = vunpack.c.h.b16 %v432
    %v794 = vunpack.c.l.b16 %v433
    %v795 = vunpack.c.h.b16 %v433
    %v796 = vunpack.c.l.b16 %v434
    %v797 = vunpack.c.h.b16 %v434
    %v798 = vunpack.c.l.b16 %v435
    %v799 = vunpack.c.h.b16 %v435
    %v800 = vunpack.c.l.b16 %v436
    %v801 = vunpack.c.h.b16 %v436
    %v802 = vunpack.c.l.b16 %v437
    %v803 = vunpack.c.h.b16 %v437
    %v804 = vunpack.c.l.b16 %v438
    %v805 = vunpack.c.h.b16 %v438
    %v806 = vunpack.c.l.b16 %v439
    %v807 = vunpack.c.h.b16 %v439
    %v808 = vunpack.c.l.b16 %v440
    %v809 = vunpack.c.h.b16 %v440
    %v810 = vunpack.c.l.b16 %v441
    %v811 = vunpack.c.h.b16 %v441
    %v812 = vunpack.c.l.b16 %v442
    %v813 = vunpack.c.h.b16 %v442
    %v814 = vunpack.c.l.b16 %v443
    %v815 = vunpack.c.h.b16 %v443
    %v816 = vunpack.c.l.b16 %v444
    %v817 = vunpack.c.h.b16 %v444
    %v818 = vunpack.c.l.b16 %v445
    %v819 = vunpack.c.h.b16 %v445
    %v820 = vunpack.c.l.b16 %v446
    %v821 = vunpack.c.h.b16 %v446
    %v822 = vunpack.c.l.b16 %v447
    %v823 = vunpack.c.h.b16 %v447
    %v824 = vunpack.c.l.b16 %v448
    %v825 = vunpack.c.h.b16 %v448
    %v826 = vunpack.c.l.b16 %v449
    %v827 = vunpack.c.h.b16 %v449
    %v828 = vunpack.c.l.b16 %v450
    %v829 = vunpack.c.h.b16 %v450
    %v830 = vunpack.c.l.b16 %v451
    %v831 = vunpack.c.h.b16 %v451
    %v832 = vunpack.c.l.b16 %v452
    %v833 = vunpack.c.h.b16 %v452
    %v834 = vunpack.c.l.b16 %v453
    %v835 = vunpack.c.h.b16 %v453
    %v836 = vunpack.c.l.b16 %v454
    %v837 = vunpack.c.h.b16 %v454
    %v838 = vunpack.c.l.b16 %v455
    %v839 = vunpack.c.h.b16 %v455
    %v840 = vunpack.c.l.b16 %v456
    %v841 = vunpack.c.h.b16 %v456
    %v842 = vunpack.c.l.b16 %v457
    %v843 = vunpack.c.h.b16 %v457
    %v844 = vunpack.c.l.b16 %v458
    %v845 = vunpack.c.h.b16 %v458
    %v846 = vunpack.c.l.b16 %v459
    %v847 = vunpack.c.h.b16 %v459
    %v848 = vunpack.c.l.b16 %v460
    %v849 = vunpack.c.h.b16 %v460
    %v850 = vunpack.c.l.b16 %v461
    %v851 = vunpack.c.h.b16 %v461
    %v852 = vunpack.c.l.b16 %v462
    %v853 = vunpack.c.h.b16 %v462
    %v854 = vunpack.c.l.b16 %v463
    %v855 = vunpack.c.h.b16 %v463
    %v856 = vunpack.c.l.b16 %v464
    %v857 = vunpack.c.h.b16 %v464
    %v858 = vunpack.c.l.b16 %v465
    %v859 = vunpack.c.h.b16 %v465
    %v860 = vunpack.c.l.b16 %v466
    %v861 = vunpack.c.h.b16 %v466
    %v862 = vunpack.c.l.b16 %v467
    %v863 = vunpack.c.h.b16 %v467
    %v864 = vunpack.c.l.b16 %v468
    %v865 = vunpack.c.h.b16 %v468
    %v866 = vunpack.c.l.b16 %v469
    %v867 = vunpack.c.h.b16 %v469
    %v868 = vunpack.c.l.b16 %v470
    %v869 = vunpack.c.h.b16 %v470
    %v870 = vunpack.c.l.b16 %v471
    %v871 = vunpack.c.h.b16 %v471
    %v872 = vunpack.c.l.b16 %v472
    %v873 = vunpack.c.h.b16 %v472
    %v874 = vunpack.c.l.b16 %v473
    %v875 = vunpack.c.h.b16 %v473
    %v876 = vunpack.c.l.b16 %v474
    %v877 = vunpack.c.h.b16 %v474
    %v878 = vunpack.c.l.b16 %v475
    %v879 = vunpack.c.h.b16 %v475
    %v880 = vunpack.c.l.b16 %v476
    %v881 = vunpack.c.h.b16 %v476
    %v882 = vunpack.c.l.b16 %v477
    %v883 = vunpack.c.h.b16 %v477
    %v884 = vunpack.c.l.b16 %v478
    %v885 = vunpack.c.h.b16 %v478
    %v886 = vpack.c.b16 %v634, %v630
    %v887 = vpack.c.b16 %v635, %v631
    %v888 = vpack.c.b16 %v636, %v632
    %v889 = vpack.c.b16 %v637, %v633
    %v890 = vpack.c.b16 %v642, %v638
    %v891 = vpack.c.b16 %v643, %v639
    %v892 = vpack.c.b16 %v644, %v640
    %v893 = vpack.c.b16 %v645, %v641
    %v894 = vpack.c.b16 %v650, %v646
    %v895 = vpack.c.b16 %v651, %v647
    %v896 = vpack.c.b16 %v652, %v648
    %v897 = vpack.c.b16 %v653, %v649
    %v898 = vpack.c.b16 %v658, %v654
    %v899 = vpack.c.b16 %v659, %v655
    %v900 = vpack.c.b16 %v660, %v656
    %v901 = vpack.c.b16 %v661, %v657
    %v902 = vpack.c.b16 %v666, %v662
    %v903 = vpack.c.b16 %v667, %v663
    %v904 = vpack.c.b16 %v668, %v664
    %v905 = vpack.c.b16 %v669, %v665
    %v906 = vpack.c.b16 %v674, %v670
    %v907 = vpack.c.b16 %v675, %v671
    %v908 = vpack.c.b16 %v676, %v672
    %v909 = vpack.c.b16 %v677, %v673
    %v910 = vpack.c.b16 %v682, %v678
    %v911 = vpack.c.b16 %v683, %v679
    %v912 = vpack.c.b16 %v684, %v680
    %v913 = vpack.c.b16 %v685, %v681
    %v914 = vpack.c.b16 %v690, %v686
    %v915 = vpack.c.b16 %v691, %v687
    %v916 = vpack.c.b16 %v692, %v688
    %v917 = vpack.c.b16 %v693, %v689
    %v918 = vpack.c.b16 %v698, %v694
    %v919 = vpack.c.b16 %v699, %v695
    %v920 = vpack.c.b16 %v700, %v696
    %v921 = vpack.c.b16 %v701, %v697
    %v922 = vpack.c.b16 %v706, %v702
    %v923 = vpack.c.b16 %v707, %v703
    %v924 = vpack.c.b16 %v708, %v704
    %v925 = vpack.c.b16 %v709, %v705
    %v926 = vpack.c.b16 %v714, %v710
    %v927 = vpack.c.b16 %v715, %v711
    %v928 = vpack.c.b16 %v716, %v712
    %v929 = vpack.c.b16 %v717, %v713
    %v930 = vpack.c.b16 %v722, %v718
    %v931 = vpack.c.b16 %v723, %v719
    %v932 = vpack.c.b16 %v724, %v720
    %v933 = vpack.c.b16 %v725, %v721
    %v934 = vpack.c.b16 %v730, %v726
    %v935 = vpack.c.b16 %v731, %v727
    %v936 = vpack.c.b16 %v732, %v728
    %v937 = vpack.c.b16 %v733, %v729
    %v938 = vpack.c.b16 %v738, %v734
    %v939 = vpack.c.b16 %v739, %v735
    %v940 = vpack.c.b16 %v740, %v736
    %v941 = vpack.c.b16 %v741, %v737
    %v942 = vpack.c.b16 %v746, %v742
    %v943 = vpack.c.b16 %v747, %v743
    %v944 = vpack.c.b16 %v748, %v744
    %v945 = vpack.c.b16 %v749, %v745
    %v946 = vpack.c.b16 %v754, %v750
    %v947 = vpack.c.b16 %v755, %v751
    %v948 = vpack.c.b16 %v756, %v752
    %v949 = vpack.c.b16 %v757, %v753
    %v950 = vpack.c.b16 %v762, %v758
    %v951 = vpack.c.b16 %v763, %v759
    %v952 = vpack.c.b16 %v764, %v760
    %v953 = vpack.c.b16 %v765, %v761
    %v954 = vpack.c.b16 %v770, %v766
    %v955 = vpack.c.b16 %v771, %v767
    %v956 = vpack.c.b16 %v772, %v768
    %v957 = vpack.c.b16 %v773, %v769
    %v958 = vpack.c.b16 %v778, %v774
    %v959 = vpack.c.b16 %v779, %v775
    %v960 = vpack.c.b16 %v780, %v776
    %v961 = vpack.c.b16 %v781, %v777
    %v962 = vpack.c.b16 %v786, %v782
    %v963 = vpack.c.b16 %v787, %v783
    %v964 = vpack.c.b16 %v788, %v784
    %v965 = vpack.c.b16 %v789, %v785
    %v966 = vpack.c.b16 %v794, %v790
    %v967 = vpack.c.b16 %v795, %v791
    %v968 = vpack.c.b16 %v796, %v792
    %v969 = vpack.c.b16 %v797, %v793
    %v970 = vpack.c.b16 %v802, %v798
    %v971 = vpack.c.b16 %v803, %v799
    %v972 = vpack.c.b16 %v804, %v800
    %v973 = vpack.c.b16 %v805, %v801
    %v974 = vpack.c.b16 %v810, %v806
    %v975 = vpack.c.b16 %v811, %v807
    %v976 = vpack.c.b16 %v812, %v808
    %v977 = vpack.c.b16 %v813, %v809
    %v978 = vpack.c.b16 %v818, %v814
    %v979 = vpack.c.b16 %v819, %v815
    %v980 = vpack.c.b16 %v820, %v816
    %v981 = vpack.c.b16 %v821, %v817
    %v982 = vpack.c.b16 %v826, %v822
    %v983 = vpack.c.b16 %v827, %v823
    %v984 = vpack.c.b16 %v828, %v824
    %v985 = vpack.c.b16 %v829, %v825
    %v986 = vpack.c.b16 %v834, %v830
    %v987 = vpack.c.b16 %v835, %v831
    %v988 = vpack.c.b16 %v836, %v832
    %v989 = vpack.c.b16 %v837, %v833
    %v990 = vpack.c.b16 %v842, %v838
    %v991 = vpack.c.b16 %v843, %v839
    %v992 = vpack.c.b16 %v844, %v840
    %v993 = vpack.c.b16 %v845, %v841
    %v994 = vpack.c.b16 %v850, %v846
    %v995 = vpack.c.b16 %v851, %v847
    %v996 = vpack.c.b16 %v852, %v848
    %v997 = vpack.c.b16 %v853, %v849
    %v998 = vpack.c.b16 %v858, %v854
    %v999 = vpack.c.b16 %v859, %v855
    %v1000 = vpack.c.b16 %v860, %v856
    %v1001 = vpack.c.b16 %v861, %v857
    %v1002 = vpack.c.b16 %v866, %v862
    %v1003 = vpack.c.b16 %v867, %v863
    %v1004 = vpack.c.b16 %v868, %v864
    %v1005 = vpack.c.b16 %v869, %v865
    %v1006 = vpack.c.b16 %v874, %v870
    %v1007 = vpack.c.b16 %v875, %v871
    %v1008 = vpack.c.b16 %v876, %v872
    %v1009 = vpack.c.b16 %v877, %v873
    %v1010 = vpack.c.b16 %v882, %v878
    %v1011 = vpack.c.b16 %v883, %v879
    %v1012 = vpack.c.b16 %v884, %v880
    %v1013 = vpack.c.b16 %v885, %v881
    %1142 = vmatprep.subr.bf16.mxu0 %v915
    %1143 = vmatpush1.bf16.msra.mxu0 %v914
    %1144 = vmatprep.subr.bf16.mxu0 %v911
    %1145 = vmatpush1.bf16.msra.mxu0 %v910
    %1146 = vmatprep.subr.bf16.mxu0 %v907
    %1147 = vmatpush1.bf16.msra.mxu0 %v906
    %1148 = vmatprep.subr.bf16.mxu0 %v903
    %1149 = vmatpush1.bf16.msra.mxu0 %v902
    %1150 = vmatprep.subr.bf16.mxu0 %v899
    %1151 = vmatpush1.bf16.msra.mxu0 %v898
    %1152 = vmatprep.subr.bf16.mxu0 %v895
    %1153 = vmatpush1.bf16.msra.mxu0 %v894
    %1154 = vmatprep.subr.bf16.mxu0 %v891
    %1155 = vmatpush1.bf16.msra.mxu0 %v890
    %1156 = vmatprep.subr.bf16.mxu0 %v887
    %1157 = vmatpush1.bf16.msra.mxu0 %v886
    %1158 = vmatprep.subr.bf16.mxu0 %v947
    %1159 = vmatpush2.bf16.msra.mxu0 %v946
    %1160 = vmatprep.subr.bf16.mxu0 %v943
    %1161 = vmatpush2.bf16.msra.mxu0 %v942
    %1162 = vmatprep.subr.bf16.mxu0 %v939
    %1163 = vmatpush2.bf16.msra.mxu0 %v938
    %1164 = vmatprep.subr.bf16.mxu0 %v935
    %1165 = vmatpush2.bf16.msra.mxu0 %v934
    %1166 = vmatprep.subr.bf16.mxu0 %v931
    %1167 = vmatpush2.bf16.msra.mxu0 %v930
    %1168 = vmatprep.subr.bf16.mxu0 %v927
    %1169 = vmatpush2.bf16.msra.mxu0 %v926
    %1170 = vmatprep.subr.bf16.mxu0 %v923
    %1171 = vmatpush2.bf16.msra.mxu0 %v922
    %1172 = vmatprep.subr.bf16.mxu0 %v919
    %1173 = vmatpush2.bf16.msra.mxu0 %v918
    %1174 = vmatprep.mubr.bf16.mxu0 %v336
    %1175 = vmatmul.mubr.bf16.gmra.mxu0 %v335
    %v1176 = vpop.f32.mrf.mxu0
    %v1177 = vadd.f32 %v485, %v1176
    %v1178 = vpop.f32.mrf.mxu0
    %v1179 = vadd.f32 %v489, %v1178
    %v1180 = vpop.f32.mrf.mxu0
    %v1181 = vadd.f32 %v485, %v1180
    %v1182 = vpop.f32.mrf.mxu0
    %v1183 = vadd.f32 %v489, %v1182
    %1184 = vmatprep.mubr.bf16.mxu0 %v340
    %1185 = vmatmul.mubr.bf16.gmra.mxu0 %v339
    %v1186 = vpop.f32.mrf.mxu0
    %v1187 = vadd.f32 %v485, %v1186
    %v1188 = vpop.f32.mrf.mxu0
    %v1189 = vadd.f32 %v489, %v1188
    %v1190 = vpop.f32.mrf.mxu0
    %v1191 = vadd.f32 %v485, %v1190
    %v1192 = vpop.f32.mrf.mxu0
    %v1193 = vadd.f32 %v489, %v1192
    %1194 = vmatprep.mubr.bf16.mxu0 %v344
    %1195 = vmatmul.mubr.bf16.gmra.mxu0 %v343
    %v1196 = vpop.f32.mrf.mxu0
    %v1197 = vadd.f32 %v485, %v1196
    %v1198 = vpop.f32.mrf.mxu0
    %v1199 = vadd.f32 %v489, %v1198
    %v1200 = vpop.f32.mrf.mxu0
    %v1201 = vadd.f32 %v485, %v1200
    %v1202 = vpop.f32.mrf.mxu0
    %v1203 = vadd.f32 %v489, %v1202
    %1204 = vmatprep.mubr.bf16.mxu0 %v348
    %1205 = vmatmul.mubr.bf16.gmra.mxu0 %v347
    %v1206 = vpop.f32.mrf.mxu0
    %v1207 = vadd.f32 %v485, %v1206
    %v1208 = vpop.f32.mrf.mxu0
    %v1209 = vadd.f32 %v489, %v1208
    %v1210 = vpop.f32.mrf.mxu0
    %v1211 = vadd.f32 %v485, %v1210
    %v1212 = vpop.f32.mrf.mxu0
    %v1213 = vadd.f32 %v489, %v1212
    %1214 = vdwg.mxu0
    %1215 = vmatprep.subr.bf16.mxu0 %v979
    %1216 = vmatpush1.bf16.msra.mxu0 %v978
    %1217 = vmatprep.subr.bf16.mxu0 %v975
    %1218 = vmatpush1.bf16.msra.mxu0 %v974
    %1219 = vmatprep.subr.bf16.mxu0 %v971
    %1220 = vmatpush1.bf16.msra.mxu0 %v970
    %1221 = vmatprep.subr.bf16.mxu0 %v967
    %1222 = vmatpush1.bf16.msra.mxu0 %v966
    %1223 = vmatprep.subr.bf16.mxu0 %v963
    %1224 = vmatpush1.bf16.msra.mxu0 %v962
    %1225 = vmatprep.subr.bf16.mxu0 %v959
    %1226 = vmatpush1.bf16.msra.mxu0 %v958
    %1227 = vmatprep.subr.bf16.mxu0 %v955
    %1228 = vmatpush1.bf16.msra.mxu0 %v954
    %1229 = vmatprep.subr.bf16.mxu0 %v951
    %1230 = vmatpush1.bf16.msra.mxu0 %v950
    %1231 = vmatprep.subr.bf16.mxu0 %v1011
    %1232 = vmatpush2.bf16.msra.mxu0 %v1010
    %1233 = vmatprep.subr.bf16.mxu0 %v1007
    %1234 = vmatpush2.bf16.msra.mxu0 %v1006
    %1235 = vmatprep.subr.bf16.mxu0 %v1003
    %1236 = vmatpush2.bf16.msra.mxu0 %v1002
    %1237 = vmatprep.subr.bf16.mxu0 %v999
    %1238 = vmatpush2.bf16.msra.mxu0 %v998
    %1239 = vmatprep.subr.bf16.mxu0 %v995
    %1240 = vmatpush2.bf16.msra.mxu0 %v994
    %1241 = vmatprep.subr.bf16.mxu0 %v991
    %1242 = vmatpush2.bf16.msra.mxu0 %v990
    %1243 = vmatprep.subr.bf16.mxu0 %v987
    %1244 = vmatpush2.bf16.msra.mxu0 %v986
    %1245 = vmatprep.subr.bf16.mxu0 %v983
    %1246 = vmatpush2.bf16.msra.mxu0 %v982
    %1247 = vmatprep.mubr.bf16.mxu0 %v338
    %1248 = vmatmul.mubr.bf16.gmra.mxu0 %v337
    %v1249 = vpop.f32.mrf.mxu0
    %v1250 = vadd.f32 %v1177, %v1249
    %v1251 = vpop.f32.mrf.mxu0
    %v1252 = vadd.f32 %v1179, %v1251
    %v1253 = vpop.f32.mrf.mxu0
    %v1254 = vadd.f32 %v1181, %v1253
    %v1255 = vpop.f32.mrf.mxu0
    %v1256 = vadd.f32 %v1183, %v1255
    %1257 = vmatprep.mubr.bf16.mxu0 %v342
    %1258 = vmatmul.mubr.bf16.gmra.mxu0 %v341
    %v1259 = vpop.f32.mrf.mxu0
    %v1260 = vadd.f32 %v1187, %v1259
    %v1261 = vpop.f32.mrf.mxu0
    %v1262 = vadd.f32 %v1189, %v1261
    %v1263 = vpop.f32.mrf.mxu0
    %v1264 = vadd.f32 %v1191, %v1263
    %v1265 = vpop.f32.mrf.mxu0
    %v1266 = vadd.f32 %v1193, %v1265
    %1267 = vmatprep.mubr.bf16.mxu0 %v346
    %1268 = vmatmul.mubr.bf16.gmra.mxu0 %v345
    %v1269 = vpop.f32.mrf.mxu0
    %v1270 = vadd.f32 %v1197, %v1269
    %v1271 = vpop.f32.mrf.mxu0
    %v1272 = vadd.f32 %v1199, %v1271
    %v1273 = vpop.f32.mrf.mxu0
    %v1274 = vadd.f32 %v1201, %v1273
    %v1275 = vpop.f32.mrf.mxu0
    %v1276 = vadd.f32 %v1203, %v1275
    %1277 = vmatprep.mubr.bf16.mxu0 %v350
    %1278 = vmatmul.mubr.bf16.gmra.mxu0 %v349
    %v1279 = vpop.f32.mrf.mxu0
    %v1280 = vadd.f32 %v1207, %v1279
    %v1281 = vpop.f32.mrf.mxu0
    %v1282 = vadd.f32 %v1209, %v1281
    %v1283 = vpop.f32.mrf.mxu0
    %v1284 = vadd.f32 %v1211, %v1283
    %v1285 = vpop.f32.mrf.mxu0
    %v1286 = vadd.f32 %v1213, %v1285
    %1287 = vdwg.mxu0
    %1288 = vmatprep.subr.bf16.mxu0 %v917
    %1289 = vmatpush1.bf16.msra.mxu0 %v916
    %1290 = vmatprep.subr.bf16.mxu0 %v913
    %1291 = vmatpush1.bf16.msra.mxu0 %v912
    %1292 = vmatprep.subr.bf16.mxu0 %v909
    %1293 = vmatpush1.bf16.msra.mxu0 %v908
    %1294 = vmatprep.subr.bf16.mxu0 %v905
    %1295 = vmatpush1.bf16.msra.mxu0 %v904
    %1296 = vmatprep.subr.bf16.mxu0 %v901
    %1297 = vmatpush1.bf16.msra.mxu0 %v900
    %1298 = vmatprep.subr.bf16.mxu0 %v897
    %1299 = vmatpush1.bf16.msra.mxu0 %v896
    %1300 = vmatprep.subr.bf16.mxu0 %v893
    %1301 = vmatpush1.bf16.msra.mxu0 %v892
    %1302 = vmatprep.subr.bf16.mxu0 %v889
    %1303 = vmatpush1.bf16.msra.mxu0 %v888
    %1304 = vmatprep.subr.bf16.mxu0 %v949
    %1305 = vmatpush2.bf16.msra.mxu0 %v948
    %1306 = vmatprep.subr.bf16.mxu0 %v945
    %1307 = vmatpush2.bf16.msra.mxu0 %v944
    %1308 = vmatprep.subr.bf16.mxu0 %v941
    %1309 = vmatpush2.bf16.msra.mxu0 %v940
    %1310 = vmatprep.subr.bf16.mxu0 %v937
    %1311 = vmatpush2.bf16.msra.mxu0 %v936
    %1312 = vmatprep.subr.bf16.mxu0 %v933
    %1313 = vmatpush2.bf16.msra.mxu0 %v932
    %1314 = vmatprep.subr.bf16.mxu0 %v929
    %1315 = vmatpush2.bf16.msra.mxu0 %v928
    %1316 = vmatprep.subr.bf16.mxu0 %v925
    %1317 = vmatpush2.bf16.msra.mxu0 %v924
    %1318 = vmatprep.subr.bf16.mxu0 %v921
    %1319 = vmatpush2.bf16.msra.mxu0 %v920
    %1320 = vmatprep.mubr.bf16.mxu0 %v336
    %1321 = vmatmul.mubr.bf16.gmra.mxu0 %v335
    %v1322 = vpop.f32.mrf.mxu0
    %v1323 = vadd.f32 %v493, %v1322
    %v1324 = vpop.f32.mrf.mxu0
    %v1325 = vadd.f32 %v497, %v1324
    %v1326 = vpop.f32.mrf.mxu0
    %v1327 = vadd.f32 %v493, %v1326
    %v1328 = vpop.f32.mrf.mxu0
    %v1329 = vadd.f32 %v497, %v1328
    %1330 = vmatprep.mubr.bf16.mxu0 %v340
    %1331 = vmatmul.mubr.bf16.gmra.mxu0 %v339
    %v1332 = vpop.f32.mrf.mxu0
    %v1333 = vadd.f32 %v493, %v1332
    %v1334 = vpop.f32.mrf.mxu0
    %v1335 = vadd.f32 %v497, %v1334
    %v1336 = vpop.f32.mrf.mxu0
    %v1337 = vadd.f32 %v493, %v1336
    %v1338 = vpop.f32.mrf.mxu0
    %v1339 = vadd.f32 %v497, %v1338
    %1340 = vmatprep.mubr.bf16.mxu0 %v344
    %1341 = vmatmul.mubr.bf16.gmra.mxu0 %v343
    %v1342 = vpop.f32.mrf.mxu0
    %v1343 = vadd.f32 %v493, %v1342
    %v1344 = vpop.f32.mrf.mxu0
    %v1345 = vadd.f32 %v497, %v1344
    %v1346 = vpop.f32.mrf.mxu0
    %v1347 = vadd.f32 %v493, %v1346
    %v1348 = vpop.f32.mrf.mxu0
    %v1349 = vadd.f32 %v497, %v1348
    %1350 = vmatprep.mubr.bf16.mxu0 %v348
    %1351 = vmatmul.mubr.bf16.gmra.mxu0 %v347
    %v1352 = vpop.f32.mrf.mxu0
    %v1353 = vadd.f32 %v493, %v1352
    %v1354 = vpop.f32.mrf.mxu0
    %v1355 = vadd.f32 %v497, %v1354
    %v1356 = vpop.f32.mrf.mxu0
    %v1357 = vadd.f32 %v493, %v1356
    %v1358 = vpop.f32.mrf.mxu0
    %v1359 = vadd.f32 %v497, %v1358
    %1360 = vdwg.mxu0
    %1361 = vmatprep.subr.bf16.mxu0 %v981
    %1362 = vmatpush1.bf16.msra.mxu0 %v980
    %1363 = vmatprep.subr.bf16.mxu0 %v977
    %1364 = vmatpush1.bf16.msra.mxu0 %v976
    %1365 = vmatprep.subr.bf16.mxu0 %v973
    %1366 = vmatpush1.bf16.msra.mxu0 %v972
    %1367 = vmatprep.subr.bf16.mxu0 %v969
    %1368 = vmatpush1.bf16.msra.mxu0 %v968
    %1369 = vmatprep.subr.bf16.mxu0 %v965
    %1370 = vmatpush1.bf16.msra.mxu0 %v964
    %1371 = vmatprep.subr.bf16.mxu0 %v961
    %1372 = vmatpush1.bf16.msra.mxu0 %v960
    %1373 = vmatprep.subr.bf16.mxu0 %v957
    %1374 = vmatpush1.bf16.msra.mxu0 %v956
    %1375 = vmatprep.subr.bf16.mxu0 %v953
    %1376 = vmatpush1.bf16.msra.mxu0 %v952
    %1377 = vmatprep.subr.bf16.mxu0 %v1013
    %1378 = vmatpush2.bf16.msra.mxu0 %v1012
    %1379 = vmatprep.subr.bf16.mxu0 %v1009
    %1380 = vmatpush2.bf16.msra.mxu0 %v1008
    %1381 = vmatprep.subr.bf16.mxu0 %v1005
    %1382 = vmatpush2.bf16.msra.mxu0 %v1004
    %1383 = vmatprep.subr.bf16.mxu0 %v1001
    %1384 = vmatpush2.bf16.msra.mxu0 %v1000
    %1385 = vmatprep.subr.bf16.mxu0 %v997
    %1386 = vmatpush2.bf16.msra.mxu0 %v996
    %1387 = vmatprep.subr.bf16.mxu0 %v993
    %1388 = vmatpush2.bf16.msra.mxu0 %v992
    %1389 = vmatprep.subr.bf16.mxu0 %v989
    %1390 = vmatpush2.bf16.msra.mxu0 %v988
    %1391 = vmatprep.subr.bf16.mxu0 %v985
    %1392 = vmatpush2.bf16.msra.mxu0 %v984
    %1393 = vmatprep.mubr.bf16.mxu0 %v338
    %1394 = vmatmul.mubr.bf16.gmra.mxu0 %v337
    %v1395 = vpop.f32.mrf.mxu0
    %v1396 = vadd.f32 %v1323, %v1395
    %v1397 = vpop.f32.mrf.mxu0
    %v1398 = vadd.f32 %v1325, %v1397
    %v1399 = vpop.f32.mrf.mxu0
    %v1400 = vadd.f32 %v1327, %v1399
    %v1401 = vpop.f32.mrf.mxu0
    %v1402 = vadd.f32 %v1329, %v1401
    %1403 = vmatprep.mubr.bf16.mxu0 %v342
    %1404 = vmatmul.mubr.bf16.gmra.mxu0 %v341
    %v1405 = vpop.f32.mrf.mxu0
    %v1406 = vadd.f32 %v1333, %v1405
    %v1407 = vpop.f32.mrf.mxu0
    %v1408 = vadd.f32 %v1335, %v1407
    %v1409 = vpop.f32.mrf.mxu0
    %v1410 = vadd.f32 %v1337, %v1409
    %v1411 = vpop.f32.mrf.mxu0
    %v1412 = vadd.f32 %v1339, %v1411
    %1413 = vmatprep.mubr.bf16.mxu0 %v346
    %1414 = vmatmul.mubr.bf16.gmra.mxu0 %v345
    %v1415 = vpop.f32.mrf.mxu0
    %v1416 = vadd.f32 %v1343, %v1415
    %v1417 = vpop.f32.mrf.mxu0
    %v1418 = vadd.f32 %v1345, %v1417
    %v1419 = vpop.f32.mrf.mxu0
    %v1420 = vadd.f32 %v1347, %v1419
    %v1421 = vpop.f32.mrf.mxu0
    %v1422 = vadd.f32 %v1349, %v1421
    %1423 = vmatprep.mubr.bf16.mxu0 %v350
    %1424 = vmatmul.mubr.bf16.gmra.mxu0 %v349
    %v1425 = vpop.f32.mrf.mxu0
    %v1426 = vadd.f32 %v1353, %v1425
    %v1427 = vpop.f32.mrf.mxu0
    %v1428 = vadd.f32 %v1355, %v1427
    %v1429 = vpop.f32.mrf.mxu0
    %v1430 = vadd.f32 %v1357, %v1429
    %v1431 = vpop.f32.mrf.mxu0
    %v1432 = vadd.f32 %v1359, %v1431
    %1433 = vdwg.mxu0
    %v1434 = vmax.f32 %v1250, 0.0
    %v1435 = vmax.f32 %v1252, 0.0
    %v1436 = vmax.f32 %v1396, 0.0
    %v1437 = vmax.f32 %v1398, 0.0
    %v1438 = vmax.f32 %v1254, 0.0
    %v1439 = vmax.f32 %v1256, 0.0
    %v1440 = vmax.f32 %v1400, 0.0
    %v1441 = vmax.f32 %v1402, 0.0
    %v1442 = vmax.f32 %v1260, 0.0
    %v1443 = vmax.f32 %v1262, 0.0
    %v1444 = vmax.f32 %v1406, 0.0
    %v1445 = vmax.f32 %v1408, 0.0
    %v1446 = vmax.f32 %v1264, 0.0
    %v1447 = vmax.f32 %v1266, 0.0
    %v1448 = vmax.f32 %v1410, 0.0
    %v1449 = vmax.f32 %v1412, 0.0
    %v1450 = vmax.f32 %v1270, 0.0
    %v1451 = vmax.f32 %v1272, 0.0
    %v1452 = vmax.f32 %v1416, 0.0
    %v1453 = vmax.f32 %v1418, 0.0
    %v1454 = vmax.f32 %v1274, 0.0
    %v1455 = vmax.f32 %v1276, 0.0
    %v1456 = vmax.f32 %v1420, 0.0
    %v1457 = vmax.f32 %v1422, 0.0
    %v1458 = vmax.f32 %v1280, 0.0
    %v1459 = vmax.f32 %v1282, 0.0
    %v1460 = vmax.f32 %v1426, 0.0
    %v1461 = vmax.f32 %v1428, 0.0
    %v1462 = vmax.f32 %v1284, 0.0
    %v1463 = vmax.f32 %v1286, 0.0
    %v1464 = vmax.f32 %v1430, 0.0
    %v1465 = vmax.f32 %v1432, 0.0
    %v1466 = vpack.c.bf16 %v1438, %v1434
    %v1467 = vpack.c.bf16 %v1439, %v1435
    %v1468 = vpack.c.bf16 %v1440, %v1436
    %v1469 = vpack.c.bf16 %v1441, %v1437
    %v1470 = vpack.c.bf16 %v1446, %v1442
    %v1471 = vpack.c.bf16 %v1447, %v1443
    %v1472 = vpack.c.bf16 %v1448, %v1444
    %v1473 = vpack.c.bf16 %v1449, %v1445
    %v1474 = vpack.c.bf16 %v1454, %v1450
    %v1475 = vpack.c.bf16 %v1455, %v1451
    %v1476 = vpack.c.bf16 %v1456, %v1452
    %v1477 = vpack.c.bf16 %v1457, %v1453
    %v1478 = vpack.c.bf16 %v1462, %v1458
    %v1479 = vpack.c.bf16 %v1463, %v1459
    %v1480 = vpack.c.bf16 %v1464, %v1460
    %v1481 = vpack.c.bf16 %v1465, %v1461
    %s1482 = scalar_lea.vmem [#allocation6], 1024
    %v1483 = vld [vmem:[%s1482] sm:$0xff]
    %v1484 = vld [vmem:[%s1482 + $0x8] sm:$0xff]
    %v1485 = vld [vmem:[%s1482 + $0x10] sm:$0xff]
    %v1486 = vld [vmem:[%s1482 + $0x18] sm:$0xff]
    %v1487 = vld [vmem:[%s1482 + $0x20] sm:$0xff]
    %v1488 = vld [vmem:[%s1482 + $0x28] sm:$0xff]
    %v1489 = vld [vmem:[%s1482 + $0x30] sm:$0xff]
    %v1490 = vld [vmem:[%s1482 + $0x38] sm:$0xff]
    %v1491 = vld [vmem:[%s1482 + $0x40] sm:$0xff]
    %v1492 = vld [vmem:[%s1482 + $0x48] sm:$0xff]
    %v1493 = vld [vmem:[%s1482 + $0x50] sm:$0xff]
    %v1494 = vld [vmem:[%s1482 + $0x58] sm:$0xff]
    %v1495 = vld [vmem:[%s1482 + $0x60] sm:$0xff]
    %v1496 = vld [vmem:[%s1482 + $0x68] sm:$0xff]
    %v1497 = vld [vmem:[%s1482 + $0x70] sm:$0xff]
    %v1498 = vld [vmem:[%s1482 + $0x78] sm:$0xff]
    %v1499 = vld [vmem:[%s1482 + $0x80] sm:$0xff]
    %v1500 = vld [vmem:[%s1482 + $0x88] sm:$0xff]
    %v1501 = vld [vmem:[%s1482 + $0x90] sm:$0xff]
    %v1502 = vld [vmem:[%s1482 + $0x98] sm:$0xff]
    %v1503 = vld [vmem:[%s1482 + $0xa0] sm:$0xff]
    %v1504 = vld [vmem:[%s1482 + $0xa8] sm:$0xff]
    %v1505 = vld [vmem:[%s1482 + $0xb0] sm:$0xff]
    %v1506 = vld [vmem:[%s1482 + $0xb8] sm:$0xff]
    %v1507 = vld [vmem:[%s1482 + $0xc0] sm:$0xff]
    %v1508 = vld [vmem:[%s1482 + $0xc8] sm:$0xff]
    %v1509 = vld [vmem:[%s1482 + $0xd0] sm:$0xff]
    %v1510 = vld [vmem:[%s1482 + $0xd8] sm:$0xff]
    %v1511 = vld [vmem:[%s1482 + $0xe0] sm:$0xff]
    %v1512 = vld [vmem:[%s1482 + $0xe8] sm:$0xff]
    %v1513 = vld [vmem:[%s1482 + $0xf0] sm:$0xff]
    %v1514 = vld [vmem:[%s1482 + $0xf8] sm:$0xff]
    %v1515 = vld [vmem:[%s1482 + $0x100] sm:$0xff]
    %v1516 = vld [vmem:[%s1482 + $0x108] sm:$0xff]
    %v1517 = vld [vmem:[%s1482 + $0x110] sm:$0xff]
    %v1518 = vld [vmem:[%s1482 + $0x118] sm:$0xff]
    %v1519 = vld [vmem:[%s1482 + $0x120] sm:$0xff]
    %v1520 = vld [vmem:[%s1482 + $0x128] sm:$0xff]
    %v1521 = vld [vmem:[%s1482 + $0x130] sm:$0xff]
    %v1522 = vld [vmem:[%s1482 + $0x138] sm:$0xff]
    %v1523 = vld [vmem:[%s1482 + $0x140] sm:$0xff]
    %v1524 = vld [vmem:[%s1482 + $0x148] sm:$0xff]
    %v1525 = vld [vmem:[%s1482 + $0x150] sm:$0xff]
    %v1526 = vld [vmem:[%s1482 + $0x158] sm:$0xff]
    %v1527 = vld [vmem:[%s1482 + $0x160] sm:$0xff]
    %v1528 = vld [vmem:[%s1482 + $0x168] sm:$0xff]
    %v1529 = vld [vmem:[%s1482 + $0x170] sm:$0xff]
    %v1530 = vld [vmem:[%s1482 + $0x178] sm:$0xff]
    %v1531 = vld [vmem:[%s1482 + $0x180] sm:$0xff]
    %v1532 = vld [vmem:[%s1482 + $0x188] sm:$0xff]
    %v1533 = vld [vmem:[%s1482 + $0x190] sm:$0xff]
    %v1534 = vld [vmem:[%s1482 + $0x198] sm:$0xff]
    %v1535 = vld [vmem:[%s1482 + $0x1a0] sm:$0xff]
    %v1536 = vld [vmem:[%s1482 + $0x1a8] sm:$0xff]
    %v1537 = vld [vmem:[%s1482 + $0x1b0] sm:$0xff]
    %v1538 = vld [vmem:[%s1482 + $0x1b8] sm:$0xff]
    %v1539 = vld [vmem:[%s1482 + $0x1c0] sm:$0xff]
    %v1540 = vld [vmem:[%s1482 + $0x1c8] sm:$0xff]
    %v1541 = vld [vmem:[%s1482 + $0x1d0] sm:$0xff]
    %v1542 = vld [vmem:[%s1482 + $0x1d8] sm:$0xff]
    %v1543 = vld [vmem:[%s1482 + $0x1e0] sm:$0xff]
    %v1544 = vld [vmem:[%s1482 + $0x1e8] sm:$0xff]
    %v1545 = vld [vmem:[%s1482 + $0x1f0] sm:$0xff]
    %v1546 = vld [vmem:[%s1482 + $0x1f8] sm:$0xff]
    %v1547 = vld [vmem:[%s1482 + $0x200] sm:$0xff]
    %v1548 = vld [vmem:[%s1482 + $0x208] sm:$0xff]
    %v1549 = vld [vmem:[%s1482 + $0x210] sm:$0xff]
    %v1550 = vld [vmem:[%s1482 + $0x218] sm:$0xff]
    %v1551 = vld [vmem:[%s1482 + $0x220] sm:$0xff]
    %v1552 = vld [vmem:[%s1482 + $0x228] sm:$0xff]
    %v1553 = vld [vmem:[%s1482 + $0x230] sm:$0xff]
    %v1554 = vld [vmem:[%s1482 + $0x238] sm:$0xff]
    %v1555 = vld [vmem:[%s1482 + $0x240] sm:$0xff]
    %v1556 = vld [vmem:[%s1482 + $0x248] sm:$0xff]
    %v1557 = vld [vmem:[%s1482 + $0x250] sm:$0xff]
    %v1558 = vld [vmem:[%s1482 + $0x258] sm:$0xff]
    %v1559 = vld [vmem:[%s1482 + $0x260] sm:$0xff]
    %v1560 = vld [vmem:[%s1482 + $0x268] sm:$0xff]
    %v1561 = vld [vmem:[%s1482 + $0x270] sm:$0xff]
    %v1562 = vld [vmem:[%s1482 + $0x278] sm:$0xff]
    %v1563 = vld [vmem:[%s1482 + $0x280] sm:$0xff]
    %v1564 = vld [vmem:[%s1482 + $0x288] sm:$0xff]
    %v1565 = vld [vmem:[%s1482 + $0x290] sm:$0xff]
    %v1566 = vld [vmem:[%s1482 + $0x298] sm:$0xff]
    %v1567 = vld [vmem:[%s1482 + $0x2a0] sm:$0xff]
    %v1568 = vld [vmem:[%s1482 + $0x2a8] sm:$0xff]
    %v1569 = vld [vmem:[%s1482 + $0x2b0] sm:$0xff]
    %v1570 = vld [vmem:[%s1482 + $0x2b8] sm:$0xff]
    %v1571 = vld [vmem:[%s1482 + $0x2c0] sm:$0xff]
    %v1572 = vld [vmem:[%s1482 + $0x2c8] sm:$0xff]
    %v1573 = vld [vmem:[%s1482 + $0x2d0] sm:$0xff]
    %v1574 = vld [vmem:[%s1482 + $0x2d8] sm:$0xff]
    %v1575 = vld [vmem:[%s1482 + $0x2e0] sm:$0xff]
    %v1576 = vld [vmem:[%s1482 + $0x2e8] sm:$0xff]
    %v1577 = vld [vmem:[%s1482 + $0x2f0] sm:$0xff]
    %v1578 = vld [vmem:[%s1482 + $0x2f8] sm:$0xff]
    %v1579 = vld [vmem:[%s1482 + $0x300] sm:$0xff]
    %v1580 = vld [vmem:[%s1482 + $0x308] sm:$0xff]
    %v1581 = vld [vmem:[%s1482 + $0x310] sm:$0xff]
    %v1582 = vld [vmem:[%s1482 + $0x318] sm:$0xff]
    %v1583 = vld [vmem:[%s1482 + $0x320] sm:$0xff]
    %v1584 = vld [vmem:[%s1482 + $0x328] sm:$0xff]
    %v1585 = vld [vmem:[%s1482 + $0x330] sm:$0xff]
    %v1586 = vld [vmem:[%s1482 + $0x338] sm:$0xff]
    %v1587 = vld [vmem:[%s1482 + $0x340] sm:$0xff]
    %v1588 = vld [vmem:[%s1482 + $0x348] sm:$0xff]
    %v1589 = vld [vmem:[%s1482 + $0x350] sm:$0xff]
    %v1590 = vld [vmem:[%s1482 + $0x358] sm:$0xff]
    %v1591 = vld [vmem:[%s1482 + $0x360] sm:$0xff]
    %v1592 = vld [vmem:[%s1482 + $0x368] sm:$0xff]
    %v1593 = vld [vmem:[%s1482 + $0x370] sm:$0xff]
    %v1594 = vld [vmem:[%s1482 + $0x378] sm:$0xff]
    %v1595 = vld [vmem:[%s1482 + $0x380] sm:$0xff]
    %v1596 = vld [vmem:[%s1482 + $0x388] sm:$0xff]
    %v1597 = vld [vmem:[%s1482 + $0x390] sm:$0xff]
    %v1598 = vld [vmem:[%s1482 + $0x398] sm:$0xff]
    %v1599 = vld [vmem:[%s1482 + $0x3a0] sm:$0xff]
    %v1600 = vld [vmem:[%s1482 + $0x3a8] sm:$0xff]
    %v1601 = vld [vmem:[%s1482 + $0x3b0] sm:$0xff]
    %v1602 = vld [vmem:[%s1482 + $0x3b8] sm:$0xff]
    %v1603 = vld [vmem:[%s1482 + $0x3c0] sm:$0xff]
    %v1604 = vld [vmem:[%s1482 + $0x3c8] sm:$0xff]
    %v1605 = vld [vmem:[%s1482 + $0x3d0] sm:$0xff]
    %v1606 = vld [vmem:[%s1482 + $0x3d8] sm:$0xff]
    %v1607 = vld [vmem:[%s1482 + $0x3e0] sm:$0xff]
    %v1608 = vld [vmem:[%s1482 + $0x3e8] sm:$0xff]
    %v1609 = vld [vmem:[%s1482 + $0x3f0] sm:$0xff]
    %v1610 = vld [vmem:[%s1482 + $0x3f8] sm:$0xff]
    %s1611 = scalar_lea.vmem [#allocation9], 2
    %v1612 = vld [vmem:[%s1611] ss:$4 sm:$0xf]
    %v1614 = vlaneseq
    %v1615 = vshrl.u32 %v1614, 7
    %v1616 = vsub.s32 0, %v1615
    %v1617 = vrot.slane %v1612, %v1616
    %v1618 = vlaneseq
    %v1619 = vshrl.u32 %v1618, 7
    %v1620 = vsub.s32 1, %v1619
    %v1621 = vrot.slane %v1612, %v1620
    %v1622 = vlaneseq
    %v1623 = vshrl.u32 %v1622, 7
    %v1624 = vsub.s32 2, %v1623
    %v1625 = vrot.slane %v1612, %v1624
    %v1626 = vlaneseq
    %v1627 = vshrl.u32 %v1626, 7
    %v1628 = vsub.s32 3, %v1627
    %v1629 = vrot.slane %v1612, %v1628
    %v1762 = vunpack.c.l.b16 %v1483
    %v1763 = vunpack.c.h.b16 %v1483
    %v1764 = vunpack.c.l.b16 %v1484
    %v1765 = vunpack.c.h.b16 %v1484
    %v1766 = vunpack.c.l.b16 %v1485
    %v1767 = vunpack.c.h.b16 %v1485
    %v1768 = vunpack.c.l.b16 %v1486
    %v1769 = vunpack.c.h.b16 %v1486
    %v1770 = vunpack.c.l.b16 %v1487
    %v1771 = vunpack.c.h.b16 %v1487
    %v1772 = vunpack.c.l.b16 %v1488
    %v1773 = vunpack.c.h.b16 %v1488
    %v1774 = vunpack.c.l.b16 %v1489
    %v1775 = vunpack.c.h.b16 %v1489
    %v1776 = vunpack.c.l.b16 %v1490
    %v1777 = vunpack.c.h.b16 %v1490
    %v1778 = vunpack.c.l.b16 %v1491
    %v1779 = vunpack.c.h.b16 %v1491
    %v1780 = vunpack.c.l.b16 %v1492
    %v1781 = vunpack.c.h.b16 %v1492
    %v1782 = vunpack.c.l.b16 %v1493
    %v1783 = vunpack.c.h.b16 %v1493
    %v1784 = vunpack.c.l.b16 %v1494
    %v1785 = vunpack.c.h.b16 %v1494
    %v1786 = vunpack.c.l.b16 %v1495
    %v1787 = vunpack.c.h.b16 %v1495
    %v1788 = vunpack.c.l.b16 %v1496
    %v1789 = vunpack.c.h.b16 %v1496
    %v1790 = vunpack.c.l.b16 %v1497
    %v1791 = vunpack.c.h.b16 %v1497
    %v1792 = vunpack.c.l.b16 %v1498
    %v1793 = vunpack.c.h.b16 %v1498
    %v1794 = vunpack.c.l.b16 %v1499
    %v1795 = vunpack.c.h.b16 %v1499
    %v1796 = vunpack.c.l.b16 %v1500
    %v1797 = vunpack.c.h.b16 %v1500
    %v1798 = vunpack.c.l.b16 %v1501
    %v1799 = vunpack.c.h.b16 %v1501
    %v1800 = vunpack.c.l.b16 %v1502
    %v1801 = vunpack.c.h.b16 %v1502
    %v1802 = vunpack.c.l.b16 %v1503
    %v1803 = vunpack.c.h.b16 %v1503
    %v1804 = vunpack.c.l.b16 %v1504
    %v1805 = vunpack.c.h.b16 %v1504
    %v1806 = vunpack.c.l.b16 %v1505
    %v1807 = vunpack.c.h.b16 %v1505
    %v1808 = vunpack.c.l.b16 %v1506
    %v1809 = vunpack.c.h.b16 %v1506
    %v1810 = vunpack.c.l.b16 %v1507
    %v1811 = vunpack.c.h.b16 %v1507
    %v1812 = vunpack.c.l.b16 %v1508
    %v1813 = vunpack.c.h.b16 %v1508
    %v1814 = vunpack.c.l.b16 %v1509
    %v1815 = vunpack.c.h.b16 %v1509
    %v1816 = vunpack.c.l.b16 %v1510
    %v1817 = vunpack.c.h.b16 %v1510
    %v1818 = vunpack.c.l.b16 %v1511
    %v1819 = vunpack.c.h.b16 %v1511
    %v1820 = vunpack.c.l.b16 %v1512
    %v1821 = vunpack.c.h.b16 %v1512
    %v1822 = vunpack.c.l.b16 %v1513
    %v1823 = vunpack.c.h.b16 %v1513
    %v1824 = vunpack.c.l.b16 %v1514
    %v1825 = vunpack.c.h.b16 %v1514
    %v1826 = vunpack.c.l.b16 %v1515
    %v1827 = vunpack.c.h.b16 %v1515
    %v1828 = vunpack.c.l.b16 %v1516
    %v1829 = vunpack.c.h.b16 %v1516
    %v1830 = vunpack.c.l.b16 %v1517
    %v1831 = vunpack.c.h.b16 %v1517
    %v1832 = vunpack.c.l.b16 %v1518
    %v1833 = vunpack.c.h.b16 %v1518
    %v1834 = vunpack.c.l.b16 %v1519
    %v1835 = vunpack.c.h.b16 %v1519
    %v1836 = vunpack.c.l.b16 %v1520
    %v1837 = vunpack.c.h.b16 %v1520
    %v1838 = vunpack.c.l.b16 %v1521
    %v1839 = vunpack.c.h.b16 %v1521
    %v1840 = vunpack.c.l.b16 %v1522
    %v1841 = vunpack.c.h.b16 %v1522
    %v1842 = vunpack.c.l.b16 %v1523
    %v1843 = vunpack.c.h.b16 %v1523
    %v1844 = vunpack.c.l.b16 %v1524
    %v1845 = vunpack.c.h.b16 %v1524
    %v1846 = vunpack.c.l.b16 %v1525
    %v1847 = vunpack.c.h.b16 %v1525
    %v1848 = vunpack.c.l.b16 %v1526
    %v1849 = vunpack.c.h.b16 %v1526
    %v1850 = vunpack.c.l.b16 %v1527
    %v1851 = vunpack.c.h.b16 %v1527
    %v1852 = vunpack.c.l.b16 %v1528
    %v1853 = vunpack.c.h.b16 %v1528
    %v1854 = vunpack.c.l.b16 %v1529
    %v1855 = vunpack.c.h.b16 %v1529
    %v1856 = vunpack.c.l.b16 %v1530
    %v1857 = vunpack.c.h.b16 %v1530
    %v1858 = vunpack.c.l.b16 %v1531
    %v1859 = vunpack.c.h.b16 %v1531
    %v1860 = vunpack.c.l.b16 %v1532
    %v1861 = vunpack.c.h.b16 %v1532
    %v1862 = vunpack.c.l.b16 %v1533
    %v1863 = vunpack.c.h.b16 %v1533
    %v1864 = vunpack.c.l.b16 %v1534
    %v1865 = vunpack.c.h.b16 %v1534
    %v1866 = vunpack.c.l.b16 %v1535
    %v1867 = vunpack.c.h.b16 %v1535
    %v1868 = vunpack.c.l.b16 %v1536
    %v1869 = vunpack.c.h.b16 %v1536
    %v1870 = vunpack.c.l.b16 %v1537
    %v1871 = vunpack.c.h.b16 %v1537
    %v1872 = vunpack.c.l.b16 %v1538
    %v1873 = vunpack.c.h.b16 %v1538
    %v1874 = vunpack.c.l.b16 %v1539
    %v1875 = vunpack.c.h.b16 %v1539
    %v1876 = vunpack.c.l.b16 %v1540
    %v1877 = vunpack.c.h.b16 %v1540
    %v1878 = vunpack.c.l.b16 %v1541
    %v1879 = vunpack.c.h.b16 %v1541
    %v1880 = vunpack.c.l.b16 %v1542
    %v1881 = vunpack.c.h.b16 %v1542
    %v1882 = vunpack.c.l.b16 %v1543
    %v1883 = vunpack.c.h.b16 %v1543
    %v1884 = vunpack.c.l.b16 %v1544
    %v1885 = vunpack.c.h.b16 %v1544
    %v1886 = vunpack.c.l.b16 %v1545
    %v1887 = vunpack.c.h.b16 %v1545
    %v1888 = vunpack.c.l.b16 %v1546
    %v1889 = vunpack.c.h.b16 %v1546
    %v1890 = vunpack.c.l.b16 %v1547
    %v1891 = vunpack.c.h.b16 %v1547
    %v1892 = vunpack.c.l.b16 %v1548
    %v1893 = vunpack.c.h.b16 %v1548
    %v1894 = vunpack.c.l.b16 %v1549
    %v1895 = vunpack.c.h.b16 %v1549
    %v1896 = vunpack.c.l.b16 %v1550
    %v1897 = vunpack.c.h.b16 %v1550
    %v1898 = vunpack.c.l.b16 %v1551
    %v1899 = vunpack.c.h.b16 %v1551
    %v1900 = vunpack.c.l.b16 %v1552
    %v1901 = vunpack.c.h.b16 %v1552
    %v1902 = vunpack.c.l.b16 %v1553
    %v1903 = vunpack.c.h.b16 %v1553
    %v1904 = vunpack.c.l.b16 %v1554
    %v1905 = vunpack.c.h.b16 %v1554
    %v1906 = vunpack.c.l.b16 %v1555
    %v1907 = vunpack.c.h.b16 %v1555
    %v1908 = vunpack.c.l.b16 %v1556
    %v1909 = vunpack.c.h.b16 %v1556
    %v1910 = vunpack.c.l.b16 %v1557
    %v1911 = vunpack.c.h.b16 %v1557
    %v1912 = vunpack.c.l.b16 %v1558
    %v1913 = vunpack.c.h.b16 %v1558
    %v1914 = vunpack.c.l.b16 %v1559
    %v1915 = vunpack.c.h.b16 %v1559
    %v1916 = vunpack.c.l.b16 %v1560
    %v1917 = vunpack.c.h.b16 %v1560
    %v1918 = vunpack.c.l.b16 %v1561
    %v1919 = vunpack.c.h.b16 %v1561
    %v1920 = vunpack.c.l.b16 %v1562
    %v1921 = vunpack.c.h.b16 %v1562
    %v1922 = vunpack.c.l.b16 %v1563
    %v1923 = vunpack.c.h.b16 %v1563
    %v1924 = vunpack.c.l.b16 %v1564
    %v1925 = vunpack.c.h.b16 %v1564
    %v1926 = vunpack.c.l.b16 %v1565
    %v1927 = vunpack.c.h.b16 %v1565
    %v1928 = vunpack.c.l.b16 %v1566
    %v1929 = vunpack.c.h.b16 %v1566
    %v1930 = vunpack.c.l.b16 %v1567
    %v1931 = vunpack.c.h.b16 %v1567
    %v1932 = vunpack.c.l.b16 %v1568
    %v1933 = vunpack.c.h.b16 %v1568
    %v1934 = vunpack.c.l.b16 %v1569
    %v1935 = vunpack.c.h.b16 %v1569
    %v1936 = vunpack.c.l.b16 %v1570
    %v1937 = vunpack.c.h.b16 %v1570
    %v1938 = vunpack.c.l.b16 %v1571
    %v1939 = vunpack.c.h.b16 %v1571
    %v1940 = vunpack.c.l.b16 %v1572
    %v1941 = vunpack.c.h.b16 %v1572
    %v1942 = vunpack.c.l.b16 %v1573
    %v1943 = vunpack.c.h.b16 %v1573
    %v1944 = vunpack.c.l.b16 %v1574
    %v1945 = vunpack.c.h.b16 %v1574
    %v1946 = vunpack.c.l.b16 %v1575
    %v1947 = vunpack.c.h.b16 %v1575
    %v1948 = vunpack.c.l.b16 %v1576
    %v1949 = vunpack.c.h.b16 %v1576
    %v1950 = vunpack.c.l.b16 %v1577
    %v1951 = vunpack.c.h.b16 %v1577
    %v1952 = vunpack.c.l.b16 %v1578
    %v1953 = vunpack.c.h.b16 %v1578
    %v1954 = vunpack.c.l.b16 %v1579
    %v1955 = vunpack.c.h.b16 %v1579
    %v1956 = vunpack.c.l.b16 %v1580
    %v1957 = vunpack.c.h.b16 %v1580
    %v1958 = vunpack.c.l.b16 %v1581
    %v1959 = vunpack.c.h.b16 %v1581
    %v1960 = vunpack.c.l.b16 %v1582
    %v1961 = vunpack.c.h.b16 %v1582
    %v1962 = vunpack.c.l.b16 %v1583
    %v1963 = vunpack.c.h.b16 %v1583
    %v1964 = vunpack.c.l.b16 %v1584
    %v1965 = vunpack.c.h.b16 %v1584
    %v1966 = vunpack.c.l.b16 %v1585
    %v1967 = vunpack.c.h.b16 %v1585
    %v1968 = vunpack.c.l.b16 %v1586
    %v1969 = vunpack.c.h.b16 %v1586
    %v1970 = vunpack.c.l.b16 %v1587
    %v1971 = vunpack.c.h.b16 %v1587
    %v1972 = vunpack.c.l.b16 %v1588
    %v1973 = vunpack.c.h.b16 %v1588
    %v1974 = vunpack.c.l.b16 %v1589
    %v1975 = vunpack.c.h.b16 %v1589
    %v1976 = vunpack.c.l.b16 %v1590
    %v1977 = vunpack.c.h.b16 %v1590
    %v1978 = vunpack.c.l.b16 %v1591
    %v1979 = vunpack.c.h.b16 %v1591
    %v1980 = vunpack.c.l.b16 %v1592
    %v1981 = vunpack.c.h.b16 %v1592
    %v1982 = vunpack.c.l.b16 %v1593
    %v1983 = vunpack.c.h.b16 %v1593
    %v1984 = vunpack.c.l.b16 %v1594
    %v1985 = vunpack.c.h.b16 %v1594
    %v1986 = vunpack.c.l.b16 %v1595
    %v1987 = vunpack.c.h.b16 %v1595
    %v1988 = vunpack.c.l.b16 %v1596
    %v1989 = vunpack.c.h.b16 %v1596
    %v1990 = vunpack.c.l.b16 %v1597
    %v1991 = vunpack.c.h.b16 %v1597
    %v1992 = vunpack.c.l.b16 %v1598
    %v1993 = vunpack.c.h.b16 %v1598
    %v1994 = vunpack.c.l.b16 %v1599
    %v1995 = vunpack.c.h.b16 %v1599
    %v1996 = vunpack.c.l.b16 %v1600
    %v1997 = vunpack.c.h.b16 %v1600
    %v1998 = vunpack.c.l.b16 %v1601
    %v1999 = vunpack.c.h.b16 %v1601
    %v2000 = vunpack.c.l.b16 %v1602
    %v2001 = vunpack.c.h.b16 %v1602
    %v2002 = vunpack.c.l.b16 %v1603
    %v2003 = vunpack.c.h.b16 %v1603
    %v2004 = vunpack.c.l.b16 %v1604
    %v2005 = vunpack.c.h.b16 %v1604
    %v2006 = vunpack.c.l.b16 %v1605
    %v2007 = vunpack.c.h.b16 %v1605
    %v2008 = vunpack.c.l.b16 %v1606
    %v2009 = vunpack.c.h.b16 %v1606
    %v2010 = vunpack.c.l.b16 %v1607
    %v2011 = vunpack.c.h.b16 %v1607
    %v2012 = vunpack.c.l.b16 %v1608
    %v2013 = vunpack.c.h.b16 %v1608
    %v2014 = vunpack.c.l.b16 %v1609
    %v2015 = vunpack.c.h.b16 %v1609
    %v2016 = vunpack.c.l.b16 %v1610
    %v2017 = vunpack.c.h.b16 %v1610
    %v2018 = vpack.c.b16 %v1766, %v1762
    %v2019 = vpack.c.b16 %v1767, %v1763
    %v2020 = vpack.c.b16 %v1768, %v1764
    %v2021 = vpack.c.b16 %v1769, %v1765
    %v2022 = vpack.c.b16 %v1774, %v1770
    %v2023 = vpack.c.b16 %v1775, %v1771
    %v2024 = vpack.c.b16 %v1776, %v1772
    %v2025 = vpack.c.b16 %v1777, %v1773
    %v2026 = vpack.c.b16 %v1782, %v1778
    %v2027 = vpack.c.b16 %v1783, %v1779
    %v2028 = vpack.c.b16 %v1784, %v1780
    %v2029 = vpack.c.b16 %v1785, %v1781
    %v2030 = vpack.c.b16 %v1790, %v1786
    %v2031 = vpack.c.b16 %v1791, %v1787
    %v2032 = vpack.c.b16 %v1792, %v1788
    %v2033 = vpack.c.b16 %v1793, %v1789
    %v2034 = vpack.c.b16 %v1798, %v1794
    %v2035 = vpack.c.b16 %v1799, %v1795
    %v2036 = vpack.c.b16 %v1800, %v1796
    %v2037 = vpack.c.b16 %v1801, %v1797
    %v2038 = vpack.c.b16 %v1806, %v1802
    %v2039 = vpack.c.b16 %v1807, %v1803
    %v2040 = vpack.c.b16 %v1808, %v1804
    %v2041 = vpack.c.b16 %v1809, %v1805
    %v2042 = vpack.c.b16 %v1814, %v1810
    %v2043 = vpack.c.b16 %v1815, %v1811
    %v2044 = vpack.c.b16 %v1816, %v1812
    %v2045 = vpack.c.b16 %v1817, %v1813
    %v2046 = vpack.c.b16 %v1822, %v1818
    %v2047 = vpack.c.b16 %v1823, %v1819
    %v2048 = vpack.c.b16 %v1824, %v1820
    %v2049 = vpack.c.b16 %v1825, %v1821
    %v2050 = vpack.c.b16 %v1830, %v1826
    %v2051 = vpack.c.b16 %v1831, %v1827
    %v2052 = vpack.c.b16 %v1832, %v1828
    %v2053 = vpack.c.b16 %v1833, %v1829
    %v2054 = vpack.c.b16 %v1838, %v1834
    %v2055 = vpack.c.b16 %v1839, %v1835
    %v2056 = vpack.c.b16 %v1840, %v1836
    %v2057 = vpack.c.b16 %v1841, %v1837
    %v2058 = vpack.c.b16 %v1846, %v1842
    %v2059 = vpack.c.b16 %v1847, %v1843
    %v2060 = vpack.c.b16 %v1848, %v1844
    %v2061 = vpack.c.b16 %v1849, %v1845
    %v2062 = vpack.c.b16 %v1854, %v1850
    %v2063 = vpack.c.b16 %v1855, %v1851
    %v2064 = vpack.c.b16 %v1856, %v1852
    %v2065 = vpack.c.b16 %v1857, %v1853
    %v2066 = vpack.c.b16 %v1862, %v1858
    %v2067 = vpack.c.b16 %v1863, %v1859
    %v2068 = vpack.c.b16 %v1864, %v1860
    %v2069 = vpack.c.b16 %v1865, %v1861
    %v2070 = vpack.c.b16 %v1870, %v1866
    %v2071 = vpack.c.b16 %v1871, %v1867
    %v2072 = vpack.c.b16 %v1872, %v1868
    %v2073 = vpack.c.b16 %v1873, %v1869
    %v2074 = vpack.c.b16 %v1878, %v1874
    %v2075 = vpack.c.b16 %v1879, %v1875
    %v2076 = vpack.c.b16 %v1880, %v1876
    %v2077 = vpack.c.b16 %v1881, %v1877
    %v2078 = vpack.c.b16 %v1886, %v1882
    %v2079 = vpack.c.b16 %v1887, %v1883
    %v2080 = vpack.c.b16 %v1888, %v1884
    %v2081 = vpack.c.b16 %v1889, %v1885
    %v2082 = vpack.c.b16 %v1894, %v1890
    %v2083 = vpack.c.b16 %v1895, %v1891
    %v2084 = vpack.c.b16 %v1896, %v1892
    %v2085 = vpack.c.b16 %v1897, %v1893
    %v2086 = vpack.c.b16 %v1902, %v1898
    %v2087 = vpack.c.b16 %v1903, %v1899
    %v2088 = vpack.c.b16 %v1904, %v1900
    %v2089 = vpack.c.b16 %v1905, %v1901
    %v2090 = vpack.c.b16 %v1910, %v1906
    %v2091 = vpack.c.b16 %v1911, %v1907
    %v2092 = vpack.c.b16 %v1912, %v1908
    %v2093 = vpack.c.b16 %v1913, %v1909
    %v2094 = vpack.c.b16 %v1918, %v1914
    %v2095 = vpack.c.b16 %v1919, %v1915
    %v2096 = vpack.c.b16 %v1920, %v1916
    %v2097 = vpack.c.b16 %v1921, %v1917
    %v2098 = vpack.c.b16 %v1926, %v1922
    %v2099 = vpack.c.b16 %v1927, %v1923
    %v2100 = vpack.c.b16 %v1928, %v1924
    %v2101 = vpack.c.b16 %v1929, %v1925
    %v2102 = vpack.c.b16 %v1934, %v1930
    %v2103 = vpack.c.b16 %v1935, %v1931
    %v2104 = vpack.c.b16 %v1936, %v1932
    %v2105 = vpack.c.b16 %v1937, %v1933
    %v2106 = vpack.c.b16 %v1942, %v1938
    %v2107 = vpack.c.b16 %v1943, %v1939
    %v2108 = vpack.c.b16 %v1944, %v1940
    %v2109 = vpack.c.b16 %v1945, %v1941
    %v2110 = vpack.c.b16 %v1950, %v1946
    %v2111 = vpack.c.b16 %v1951, %v1947
    %v2112 = vpack.c.b16 %v1952, %v1948
    %v2113 = vpack.c.b16 %v1953, %v1949
    %v2114 = vpack.c.b16 %v1958, %v1954
    %v2115 = vpack.c.b16 %v1959, %v1955
    %v2116 = vpack.c.b16 %v1960, %v1956
    %v2117 = vpack.c.b16 %v1961, %v1957
    %v2118 = vpack.c.b16 %v1966, %v1962
    %v2119 = vpack.c.b16 %v1967, %v1963
    %v2120 = vpack.c.b16 %v1968, %v1964
    %v2121 = vpack.c.b16 %v1969, %v1965
    %v2122 = vpack.c.b16 %v1974, %v1970
    %v2123 = vpack.c.b16 %v1975, %v1971
    %v2124 = vpack.c.b16 %v1976, %v1972
    %v2125 = vpack.c.b16 %v1977, %v1973
    %v2126 = vpack.c.b16 %v1982, %v1978
    %v2127 = vpack.c.b16 %v1983, %v1979
    %v2128 = vpack.c.b16 %v1984, %v1980
    %v2129 = vpack.c.b16 %v1985, %v1981
    %v2130 = vpack.c.b16 %v1990, %v1986
    %v2131 = vpack.c.b16 %v1991, %v1987
    %v2132 = vpack.c.b16 %v1992, %v1988
    %v2133 = vpack.c.b16 %v1993, %v1989
    %v2134 = vpack.c.b16 %v1998, %v1994
    %v2135 = vpack.c.b16 %v1999, %v1995
    %v2136 = vpack.c.b16 %v2000, %v1996
    %v2137 = vpack.c.b16 %v2001, %v1997
    %v2138 = vpack.c.b16 %v2006, %v2002
    %v2139 = vpack.c.b16 %v2007, %v2003
    %v2140 = vpack.c.b16 %v2008, %v2004
    %v2141 = vpack.c.b16 %v2009, %v2005
    %v2142 = vpack.c.b16 %v2014, %v2010
    %v2143 = vpack.c.b16 %v2015, %v2011
    %v2144 = vpack.c.b16 %v2016, %v2012
    %v2145 = vpack.c.b16 %v2017, %v2013
    %2274 = vmatprep.subr.bf16.mxu0 %v2047
    %2275 = vmatpush1.bf16.msra.mxu0 %v2046
    %2276 = vmatprep.subr.bf16.mxu0 %v2043
    %2277 = vmatpush1.bf16.msra.mxu0 %v2042
    %2278 = vmatprep.subr.bf16.mxu0 %v2039
    %2279 = vmatpush1.bf16.msra.mxu0 %v2038
    %2280 = vmatprep.subr.bf16.mxu0 %v2035
    %2281 = vmatpush1.bf16.msra.mxu0 %v2034
    %2282 = vmatprep.subr.bf16.mxu0 %v2031
    %2283 = vmatpush1.bf16.msra.mxu0 %v2030
    %2284 = vmatprep.subr.bf16.mxu0 %v2027
    %2285 = vmatpush1.bf16.msra.mxu0 %v2026
    %2286 = vmatprep.subr.bf16.mxu0 %v2023
    %2287 = vmatpush1.bf16.msra.mxu0 %v2022
    %2288 = vmatprep.subr.bf16.mxu0 %v2019
    %2289 = vmatpush1.bf16.msra.mxu0 %v2018
    %2290 = vmatprep.subr.bf16.mxu0 %v2079
    %2291 = vmatpush2.bf16.msra.mxu0 %v2078
    %2292 = vmatprep.subr.bf16.mxu0 %v2075
    %2293 = vmatpush2.bf16.msra.mxu0 %v2074
    %2294 = vmatprep.subr.bf16.mxu0 %v2071
    %2295 = vmatpush2.bf16.msra.mxu0 %v2070
    %2296 = vmatprep.subr.bf16.mxu0 %v2067
    %2297 = vmatpush2.bf16.msra.mxu0 %v2066
    %2298 = vmatprep.subr.bf16.mxu0 %v2063
    %2299 = vmatpush2.bf16.msra.mxu0 %v2062
    %2300 = vmatprep.subr.bf16.mxu0 %v2059
    %2301 = vmatpush2.bf16.msra.mxu0 %v2058
    %2302 = vmatprep.subr.bf16.mxu0 %v2055
    %2303 = vmatpush2.bf16.msra.mxu0 %v2054
    %2304 = vmatprep.subr.bf16.mxu0 %v2051
    %2305 = vmatpush2.bf16.msra.mxu0 %v2050
    %2306 = vmatprep.mubr.bf16.mxu0 %v1467
    %2307 = vmatmul.mubr.bf16.gmra.mxu0 %v1466
    %v2308 = vpop.f32.mrf.mxu0
    %v2309 = vadd.f32 %v1617, %v2308
    %v2310 = vpop.f32.mrf.mxu0
    %v2311 = vadd.f32 %v1621, %v2310
    %v2312 = vpop.f32.mrf.mxu0
    %v2313 = vadd.f32 %v1617, %v2312
    %v2314 = vpop.f32.mrf.mxu0
    %v2315 = vadd.f32 %v1621, %v2314
    %2316 = vmatprep.mubr.bf16.mxu0 %v1471
    %2317 = vmatmul.mubr.bf16.gmra.mxu0 %v1470
    %v2318 = vpop.f32.mrf.mxu0
    %v2319 = vadd.f32 %v1617, %v2318
    %v2320 = vpop.f32.mrf.mxu0
    %v2321 = vadd.f32 %v1621, %v2320
    %v2322 = vpop.f32.mrf.mxu0
    %v2323 = vadd.f32 %v1617, %v2322
    %v2324 = vpop.f32.mrf.mxu0
    %v2325 = vadd.f32 %v1621, %v2324
    %2326 = vmatprep.mubr.bf16.mxu0 %v1475
    %2327 = vmatmul.mubr.bf16.gmra.mxu0 %v1474
    %v2328 = vpop.f32.mrf.mxu0
    %v2329 = vadd.f32 %v1617, %v2328
    %v2330 = vpop.f32.mrf.mxu0
    %v2331 = vadd.f32 %v1621, %v2330
    %v2332 = vpop.f32.mrf.mxu0
    %v2333 = vadd.f32 %v1617, %v2332
    %v2334 = vpop.f32.mrf.mxu0
    %v2335 = vadd.f32 %v1621, %v2334
    %2336 = vmatprep.mubr.bf16.mxu0 %v1479
    %2337 = vmatmul.mubr.bf16.gmra.mxu0 %v1478
    %v2338 = vpop.f32.mrf.mxu0
    %v2339 = vadd.f32 %v1617, %v2338
    %v2340 = vpop.f32.mrf.mxu0
    %v2341 = vadd.f32 %v1621, %v2340
    %v2342 = vpop.f32.mrf.mxu0
    %v2343 = vadd.f32 %v1617, %v2342
    %v2344 = vpop.f32.mrf.mxu0
    %v2345 = vadd.f32 %v1621, %v2344
    %2346 = vdwg.mxu0
    %2347 = vmatprep.subr.bf16.mxu0 %v2111
    %2348 = vmatpush1.bf16.msra.mxu0 %v2110
    %2349 = vmatprep.subr.bf16.mxu0 %v2107
    %2350 = vmatpush1.bf16.msra.mxu0 %v2106
    %2351 = vmatprep.subr.bf16.mxu0 %v2103
    %2352 = vmatpush1.bf16.msra.mxu0 %v2102
    %2353 = vmatprep.subr.bf16.mxu0 %v2099
    %2354 = vmatpush1.bf16.msra.mxu0 %v2098
    %2355 = vmatprep.subr.bf16.mxu0 %v2095
    %2356 = vmatpush1.bf16.msra.mxu0 %v2094
    %2357 = vmatprep.subr.bf16.mxu0 %v2091
    %2358 = vmatpush1.bf16.msra.mxu0 %v2090
    %2359 = vmatprep.subr.bf16.mxu0 %v2087
    %2360 = vmatpush1.bf16.msra.mxu0 %v2086
    %2361 = vmatprep.subr.bf16.mxu0 %v2083
    %2362 = vmatpush1.bf16.msra.mxu0 %v2082
    %2363 = vmatprep.subr.bf16.mxu0 %v2143
    %2364 = vmatpush2.bf16.msra.mxu0 %v2142
    %2365 = vmatprep.subr.bf16.mxu0 %v2139
    %2366 = vmatpush2.bf16.msra.mxu0 %v2138
    %2367 = vmatprep.subr.bf16.mxu0 %v2135
    %2368 = vmatpush2.bf16.msra.mxu0 %v2134
    %2369 = vmatprep.subr.bf16.mxu0 %v2131
    %2370 = vmatpush2.bf16.msra.mxu0 %v2130
    %2371 = vmatprep.subr.bf16.mxu0 %v2127
    %2372 = vmatpush2.bf16.msra.mxu0 %v2126
    %2373 = vmatprep.subr.bf16.mxu0 %v2123
    %2374 = vmatpush2.bf16.msra.mxu0 %v2122
    %2375 = vmatprep.subr.bf16.mxu0 %v2119
    %2376 = vmatpush2.bf16.msra.mxu0 %v2118
    %2377 = vmatprep.subr.bf16.mxu0 %v2115
    %2378 = vmatpush2.bf16.msra.mxu0 %v2114
    %2379 = vmatprep.mubr.bf16.mxu0 %v1469
    %2380 = vmatmul.mubr.bf16.gmra.mxu0 %v1468
    %v2381 = vpop.f32.mrf.mxu0
    %v2382 = vadd.f32 %v2309, %v2381
    %v2383 = vpop.f32.mrf.mxu0
    %v2384 = vadd.f32 %v2311, %v2383
    %v2385 = vpop.f32.mrf.mxu0
    %v2386 = vadd.f32 %v2313, %v2385
    %v2387 = vpop.f32.mrf.mxu0
    %v2388 = vadd.f32 %v2315, %v2387
    %2389 = vmatprep.mubr.bf16.mxu0 %v1473
    %2390 = vmatmul.mubr.bf16.gmra.mxu0 %v1472
    %v2391 = vpop.f32.mrf.mxu0
    %v2392 = vadd.f32 %v2319, %v2391
    %v2393 = vpop.f32.mrf.mxu0
    %v2394 = vadd.f32 %v2321, %v2393
    %v2395 = vpop.f32.mrf.mxu0
    %v2396 = vadd.f32 %v2323, %v2395
    %v2397 = vpop.f32.mrf.mxu0
    %v2398 = vadd.f32 %v2325, %v2397
    %2399 = vmatprep.mubr.bf16.mxu0 %v1477
    %2400 = vmatmul.mubr.bf16.gmra.mxu0 %v1476
    %v2401 = vpop.f32.mrf.mxu0
    %v2402 = vadd.f32 %v2329, %v2401
    %v2403 = vpop.f32.mrf.mxu0
    %v2404 = vadd.f32 %v2331, %v2403
    %v2405 = vpop.f32.mrf.mxu0
    %v2406 = vadd.f32 %v2333, %v2405
    %v2407 = vpop.f32.mrf.mxu0
    %v2408 = vadd.f32 %v2335, %v2407
    %2409 = vmatprep.mubr.bf16.mxu0 %v1481
    %2410 = vmatmul.mubr.bf16.gmra.mxu0 %v1480
    %v2411 = vpop.f32.mrf.mxu0
    %v2412 = vadd.f32 %v2339, %v2411
    %v2413 = vpop.f32.mrf.mxu0
    %v2414 = vadd.f32 %v2341, %v2413
    %v2415 = vpop.f32.mrf.mxu0
    %v2416 = vadd.f32 %v2343, %v2415
    %v2417 = vpop.f32.mrf.mxu0
    %v2418 = vadd.f32 %v2345, %v2417
    %2419 = vdwg.mxu0
    %2420 = vmatprep.subr.bf16.mxu0 %v2049
    %2421 = vmatpush1.bf16.msra.mxu0 %v2048
    %2422 = vmatprep.subr.bf16.mxu0 %v2045
    %2423 = vmatpush1.bf16.msra.mxu0 %v2044
    %2424 = vmatprep.subr.bf16.mxu0 %v2041
    %2425 = vmatpush1.bf16.msra.mxu0 %v2040
    %2426 = vmatprep.subr.bf16.mxu0 %v2037
    %2427 = vmatpush1.bf16.msra.mxu0 %v2036
    %2428 = vmatprep.subr.bf16.mxu0 %v2033
    %2429 = vmatpush1.bf16.msra.mxu0 %v2032
    %2430 = vmatprep.subr.bf16.mxu0 %v2029
    %2431 = vmatpush1.bf16.msra.mxu0 %v2028
    %2432 = vmatprep.subr.bf16.mxu0 %v2025
    %2433 = vmatpush1.bf16.msra.mxu0 %v2024
    %2434 = vmatprep.subr.bf16.mxu0 %v2021
    %2435 = vmatpush1.bf16.msra.mxu0 %v2020
    %2436 = vmatprep.subr.bf16.mxu0 %v2081
    %2437 = vmatpush2.bf16.msra.mxu0 %v2080
    %2438 = vmatprep.subr.bf16.mxu0 %v2077
    %2439 = vmatpush2.bf16.msra.mxu0 %v2076
    %2440 = vmatprep.subr.bf16.mxu0 %v2073
    %2441 = vmatpush2.bf16.msra.mxu0 %v2072
    %2442 = vmatprep.subr.bf16.mxu0 %v2069
    %2443 = vmatpush2.bf16.msra.mxu0 %v2068
    %2444 = vmatprep.subr.bf16.mxu0 %v2065
    %2445 = vmatpush2.bf16.msra.mxu0 %v2064
    %2446 = vmatprep.subr.bf16.mxu0 %v2061
    %2447 = vmatpush2.bf16.msra.mxu0 %v2060
    %2448 = vmatprep.subr.bf16.mxu0 %v2057
    %2449 = vmatpush2.bf16.msra.mxu0 %v2056
    %2450 = vmatprep.subr.bf16.mxu0 %v2053
    %2451 = vmatpush2.bf16.msra.mxu0 %v2052
    %2452 = vmatprep.mubr.bf16.mxu0 %v1467
    %2453 = vmatmul.mubr.bf16.gmra.mxu0 %v1466
    %v2454 = vpop.f32.mrf.mxu0
    %v2455 = vadd.f32 %v1625, %v2454
    %v2456 = vpop.f32.mrf.mxu0
    %v2457 = vadd.f32 %v1629, %v2456
    %v2458 = vpop.f32.mrf.mxu0
    %v2459 = vadd.f32 %v1625, %v2458
    %v2460 = vpop.f32.mrf.mxu0
    %v2461 = vadd.f32 %v1629, %v2460
    %2462 = vmatprep.mubr.bf16.mxu0 %v1471
    %2463 = vmatmul.mubr.bf16.gmra.mxu0 %v1470
    %v2464 = vpop.f32.mrf.mxu0
    %v2465 = vadd.f32 %v1625, %v2464
    %v2466 = vpop.f32.mrf.mxu0
    %v2467 = vadd.f32 %v1629, %v2466
    %v2468 = vpop.f32.mrf.mxu0
    %v2469 = vadd.f32 %v1625, %v2468
    %v2470 = vpop.f32.mrf.mxu0
    %v2471 = vadd.f32 %v1629, %v2470
    %2472 = vmatprep.mubr.bf16.mxu0 %v1475
    %2473 = vmatmul.mubr.bf16.gmra.mxu0 %v1474
    %v2474 = vpop.f32.mrf.mxu0
    %v2475 = vadd.f32 %v1625, %v2474
    %v2476 = vpop.f32.mrf.mxu0
    %v2477 = vadd.f32 %v1629, %v2476
    %v2478 = vpop.f32.mrf.mxu0
    %v2479 = vadd.f32 %v1625, %v2478
    %v2480 = vpop.f32.mrf.mxu0
    %v2481 = vadd.f32 %v1629, %v2480
    %2482 = vmatprep.mubr.bf16.mxu0 %v1479
    %2483 = vmatmul.mubr.bf16.gmra.mxu0 %v1478
    %v2484 = vpop.f32.mrf.mxu0
    %v2485 = vadd.f32 %v1625, %v2484
    %v2486 = vpop.f32.mrf.mxu0
    %v2487 = vadd.f32 %v1629, %v2486
    %v2488 = vpop.f32.mrf.mxu0
    %v2489 = vadd.f32 %v1625, %v2488
    %v2490 = vpop.f32.mrf.mxu0
    %v2491 = vadd.f32 %v1629, %v2490
    %2492 = vdwg.mxu0
    %2493 = vmatprep.subr.bf16.mxu0 %v2113
    %2494 = vmatpush1.bf16.msra.mxu0 %v2112
    %2495 = vmatprep.subr.bf16.mxu0 %v2109
    %2496 = vmatpush1.bf16.msra.mxu0 %v2108
    %2497 = vmatprep.subr.bf16.mxu0 %v2105
    %2498 = vmatpush1.bf16.msra.mxu0 %v2104
    %2499 = vmatprep.subr.bf16.mxu0 %v2101
    %2500 = vmatpush1.bf16.msra.mxu0 %v2100
    %2501 = vmatprep.subr.bf16.mxu0 %v2097
    %2502 = vmatpush1.bf16.msra.mxu0 %v2096
    %2503 = vmatprep.subr.bf16.mxu0 %v2093
    %2504 = vmatpush1.bf16.msra.mxu0 %v2092
    %2505 = vmatprep.subr.bf16.mxu0 %v2089
    %2506 = vmatpush1.bf16.msra.mxu0 %v2088
    %2507 = vmatprep.subr.bf16.mxu0 %v2085
    %2508 = vmatpush1.bf16.msra.mxu0 %v2084
    %2509 = vmatprep.subr.bf16.mxu0 %v2145
    %2510 = vmatpush2.bf16.msra.mxu0 %v2144
    %2511 = vmatprep.subr.bf16.mxu0 %v2141
    %2512 = vmatpush2.bf16.msra.mxu0 %v2140
    %2513 = vmatprep.subr.bf16.mxu0 %v2137
    %2514 = vmatpush2.bf16.msra.mxu0 %v2136
    %2515 = vmatprep.subr.bf16.mxu0 %v2133
    %2516 = vmatpush2.bf16.msra.mxu0 %v2132
    %2517 = vmatprep.subr.bf16.mxu0 %v2129
    %2518 = vmatpush2.bf16.msra.mxu0 %v2128
    %2519 = vmatprep.subr.bf16.mxu0 %v2125
    %2520 = vmatpush2.bf16.msra.mxu0 %v2124
    %2521 = vmatprep.subr.bf16.mxu0 %v2121
    %2522 = vmatpush2.bf16.msra.mxu0 %v2120
    %2523 = vmatprep.subr.bf16.mxu0 %v2117
    %2524 = vmatpush2.bf16.msra.mxu0 %v2116
    %2525 = vmatprep.mubr.bf16.mxu0 %v1469
    %2526 = vmatmul.mubr.bf16.gmra.mxu0 %v1468
    %v2527 = vpop.f32.mrf.mxu0
    %v2528 = vadd.f32 %v2455, %v2527
    %v2529 = vpop.f32.mrf.mxu0
    %v2530 = vadd.f32 %v2457, %v2529
    %v2531 = vpop.f32.mrf.mxu0
    %v2532 = vadd.f32 %v2459, %v2531
    %v2533 = vpop.f32.mrf.mxu0
    %v2534 = vadd.f32 %v2461, %v2533
    %2535 = vmatprep.mubr.bf16.mxu0 %v1473
    %2536 = vmatmul.mubr.bf16.gmra.mxu0 %v1472
    %v2537 = vpop.f32.mrf.mxu0
    %v2538 = vadd.f32 %v2465, %v2537
    %v2539 = vpop.f32.mrf.mxu0
    %v2540 = vadd.f32 %v2467, %v2539
    %v2541 = vpop.f32.mrf.mxu0
    %v2542 = vadd.f32 %v2469, %v2541
    %v2543 = vpop.f32.mrf.mxu0
    %v2544 = vadd.f32 %v2471, %v2543
    %2545 = vmatprep.mubr.bf16.mxu0 %v1477
    %2546 = vmatmul.mubr.bf16.gmra.mxu0 %v1476
    %v2547 = vpop.f32.mrf.mxu0
    %v2548 = vadd.f32 %v2475, %v2547
    %v2549 = vpop.f32.mrf.mxu0
    %v2550 = vadd.f32 %v2477, %v2549
    %v2551 = vpop.f32.mrf.mxu0
    %v2552 = vadd.f32 %v2479, %v2551
    %v2553 = vpop.f32.mrf.mxu0
    %v2554 = vadd.f32 %v2481, %v2553
    %2555 = vmatprep.mubr.bf16.mxu0 %v1481
    %2556 = vmatmul.mubr.bf16.gmra.mxu0 %v1480
    %v2557 = vpop.f32.mrf.mxu0
    %v2558 = vadd.f32 %v2485, %v2557
    %v2559 = vpop.f32.mrf.mxu0
    %v2560 = vadd.f32 %v2487, %v2559
    %v2561 = vpop.f32.mrf.mxu0
    %v2562 = vadd.f32 %v2489, %v2561
    %v2563 = vpop.f32.mrf.mxu0
    %v2564 = vadd.f32 %v2491, %v2563
    %2565 = vdwg.mxu0
    %v2566 = vmax.f32 %v2382, 0.0
    %v2567 = vmax.f32 %v2384, 0.0
    %v2568 = vmax.f32 %v2528, 0.0
    %v2569 = vmax.f32 %v2530, 0.0
    %v2570 = vmax.f32 %v2386, 0.0
    %v2571 = vmax.f32 %v2388, 0.0
    %v2572 = vmax.f32 %v2532, 0.0
    %v2573 = vmax.f32 %v2534, 0.0
    %v2574 = vmax.f32 %v2392, 0.0
    %v2575 = vmax.f32 %v2394, 0.0
    %v2576 = vmax.f32 %v2538, 0.0
    %v2577 = vmax.f32 %v2540, 0.0
    %v2578 = vmax.f32 %v2396, 0.0
    %v2579 = vmax.f32 %v2398, 0.0
    %v2580 = vmax.f32 %v2542, 0.0
    %v2581 = vmax.f32 %v2544, 0.0
    %v2582 = vmax.f32 %v2402, 0.0
    %v2583 = vmax.f32 %v2404, 0.0
    %v2584 = vmax.f32 %v2548, 0.0
    %v2585 = vmax.f32 %v2550, 0.0
    %v2586 = vmax.f32 %v2406, 0.0
    %v2587 = vmax.f32 %v2408, 0.0
    %v2588 = vmax.f32 %v2552, 0.0
    %v2589 = vmax.f32 %v2554, 0.0
    %v2590 = vmax.f32 %v2412, 0.0
    %v2591 = vmax.f32 %v2414, 0.0
    %v2592 = vmax.f32 %v2558, 0.0
    %v2593 = vmax.f32 %v2560, 0.0
    %v2594 = vmax.f32 %v2416, 0.0
    %v2595 = vmax.f32 %v2418, 0.0
    %v2596 = vmax.f32 %v2562, 0.0
    %v2597 = vmax.f32 %v2564, 0.0
    %v2598 = vpack.c.bf16 %v2570, %v2566
    %v2599 = vpack.c.bf16 %v2571, %v2567
    %v2600 = vpack.c.bf16 %v2572, %v2568
    %v2601 = vpack.c.bf16 %v2573, %v2569
    %v2602 = vpack.c.bf16 %v2578, %v2574
    %v2603 = vpack.c.bf16 %v2579, %v2575
    %v2604 = vpack.c.bf16 %v2580, %v2576
    %v2605 = vpack.c.bf16 %v2581, %v2577
    %v2606 = vpack.c.bf16 %v2586, %v2582
    %v2607 = vpack.c.bf16 %v2587, %v2583
    %v2608 = vpack.c.bf16 %v2588, %v2584
    %v2609 = vpack.c.bf16 %v2589, %v2585
    %v2610 = vpack.c.bf16 %v2594, %v2590
    %v2611 = vpack.c.bf16 %v2595, %v2591
    %v2612 = vpack.c.bf16 %v2596, %v2592
    %v2613 = vpack.c.bf16 %v2597, %v2593
    %s2614 = scalar_lea.vmem [#allocation6], 2048
    %v2615 = vld [vmem:[%s2614] sm:$0xff]
    %v2616 = vld [vmem:[%s2614 + $0x8] sm:$0xff]
    %v2617 = vld [vmem:[%s2614 + $0x10] sm:$0xff]
    %v2618 = vld [vmem:[%s2614 + $0x18] sm:$0xff]
    %v2619 = vld [vmem:[%s2614 + $0x20] sm:$0xff]
    %v2620 = vld [vmem:[%s2614 + $0x28] sm:$0xff]
    %v2621 = vld [vmem:[%s2614 + $0x30] sm:$0xff]
    %v2622 = vld [vmem:[%s2614 + $0x38] sm:$0xff]
    %v2623 = vld [vmem:[%s2614 + $0x40] sm:$0xff]
    %v2624 = vld [vmem:[%s2614 + $0x48] sm:$0xff]
    %v2625 = vld [vmem:[%s2614 + $0x50] sm:$0xff]
    %v2626 = vld [vmem:[%s2614 + $0x58] sm:$0xff]
    %v2627 = vld [vmem:[%s2614 + $0x60] sm:$0xff]
    %v2628 = vld [vmem:[%s2614 + $0x68] sm:$0xff]
    %v2629 = vld [vmem:[%s2614 + $0x70] sm:$0xff]
    %v2630 = vld [vmem:[%s2614 + $0x78] sm:$0xff]
    %v2631 = vld [vmem:[%s2614 + $0x80] sm:$0xff]
    %v2632 = vld [vmem:[%s2614 + $0x88] sm:$0xff]
    %v2633 = vld [vmem:[%s2614 + $0x90] sm:$0xff]
    %v2634 = vld [vmem:[%s2614 + $0x98] sm:$0xff]
    %v2635 = vld [vmem:[%s2614 + $0xa0] sm:$0xff]
    %v2636 = vld [vmem:[%s2614 + $0xa8] sm:$0xff]
    %v2637 = vld [vmem:[%s2614 + $0xb0] sm:$0xff]
    %v2638 = vld [vmem:[%s2614 + $0xb8] sm:$0xff]
    %v2639 = vld [vmem:[%s2614 + $0xc0] sm:$0xff]
    %v2640 = vld [vmem:[%s2614 + $0xc8] sm:$0xff]
    %v2641 = vld [vmem:[%s2614 + $0xd0] sm:$0xff]
    %v2642 = vld [vmem:[%s2614 + $0xd8] sm:$0xff]
    %v2643 = vld [vmem:[%s2614 + $0xe0] sm:$0xff]
    %v2644 = vld [vmem:[%s2614 + $0xe8] sm:$0xff]
    %v2645 = vld [vmem:[%s2614 + $0xf0] sm:$0xff]
    %v2646 = vld [vmem:[%s2614 + $0xf8] sm:$0xff]
    %v2647 = vld [vmem:[%s2614 + $0x100] sm:$0xff]
    %v2648 = vld [vmem:[%s2614 + $0x108] sm:$0xff]
    %v2649 = vld [vmem:[%s2614 + $0x110] sm:$0xff]
    %v2650 = vld [vmem:[%s2614 + $0x118] sm:$0xff]
    %v2651 = vld [vmem:[%s2614 + $0x120] sm:$0xff]
    %v2652 = vld [vmem:[%s2614 + $0x128] sm:$0xff]
    %v2653 = vld [vmem:[%s2614 + $0x130] sm:$0xff]
    %v2654 = vld [vmem:[%s2614 + $0x138] sm:$0xff]
    %v2655 = vld [vmem:[%s2614 + $0x140] sm:$0xff]
    %v2656 = vld [vmem:[%s2614 + $0x148] sm:$0xff]
    %v2657 = vld [vmem:[%s2614 + $0x150] sm:$0xff]
    %v2658 = vld [vmem:[%s2614 + $0x158] sm:$0xff]
    %v2659 = vld [vmem:[%s2614 + $0x160] sm:$0xff]
    %v2660 = vld [vmem:[%s2614 + $0x168] sm:$0xff]
    %v2661 = vld [vmem:[%s2614 + $0x170] sm:$0xff]
    %v2662 = vld [vmem:[%s2614 + $0x178] sm:$0xff]
    %v2663 = vld [vmem:[%s2614 + $0x180] sm:$0xff]
    %v2664 = vld [vmem:[%s2614 + $0x188] sm:$0xff]
    %v2665 = vld [vmem:[%s2614 + $0x190] sm:$0xff]
    %v2666 = vld [vmem:[%s2614 + $0x198] sm:$0xff]
    %v2667 = vld [vmem:[%s2614 + $0x1a0] sm:$0xff]
    %v2668 = vld [vmem:[%s2614 + $0x1a8] sm:$0xff]
    %v2669 = vld [vmem:[%s2614 + $0x1b0] sm:$0xff]
    %v2670 = vld [vmem:[%s2614 + $0x1b8] sm:$0xff]
    %v2671 = vld [vmem:[%s2614 + $0x1c0] sm:$0xff]
    %v2672 = vld [vmem:[%s2614 + $0x1c8] sm:$0xff]
    %v2673 = vld [vmem:[%s2614 + $0x1d0] sm:$0xff]
    %v2674 = vld [vmem:[%s2614 + $0x1d8] sm:$0xff]
    %v2675 = vld [vmem:[%s2614 + $0x1e0] sm:$0xff]
    %v2676 = vld [vmem:[%s2614 + $0x1e8] sm:$0xff]
    %v2677 = vld [vmem:[%s2614 + $0x1f0] sm:$0xff]
    %v2678 = vld [vmem:[%s2614 + $0x1f8] sm:$0xff]
    %v2679 = vld [vmem:[%s2614 + $0x200] sm:$0xff]
    %v2680 = vld [vmem:[%s2614 + $0x208] sm:$0xff]
    %v2681 = vld [vmem:[%s2614 + $0x210] sm:$0xff]
    %v2682 = vld [vmem:[%s2614 + $0x218] sm:$0xff]
    %v2683 = vld [vmem:[%s2614 + $0x220] sm:$0xff]
    %v2684 = vld [vmem:[%s2614 + $0x228] sm:$0xff]
    %v2685 = vld [vmem:[%s2614 + $0x230] sm:$0xff]
    %v2686 = vld [vmem:[%s2614 + $0x238] sm:$0xff]
    %v2687 = vld [vmem:[%s2614 + $0x240] sm:$0xff]
    %v2688 = vld [vmem:[%s2614 + $0x248] sm:$0xff]
    %v2689 = vld [vmem:[%s2614 + $0x250] sm:$0xff]
    %v2690 = vld [vmem:[%s2614 + $0x258] sm:$0xff]
    %v2691 = vld [vmem:[%s2614 + $0x260] sm:$0xff]
    %v2692 = vld [vmem:[%s2614 + $0x268] sm:$0xff]
    %v2693 = vld [vmem:[%s2614 + $0x270] sm:$0xff]
    %v2694 = vld [vmem:[%s2614 + $0x278] sm:$0xff]
    %v2695 = vld [vmem:[%s2614 + $0x280] sm:$0xff]
    %v2696 = vld [vmem:[%s2614 + $0x288] sm:$0xff]
    %v2697 = vld [vmem:[%s2614 + $0x290] sm:$0xff]
    %v2698 = vld [vmem:[%s2614 + $0x298] sm:$0xff]
    %v2699 = vld [vmem:[%s2614 + $0x2a0] sm:$0xff]
    %v2700 = vld [vmem:[%s2614 + $0x2a8] sm:$0xff]
    %v2701 = vld [vmem:[%s2614 + $0x2b0] sm:$0xff]
    %v2702 = vld [vmem:[%s2614 + $0x2b8] sm:$0xff]
    %v2703 = vld [vmem:[%s2614 + $0x2c0] sm:$0xff]
    %v2704 = vld [vmem:[%s2614 + $0x2c8] sm:$0xff]
    %v2705 = vld [vmem:[%s2614 + $0x2d0] sm:$0xff]
    %v2706 = vld [vmem:[%s2614 + $0x2d8] sm:$0xff]
    %v2707 = vld [vmem:[%s2614 + $0x2e0] sm:$0xff]
    %v2708 = vld [vmem:[%s2614 + $0x2e8] sm:$0xff]
    %v2709 = vld [vmem:[%s2614 + $0x2f0] sm:$0xff]
    %v2710 = vld [vmem:[%s2614 + $0x2f8] sm:$0xff]
    %v2711 = vld [vmem:[%s2614 + $0x300] sm:$0xff]
    %v2712 = vld [vmem:[%s2614 + $0x308] sm:$0xff]
    %v2713 = vld [vmem:[%s2614 + $0x310] sm:$0xff]
    %v2714 = vld [vmem:[%s2614 + $0x318] sm:$0xff]
    %v2715 = vld [vmem:[%s2614 + $0x320] sm:$0xff]
    %v2716 = vld [vmem:[%s2614 + $0x328] sm:$0xff]
    %v2717 = vld [vmem:[%s2614 + $0x330] sm:$0xff]
    %v2718 = vld [vmem:[%s2614 + $0x338] sm:$0xff]
    %v2719 = vld [vmem:[%s2614 + $0x340] sm:$0xff]
    %v2720 = vld [vmem:[%s2614 + $0x348] sm:$0xff]
    %v2721 = vld [vmem:[%s2614 + $0x350] sm:$0xff]
    %v2722 = vld [vmem:[%s2614 + $0x358] sm:$0xff]
    %v2723 = vld [vmem:[%s2614 + $0x360] sm:$0xff]
    %v2724 = vld [vmem:[%s2614 + $0x368] sm:$0xff]
    %v2725 = vld [vmem:[%s2614 + $0x370] sm:$0xff]
    %v2726 = vld [vmem:[%s2614 + $0x378] sm:$0xff]
    %v2727 = vld [vmem:[%s2614 + $0x380] sm:$0xff]
    %v2728 = vld [vmem:[%s2614 + $0x388] sm:$0xff]
    %v2729 = vld [vmem:[%s2614 + $0x390] sm:$0xff]
    %v2730 = vld [vmem:[%s2614 + $0x398] sm:$0xff]
    %v2731 = vld [vmem:[%s2614 + $0x3a0] sm:$0xff]
    %v2732 = vld [vmem:[%s2614 + $0x3a8] sm:$0xff]
    %v2733 = vld [vmem:[%s2614 + $0x3b0] sm:$0xff]
    %v2734 = vld [vmem:[%s2614 + $0x3b8] sm:$0xff]
    %v2735 = vld [vmem:[%s2614 + $0x3c0] sm:$0xff]
    %v2736 = vld [vmem:[%s2614 + $0x3c8] sm:$0xff]
    %v2737 = vld [vmem:[%s2614 + $0x3d0] sm:$0xff]
    %v2738 = vld [vmem:[%s2614 + $0x3d8] sm:$0xff]
    %v2739 = vld [vmem:[%s2614 + $0x3e0] sm:$0xff]
    %v2740 = vld [vmem:[%s2614 + $0x3e8] sm:$0xff]
    %v2741 = vld [vmem:[%s2614 + $0x3f0] sm:$0xff]
    %v2742 = vld [vmem:[%s2614 + $0x3f8] sm:$0xff]
    %s2743 = scalar_lea.vmem [#allocation9], 3
    %v2744 = vld [vmem:[%s2743] ss:$4 sm:$0xf]
    %v2746 = vlaneseq
    %v2747 = vshrl.u32 %v2746, 7
    %v2748 = vsub.s32 0, %v2747
    %v2749 = vrot.slane %v2744, %v2748
    %v2750 = vlaneseq
    %v2751 = vshrl.u32 %v2750, 7
    %v2752 = vsub.s32 1, %v2751
    %v2753 = vrot.slane %v2744, %v2752
    %v2754 = vlaneseq
    %v2755 = vshrl.u32 %v2754, 7
    %v2756 = vsub.s32 2, %v2755
    %v2757 = vrot.slane %v2744, %v2756
    %v2758 = vlaneseq
    %v2759 = vshrl.u32 %v2758, 7
    %v2760 = vsub.s32 3, %v2759
    %v2761 = vrot.slane %v2744, %v2760
    %v2894 = vunpack.c.l.b16 %v2615
    %v2895 = vunpack.c.h.b16 %v2615
    %v2896 = vunpack.c.l.b16 %v2616
    %v2897 = vunpack.c.h.b16 %v2616
    %v2898 = vunpack.c.l.b16 %v2617
    %v2899 = vunpack.c.h.b16 %v2617
    %v2900 = vunpack.c.l.b16 %v2618
    %v2901 = vunpack.c.h.b16 %v2618
    %v2902 = vunpack.c.l.b16 %v2619
    %v2903 = vunpack.c.h.b16 %v2619
    %v2904 = vunpack.c.l.b16 %v2620
    %v2905 = vunpack.c.h.b16 %v2620
    %v2906 = vunpack.c.l.b16 %v2621
    %v2907 = vunpack.c.h.b16 %v2621
    %v2908 = vunpack.c.l.b16 %v2622
    %v2909 = vunpack.c.h.b16 %v2622
    %v2910 = vunpack.c.l.b16 %v2623
    %v2911 = vunpack.c.h.b16 %v2623
    %v2912 = vunpack.c.l.b16 %v2624
    %v2913 = vunpack.c.h.b16 %v2624
    %v2914 = vunpack.c.l.b16 %v2625
    %v2915 = vunpack.c.h.b16 %v2625
    %v2916 = vunpack.c.l.b16 %v2626
    %v2917 = vunpack.c.h.b16 %v2626
    %v2918 = vunpack.c.l.b16 %v2627
    %v2919 = vunpack.c.h.b16 %v2627
    %v2920 = vunpack.c.l.b16 %v2628
    %v2921 = vunpack.c.h.b16 %v2628
    %v2922 = vunpack.c.l.b16 %v2629
    %v2923 = vunpack.c.h.b16 %v2629
    %v2924 = vunpack.c.l.b16 %v2630
    %v2925 = vunpack.c.h.b16 %v2630
    %v2926 = vunpack.c.l.b16 %v2631
    %v2927 = vunpack.c.h.b16 %v2631
    %v2928 = vunpack.c.l.b16 %v2632
    %v2929 = vunpack.c.h.b16 %v2632
    %v2930 = vunpack.c.l.b16 %v2633
    %v2931 = vunpack.c.h.b16 %v2633
    %v2932 = vunpack.c.l.b16 %v2634
    %v2933 = vunpack.c.h.b16 %v2634
    %v2934 = vunpack.c.l.b16 %v2635
    %v2935 = vunpack.c.h.b16 %v2635
    %v2936 = vunpack.c.l.b16 %v2636
    %v2937 = vunpack.c.h.b16 %v2636
    %v2938 = vunpack.c.l.b16 %v2637
    %v2939 = vunpack.c.h.b16 %v2637
    %v2940 = vunpack.c.l.b16 %v2638
    %v2941 = vunpack.c.h.b16 %v2638
    %v2942 = vunpack.c.l.b16 %v2639
    %v2943 = vunpack.c.h.b16 %v2639
    %v2944 = vunpack.c.l.b16 %v2640
    %v2945 = vunpack.c.h.b16 %v2640
    %v2946 = vunpack.c.l.b16 %v2641
    %v2947 = vunpack.c.h.b16 %v2641
    %v2948 = vunpack.c.l.b16 %v2642
    %v2949 = vunpack.c.h.b16 %v2642
    %v2950 = vunpack.c.l.b16 %v2643
    %v2951 = vunpack.c.h.b16 %v2643
    %v2952 = vunpack.c.l.b16 %v2644
    %v2953 = vunpack.c.h.b16 %v2644
    %v2954 = vunpack.c.l.b16 %v2645
    %v2955 = vunpack.c.h.b16 %v2645
    %v2956 = vunpack.c.l.b16 %v2646
    %v2957 = vunpack.c.h.b16 %v2646
    %v2958 = vunpack.c.l.b16 %v2647
    %v2959 = vunpack.c.h.b16 %v2647
    %v2960 = vunpack.c.l.b16 %v2648
    %v2961 = vunpack.c.h.b16 %v2648
    %v2962 = vunpack.c.l.b16 %v2649
    %v2963 = vunpack.c.h.b16 %v2649
    %v2964 = vunpack.c.l.b16 %v2650
    %v2965 = vunpack.c.h.b16 %v2650
    %v2966 = vunpack.c.l.b16 %v2651
    %v2967 = vunpack.c.h.b16 %v2651
    %v2968 = vunpack.c.l.b16 %v2652
    %v2969 = vunpack.c.h.b16 %v2652
    %v2970 = vunpack.c.l.b16 %v2653
    %v2971 = vunpack.c.h.b16 %v2653
    %v2972 = vunpack.c.l.b16 %v2654
    %v2973 = vunpack.c.h.b16 %v2654
    %v2974 = vunpack.c.l.b16 %v2655
    %v2975 = vunpack.c.h.b16 %v2655
    %v2976 = vunpack.c.l.b16 %v2656
    %v2977 = vunpack.c.h.b16 %v2656
    %v2978 = vunpack.c.l.b16 %v2657
    %v2979 = vunpack.c.h.b16 %v2657
    %v2980 = vunpack.c.l.b16 %v2658
    %v2981 = vunpack.c.h.b16 %v2658
    %v2982 = vunpack.c.l.b16 %v2659
    %v2983 = vunpack.c.h.b16 %v2659
    %v2984 = vunpack.c.l.b16 %v2660
    %v2985 = vunpack.c.h.b16 %v2660
    %v2986 = vunpack.c.l.b16 %v2661
    %v2987 = vunpack.c.h.b16 %v2661
    %v2988 = vunpack.c.l.b16 %v2662
    %v2989 = vunpack.c.h.b16 %v2662
    %v2990 = vunpack.c.l.b16 %v2663
    %v2991 = vunpack.c.h.b16 %v2663
    %v2992 = vunpack.c.l.b16 %v2664
    %v2993 = vunpack.c.h.b16 %v2664
    %v2994 = vunpack.c.l.b16 %v2665
    %v2995 = vunpack.c.h.b16 %v2665
    %v2996 = vunpack.c.l.b16 %v2666
    %v2997 = vunpack.c.h.b16 %v2666
    %v2998 = vunpack.c.l.b16 %v2667
    %v2999 = vunpack.c.h.b16 %v2667
    %v3000 = vunpack.c.l.b16 %v2668
    %v3001 = vunpack.c.h.b16 %v2668
    %v3002 = vunpack.c.l.b16 %v2669
    %v3003 = vunpack.c.h.b16 %v2669
    %v3004 = vunpack.c.l.b16 %v2670
    %v3005 = vunpack.c.h.b16 %v2670
    %v3006 = vunpack.c.l.b16 %v2671
    %v3007 = vunpack.c.h.b16 %v2671
    %v3008 = vunpack.c.l.b16 %v2672
    %v3009 = vunpack.c.h.b16 %v2672
    %v3010 = vunpack.c.l.b16 %v2673
    %v3011 = vunpack.c.h.b16 %v2673
    %v3012 = vunpack.c.l.b16 %v2674
    %v3013 = vunpack.c.h.b16 %v2674
    %v3014 = vunpack.c.l.b16 %v2675
    %v3015 = vunpack.c.h.b16 %v2675
    %v3016 = vunpack.c.l.b16 %v2676
    %v3017 = vunpack.c.h.b16 %v2676
    %v3018 = vunpack.c.l.b16 %v2677
    %v3019 = vunpack.c.h.b16 %v2677
    %v3020 = vunpack.c.l.b16 %v2678
    %v3021 = vunpack.c.h.b16 %v2678
    %v3022 = vunpack.c.l.b16 %v2679
    %v3023 = vunpack.c.h.b16 %v2679
    %v3024 = vunpack.c.l.b16 %v2680
    %v3025 = vunpack.c.h.b16 %v2680
    %v3026 = vunpack.c.l.b16 %v2681
    %v3027 = vunpack.c.h.b16 %v2681
    %v3028 = vunpack.c.l.b16 %v2682
    %v3029 = vunpack.c.h.b16 %v2682
    %v3030 = vunpack.c.l.b16 %v2683
    %v3031 = vunpack.c.h.b16 %v2683
    %v3032 = vunpack.c.l.b16 %v2684
    %v3033 = vunpack.c.h.b16 %v2684
    %v3034 = vunpack.c.l.b16 %v2685
    %v3035 = vunpack.c.h.b16 %v2685
    %v3036 = vunpack.c.l.b16 %v2686
    %v3037 = vunpack.c.h.b16 %v2686
    %v3038 = vunpack.c.l.b16 %v2687
    %v3039 = vunpack.c.h.b16 %v2687
    %v3040 = vunpack.c.l.b16 %v2688
    %v3041 = vunpack.c.h.b16 %v2688
    %v3042 = vunpack.c.l.b16 %v2689
    %v3043 = vunpack.c.h.b16 %v2689
    %v3044 = vunpack.c.l.b16 %v2690
    %v3045 = vunpack.c.h.b16 %v2690
    %v3046 = vunpack.c.l.b16 %v2691
    %v3047 = vunpack.c.h.b16 %v2691
    %v3048 = vunpack.c.l.b16 %v2692
    %v3049 = vunpack.c.h.b16 %v2692
    %v3050 = vunpack.c.l.b16 %v2693
    %v3051 = vunpack.c.h.b16 %v2693
    %v3052 = vunpack.c.l.b16 %v2694
    %v3053 = vunpack.c.h.b16 %v2694
    %v3054 = vunpack.c.l.b16 %v2695
    %v3055 = vunpack.c.h.b16 %v2695
    %v3056 = vunpack.c.l.b16 %v2696
    %v3057 = vunpack.c.h.b16 %v2696
    %v3058 = vunpack.c.l.b16 %v2697
    %v3059 = vunpack.c.h.b16 %v2697
    %v3060 = vunpack.c.l.b16 %v2698
    %v3061 = vunpack.c.h.b16 %v2698
    %v3062 = vunpack.c.l.b16 %v2699
    %v3063 = vunpack.c.h.b16 %v2699
    %v3064 = vunpack.c.l.b16 %v2700
    %v3065 = vunpack.c.h.b16 %v2700
    %v3066 = vunpack.c.l.b16 %v2701
    %v3067 = vunpack.c.h.b16 %v2701
    %v3068 = vunpack.c.l.b16 %v2702
    %v3069 = vunpack.c.h.b16 %v2702
    %v3070 = vunpack.c.l.b16 %v2703
    %v3071 = vunpack.c.h.b16 %v2703
    %v3072 = vunpack.c.l.b16 %v2704
    %v3073 = vunpack.c.h.b16 %v2704
    %v3074 = vunpack.c.l.b16 %v2705
    %v3075 = vunpack.c.h.b16 %v2705
    %v3076 = vunpack.c.l.b16 %v2706
    %v3077 = vunpack.c.h.b16 %v2706
    %v3078 = vunpack.c.l.b16 %v2707
    %v3079 = vunpack.c.h.b16 %v2707
    %v3080 = vunpack.c.l.b16 %v2708
    %v3081 = vunpack.c.h.b16 %v2708
    %v3082 = vunpack.c.l.b16 %v2709
    %v3083 = vunpack.c.h.b16 %v2709
    %v3084 = vunpack.c.l.b16 %v2710
    %v3085 = vunpack.c.h.b16 %v2710
    %v3086 = vunpack.c.l.b16 %v2711
    %v3087 = vunpack.c.h.b16 %v2711
    %v3088 = vunpack.c.l.b16 %v2712
    %v3089 = vunpack.c.h.b16 %v2712
    %v3090 = vunpack.c.l.b16 %v2713
    %v3091 = vunpack.c.h.b16 %v2713
    %v3092 = vunpack.c.l.b16 %v2714
    %v3093 = vunpack.c.h.b16 %v2714
    %v3094 = vunpack.c.l.b16 %v2715
    %v3095 = vunpack.c.h.b16 %v2715
    %v3096 = vunpack.c.l.b16 %v2716
    %v3097 = vunpack.c.h.b16 %v2716
    %v3098 = vunpack.c.l.b16 %v2717
    %v3099 = vunpack.c.h.b16 %v2717
    %v3100 = vunpack.c.l.b16 %v2718
    %v3101 = vunpack.c.h.b16 %v2718
    %v3102 = vunpack.c.l.b16 %v2719
    %v3103 = vunpack.c.h.b16 %v2719
    %v3104 = vunpack.c.l.b16 %v2720
    %v3105 = vunpack.c.h.b16 %v2720
    %v3106 = vunpack.c.l.b16 %v2721
    %v3107 = vunpack.c.h.b16 %v2721
    %v3108 = vunpack.c.l.b16 %v2722
    %v3109 = vunpack.c.h.b16 %v2722
    %v3110 = vunpack.c.l.b16 %v2723
    %v3111 = vunpack.c.h.b16 %v2723
    %v3112 = vunpack.c.l.b16 %v2724
    %v3113 = vunpack.c.h.b16 %v2724
    %v3114 = vunpack.c.l.b16 %v2725
    %v3115 = vunpack.c.h.b16 %v2725
    %v3116 = vunpack.c.l.b16 %v2726
    %v3117 = vunpack.c.h.b16 %v2726
    %v3118 = vunpack.c.l.b16 %v2727
    %v3119 = vunpack.c.h.b16 %v2727
    %v3120 = vunpack.c.l.b16 %v2728
    %v3121 = vunpack.c.h.b16 %v2728
    %v3122 = vunpack.c.l.b16 %v2729
    %v3123 = vunpack.c.h.b16 %v2729
    %v3124 = vunpack.c.l.b16 %v2730
    %v3125 = vunpack.c.h.b16 %v2730
    %v3126 = vunpack.c.l.b16 %v2731
    %v3127 = vunpack.c.h.b16 %v2731
    %v3128 = vunpack.c.l.b16 %v2732
    %v3129 = vunpack.c.h.b16 %v2732
    %v3130 = vunpack.c.l.b16 %v2733
    %v3131 = vunpack.c.h.b16 %v2733
    %v3132 = vunpack.c.l.b16 %v2734
    %v3133 = vunpack.c.h.b16 %v2734
    %v3134 = vunpack.c.l.b16 %v2735
    %v3135 = vunpack.c.h.b16 %v2735
    %v3136 = vunpack.c.l.b16 %v2736
    %v3137 = vunpack.c.h.b16 %v2736
    %v3138 = vunpack.c.l.b16 %v2737
    %v3139 = vunpack.c.h.b16 %v2737
    %v3140 = vunpack.c.l.b16 %v2738
    %v3141 = vunpack.c.h.b16 %v2738
    %v3142 = vunpack.c.l.b16 %v2739
    %v3143 = vunpack.c.h.b16 %v2739
    %v3144 = vunpack.c.l.b16 %v2740
    %v3145 = vunpack.c.h.b16 %v2740
    %v3146 = vunpack.c.l.b16 %v2741
    %v3147 = vunpack.c.h.b16 %v2741
    %v3148 = vunpack.c.l.b16 %v2742
    %v3149 = vunpack.c.h.b16 %v2742
    %v3150 = vpack.c.b16 %v2898, %v2894
    %v3151 = vpack.c.b16 %v2899, %v2895
    %v3152 = vpack.c.b16 %v2900, %v2896
    %v3153 = vpack.c.b16 %v2901, %v2897
    %v3154 = vpack.c.b16 %v2906, %v2902
    %v3155 = vpack.c.b16 %v2907, %v2903
    %v3156 = vpack.c.b16 %v2908, %v2904
    %v3157 = vpack.c.b16 %v2909, %v2905
    %v3158 = vpack.c.b16 %v2914, %v2910
    %v3159 = vpack.c.b16 %v2915, %v2911
    %v3160 = vpack.c.b16 %v2916, %v2912
    %v3161 = vpack.c.b16 %v2917, %v2913
    %v3162 = vpack.c.b16 %v2922, %v2918
    %v3163 = vpack.c.b16 %v2923, %v2919
    %v3164 = vpack.c.b16 %v2924, %v2920
    %v3165 = vpack.c.b16 %v2925, %v2921
    %v3166 = vpack.c.b16 %v2930, %v2926
    %v3167 = vpack.c.b16 %v2931, %v2927
    %v3168 = vpack.c.b16 %v2932, %v2928
    %v3169 = vpack.c.b16 %v2933, %v2929
    %v3170 = vpack.c.b16 %v2938, %v2934
    %v3171 = vpack.c.b16 %v2939, %v2935
    %v3172 = vpack.c.b16 %v2940, %v2936
    %v3173 = vpack.c.b16 %v2941, %v2937
    %v3174 = vpack.c.b16 %v2946, %v2942
    %v3175 = vpack.c.b16 %v2947, %v2943
    %v3176 = vpack.c.b16 %v2948, %v2944
    %v3177 = vpack.c.b16 %v2949, %v2945
    %v3178 = vpack.c.b16 %v2954, %v2950
    %v3179 = vpack.c.b16 %v2955, %v2951
    %v3180 = vpack.c.b16 %v2956, %v2952
    %v3181 = vpack.c.b16 %v2957, %v2953
    %v3182 = vpack.c.b16 %v2962, %v2958
    %v3183 = vpack.c.b16 %v2963, %v2959
    %v3184 = vpack.c.b16 %v2964, %v2960
    %v3185 = vpack.c.b16 %v2965, %v2961
    %v3186 = vpack.c.b16 %v2970, %v2966
    %v3187 = vpack.c.b16 %v2971, %v2967
    %v3188 = vpack.c.b16 %v2972, %v2968
    %v3189 = vpack.c.b16 %v2973, %v2969
    %v3190 = vpack.c.b16 %v2978, %v2974
    %v3191 = vpack.c.b16 %v2979, %v2975
    %v3192 = vpack.c.b16 %v2980, %v2976
    %v3193 = vpack.c.b16 %v2981, %v2977
    %v3194 = vpack.c.b16 %v2986, %v2982
    %v3195 = vpack.c.b16 %v2987, %v2983
    %v3196 = vpack.c.b16 %v2988, %v2984
    %v3197 = vpack.c.b16 %v2989, %v2985
    %v3198 = vpack.c.b16 %v2994, %v2990
    %v3199 = vpack.c.b16 %v2995, %v2991
    %v3200 = vpack.c.b16 %v2996, %v2992
    %v3201 = vpack.c.b16 %v2997, %v2993
    %v3202 = vpack.c.b16 %v3002, %v2998
    %v3203 = vpack.c.b16 %v3003, %v2999
    %v3204 = vpack.c.b16 %v3004, %v3000
    %v3205 = vpack.c.b16 %v3005, %v3001
    %v3206 = vpack.c.b16 %v3010, %v3006
    %v3207 = vpack.c.b16 %v3011, %v3007
    %v3208 = vpack.c.b16 %v3012, %v3008
    %v3209 = vpack.c.b16 %v3013, %v3009
    %v3210 = vpack.c.b16 %v3018, %v3014
    %v3211 = vpack.c.b16 %v3019, %v3015
    %v3212 = vpack.c.b16 %v3020, %v3016
    %v3213 = vpack.c.b16 %v3021, %v3017
    %v3214 = vpack.c.b16 %v3026, %v3022
    %v3215 = vpack.c.b16 %v3027, %v3023
    %v3216 = vpack.c.b16 %v3028, %v3024
    %v3217 = vpack.c.b16 %v3029, %v3025
    %v3218 = vpack.c.b16 %v3034, %v3030
    %v3219 = vpack.c.b16 %v3035, %v3031
    %v3220 = vpack.c.b16 %v3036, %v3032
    %v3221 = vpack.c.b16 %v3037, %v3033
    %v3222 = vpack.c.b16 %v3042, %v3038
    %v3223 = vpack.c.b16 %v3043, %v3039
    %v3224 = vpack.c.b16 %v3044, %v3040
    %v3225 = vpack.c.b16 %v3045, %v3041
    %v3226 = vpack.c.b16 %v3050, %v3046
    %v3227 = vpack.c.b16 %v3051, %v3047
    %v3228 = vpack.c.b16 %v3052, %v3048
    %v3229 = vpack.c.b16 %v3053, %v3049
    %v3230 = vpack.c.b16 %v3058, %v3054
    %v3231 = vpack.c.b16 %v3059, %v3055
    %v3232 = vpack.c.b16 %v3060, %v3056
    %v3233 = vpack.c.b16 %v3061, %v3057
    %v3234 = vpack.c.b16 %v3066, %v3062
    %v3235 = vpack.c.b16 %v3067, %v3063
    %v3236 = vpack.c.b16 %v3068, %v3064
    %v3237 = vpack.c.b16 %v3069, %v3065
    %v3238 = vpack.c.b16 %v3074, %v3070
    %v3239 = vpack.c.b16 %v3075, %v3071
    %v3240 = vpack.c.b16 %v3076, %v3072
    %v3241 = vpack.c.b16 %v3077, %v3073
    %v3242 = vpack.c.b16 %v3082, %v3078
    %v3243 = vpack.c.b16 %v3083, %v3079
    %v3244 = vpack.c.b16 %v3084, %v3080
    %v3245 = vpack.c.b16 %v3085, %v3081
    %v3246 = vpack.c.b16 %v3090, %v3086
    %v3247 = vpack.c.b16 %v3091, %v3087
    %v3248 = vpack.c.b16 %v3092, %v3088
    %v3249 = vpack.c.b16 %v3093, %v3089
    %v3250 = vpack.c.b16 %v3098, %v3094
    %v3251 = vpack.c.b16 %v3099, %v3095
    %v3252 = vpack.c.b16 %v3100, %v3096
    %v3253 = vpack.c.b16 %v3101, %v3097
    %v3254 = vpack.c.b16 %v3106, %v3102
    %v3255 = vpack.c.b16 %v3107, %v3103
    %v3256 = vpack.c.b16 %v3108, %v3104
    %v3257 = vpack.c.b16 %v3109, %v3105
    %v3258 = vpack.c.b16 %v3114, %v3110
    %v3259 = vpack.c.b16 %v3115, %v3111
    %v3260 = vpack.c.b16 %v3116, %v3112
    %v3261 = vpack.c.b16 %v3117, %v3113
    %v3262 = vpack.c.b16 %v3122, %v3118
    %v3263 = vpack.c.b16 %v3123, %v3119
    %v3264 = vpack.c.b16 %v3124, %v3120
    %v3265 = vpack.c.b16 %v3125, %v3121
    %v3266 = vpack.c.b16 %v3130, %v3126
    %v3267 = vpack.c.b16 %v3131, %v3127
    %v3268 = vpack.c.b16 %v3132, %v3128
    %v3269 = vpack.c.b16 %v3133, %v3129
    %v3270 = vpack.c.b16 %v3138, %v3134
    %v3271 = vpack.c.b16 %v3139, %v3135
    %v3272 = vpack.c.b16 %v3140, %v3136
    %v3273 = vpack.c.b16 %v3141, %v3137
    %v3274 = vpack.c.b16 %v3146, %v3142
    %v3275 = vpack.c.b16 %v3147, %v3143
    %v3276 = vpack.c.b16 %v3148, %v3144
    %v3277 = vpack.c.b16 %v3149, %v3145
    %3406 = vmatprep.subr.bf16.mxu0 %v3179
    %3407 = vmatpush1.bf16.msra.mxu0 %v3178
    %3408 = vmatprep.subr.bf16.mxu0 %v3175
    %3409 = vmatpush1.bf16.msra.mxu0 %v3174
    %3410 = vmatprep.subr.bf16.mxu0 %v3171
    %3411 = vmatpush1.bf16.msra.mxu0 %v3170
    %3412 = vmatprep.subr.bf16.mxu0 %v3167
    %3413 = vmatpush1.bf16.msra.mxu0 %v3166
    %3414 = vmatprep.subr.bf16.mxu0 %v3163
    %3415 = vmatpush1.bf16.msra.mxu0 %v3162
    %3416 = vmatprep.subr.bf16.mxu0 %v3159
    %3417 = vmatpush1.bf16.msra.mxu0 %v3158
    %3418 = vmatprep.subr.bf16.mxu0 %v3155
    %3419 = vmatpush1.bf16.msra.mxu0 %v3154
    %3420 = vmatprep.subr.bf16.mxu0 %v3151
    %3421 = vmatpush1.bf16.msra.mxu0 %v3150
    %3422 = vmatprep.subr.bf16.mxu0 %v3211
    %3423 = vmatpush2.bf16.msra.mxu0 %v3210
    %3424 = vmatprep.subr.bf16.mxu0 %v3207
    %3425 = vmatpush2.bf16.msra.mxu0 %v3206
    %3426 = vmatprep.subr.bf16.mxu0 %v3203
    %3427 = vmatpush2.bf16.msra.mxu0 %v3202
    %3428 = vmatprep.subr.bf16.mxu0 %v3199
    %3429 = vmatpush2.bf16.msra.mxu0 %v3198
    %3430 = vmatprep.subr.bf16.mxu0 %v3195
    %3431 = vmatpush2.bf16.msra.mxu0 %v3194
    %3432 = vmatprep.subr.bf16.mxu0 %v3191
    %3433 = vmatpush2.bf16.msra.mxu0 %v3190
    %3434 = vmatprep.subr.bf16.mxu0 %v3187
    %3435 = vmatpush2.bf16.msra.mxu0 %v3186
    %3436 = vmatprep.subr.bf16.mxu0 %v3183
    %3437 = vmatpush2.bf16.msra.mxu0 %v3182
    %3438 = vmatprep.mubr.bf16.mxu0 %v2599
    %3439 = vmatmul.mubr.bf16.gmra.mxu0 %v2598
    %v3440 = vpop.f32.mrf.mxu0
    %v3441 = vadd.f32 %v2749, %v3440
    %v3442 = vpop.f32.mrf.mxu0
    %v3443 = vadd.f32 %v2753, %v3442
    %v3444 = vpop.f32.mrf.mxu0
    %v3445 = vadd.f32 %v2749, %v3444
    %v3446 = vpop.f32.mrf.mxu0
    %v3447 = vadd.f32 %v2753, %v3446
    %3448 = vmatprep.mubr.bf16.mxu0 %v2603
    %3449 = vmatmul.mubr.bf16.gmra.mxu0 %v2602
    %v3450 = vpop.f32.mrf.mxu0
    %v3451 = vadd.f32 %v2749, %v3450
    %v3452 = vpop.f32.mrf.mxu0
    %v3453 = vadd.f32 %v2753, %v3452
    %v3454 = vpop.f32.mrf.mxu0
    %v3455 = vadd.f32 %v2749, %v3454
    %v3456 = vpop.f32.mrf.mxu0
    %v3457 = vadd.f32 %v2753, %v3456
    %3458 = vmatprep.mubr.bf16.mxu0 %v2607
    %3459 = vmatmul.mubr.bf16.gmra.mxu0 %v2606
    %v3460 = vpop.f32.mrf.mxu0
    %v3461 = vadd.f32 %v2749, %v3460
    %v3462 = vpop.f32.mrf.mxu0
    %v3463 = vadd.f32 %v2753, %v3462
    %v3464 = vpop.f32.mrf.mxu0
    %v3465 = vadd.f32 %v2749, %v3464
    %v3466 = vpop.f32.mrf.mxu0
    %v3467 = vadd.f32 %v2753, %v3466
    %3468 = vmatprep.mubr.bf16.mxu0 %v2611
    %3469 = vmatmul.mubr.bf16.gmra.mxu0 %v2610
    %v3470 = vpop.f32.mrf.mxu0
    %v3471 = vadd.f32 %v2749, %v3470
    %v3472 = vpop.f32.mrf.mxu0
    %v3473 = vadd.f32 %v2753, %v3472
    %v3474 = vpop.f32.mrf.mxu0
    %v3475 = vadd.f32 %v2749, %v3474
    %v3476 = vpop.f32.mrf.mxu0
    %v3477 = vadd.f32 %v2753, %v3476
    %3478 = vdwg.mxu0
    %3479 = vmatprep.subr.bf16.mxu0 %v3243
    %3480 = vmatpush1.bf16.msra.mxu0 %v3242
    %3481 = vmatprep.subr.bf16.mxu0 %v3239
    %3482 = vmatpush1.bf16.msra.mxu0 %v3238
    %3483 = vmatprep.subr.bf16.mxu0 %v3235
    %3484 = vmatpush1.bf16.msra.mxu0 %v3234
    %3485 = vmatprep.subr.bf16.mxu0 %v3231
    %3486 = vmatpush1.bf16.msra.mxu0 %v3230
    %3487 = vmatprep.subr.bf16.mxu0 %v3227
    %3488 = vmatpush1.bf16.msra.mxu0 %v3226
    %3489 = vmatprep.subr.bf16.mxu0 %v3223
    %3490 = vmatpush1.bf16.msra.mxu0 %v3222
    %3491 = vmatprep.subr.bf16.mxu0 %v3219
    %3492 = vmatpush1.bf16.msra.mxu0 %v3218
    %3493 = vmatprep.subr.bf16.mxu0 %v3215
    %3494 = vmatpush1.bf16.msra.mxu0 %v3214
    %3495 = vmatprep.subr.bf16.mxu0 %v3275
    %3496 = vmatpush2.bf16.msra.mxu0 %v3274
    %3497 = vmatprep.subr.bf16.mxu0 %v3271
    %3498 = vmatpush2.bf16.msra.mxu0 %v3270
    %3499 = vmatprep.subr.bf16.mxu0 %v3267
    %3500 = vmatpush2.bf16.msra.mxu0 %v3266
    %3501 = vmatprep.subr.bf16.mxu0 %v3263
    %3502 = vmatpush2.bf16.msra.mxu0 %v3262
    %3503 = vmatprep.subr.bf16.mxu0 %v3259
    %3504 = vmatpush2.bf16.msra.mxu0 %v3258
    %3505 = vmatprep.subr.bf16.mxu0 %v3255
    %3506 = vmatpush2.bf16.msra.mxu0 %v3254
    %3507 = vmatprep.subr.bf16.mxu0 %v3251
    %3508 = vmatpush2.bf16.msra.mxu0 %v3250
    %3509 = vmatprep.subr.bf16.mxu0 %v3247
    %3510 = vmatpush2.bf16.msra.mxu0 %v3246
    %3511 = vmatprep.mubr.bf16.mxu0 %v2601
    %3512 = vmatmul.mubr.bf16.gmra.mxu0 %v2600
    %v3513 = vpop.f32.mrf.mxu0
    %v3514 = vadd.f32 %v3441, %v3513
    %v3515 = vpop.f32.mrf.mxu0
    %v3516 = vadd.f32 %v3443, %v3515
    %v3517 = vpop.f32.mrf.mxu0
    %v3518 = vadd.f32 %v3445, %v3517
    %v3519 = vpop.f32.mrf.mxu0
    %v3520 = vadd.f32 %v3447, %v3519
    %3521 = vmatprep.mubr.bf16.mxu0 %v2605
    %3522 = vmatmul.mubr.bf16.gmra.mxu0 %v2604
    %v3523 = vpop.f32.mrf.mxu0
    %v3524 = vadd.f32 %v3451, %v3523
    %v3525 = vpop.f32.mrf.mxu0
    %v3526 = vadd.f32 %v3453, %v3525
    %v3527 = vpop.f32.mrf.mxu0
    %v3528 = vadd.f32 %v3455, %v3527
    %v3529 = vpop.f32.mrf.mxu0
    %v3530 = vadd.f32 %v3457, %v3529
    %3531 = vmatprep.mubr.bf16.mxu0 %v2609
    %3532 = vmatmul.mubr.bf16.gmra.mxu0 %v2608
    %v3533 = vpop.f32.mrf.mxu0
    %v3534 = vadd.f32 %v3461, %v3533
    %v3535 = vpop.f32.mrf.mxu0
    %v3536 = vadd.f32 %v3463, %v3535
    %v3537 = vpop.f32.mrf.mxu0
    %v3538 = vadd.f32 %v3465, %v3537
    %v3539 = vpop.f32.mrf.mxu0
    %v3540 = vadd.f32 %v3467, %v3539
    %3541 = vmatprep.mubr.bf16.mxu0 %v2613
    %3542 = vmatmul.mubr.bf16.gmra.mxu0 %v2612
    %v3543 = vpop.f32.mrf.mxu0
    %v3544 = vadd.f32 %v3471, %v3543
    %v3545 = vpop.f32.mrf.mxu0
    %v3546 = vadd.f32 %v3473, %v3545
    %v3547 = vpop.f32.mrf.mxu0
    %v3548 = vadd.f32 %v3475, %v3547
    %v3549 = vpop.f32.mrf.mxu0
    %v3550 = vadd.f32 %v3477, %v3549
    %3551 = vdwg.mxu0
    %3552 = vmatprep.subr.bf16.mxu0 %v3181
    %3553 = vmatpush1.bf16.msra.mxu0 %v3180
    %3554 = vmatprep.subr.bf16.mxu0 %v3177
    %3555 = vmatpush1.bf16.msra.mxu0 %v3176
    %3556 = vmatprep.subr.bf16.mxu0 %v3173
    %3557 = vmatpush1.bf16.msra.mxu0 %v3172
    %3558 = vmatprep.subr.bf16.mxu0 %v3169
    %3559 = vmatpush1.bf16.msra.mxu0 %v3168
    %3560 = vmatprep.subr.bf16.mxu0 %v3165
    %3561 = vmatpush1.bf16.msra.mxu0 %v3164
    %3562 = vmatprep.subr.bf16.mxu0 %v3161
    %3563 = vmatpush1.bf16.msra.mxu0 %v3160
    %3564 = vmatprep.subr.bf16.mxu0 %v3157
    %3565 = vmatpush1.bf16.msra.mxu0 %v3156
    %3566 = vmatprep.subr.bf16.mxu0 %v3153
    %3567 = vmatpush1.bf16.msra.mxu0 %v3152
    %3568 = vmatprep.subr.bf16.mxu0 %v3213
    %3569 = vmatpush2.bf16.msra.mxu0 %v3212
    %3570 = vmatprep.subr.bf16.mxu0 %v3209
    %3571 = vmatpush2.bf16.msra.mxu0 %v3208
    %3572 = vmatprep.subr.bf16.mxu0 %v3205
    %3573 = vmatpush2.bf16.msra.mxu0 %v3204
    %3574 = vmatprep.subr.bf16.mxu0 %v3201
    %3575 = vmatpush2.bf16.msra.mxu0 %v3200
    %3576 = vmatprep.subr.bf16.mxu0 %v3197
    %3577 = vmatpush2.bf16.msra.mxu0 %v3196
    %3578 = vmatprep.subr.bf16.mxu0 %v3193
    %3579 = vmatpush2.bf16.msra.mxu0 %v3192
    %3580 = vmatprep.subr.bf16.mxu0 %v3189
    %3581 = vmatpush2.bf16.msra.mxu0 %v3188
    %3582 = vmatprep.subr.bf16.mxu0 %v3185
    %3583 = vmatpush2.bf16.msra.mxu0 %v3184
    %3584 = vmatprep.mubr.bf16.mxu0 %v2599
    %3585 = vmatmul.mubr.bf16.gmra.mxu0 %v2598
    %v3586 = vpop.f32.mrf.mxu0
    %v3587 = vadd.f32 %v2757, %v3586
    %v3588 = vpop.f32.mrf.mxu0
    %v3589 = vadd.f32 %v2761, %v3588
    %v3590 = vpop.f32.mrf.mxu0
    %v3591 = vadd.f32 %v2757, %v3590
    %v3592 = vpop.f32.mrf.mxu0
    %v3593 = vadd.f32 %v2761, %v3592
    %3594 = vmatprep.mubr.bf16.mxu0 %v2603
    %3595 = vmatmul.mubr.bf16.gmra.mxu0 %v2602
    %v3596 = vpop.f32.mrf.mxu0
    %v3597 = vadd.f32 %v2757, %v3596
    %v3598 = vpop.f32.mrf.mxu0
    %v3599 = vadd.f32 %v2761, %v3598
    %v3600 = vpop.f32.mrf.mxu0
    %v3601 = vadd.f32 %v2757, %v3600
    %v3602 = vpop.f32.mrf.mxu0
    %v3603 = vadd.f32 %v2761, %v3602
    %3604 = vmatprep.mubr.bf16.mxu0 %v2607
    %3605 = vmatmul.mubr.bf16.gmra.mxu0 %v2606
    %v3606 = vpop.f32.mrf.mxu0
    %v3607 = vadd.f32 %v2757, %v3606
    %v3608 = vpop.f32.mrf.mxu0
    %v3609 = vadd.f32 %v2761, %v3608
    %v3610 = vpop.f32.mrf.mxu0
    %v3611 = vadd.f32 %v2757, %v3610
    %v3612 = vpop.f32.mrf.mxu0
    %v3613 = vadd.f32 %v2761, %v3612
    %3614 = vmatprep.mubr.bf16.mxu0 %v2611
    %3615 = vmatmul.mubr.bf16.gmra.mxu0 %v2610
    %v3616 = vpop.f32.mrf.mxu0
    %v3617 = vadd.f32 %v2757, %v3616
    %v3618 = vpop.f32.mrf.mxu0
    %v3619 = vadd.f32 %v2761, %v3618
    %v3620 = vpop.f32.mrf.mxu0
    %v3621 = vadd.f32 %v2757, %v3620
    %v3622 = vpop.f32.mrf.mxu0
    %v3623 = vadd.f32 %v2761, %v3622
    %3624 = vdwg.mxu0
    %3625 = vmatprep.subr.bf16.mxu0 %v3245
    %3626 = vmatpush1.bf16.msra.mxu0 %v3244
    %3627 = vmatprep.subr.bf16.mxu0 %v3241
    %3628 = vmatpush1.bf16.msra.mxu0 %v3240
    %3629 = vmatprep.subr.bf16.mxu0 %v3237
    %3630 = vmatpush1.bf16.msra.mxu0 %v3236
    %3631 = vmatprep.subr.bf16.mxu0 %v3233
    %3632 = vmatpush1.bf16.msra.mxu0 %v3232
    %3633 = vmatprep.subr.bf16.mxu0 %v3229
    %3634 = vmatpush1.bf16.msra.mxu0 %v3228
    %3635 = vmatprep.subr.bf16.mxu0 %v3225
    %3636 = vmatpush1.bf16.msra.mxu0 %v3224
    %3637 = vmatprep.subr.bf16.mxu0 %v3221
    %3638 = vmatpush1.bf16.msra.mxu0 %v3220
    %3639 = vmatprep.subr.bf16.mxu0 %v3217
    %3640 = vmatpush1.bf16.msra.mxu0 %v3216
    %3641 = vmatprep.subr.bf16.mxu0 %v3277
    %3642 = vmatpush2.bf16.msra.mxu0 %v3276
    %3643 = vmatprep.subr.bf16.mxu0 %v3273
    %3644 = vmatpush2.bf16.msra.mxu0 %v3272
    %3645 = vmatprep.subr.bf16.mxu0 %v3269
    %3646 = vmatpush2.bf16.msra.mxu0 %v3268
    %3647 = vmatprep.subr.bf16.mxu0 %v3265
    %3648 = vmatpush2.bf16.msra.mxu0 %v3264
    %3649 = vmatprep.subr.bf16.mxu0 %v3261
    %3650 = vmatpush2.bf16.msra.mxu0 %v3260
    %3651 = vmatprep.subr.bf16.mxu0 %v3257
    %3652 = vmatpush2.bf16.msra.mxu0 %v3256
    %3653 = vmatprep.subr.bf16.mxu0 %v3253
    %3654 = vmatpush2.bf16.msra.mxu0 %v3252
    %3655 = vmatprep.subr.bf16.mxu0 %v3249
    %3656 = vmatpush2.bf16.msra.mxu0 %v3248
    %3657 = vmatprep.mubr.bf16.mxu0 %v2601
    %3658 = vmatmul.mubr.bf16.gmra.mxu0 %v2600
    %v3659 = vpop.f32.mrf.mxu0
    %v3660 = vadd.f32 %v3587, %v3659
    %v3661 = vpop.f32.mrf.mxu0
    %v3662 = vadd.f32 %v3589, %v3661
    %v3663 = vpop.f32.mrf.mxu0
    %v3664 = vadd.f32 %v3591, %v3663
    %v3665 = vpop.f32.mrf.mxu0
    %v3666 = vadd.f32 %v3593, %v3665
    %3667 = vmatprep.mubr.bf16.mxu0 %v2605
    %3668 = vmatmul.mubr.bf16.gmra.mxu0 %v2604
    %v3669 = vpop.f32.mrf.mxu0
    %v3670 = vadd.f32 %v3597, %v3669
    %v3671 = vpop.f32.mrf.mxu0
    %v3672 = vadd.f32 %v3599, %v3671
    %v3673 = vpop.f32.mrf.mxu0
    %v3674 = vadd.f32 %v3601, %v3673
    %v3675 = vpop.f32.mrf.mxu0
    %v3676 = vadd.f32 %v3603, %v3675
    %3677 = vmatprep.mubr.bf16.mxu0 %v2609
    %3678 = vmatmul.mubr.bf16.gmra.mxu0 %v2608
    %v3679 = vpop.f32.mrf.mxu0
    %v3680 = vadd.f32 %v3607, %v3679
    %v3681 = vpop.f32.mrf.mxu0
    %v3682 = vadd.f32 %v3609, %v3681
    %v3683 = vpop.f32.mrf.mxu0
    %v3684 = vadd.f32 %v3611, %v3683
    %v3685 = vpop.f32.mrf.mxu0
    %v3686 = vadd.f32 %v3613, %v3685
    %3687 = vmatprep.mubr.bf16.mxu0 %v2613
    %3688 = vmatmul.mubr.bf16.gmra.mxu0 %v2612
    %v3689 = vpop.f32.mrf.mxu0
    %v3690 = vadd.f32 %v3617, %v3689
    %v3691 = vpop.f32.mrf.mxu0
    %v3692 = vadd.f32 %v3619, %v3691
    %v3693 = vpop.f32.mrf.mxu0
    %v3694 = vadd.f32 %v3621, %v3693
    %v3695 = vpop.f32.mrf.mxu0
    %v3696 = vadd.f32 %v3623, %v3695
    %3697 = vdwg.mxu0
    %v3698 = vmax.f32 %v3514, 0.0
    %v3699 = vmax.f32 %v3516, 0.0
    %v3700 = vmax.f32 %v3660, 0.0
    %v3701 = vmax.f32 %v3662, 0.0
    %v3702 = vmax.f32 %v3518, 0.0
    %v3703 = vmax.f32 %v3520, 0.0
    %v3704 = vmax.f32 %v3664, 0.0
    %v3705 = vmax.f32 %v3666, 0.0
    %v3706 = vmax.f32 %v3524, 0.0
    %v3707 = vmax.f32 %v3526, 0.0
    %v3708 = vmax.f32 %v3670, 0.0
    %v3709 = vmax.f32 %v3672, 0.0
    %v3710 = vmax.f32 %v3528, 0.0
    %v3711 = vmax.f32 %v3530, 0.0
    %v3712 = vmax.f32 %v3674, 0.0
    %v3713 = vmax.f32 %v3676, 0.0
    %v3714 = vmax.f32 %v3534, 0.0
    %v3715 = vmax.f32 %v3536, 0.0
    %v3716 = vmax.f32 %v3680, 0.0
    %v3717 = vmax.f32 %v3682, 0.0
    %v3718 = vmax.f32 %v3538, 0.0
    %v3719 = vmax.f32 %v3540, 0.0
    %v3720 = vmax.f32 %v3684, 0.0
    %v3721 = vmax.f32 %v3686, 0.0
    %v3722 = vmax.f32 %v3544, 0.0
    %v3723 = vmax.f32 %v3546, 0.0
    %v3724 = vmax.f32 %v3690, 0.0
    %v3725 = vmax.f32 %v3692, 0.0
    %v3726 = vmax.f32 %v3548, 0.0
    %v3727 = vmax.f32 %v3550, 0.0
    %v3728 = vmax.f32 %v3694, 0.0
    %v3729 = vmax.f32 %v3696, 0.0
    %v3730 = vpack.c.bf16 %v3702, %v3698
    %v3731 = vpack.c.bf16 %v3703, %v3699
    %v3732 = vpack.c.bf16 %v3704, %v3700
    %v3733 = vpack.c.bf16 %v3705, %v3701
    %v3734 = vpack.c.bf16 %v3710, %v3706
    %v3735 = vpack.c.bf16 %v3711, %v3707
    %v3736 = vpack.c.bf16 %v3712, %v3708
    %v3737 = vpack.c.bf16 %v3713, %v3709
    %v3738 = vpack.c.bf16 %v3718, %v3714
    %v3739 = vpack.c.bf16 %v3719, %v3715
    %v3740 = vpack.c.bf16 %v3720, %v3716
    %v3741 = vpack.c.bf16 %v3721, %v3717
    %v3742 = vpack.c.bf16 %v3726, %v3722
    %v3743 = vpack.c.bf16 %v3727, %v3723
    %v3744 = vpack.c.bf16 %v3728, %v3724
    %v3745 = vpack.c.bf16 %v3729, %v3725
    %v3746 = vld [vmem:[#allocation8] sm:$0xf]
    %s3747 = sld [smem:[#allocation2]]
    %v3748 = vstv %s3747
    %v3751 = vunpack.c.l.s4 1966171168
    %v3752 = vunpack.c.0.s8 %v3751
    %v3753 = vlaneseq
    %v3754 = vshrl.u32 %v3753, 7
    %v3755 = vsub.s32 %v3752, %v3754
    %v3756 = vrot.slane %v3746, %v3755
    %v3757 = vcombine.high %v3756, %v3756
    %v3759 = vunpack.c.l.s4 1966171168
    %v3760 = vunpack.c.0.s8 %v3759
    %v3761 = vlaneseq
    %v3762 = vshrl.u32 %v3761, 7
    %v3763 = vsub.s32 %v3760, %v3762
    %v3764 = vrot.slane %v3756, %v3763
    %v3766 = vunpack.c.l.s4 1966171168
    %v3767 = vunpack.c.0.s8 %v3766
    %v3768 = vlaneseq
    %v3769 = vshrl.u32 %v3768, 7
    %v3770 = vsub.s32 %v3767, %v3769
    %v3771 = vrot.slane %v3757, %v3770
    %v3772 = vcombine.high %v3764, %v3764
    %v3773 = vcombine.high %v3771, %v3771
    %3778 = vmatprep.subr.bf16.mxu0 0
    %3779 = vmatpush1.bf16.xpose.msra.mxu0 0
    %3780 = vmatprep.subr.bf16.mxu0 0
    %3781 = vmatpush1.bf16.xpose.msra.mxu0 0
    %3782 = vmatprep.subr.bf16.mxu0 0
    %3783 = vmatpush1.bf16.xpose.msra.mxu0 0
    %3784 = vmatprep.subr.bf16.mxu0 0
    %3785 = vmatpush1.bf16.xpose.msra.mxu0 0
    %3786 = vmatprep.subr.bf16.mxu0 %v3743
    %3787 = vmatpush1.bf16.xpose.msra.mxu0 %v3742
    %3788 = vmatprep.subr.bf16.mxu0 %v3739
    %3789 = vmatpush1.bf16.xpose.msra.mxu0 %v3738
    %3790 = vmatprep.subr.bf16.mxu0 %v3735
    %3791 = vmatpush1.bf16.xpose.msra.mxu0 %v3734
    %3792 = vmatprep.subr.bf16.mxu0 %v3731
    %3793 = vmatpush1.bf16.xpose.msra.mxu0 %v3730
    %3794 = vmatprep.subr.bf16.mxu0 0
    %3795 = vmatpush2.bf16.xpose.msra.mxu0 0
    %3796 = vmatprep.subr.bf16.mxu0 0
    %3797 = vmatpush2.bf16.xpose.msra.mxu0 0
    %3798 = vmatprep.subr.bf16.mxu0 0
    %3799 = vmatpush2.bf16.xpose.msra.mxu0 0
    %3800 = vmatprep.subr.bf16.mxu0 0
    %3801 = vmatpush2.bf16.xpose.msra.mxu0 0
    %3802 = vmatprep.subr.bf16.mxu0 0
    %3803 = vmatpush2.bf16.xpose.msra.mxu0 0
    %3804 = vmatprep.subr.bf16.mxu0 0
    %3805 = vmatpush2.bf16.xpose.msra.mxu0 0
    %3806 = vmatprep.subr.bf16.mxu0 0
    %3807 = vmatpush2.bf16.xpose.msra.mxu0 0
    %3808 = vmatprep.subr.bf16.mxu0 0
    %3809 = vmatpush2.bf16.xpose.msra.mxu0 0
    %3810 = vmatprep.mubr.bf16.mxu0 %v3771
    %3811 = vmatmul.mubr.bf16.gmra.mxu0 %v3764
    %v3812 = vpop.f32.mrf.mxu0
    %v3813 = vadd.f32 %v3748, %v3812
    %v3814 = vpop.f32.mrf.mxu0
    %v3815 = vpop.f32.mrf.mxu0
    %v3816 = vpop.f32.mrf.mxu0
    %3817 = vdwg.mxu0
    %3818 = vmatprep.subr.bf16.mxu0 0
    %3819 = vmatpush1.bf16.xpose.msra.mxu0 0
    %3820 = vmatprep.subr.bf16.mxu0 0
    %3821 = vmatpush1.bf16.xpose.msra.mxu0 0
    %3822 = vmatprep.subr.bf16.mxu0 0
    %3823 = vmatpush1.bf16.xpose.msra.mxu0 0
    %3824 = vmatprep.subr.bf16.mxu0 0
    %3825 = vmatpush1.bf16.xpose.msra.mxu0 0
    %3826 = vmatprep.subr.bf16.mxu0 %v3745
    %3827 = vmatpush1.bf16.xpose.msra.mxu0 %v3744
    %3828 = vmatprep.subr.bf16.mxu0 %v3741
    %3829 = vmatpush1.bf16.xpose.msra.mxu0 %v3740
    %3830 = vmatprep.subr.bf16.mxu0 %v3737
    %3831 = vmatpush1.bf16.xpose.msra.mxu0 %v3736
    %3832 = vmatprep.subr.bf16.mxu0 %v3733
    %3833 = vmatpush1.bf16.xpose.msra.mxu0 %v3732
    %3834 = vmatprep.subr.bf16.mxu0 0
    %3835 = vmatpush2.bf16.xpose.msra.mxu0 0
    %3836 = vmatprep.subr.bf16.mxu0 0
    %3837 = vmatpush2.bf16.xpose.msra.mxu0 0
    %3838 = vmatprep.subr.bf16.mxu0 0
    %3839 = vmatpush2.bf16.xpose.msra.mxu0 0
    %3840 = vmatprep.subr.bf16.mxu0 0
    %3841 = vmatpush2.bf16.xpose.msra.mxu0 0
    %3842 = vmatprep.subr.bf16.mxu0 0
    %3843 = vmatpush2.bf16.xpose.msra.mxu0 0
    %3844 = vmatprep.subr.bf16.mxu0 0
    %3845 = vmatpush2.bf16.xpose.msra.mxu0 0
    %3846 = vmatprep.subr.bf16.mxu0 0
    %3847 = vmatpush2.bf16.xpose.msra.mxu0 0
    %3848 = vmatprep.subr.bf16.mxu0 0
    %3849 = vmatpush2.bf16.xpose.msra.mxu0 0
    %3850 = vmatprep.mubr.bf16.mxu0 %v3773
    %3851 = vmatmul.mubr.bf16.gmra.mxu0 %v3772
    %v3852 = vpop.f32.mrf.mxu0
    %v3853 = vadd.f32 %v3813, %v3852
    %v3854 = vpop.f32.mrf.mxu0
    %v3855 = vpop.f32.mrf.mxu0
    %v3856 = vpop.f32.mrf.mxu0
    %3857 = vdwg.mxu0
    %v3858 = vsub.f32 0.0, %v3853
    %v3859 = vmul.f32 %v3858, 1.442695
    %v3860 = vpow.pop %v3859
    %v3861 = vadd.f32 %v3860, 1.0
    %v3862 = vrcp.pop %v3861
    %v3863 = vmul.f32 1.0, %v3862
    %vm3864 = vcmask 516096
    %3865 = vst.msk [vmem:[#allocation11] sm:$0x1] %vm3864, %v3863
    // Predicated region
    $region42: #{tpu_custom_call.1} parent=1 // pred_check
      _
    $region43: #{tpu_custom_call.1} parent=1 // pred_check_branch
      %3867 = sbr.rel (0) target = $region45
    $region44: #{tpu_custom_call.1} parent=1 // pred_region
      %s3869 = ssub.s32 16, 16
      %3870 = vsyncadd [#allocation5], %s3869
      %s3872 = sshll.u32 [#allocation11], 4
      %s3873 = int_to_ptr.vmem [resolvable:$true] %s3872
      %3875 = dma.vmem_to_hbm [thread:$0]  %s3873, 16, %s6, [#allocation5]
    $region45: #{tpu_custom_call.1} parent=1 // pred_fallthru
      _
    // Predicated region
    $region46: #{tpu_custom_call.1} parent=1 // pred_check
      _
    $region47: #{tpu_custom_call.1} parent=1 // pred_check_branch
      %3877 = sbr.rel (0) target = $region49
    $region48: #{tpu_custom_call.1} parent=1 // pred_region
      %3878 = dma.done [#allocation5], 16
    $region49: #{tpu_custom_call.1} parent=1 // pred_fallthru
      _
    %3879 = vsyncpa [#allocation4], 1
    %3880 = vsyncpa [#allocation7], 1
    %3881 = vsyncpa [#allocation10], 1
    %3882 = vsyncpa [#allocation5], 1

// kernel: tpu_custom_call.1
$region0: #{tpu_custom_call.1}
  #allocation0 [shape = 'u32[]', space=smem, size = 0x4, offset = 0x4, fixed_abs, tag = 'smem constant byte address 0x4 - core index']
  #allocation1 [shape = 'u32[144,128]{1,0:T(1,128)}', space=vmem, size = 0x12000, scoped, tag = 'internal scratch']
  #allocation2 [shape = 'f32[1,1]{1,0:T(1,128)S(6)}', space=smem, size = 0x200, scoped, tag = 'scoped memory for tpu_custom_call.1']
  %s0 = inlined_call_operand.vmem [shape: f32[64,10], index: 0, kind: input, shape index: {}]
  %s1 = inlined_call_operand.hbm [shape: bf16[10,512], index: 1, kind: input, shape index: {}]
  %s2 = inlined_call_operand.hbm [shape: bf16[3,512,512], index: 2, kind: input, shape index: {}]
  %s3 = inlined_call_operand.hbm [shape: bf16[1,512], index: 3, kind: input, shape index: {}]
  %s4 = inlined_call_operand.hbm [shape: f32[4,512], index: 4, kind: input, shape index: {}]
  %s5 = inlined_call_operand.<no memory space> [shape: f32[1,1], index: 5, kind: input, shape index: {}]
  %s6 = inlined_call_operand.hbm [shape: f32[1,64], index: 6, kind: output, shape index: {}]
  %s7 = sld [smem:[#allocation0]]
  $region50: #{tpu_custom_call.1} parent=0
    _
  %s9 = ssub.s32 1, %s7
  %s10 = scalar_select 0, %s9, %s7
  %11 = sst [smem:[#allocation2]] %s5
  $region1: #{tpu_custom_call.1} parent=0
    #allocation3 [shape = 'u8[16384]{0}', space=vmem, size = 0x4000, scoped, tag = 'input window, operand 1, single buffered']
    #allocation4 [shape = 's32[1]{0}', space=sflag, size = 0x4, scoped, tag = 'scoped memory for tpu_custom_call.1']
    #allocation5 [shape = 's32[1]{0}', space=sflag, size = 0x4, scoped, tag = 'scoped memory for tpu_custom_call.1']
    #allocation6 [shape = 'u8[1572864]{0}', space=vmem, size = 0x180000, scoped, tag = 'input window, operand 2, single buffered']
    #allocation7 [shape = 's32[1]{0}', space=sflag, size = 0x4, scoped, tag = 'scoped memory for tpu_custom_call.1']
    #allocation8 [shape = 'u8[2048]{0}', space=vmem, size = 0x800, scoped, tag = 'input window, operand 3, single buffered']
    #allocation9 [shape = 'u8[8192]{0}', space=vmem, size = 0x2000, scoped, tag = 'input window, operand 4, single buffered']
    #allocation10 [shape = 's32[1]{0}', space=sflag, size = 0x4, scoped, tag = 'scoped memory for tpu_custom_call.1']
    #allocation11 [shape = 'u8[512]{0}', space=vmem, size = 0x400, scoped, tag = 'output window, operand 0, single buffered']
    %12 = vsyncpa [#allocation4], 0
    %13 = vsyncpa [#allocation7], 0
    %14 = vsyncpa [#allocation10], 0
    %15 = vsyncpa [#allocation5], 0
    // Predicated region
    $region2: #{tpu_custom_call.1} parent=1 // pred_check
      _
    $region3: #{tpu_custom_call.1} parent=1 // pred_check_branch
      %17 = sbr.rel (0) target = $region5
    $region4: #{tpu_custom_call.1} parent=1 // pred_region
      _
    $region5: #{tpu_custom_call.1} parent=1 // pred_fallthru
      _
    // Predicated region
    $region6: #{tpu_custom_call.1} parent=1 // pred_check
      _
    $region7: #{tpu_custom_call.1} parent=1 // pred_check_branch
      %19 = sbr.rel (0) target = $region9
    $region8: #{tpu_custom_call.1} parent=1 // pred_region
      %s21 = ssub.s32 512, 512
      %22 = vsyncadd [#allocation4], %s21
      %s23 = sshll.u32 [#allocation3], 4
      %s24 = int_to_ptr.vmem [resolvable:$true] %s23
      %29 = dma.hbm_to_vmem [thread:$0]  %s1, 512, %s24, [#allocation4], 256, 256, 16
    $region9: #{tpu_custom_call.1} parent=1 // pred_fallthru
      _
    // Predicated region
    $region10: #{tpu_custom_call.1} parent=1 // pred_check
      _
    $region11: #{tpu_custom_call.1} parent=1 // pred_check_branch
      %31 = sbr.rel (0) target = $region13
    $region12: #{tpu_custom_call.1} parent=1 // pred_region
      %s33 = ssub.s32 49152, 49152
      %34 = vsyncadd [#allocation7], %s33
      %s35 = sshll.u32 [#allocation6], 4
      %s36 = int_to_ptr.vmem [resolvable:$true] %s35
      %41 = dma.hbm_to_vmem [thread:$0]  %s2, 49152, %s36, [#allocation7], 256, 256, 16
    $region13: #{tpu_custom_call.1} parent=1 // pred_fallthru
      _
    // Predicated region
    $region14: #{tpu_custom_call.1} parent=1 // pred_check
      _
    $region15: #{tpu_custom_call.1} parent=1 // pred_check_branch
      %43 = sbr.rel (0) target = $region17
    $region16: #{tpu_custom_call.1} parent=1 // pred_region
      %s45 = ssub.s32 64, 64
      %46 = vsyncadd [#allocation7], %s45
      %s48 = sshll.u32 [#allocation8], 4
      %s49 = int_to_ptr.vmem [resolvable:$true] %s48
      %51 = dma.hbm_to_vmem [thread:$0]  %s3, 64, %s49, [#allocation7]
    $region17: #{tpu_custom_call.1} parent=1 // pred_fallthru
      _
    // Predicated region
    $region18: #{tpu_custom_call.1} parent=1 // pred_check
      _
    $region19: #{tpu_custom_call.1} parent=1 // pred_check_branch
      %53 = sbr.rel (0) target = $region21
    $region20: #{tpu_custom_call.1} parent=1 // pred_region
      %s55 = ssub.s32 256, 256
      %56 = vsyncadd [#allocation10], %s55
      %s58 = sshll.u32 [#allocation9], 4
      %s59 = int_to_ptr.vmem [resolvable:$true] %s58
      %61 = dma.hbm_to_vmem [thread:$0]  %s4, 256, %s59, [#allocation10]
    $region21: #{tpu_custom_call.1} parent=1 // pred_fallthru
      _
    // Predicated region
    $region22: #{tpu_custom_call.1} parent=1 // pred_check
      _
    $region23: #{tpu_custom_call.1} parent=1 // pred_check_branch
      %63 = sbr.rel (0) target = $region25
    $region24: #{tpu_custom_call.1} parent=1 // pred_region
      _
    $region25: #{tpu_custom_call.1} parent=1 // pred_fallthru
      _
    // Predicated region
    $region26: #{tpu_custom_call.1} parent=1 // pred_check
      _
    $region27: #{tpu_custom_call.1} parent=1 // pred_check_branch
      %65 = sbr.rel (0) target = $region29
    $region28: #{tpu_custom_call.1} parent=1 // pred_region
      %66 = dma.done [#allocation4], 512
    $region29: #{tpu_custom_call.1} parent=1 // pred_fallthru
      _
    // Predicated region
    $region30: #{tpu_custom_call.1} parent=1 // pred_check
      _
    $region31: #{tpu_custom_call.1} parent=1 // pred_check_branch
      %68 = sbr.rel (0) target = $region33
    $region32: #{tpu_custom_call.1} parent=1 // pred_region
      %69 = dma.done [#allocation7], 49152
    $region33: #{tpu_custom_call.1} parent=1 // pred_fallthru
      _
    // Predicated region
    $region34: #{tpu_custom_call.1} parent=1 // pred_check
      _
    $region35: #{tpu_custom_call.1} parent=1 // pred_check_branch
      %71 = sbr.rel (0) target = $region37
    $region36: #{tpu_custom_call.1} parent=1 // pred_region
      %72 = dma.done [#allocation7], 64
    $region37: #{tpu_custom_call.1} parent=1 // pred_fallthru
      _
    // Predicated region
    $region38: #{tpu_custom_call.1} parent=1 // pred_check
      _
    $region39: #{tpu_custom_call.1} parent=1 // pred_check_branch
      %74 = sbr.rel (0) target = $region41
    $region40: #{tpu_custom_call.1} parent=1 // pred_region
      %75 = dma.done [#allocation10], 256
    $region41: #{tpu_custom_call.1} parent=1 // pred_fallthru
      _
    %v77 = vld [vmem:[%s0] sm:$0xff]
    %v78 = vld [vmem:[%s0 + $0x8] sm:$0xff]
    %v79 = vld [vmem:[%s0 + $0x10] sm:$0xff]
    %v80 = vld [vmem:[%s0 + $0x18] sm:$0xff]
    %v81 = vld [vmem:[%s0 + $0x20] sm:$0xff]
    %v82 = vld [vmem:[%s0 + $0x28] sm:$0xff]
    %v83 = vld [vmem:[%s0 + $0x30] sm:$0xff]
    %v84 = vld [vmem:[%s0 + $0x38] sm:$0xff]
    %v85 = vpack.c.bf16 %v78, %v77
    %v86 = vpack.c.bf16 %v80, %v79
    %v87 = vpack.c.bf16 %v82, %v81
    %v88 = vpack.c.bf16 %v84, %v83
    %v89 = vld [vmem:[#allocation3] sm:$0xff]
    %v90 = vld [vmem:[#allocation3 + $0x8] sm:$0xff]
    %v91 = vld [vmem:[#allocation3 + $0x10] sm:$0x11]
    %v92 = vld [vmem:[#allocation3 + $0x18] sm:$0x11]
    %v93 = vld [vmem:[#allocation9] ss:$4 sm:$0xf]
    %v95 = vlaneseq
    %v96 = vshrl.u32 %v95, 7
    %v97 = vsub.s32 0, %v96
    %v98 = vrot.slane %v93, %v97
    %v99 = vlaneseq
    %v100 = vshrl.u32 %v99, 7
    %v101 = vsub.s32 1, %v100
    %v102 = vrot.slane %v93, %v101
    %v103 = vlaneseq
    %v104 = vshrl.u32 %v103, 7
    %v105 = vsub.s32 2, %v104
    %v106 = vrot.slane %v93, %v105
    %v107 = vlaneseq
    %v108 = vshrl.u32 %v107, 7
    %v109 = vsub.s32 3, %v108
    %v110 = vrot.slane %v93, %v109
    %v119 = vunpack.c.l.b16 %v89
    %v120 = vunpack.c.h.b16 %v89
    %v121 = vunpack.c.l.b16 %v90
    %v122 = vunpack.c.h.b16 %v90
    %v123 = vunpack.c.l.b16 %v91
    %v124 = vunpack.c.h.b16 %v91
    %v125 = vunpack.c.l.b16 %v92
    %v126 = vunpack.c.h.b16 %v92
    %v127 = vpack.c.b16 %v123, %v119
    %v128 = vpack.c.b16 %v124, %v120
    %v129 = vpack.c.b16 %v125, %v121
    %v130 = vpack.c.b16 %v126, %v122
    %vm131 = vcmask 80896
    %v133 = vsel %vm131, %v85, 0
    %v136 = vsel %vm131, %v86, 0
    %v139 = vsel %vm131, %v87, 0
    %v142 = vsel %vm131, %v88, 0
    %vm144 = vcmask 1044480
    %v146 = vsel %vm144, %v127, 0
    %v149 = vsel %vm144, %v128, 0
    %v152 = vsel %vm144, %v129, 0
    %v155 = vsel %vm144, %v130, 0
    %157 = vmatprep.subr.bf16.mxu0 0
    %158 = vmatpush1.bf16.msra.mxu0 0
    %159 = vmatprep.subr.bf16.mxu0 0
    %160 = vmatpush1.bf16.msra.mxu0 0
    %161 = vmatprep.subr.bf16.mxu0 0
    %162 = vmatpush1.bf16.msra.mxu0 0
    %163 = vmatprep.subr.bf16.mxu0 0
    %164 = vmatpush1.bf16.msra.mxu0 0
    %165 = vmatprep.subr.bf16.mxu0 0
    %166 = vmatpush1.bf16.msra.mxu0 0
    %167 = vmatprep.subr.bf16.mxu0 0
    %168 = vmatpush1.bf16.msra.mxu0 0
    %169 = vmatprep.subr.bf16.mxu0 0
    %170 = vmatpush1.bf16.msra.mxu0 0
    %171 = vmatprep.subr.bf16.mxu0 %v149
    %172 = vmatpush1.bf16.msra.mxu0 %v146
    %173 = vmatprep.subr.bf16.mxu0 0
    %174 = vmatpush2.bf16.msra.mxu0 0
    %175 = vmatprep.subr.bf16.mxu0 0
    %176 = vmatpush2.bf16.msra.mxu0 0
    %177 = vmatprep.subr.bf16.mxu0 0
    %178 = vmatpush2.bf16.msra.mxu0 0
    %179 = vmatprep.subr.bf16.mxu0 0
    %180 = vmatpush2.bf16.msra.mxu0 0
    %181 = vmatprep.subr.bf16.mxu0 0
    %182 = vmatpush2.bf16.msra.mxu0 0
    %183 = vmatprep.subr.bf16.mxu0 0
    %184 = vmatpush2.bf16.msra.mxu0 0
    %185 = vmatprep.subr.bf16.mxu0 0
    %186 = vmatpush2.bf16.msra.mxu0 0
    %187 = vmatprep.subr.bf16.mxu0 0
    %188 = vmatpush2.bf16.msra.mxu0 0
    %189 = vmatprep.mubr.bf16.mxu0 0
    %190 = vmatmul.mubr.bf16.gmra.mxu0 %v133
    %v191 = vpop.f32.mrf.mxu0
    %v192 = vadd.f32 %v98, %v191
    %v193 = vpop.f32.mrf.mxu0
    %v194 = vadd.f32 %v102, %v193
    %v195 = vpop.f32.mrf.mxu0
    %v196 = vadd.f32 %v98, %v195
    %v197 = vpop.f32.mrf.mxu0
    %v198 = vadd.f32 %v102, %v197
    %199 = vmatprep.mubr.bf16.mxu0 0
    %200 = vmatmul.mubr.bf16.gmra.mxu0 %v136
    %v201 = vpop.f32.mrf.mxu0
    %v202 = vadd.f32 %v98, %v201
    %v203 = vpop.f32.mrf.mxu0
    %v204 = vadd.f32 %v102, %v203
    %v205 = vpop.f32.mrf.mxu0
    %v206 = vadd.f32 %v98, %v205
    %v207 = vpop.f32.mrf.mxu0
    %v208 = vadd.f32 %v102, %v207
    %209 = vmatprep.mubr.bf16.mxu0 0
    %210 = vmatmul.mubr.bf16.gmra.mxu0 %v139
    %v211 = vpop.f32.mrf.mxu0
    %v212 = vadd.f32 %v98, %v211
    %v213 = vpop.f32.mrf.mxu0
    %v214 = vadd.f32 %v102, %v213
    %v215 = vpop.f32.mrf.mxu0
    %v216 = vadd.f32 %v98, %v215
    %v217 = vpop.f32.mrf.mxu0
    %v218 = vadd.f32 %v102, %v217
    %219 = vmatprep.mubr.bf16.mxu0 0
    %220 = vmatmul.mubr.bf16.gmra.mxu0 %v142
    %v221 = vpop.f32.mrf.mxu0
    %v222 = vadd.f32 %v98, %v221
    %v223 = vpop.f32.mrf.mxu0
    %v224 = vadd.f32 %v102, %v223
    %v225 = vpop.f32.mrf.mxu0
    %v226 = vadd.f32 %v98, %v225
    %v227 = vpop.f32.mrf.mxu0
    %v228 = vadd.f32 %v102, %v227
    %229 = vdwg.mxu0
    %230 = vmatprep.subr.bf16.mxu0 0
    %231 = vmatpush1.bf16.msra.mxu0 0
    %232 = vmatprep.subr.bf16.mxu0 0
    %233 = vmatpush1.bf16.msra.mxu0 0
    %234 = vmatprep.subr.bf16.mxu0 0
    %235 = vmatpush1.bf16.msra.mxu0 0
    %236 = vmatprep.subr.bf16.mxu0 0
    %237 = vmatpush1.bf16.msra.mxu0 0
    %238 = vmatprep.subr.bf16.mxu0 0
    %239 = vmatpush1.bf16.msra.mxu0 0
    %240 = vmatprep.subr.bf16.mxu0 0
    %241 = vmatpush1.bf16.msra.mxu0 0
    %242 = vmatprep.subr.bf16.mxu0 0
    %243 = vmatpush1.bf16.msra.mxu0 0
    %244 = vmatprep.subr.bf16.mxu0 %v155
    %245 = vmatpush1.bf16.msra.mxu0 %v152
    %246 = vmatprep.subr.bf16.mxu0 0
    %247 = vmatpush2.bf16.msra.mxu0 0
    %248 = vmatprep.subr.bf16.mxu0 0
    %249 = vmatpush2.bf16.msra.mxu0 0
    %250 = vmatprep.subr.bf16.mxu0 0
    %251 = vmatpush2.bf16.msra.mxu0 0
    %252 = vmatprep.subr.bf16.mxu0 0
    %253 = vmatpush2.bf16.msra.mxu0 0
    %254 = vmatprep.subr.bf16.mxu0 0
    %255 = vmatpush2.bf16.msra.mxu0 0
    %256 = vmatprep.subr.bf16.mxu0 0
    %257 = vmatpush2.bf16.msra.mxu0 0
    %258 = vmatprep.subr.bf16.mxu0 0
    %259 = vmatpush2.bf16.msra.mxu0 0
    %260 = vmatprep.subr.bf16.mxu0 0
    %261 = vmatpush2.bf16.msra.mxu0 0
    %262 = vmatprep.mubr.bf16.mxu0 0
    %263 = vmatmul.mubr.bf16.gmra.mxu0 %v133
    %v264 = vpop.f32.mrf.mxu0
    %v265 = vadd.f32 %v106, %v264
    %v266 = vpop.f32.mrf.mxu0
    %v267 = vadd.f32 %v110, %v266
    %v268 = vpop.f32.mrf.mxu0
    %v269 = vadd.f32 %v106, %v268
    %v270 = vpop.f32.mrf.mxu0
    %v271 = vadd.f32 %v110, %v270
    %272 = vmatprep.mubr.bf16.mxu0 0
    %273 = vmatmul.mubr.bf16.gmra.mxu0 %v136
    %v274 = vpop.f32.mrf.mxu0
    %v275 = vadd.f32 %v106, %v274
    %v276 = vpop.f32.mrf.mxu0
    %v277 = vadd.f32 %v110, %v276
    %v278 = vpop.f32.mrf.mxu0
    %v279 = vadd.f32 %v106, %v278
    %v280 = vpop.f32.mrf.mxu0
    %v281 = vadd.f32 %v110, %v280
    %282 = vmatprep.mubr.bf16.mxu0 0
    %283 = vmatmul.mubr.bf16.gmra.mxu0 %v139
    %v284 = vpop.f32.mrf.mxu0
    %v285 = vadd.f32 %v106, %v284
    %v286 = vpop.f32.mrf.mxu0
    %v287 = vadd.f32 %v110, %v286
    %v288 = vpop.f32.mrf.mxu0
    %v289 = vadd.f32 %v106, %v288
    %v290 = vpop.f32.mrf.mxu0
    %v291 = vadd.f32 %v110, %v290
    %292 = vmatprep.mubr.bf16.mxu0 0
    %293 = vmatmul.mubr.bf16.gmra.mxu0 %v142
    %v294 = vpop.f32.mrf.mxu0
    %v295 = vadd.f32 %v106, %v294
    %v296 = vpop.f32.mrf.mxu0
    %v297 = vadd.f32 %v110, %v296
    %v298 = vpop.f32.mrf.mxu0
    %v299 = vadd.f32 %v106, %v298
    %v300 = vpop.f32.mrf.mxu0
    %v301 = vadd.f32 %v110, %v300
    %302 = vdwg.mxu0
    %v303 = vmax.f32 %v192, 0.0
    %v304 = vmax.f32 %v194, 0.0
    %v305 = vmax.f32 %v265, 0.0
    %v306 = vmax.f32 %v267, 0.0
    %v307 = vmax.f32 %v196, 0.0
    %v308 = vmax.f32 %v198, 0.0
    %v309 = vmax.f32 %v269, 0.0
    %v310 = vmax.f32 %v271, 0.0
    %v311 = vmax.f32 %v202, 0.0
    %v312 = vmax.f32 %v204, 0.0
    %v313 = vmax.f32 %v275, 0.0
    %v314 = vmax.f32 %v277, 0.0
    %v315 = vmax.f32 %v206, 0.0
    %v316 = vmax.f32 %v208, 0.0
    %v317 = vmax.f32 %v279, 0.0
    %v318 = vmax.f32 %v281, 0.0
    %v319 = vmax.f32 %v212, 0.0
    %v320 = vmax.f32 %v214, 0.0
    %v321 = vmax.f32 %v285, 0.0
    %v322 = vmax.f32 %v287, 0.0
    %v323 = vmax.f32 %v216, 0.0
    %v324 = vmax.f32 %v218, 0.0
    %v325 = vmax.f32 %v289, 0.0
    %v326 = vmax.f32 %v291, 0.0
    %v327 = vmax.f32 %v222, 0.0
    %v328 = vmax.f32 %v224, 0.0
    %v329 = vmax.f32 %v295, 0.0
    %v330 = vmax.f32 %v297, 0.0
    %v331 = vmax.f32 %v226, 0.0
    %v332 = vmax.f32 %v228, 0.0
    %v333 = vmax.f32 %v299, 0.0
    %v334 = vmax.f32 %v301, 0.0
    %v335 = vpack.c.bf16 %v307, %v303
    %v336 = vpack.c.bf16 %v308, %v304
    %v337 = vpack.c.bf16 %v309, %v305
    %v338 = vpack.c.bf16 %v310, %v306
    %v339 = vpack.c.bf16 %v315, %v311
    %v340 = vpack.c.bf16 %v316, %v312
    %v341 = vpack.c.bf16 %v317, %v313
    %v342 = vpack.c.bf16 %v318, %v314
    %v343 = vpack.c.bf16 %v323, %v319
    %v344 = vpack.c.bf16 %v324, %v320
    %v345 = vpack.c.bf16 %v325, %v321
    %v346 = vpack.c.bf16 %v326, %v322
    %v347 = vpack.c.bf16 %v331, %v327
    %v348 = vpack.c.bf16 %v332, %v328
    %v349 = vpack.c.bf16 %v333, %v329
    %v350 = vpack.c.bf16 %v334, %v330
    %v351 = vld [vmem:[#allocation6] sm:$0xff]
    %v352 = vld [vmem:[#allocation6 + $0x8] sm:$0xff]
    %v353 = vld [vmem:[#allocation6 + $0x10] sm:$0xff]
    %v354 = vld [vmem:[#allocation6 + $0x18] sm:$0xff]
    %v355 = vld [vmem:[#allocation6 + $0x20] sm:$0xff]
    %v356 = vld [vmem:[#allocation6 + $0x28] sm:$0xff]
    %v357 = vld [vmem:[#allocation6 + $0x30] sm:$0xff]
    %v358 = vld [vmem:[#allocation6 + $0x38] sm:$0xff]
    %v359 = vld [vmem:[#allocation6 + $0x40] sm:$0xff]
    %v360 = vld [vmem:[#allocation6 + $0x48] sm:$0xff]
    %v361 = vld [vmem:[#allocation6 + $0x50] sm:$0xff]
    %v362 = vld [vmem:[#allocation6 + $0x58] sm:$0xff]
    %v363 = vld [vmem:[#allocation6 + $0x60] sm:$0xff]
    %v364 = vld [vmem:[#allocation6 + $0x68] sm:$0xff]
    %v365 = vld [vmem:[#allocation6 + $0x70] sm:$0xff]
    %v366 = vld [vmem:[#allocation6 + $0x78] sm:$0xff]
    %v367 = vld [vmem:[#allocation6 + $0x80] sm:$0xff]
    %v368 = vld [vmem:[#allocation6 + $0x88] sm:$0xff]
    %v369 = vld [vmem:[#allocation6 + $0x90] sm:$0xff]
    %v370 = vld [vmem:[#allocation6 + $0x98] sm:$0xff]
    %v371 = vld [vmem:[#allocation6 + $0xa0] sm:$0xff]
    %v372 = vld [vmem:[#allocation6 + $0xa8] sm:$0xff]
    %v373 = vld [vmem:[#allocation6 + $0xb0] sm:$0xff]
    %v374 = vld [vmem:[#allocation6 + $0xb8] sm:$0xff]
    %v375 = vld [vmem:[#allocation6 + $0xc0] sm:$0xff]
    %v376 = vld [vmem:[#allocation6 + $0xc8] sm:$0xff]
    %v377 = vld [vmem:[#allocation6 + $0xd0] sm:$0xff]
    %v378 = vld [vmem:[#allocation6 + $0xd8] sm:$0xff]
    %v379 = vld [vmem:[#allocation6 + $0xe0] sm:$0xff]
    %v380 = vld [vmem:[#allocation6 + $0xe8] sm:$0xff]
    %v381 = vld [vmem:[#allocation6 + $0xf0] sm:$0xff]
    %v382 = vld [vmem:[#allocation6 + $0xf8] sm:$0xff]
    %v383 = vld [vmem:[#allocation6 + $0x100] sm:$0xff]
    %v384 = vld [vmem:[#allocation6 + $0x108] sm:$0xff]
    %v385 = vld [vmem:[#allocation6 + $0x110] sm:$0xff]
    %v386 = vld [vmem:[#allocation6 + $0x118] sm:$0xff]
    %v387 = vld [vmem:[#allocation6 + $0x120] sm:$0xff]
    %v388 = vld [vmem:[#allocation6 + $0x128] sm:$0xff]
    %v389 = vld [vmem:[#allocation6 + $0x130] sm:$0xff]
    %v390 = vld [vmem:[#allocation6 + $0x138] sm:$0xff]
    %v391 = vld [vmem:[#allocation6 + $0x140] sm:$0xff]
    %v392 = vld [vmem:[#allocation6 + $0x148] sm:$0xff]
    %v393 = vld [vmem:[#allocation6 + $0x150] sm:$0xff]
    %v394 = vld [vmem:[#allocation6 + $0x158] sm:$0xff]
    %v395 = vld [vmem:[#allocation6 + $0x160] sm:$0xff]
    %v396 = vld [vmem:[#allocation6 + $0x168] sm:$0xff]
    %v397 = vld [vmem:[#allocation6 + $0x170] sm:$0xff]
    %v398 = vld [vmem:[#allocation6 + $0x178] sm:$0xff]
    %v399 = vld [vmem:[#allocation6 + $0x180] sm:$0xff]
    %v400 = vld [vmem:[#allocation6 + $0x188] sm:$0xff]
    %v401 = vld [vmem:[#allocation6 + $0x190] sm:$0xff]
    %v402 = vld [vmem:[#allocation6 + $0x198] sm:$0xff]
    %v403 = vld [vmem:[#allocation6 + $0x1a0] sm:$0xff]
    %v404 = vld [vmem:[#allocation6 + $0x1a8] sm:$0xff]
    %v405 = vld [vmem:[#allocation6 + $0x1b0] sm:$0xff]
    %v406 = vld [vmem:[#allocation6 + $0x1b8] sm:$0xff]
    %v407 = vld [vmem:[#allocation6 + $0x1c0] sm:$0xff]
    %v408 = vld [vmem:[#allocation6 + $0x1c8] sm:$0xff]
    %v409 = vld [vmem:[#allocation6 + $0x1d0] sm:$0xff]
    %v410 = vld [vmem:[#allocation6 + $0x1d8] sm:$0xff]
    %v411 = vld [vmem:[#allocation6 + $0x1e0] sm:$0xff]
    %v412 = vld [vmem:[#allocation6 + $0x1e8] sm:$0xff]
    %v413 = vld [vmem:[#allocation6 + $0x1f0] sm:$0xff]
    %v414 = vld [vmem:[#allocation6 + $0x1f8] sm:$0xff]
    %v415 = vld [vmem:[#allocation6 + $0x200] sm:$0xff]
    %v416 = vld [vmem:[#allocation6 + $0x208] sm:$0xff]
    %v417 = vld [vmem:[#allocation6 + $0x210] sm:$0xff]
    %v418 = vld [vmem:[#allocation6 + $0x218] sm:$0xff]
    %v419 = vld [vmem:[#allocation6 + $0x220] sm:$0xff]
    %v420 = vld [vmem:[#allocation6 + $0x228] sm:$0xff]
    %v421 = vld [vmem:[#allocation6 + $0x230] sm:$0xff]
    %v422 = vld [vmem:[#allocation6 + $0x238] sm:$0xff]
    %v423 = vld [vmem:[#allocation6 + $0x240] sm:$0xff]
    %v424 = vld [vmem:[#allocation6 + $0x248] sm:$0xff]
    %v425 = vld [vmem:[#allocation6 + $0x250] sm:$0xff]
    %v426 = vld [vmem:[#allocation6 + $0x258] sm:$0xff]
    %v427 = vld [vmem:[#allocation6 + $0x260] sm:$0xff]
    %v428 = vld [vmem:[#allocation6 + $0x268] sm:$0xff]
    %v429 = vld [vmem:[#allocation6 + $0x270] sm:$0xff]
    %v430 = vld [vmem:[#allocation6 + $0x278] sm:$0xff]
    %v431 = vld [vmem:[#allocation6 + $0x280] sm:$0xff]
    %v432 = vld [vmem:[#allocation6 + $0x288] sm:$0xff]
    %v433 = vld [vmem:[#allocation6 + $0x290] sm:$0xff]
    %v434 = vld [vmem:[#allocation6 + $0x298] sm:$0xff]
    %v435 = vld [vmem:[#allocation6 + $0x2a0] sm:$0xff]
    %v436 = vld [vmem:[#allocation6 + $0x2a8] sm:$0xff]
    %v437 = vld [vmem:[#allocation6 + $0x2b0] sm:$0xff]
    %v438 = vld [vmem:[#allocation6 + $0x2b8] sm:$0xff]
    %v439 = vld [vmem:[#allocation6 + $0x2c0] sm:$0xff]
    %v440 = vld [vmem:[#allocation6 + $0x2c8] sm:$0xff]
    %v441 = vld [vmem:[#allocation6 + $0x2d0] sm:$0xff]
    %v442 = vld [vmem:[#allocation6 + $0x2d8] sm:$0xff]
    %v443 = vld [vmem:[#allocation6 + $0x2e0] sm:$0xff]
    %v444 = vld [vmem:[#allocation6 + $0x2e8] sm:$0xff]
    %v445 = vld [vmem:[#allocation6 + $0x2f0] sm:$0xff]
    %v446 = vld [vmem:[#allocation6 + $0x2f8] sm:$0xff]
    %v447 = vld [vmem:[#allocation6 + $0x300] sm:$0xff]
    %v448 = vld [vmem:[#allocation6 + $0x308] sm:$0xff]
    %v449 = vld [vmem:[#allocation6 + $0x310] sm:$0xff]
    %v450 = vld [vmem:[#allocation6 + $0x318] sm:$0xff]
    %v451 = vld [vmem:[#allocation6 + $0x320] sm:$0xff]
    %v452 = vld [vmem:[#allocation6 + $0x328] sm:$0xff]
    %v453 = vld [vmem:[#allocation6 + $0x330] sm:$0xff]
    %v454 = vld [vmem:[#allocation6 + $0x338] sm:$0xff]
    %v455 = vld [vmem:[#allocation6 + $0x340] sm:$0xff]
    %v456 = vld [vmem:[#allocation6 + $0x348] sm:$0xff]
    %v457 = vld [vmem:[#allocation6 + $0x350] sm:$0xff]
    %v458 = vld [vmem:[#allocation6 + $0x358] sm:$0xff]
    %v459 = vld [vmem:[#allocation6 + $0x360] sm:$0xff]
    %v460 = vld [vmem:[#allocation6 + $0x368] sm:$0xff]
    %v461 = vld [vmem:[#allocation6 + $0x370] sm:$0xff]
    %v462 = vld [vmem:[#allocation6 + $0x378] sm:$0xff]
    %v463 = vld [vmem:[#allocation6 + $0x380] sm:$0xff]
    %v464 = vld [vmem:[#allocation6 + $0x388] sm:$0xff]
    %v465 = vld [vmem:[#allocation6 + $0x390] sm:$0xff]
    %v466 = vld [vmem:[#allocation6 + $0x398] sm:$0xff]
    %v467 = vld [vmem:[#allocation6 + $0x3a0] sm:$0xff]
    %v468 = vld [vmem:[#allocation6 + $0x3a8] sm:$0xff]
    %v469 = vld [vmem:[#allocation6 + $0x3b0] sm:$0xff]
    %v470 = vld [vmem:[#allocation6 + $0x3b8] sm:$0xff]
    %v471 = vld [vmem:[#allocation6 + $0x3c0] sm:$0xff]
    %v472 = vld [vmem:[#allocation6 + $0x3c8] sm:$0xff]
    %v473 = vld [vmem:[#allocation6 + $0x3d0] sm:$0xff]
    %v474 = vld [vmem:[#allocation6 + $0x3d8] sm:$0xff]
    %v475 = vld [vmem:[#allocation6 + $0x3e0] sm:$0xff]
    %v476 = vld [vmem:[#allocation6 + $0x3e8] sm:$0xff]
    %v477 = vld [vmem:[#allocation6 + $0x3f0] sm:$0xff]
    %v478 = vld [vmem:[#allocation6 + $0x3f8] sm:$0xff]
    %s479 = scalar_lea.vmem [#allocation9], 1
    %v480 = vld [vmem:[%s479] ss:$4 sm:$0xf]
    %v482 = vlaneseq
    %v483 = vshrl.u32 %v482, 7
    %v484 = vsub.s32 0, %v483
    %v485 = vrot.slane %v480, %v484
    %v486 = vlaneseq
    %v487 = vshrl.u32 %v486, 7
    %v488 = vsub.s32 1, %v487
    %v489 = vrot.slane %v480, %v488
    %v490 = vlaneseq
    %v491 = vshrl.u32 %v490, 7
    %v492 = vsub.s32 2, %v491
    %v493 = vrot.slane %v480, %v492
    %v494 = vlaneseq
    %v495 = vshrl.u32 %v494, 7
    %v496 = vsub.s32 3, %v495
    %v497 = vrot.slane %v480, %v496
    %v630 = vunpack.c.l.b16 %v351
    %v631 = vunpack.c.h.b16 %v351
    %v632 = vunpack.c.l.b16 %v352
    %v633 = vunpack.c.h.b16 %v352
    %v634 = vunpack.c.l.b16 %v353
    %v635 = vunpack.c.h.b16 %v353
    %v636 = vunpack.c.l.b16 %v354
    %v637 = vunpack.c.h.b16 %v354
    %v638 = vunpack.c.l.b16 %v355
    %v639 = vunpack.c.h.b16 %v355
    %v640 = vunpack.c.l.b16 %v356
    %v641 = vunpack.c.h.b16 %v356
    %v642 = vunpack.c.l.b16 %v357
    %v643 = vunpack.c.h.b16 %v357
    %v644 = vunpack.c.l.b16 %v358
    %v645 = vunpack.c.h.b16 %v358
    %v646 = vunpack.c.l.b16 %v359
    %v647 = vunpack.c.h.b16 %v359
    %v648 = vunpack.c.l.b16 %v360
    %v649 = vunpack.c.h.b16 %v360
    %v650 = vunpack.c.l.b16 %v361
    %v651 = vunpack.c.h.b16 %v361
    %v652 = vunpack.c.l.b16 %v362
    %v653 = vunpack.c.h.b16 %v362
    %v654 = vunpack.c.l.b16 %v363
    %v655 = vunpack.c.h.b16 %v363
    %v656 = vunpack.c.l.b16 %v364
    %v657 = vunpack.c.h.b16 %v364
    %v658 = vunpack.c.l.b16 %v365
    %v659 = vunpack.c.h.b16 %v365
    %v660 = vunpack.c.l.b16 %v366
    %v661 = vunpack.c.h.b16 %v366
    %v662 = vunpack.c.l.b16 %v367
    %v663 = vunpack.c.h.b16 %v367
    %v664 = vunpack.c.l.b16 %v368
    %v665 = vunpack.c.h.b16 %v368
    %v666 = vunpack.c.l.b16 %v369
    %v667 = vunpack.c.h.b16 %v369
    %v668 = vunpack.c.l.b16 %v370
    %v669 = vunpack.c.h.b16 %v370
    %v670 = vunpack.c.l.b16 %v371
    %v671 = vunpack.c.h.b16 %v371
    %v672 = vunpack.c.l.b16 %v372
    %v673 = vunpack.c.h.b16 %v372
    %v674 = vunpack.c.l.b16 %v373
    %v675 = vunpack.c.h.b16 %v373
    %v676 = vunpack.c.l.b16 %v374
    %v677 = vunpack.c.h.b16 %v374
    %v678 = vunpack.c.l.b16 %v375
    %v679 = vunpack.c.h.b16 %v375
    %v680 = vunpack.c.l.b16 %v376
    %v681 = vunpack.c.h.b16 %v376
    %v682 = vunpack.c.l.b16 %v377
    %v683 = vunpack.c.h.b16 %v377
    %v684 = vunpack.c.l.b16 %v378
    %v685 = vunpack.c.h.b16 %v378
    %v686 = vunpack.c.l.b16 %v379
    %v687 = vunpack.c.h.b16 %v379
    %v688 = vunpack.c.l.b16 %v380
    %v689 = vunpack.c.h.b16 %v380
    %v690 = vunpack.c.l.b16 %v381
    %v691 = vunpack.c.h.b16 %v381
    %v692 = vunpack.c.l.b16 %v382
    %v693 = vunpack.c.h.b16 %v382
    %v694 = vunpack.c.l.b16 %v383
    %v695 = vunpack.c.h.b16 %v383
    %v696 = vunpack.c.l.b16 %v384
    %v697 = vunpack.c.h.b16 %v384
    %v698 = vunpack.c.l.b16 %v385
    %v699 = vunpack.c.h.b16 %v385
    %v700 = vunpack.c.l.b16 %v386
    %v701 = vunpack.c.h.b16 %v386
    %v702 = vunpack.c.l.b16 %v387
    %v703 = vunpack.c.h.b16 %v387
    %v704 = vunpack.c.l.b16 %v388
    %v705 = vunpack.c.h.b16 %v388
    %v706 = vunpack.c.l.b16 %v389
    %v707 = vunpack.c.h.b16 %v389
    %v708 = vunpack.c.l.b16 %v390
    %v709 = vunpack.c.h.b16 %v390
    %v710 = vunpack.c.l.b16 %v391
    %v711 = vunpack.c.h.b16 %v391
    %v712 = vunpack.c.l.b16 %v392
    %v713 = vunpack.c.h.b16 %v392
    %v714 = vunpack.c.l.b16 %v393
    %v715 = vunpack.c.h.b16 %v393
    %v716 = vunpack.c.l.b16 %v394
    %v717 = vunpack.c.h.b16 %v394
    %v718 = vunpack.c.l.b16 %v395
    %v719 = vunpack.c.h.b16 %v395
    %v720 = vunpack.c.l.b16 %v396
    %v721 = vunpack.c.h.b16 %v396
    %v722 = vunpack.c.l.b16 %v397
    %v723 = vunpack.c.h.b16 %v397
    %v724 = vunpack.c.l.b16 %v398
    %v725 = vunpack.c.h.b16 %v398
    %v726 = vunpack.c.l.b16 %v399
    %v727 = vunpack.c.h.b16 %v399
    %v728 = vunpack.c.l.b16 %v400
    %v729 = vunpack.c.h.b16 %v400
    %v730 = vunpack.c.l.b16 %v401
    %v731 = vunpack.c.h.b16 %v401
    %v732 = vunpack.c.l.b16 %v402
    %v733 = vunpack.c.h.b16 %v402
    %v734 = vunpack.c.l.b16 %v403
    %v735 = vunpack.c.h.b16 %v403
    %v736 = vunpack.c.l.b16 %v404
    %v737 = vunpack.c.h.b16 %v404
    %v738 = vunpack.c.l.b16 %v405
    %v739 = vunpack.c.h.b16 %v405
    %v740 = vunpack.c.l.b16 %v406
    %v741 = vunpack.c.h.b16 %v406
    %v742 = vunpack.c.l.b16 %v407
    %v743 = vunpack.c.h.b16 %v407
    %v744 = vunpack.c.l.b16 %v408
    %v745 = vunpack.c.h.b16 %v408
    %v746 = vunpack.c.l.b16 %v409
    %v747 = vunpack.c.h.b16 %v409
    %v748 = vunpack.c.l.b16 %v410
    %v749 = vunpack.c.h.b16 %v410
    %v750 = vunpack.c.l.b16 %v411
    %v751 = vunpack.c.h.b16 %v411
    %v752 = vunpack.c.l.b16 %v412
    %v753 = vunpack.c.h.b16 %v412
    %v754 = vunpack.c.l.b16 %v413
    %v755 = vunpack.c.h.b16 %v413
    %v756 = vunpack.c.l.b16 %v414
    %v757 = vunpack.c.h.b16 %v414
    %v758 = vunpack.c.l.b16 %v415
    %v759 = vunpack.c.h.b16 %v415
    %v760 = vunpack.c.l.b16 %v416
    %v761 = vunpack.c.h.b16 %v416
    %v762 = vunpack.c.l.b16 %v417
    %v763 = vunpack.c.h.b16 %v417
    %v764 = vunpack.c.l.b16 %v418
    %v765 = vunpack.c.h.b16 %v418
    %v766 = vunpack.c.l.b16 %v419
    %v767 = vunpack.c.h.b16 %v419
    %v768 = vunpack.c.l.b16 %v420
    %v769 = vunpack.c.h.b16 %v420
    %v770 = vunpack.c.l.b16 %v421
    %v771 = vunpack.c.h.b16 %v421
    %v772 = vunpack.c.l.b16 %v422
    %v773 = vunpack.c.h.b16 %v422
    %v774 = vunpack.c.l.b16 %v423
    %v775 = vunpack.c.h.b16 %v423
    %v776 = vunpack.c.l.b16 %v424
    %v777 = vunpack.c.h.b16 %v424
    %v778 = vunpack.c.l.b16 %v425
    %v779 = vunpack.c.h.b16 %v425
    %v780 = vunpack.c.l.b16 %v426
    %v781 = vunpack.c.h.b16 %v426
    %v782 = vunpack.c.l.b16 %v427
    %v783 = vunpack.c.h.b16 %v427
    %v784 = vunpack.c.l.b16 %v428
    %v785 = vunpack.c.h.b16 %v428
    %v786 = vunpack.c.l.b16 %v429
    %v787 = vunpack.c.h.b16 %v429
    %v788 = vunpack.c.l.b16 %v430
    %v789 = vunpack.c.h.b16 %v430
    %v790 = vunpack.c.l.b16 %v431
    %v791 = vunpack.c.h.b16 %v431
    %v792 = vunpack.c.l.b16 %v432
    %v793 = vunpack.c.h.b16 %v432
    %v794 = vunpack.c.l.b16 %v433
    %v795 = vunpack.c.h.b16 %v433
    %v796 = vunpack.c.l.b16 %v434
    %v797 = vunpack.c.h.b16 %v434
    %v798 = vunpack.c.l.b16 %v435
    %v799 = vunpack.c.h.b16 %v435
    %v800 = vunpack.c.l.b16 %v436
    %v801 = vunpack.c.h.b16 %v436
    %v802 = vunpack.c.l.b16 %v437
    %v803 = vunpack.c.h.b16 %v437
    %v804 = vunpack.c.l.b16 %v438
    %v805 = vunpack.c.h.b16 %v438
    %v806 = vunpack.c.l.b16 %v439
    %v807 = vunpack.c.h.b16 %v439
    %v808 = vunpack.c.l.b16 %v440
    %v809 = vunpack.c.h.b16 %v440
    %v810 = vunpack.c.l.b16 %v441
    %v811 = vunpack.c.h.b16 %v441
    %v812 = vunpack.c.l.b16 %v442
    %v813 = vunpack.c.h.b16 %v442
    %v814 = vunpack.c.l.b16 %v443
    %v815 = vunpack.c.h.b16 %v443
    %v816 = vunpack.c.l.b16 %v444
    %v817 = vunpack.c.h.b16 %v444
    %v818 = vunpack.c.l.b16 %v445
    %v819 = vunpack.c.h.b16 %v445
    %v820 = vunpack.c.l.b16 %v446
    %v821 = vunpack.c.h.b16 %v446
    %v822 = vunpack.c.l.b16 %v447
    %v823 = vunpack.c.h.b16 %v447
    %v824 = vunpack.c.l.b16 %v448
    %v825 = vunpack.c.h.b16 %v448
    %v826 = vunpack.c.l.b16 %v449
    %v827 = vunpack.c.h.b16 %v449
    %v828 = vunpack.c.l.b16 %v450
    %v829 = vunpack.c.h.b16 %v450
    %v830 = vunpack.c.l.b16 %v451
    %v831 = vunpack.c.h.b16 %v451
    %v832 = vunpack.c.l.b16 %v452
    %v833 = vunpack.c.h.b16 %v452
    %v834 = vunpack.c.l.b16 %v453
    %v835 = vunpack.c.h.b16 %v453
    %v836 = vunpack.c.l.b16 %v454
    %v837 = vunpack.c.h.b16 %v454
    %v838 = vunpack.c.l.b16 %v455
    %v839 = vunpack.c.h.b16 %v455
    %v840 = vunpack.c.l.b16 %v456
    %v841 = vunpack.c.h.b16 %v456
    %v842 = vunpack.c.l.b16 %v457
    %v843 = vunpack.c.h.b16 %v457
    %v844 = vunpack.c.l.b16 %v458
    %v845 = vunpack.c.h.b16 %v458
    %v846 = vunpack.c.l.b16 %v459
    %v847 = vunpack.c.h.b16 %v459
    %v848 = vunpack.c.l.b16 %v460
    %v849 = vunpack.c.h.b16 %v460
    %v850 = vunpack.c.l.b16 %v461
    %v851 = vunpack.c.h.b16 %v461
    %v852 = vunpack.c.l.b16 %v462
    %v853 = vunpack.c.h.b16 %v462
    %v854 = vunpack.c.l.b16 %v463
    %v855 = vunpack.c.h.b16 %v463
    %v856 = vunpack.c.l.b16 %v464
    %v857 = vunpack.c.h.b16 %v464
    %v858 = vunpack.c.l.b16 %v465
    %v859 = vunpack.c.h.b16 %v465
    %v860 = vunpack.c.l.b16 %v466
    %v861 = vunpack.c.h.b16 %v466
    %v862 = vunpack.c.l.b16 %v467
    %v863 = vunpack.c.h.b16 %v467
    %v864 = vunpack.c.l.b16 %v468
    %v865 = vunpack.c.h.b16 %v468
    %v866 = vunpack.c.l.b16 %v469
    %v867 = vunpack.c.h.b16 %v469
    %v868 = vunpack.c.l.b16 %v470
    %v869 = vunpack.c.h.b16 %v470
    %v870 = vunpack.c.l.b16 %v471
    %v871 = vunpack.c.h.b16 %v471
    %v872 = vunpack.c.l.b16 %v472
    %v873 = vunpack.c.h.b16 %v472
    %v874 = vunpack.c.l.b16 %v473
    %v875 = vunpack.c.h.b16 %v473
    %v876 = vunpack.c.l.b16 %v474
    %v877 = vunpack.c.h.b16 %v474
    %v878 = vunpack.c.l.b16 %v475
    %v879 = vunpack.c.h.b16 %v475
    %v880 = vunpack.c.l.b16 %v476
    %v881 = vunpack.c.h.b16 %v476
    %v882 = vunpack.c.l.b16 %v477
    %v883 = vunpack.c.h.b16 %v477
    %v884 = vunpack.c.l.b16 %v478
    %v885 = vunpack.c.h.b16 %v478
    %v886 = vpack.c.b16 %v634, %v630
    %v887 = vpack.c.b16 %v635, %v631
    %v888 = vpack.c.b16 %v636, %v632
    %v889 = vpack.c.b16 %v637, %v633
    %v890 = vpack.c.b16 %v642, %v638
    %v891 = vpack.c.b16 %v643, %v639
    %v892 = vpack.c.b16 %v644, %v640
    %v893 = vpack.c.b16 %v645, %v641
    %v894 = vpack.c.b16 %v650, %v646
    %v895 = vpack.c.b16 %v651, %v647
    %v896 = vpack.c.b16 %v652, %v648
    %v897 = vpack.c.b16 %v653, %v649
    %v898 = vpack.c.b16 %v658, %v654
    %v899 = vpack.c.b16 %v659, %v655
    %v900 = vpack.c.b16 %v660, %v656
    %v901 = vpack.c.b16 %v661, %v657
    %v902 = vpack.c.b16 %v666, %v662
    %v903 = vpack.c.b16 %v667, %v663
    %v904 = vpack.c.b16 %v668, %v664
    %v905 = vpack.c.b16 %v669, %v665
    %v906 = vpack.c.b16 %v674, %v670
    %v907 = vpack.c.b16 %v675, %v671
    %v908 = vpack.c.b16 %v676, %v672
    %v909 = vpack.c.b16 %v677, %v673
    %v910 = vpack.c.b16 %v682, %v678
    %v911 = vpack.c.b16 %v683, %v679
    %v912 = vpack.c.b16 %v684, %v680
    %v913 = vpack.c.b16 %v685, %v681
    %v914 = vpack.c.b16 %v690, %v686
    %v915 = vpack.c.b16 %v691, %v687
    %v916 = vpack.c.b16 %v692, %v688
    %v917 = vpack.c.b16 %v693, %v689
    %v918 = vpack.c.b16 %v698, %v694
    %v919 = vpack.c.b16 %v699, %v695
    %v920 = vpack.c.b16 %v700, %v696
    %v921 = vpack.c.b16 %v701, %v697
    %v922 = vpack.c.b16 %v706, %v702
    %v923 = vpack.c.b16 %v707, %v703
    %v924 = vpack.c.b16 %v708, %v704
    %v925 = vpack.c.b16 %v709, %v705
    %v926 = vpack.c.b16 %v714, %v710
    %v927 = vpack.c.b16 %v715, %v711
    %v928 = vpack.c.b16 %v716, %v712
    %v929 = vpack.c.b16 %v717, %v713
    %v930 = vpack.c.b16 %v722, %v718
    %v931 = vpack.c.b16 %v723, %v719
    %v932 = vpack.c.b16 %v724, %v720
    %v933 = vpack.c.b16 %v725, %v721
    %v934 = vpack.c.b16 %v730, %v726
    %v935 = vpack.c.b16 %v731, %v727
    %v936 = vpack.c.b16 %v732, %v728
    %v937 = vpack.c.b16 %v733, %v729
    %v938 = vpack.c.b16 %v738, %v734
    %v939 = vpack.c.b16 %v739, %v735
    %v940 = vpack.c.b16 %v740, %v736
    %v941 = vpack.c.b16 %v741, %v737
    %v942 = vpack.c.b16 %v746, %v742
    %v943 = vpack.c.b16 %v747, %v743
    %v944 = vpack.c.b16 %v748, %v744
    %v945 = vpack.c.b16 %v749, %v745
    %v946 = vpack.c.b16 %v754, %v750
    %v947 = vpack.c.b16 %v755, %v751
    %v948 = vpack.c.b16 %v756, %v752
    %v949 = vpack.c.b16 %v757, %v753
    %v950 = vpack.c.b16 %v762, %v758
    %v951 = vpack.c.b16 %v763, %v759
    %v952 = vpack.c.b16 %v764, %v760
    %v953 = vpack.c.b16 %v765, %v761
    %v954 = vpack.c.b16 %v770, %v766
    %v955 = vpack.c.b16 %v771, %v767
    %v956 = vpack.c.b16 %v772, %v768
    %v957 = vpack.c.b16 %v773, %v769
    %v958 = vpack.c.b16 %v778, %v774
    %v959 = vpack.c.b16 %v779, %v775
    %v960 = vpack.c.b16 %v780, %v776
    %v961 = vpack.c.b16 %v781, %v777
    %v962 = vpack.c.b16 %v786, %v782
    %v963 = vpack.c.b16 %v787, %v783
    %v964 = vpack.c.b16 %v788, %v784
    %v965 = vpack.c.b16 %v789, %v785
    %v966 = vpack.c.b16 %v794, %v790
    %v967 = vpack.c.b16 %v795, %v791
    %v968 = vpack.c.b16 %v796, %v792
    %v969 = vpack.c.b16 %v797, %v793
    %v970 = vpack.c.b16 %v802, %v798
    %v971 = vpack.c.b16 %v803, %v799
    %v972 = vpack.c.b16 %v804, %v800
    %v973 = vpack.c.b16 %v805, %v801
    %v974 = vpack.c.b16 %v810, %v806
    %v975 = vpack.c.b16 %v811, %v807
    %v976 = vpack.c.b16 %v812, %v808
    %v977 = vpack.c.b16 %v813, %v809
    %v978 = vpack.c.b16 %v818, %v814
    %v979 = vpack.c.b16 %v819, %v815
    %v980 = vpack.c.b16 %v820, %v816
    %v981 = vpack.c.b16 %v821, %v817
    %v982 = vpack.c.b16 %v826, %v822
    %v983 = vpack.c.b16 %v827, %v823
    %v984 = vpack.c.b16 %v828, %v824
    %v985 = vpack.c.b16 %v829, %v825
    %v986 = vpack.c.b16 %v834, %v830
    %v987 = vpack.c.b16 %v835, %v831
    %v988 = vpack.c.b16 %v836, %v832
    %v989 = vpack.c.b16 %v837, %v833
    %v990 = vpack.c.b16 %v842, %v838
    %v991 = vpack.c.b16 %v843, %v839
    %v992 = vpack.c.b16 %v844, %v840
    %v993 = vpack.c.b16 %v845, %v841
    %v994 = vpack.c.b16 %v850, %v846
    %v995 = vpack.c.b16 %v851, %v847
    %v996 = vpack.c.b16 %v852, %v848
    %v997 = vpack.c.b16 %v853, %v849
    %v998 = vpack.c.b16 %v858, %v854
    %v999 = vpack.c.b16 %v859, %v855
    %v1000 = vpack.c.b16 %v860, %v856
    %v1001 = vpack.c.b16 %v861, %v857
    %v1002 = vpack.c.b16 %v866, %v862
    %v1003 = vpack.c.b16 %v867, %v863
    %v1004 = vpack.c.b16 %v868, %v864
    %v1005 = vpack.c.b16 %v869, %v865
    %v1006 = vpack.c.b16 %v874, %v870
    %v1007 = vpack.c.b16 %v875, %v871
    %v1008 = vpack.c.b16 %v876, %v872
    %v1009 = vpack.c.b16 %v877, %v873
    %v1010 = vpack.c.b16 %v882, %v878
    %v1011 = vpack.c.b16 %v883, %v879
    %v1012 = vpack.c.b16 %v884, %v880
    %v1013 = vpack.c.b16 %v885, %v881
    %1142 = vmatprep.subr.bf16.mxu0 %v915
    %1143 = vmatpush1.bf16.msra.mxu0 %v914
    %1144 = vmatprep.subr.bf16.mxu0 %v911
    %1145 = vmatpush1.bf16.msra.mxu0 %v910
    %1146 = vmatprep.subr.bf16.mxu0 %v907
    %1147 = vmatpush1.bf16.msra.mxu0 %v906
    %1148 = vmatprep.subr.bf16.mxu0 %v903
    %1149 = vmatpush1.bf16.msra.mxu0 %v902
    %1150 = vmatprep.subr.bf16.mxu0 %v899
    %1151 = vmatpush1.bf16.msra.mxu0 %v898
    %1152 = vmatprep.subr.bf16.mxu0 %v895
    %1153 = vmatpush1.bf16.msra.mxu0 %v894
    %1154 = vmatprep.subr.bf16.mxu0 %v891
    %1155 = vmatpush1.bf16.msra.mxu0 %v890
    %1156 = vmatprep.subr.bf16.mxu0 %v887
    %1157 = vmatpush1.bf16.msra.mxu0 %v886
    %1158 = vmatprep.subr.bf16.mxu0 %v947
    %1159 = vmatpush2.bf16.msra.mxu0 %v946
    %1160 = vmatprep.subr.bf16.mxu0 %v943
    %1161 = vmatpush2.bf16.msra.mxu0 %v942
    %1162 = vmatprep.subr.bf16.mxu0 %v939
    %1163 = vmatpush2.bf16.msra.mxu0 %v938
    %1164 = vmatprep.subr.bf16.mxu0 %v935
    %1165 = vmatpush2.bf16.msra.mxu0 %v934
    %1166 = vmatprep.subr.bf16.mxu0 %v931
    %1167 = vmatpush2.bf16.msra.mxu0 %v930
    %1168 = vmatprep.subr.bf16.mxu0 %v927
    %1169 = vmatpush2.bf16.msra.mxu0 %v926
    %1170 = vmatprep.subr.bf16.mxu0 %v923
    %1171 = vmatpush2.bf16.msra.mxu0 %v922
    %1172 = vmatprep.subr.bf16.mxu0 %v919
    %1173 = vmatpush2.bf16.msra.mxu0 %v918
    %1174 = vmatprep.mubr.bf16.mxu0 %v336
    %1175 = vmatmul.mubr.bf16.gmra.mxu0 %v335
    %v1176 = vpop.f32.mrf.mxu0
    %v1177 = vadd.f32 %v485, %v1176
    %v1178 = vpop.f32.mrf.mxu0
    %v1179 = vadd.f32 %v489, %v1178
    %v1180 = vpop.f32.mrf.mxu0
    %v1181 = vadd.f32 %v485, %v1180
    %v1182 = vpop.f32.mrf.mxu0
    %v1183 = vadd.f32 %v489, %v1182
    %1184 = vmatprep.mubr.bf16.mxu0 %v340
    %1185 = vmatmul.mubr.bf16.gmra.mxu0 %v339
    %v1186 = vpop.f32.mrf.mxu0
    %v1187 = vadd.f32 %v485, %v1186
    %v1188 = vpop.f32.mrf.mxu0
    %v1189 = vadd.f32 %v489, %v1188
    %v1190 = vpop.f32.mrf.mxu0
    %v1191 = vadd.f32 %v485, %v1190
    %v1192 = vpop.f32.mrf.mxu0
    %v1193 = vadd.f32 %v489, %v1192
    %1194 = vmatprep.mubr.bf16.mxu0 %v344
    %1195 = vmatmul.mubr.bf16.gmra.mxu0 %v343
    %v1196 = vpop.f32.mrf.mxu0
    %v1197 = vadd.f32 %v485, %v1196
    %v1198 = vpop.f32.mrf.mxu0
    %v1199 = vadd.f32 %v489, %v1198
    %v1200 = vpop.f32.mrf.mxu0
    %v1201 = vadd.f32 %v485, %v1200
    %v1202 = vpop.f32.mrf.mxu0
    %v1203 = vadd.f32 %v489, %v1202
    %1204 = vmatprep.mubr.bf16.mxu0 %v348
    %1205 = vmatmul.mubr.bf16.gmra.mxu0 %v347
    %v1206 = vpop.f32.mrf.mxu0
    %v1207 = vadd.f32 %v485, %v1206
    %v1208 = vpop.f32.mrf.mxu0
    %v1209 = vadd.f32 %v489, %v1208
    %v1210 = vpop.f32.mrf.mxu0
    %v1211 = vadd.f32 %v485, %v1210
    %v1212 = vpop.f32.mrf.mxu0
    %v1213 = vadd.f32 %v489, %v1212
    %1214 = vdwg.mxu0
    %1215 = vmatprep.subr.bf16.mxu0 %v979
    %1216 = vmatpush1.bf16.msra.mxu0 %v978
    %1217 = vmatprep.subr.bf16.mxu0 %v975
    %1218 = vmatpush1.bf16.msra.mxu0 %v974
    %1219 = vmatprep.subr.bf16.mxu0 %v971
    %1220 = vmatpush1.bf16.msra.mxu0 %v970
    %1221 = vmatprep.subr.bf16.mxu0 %v967
    %1222 = vmatpush1.bf16.msra.mxu0 %v966
    %1223 = vmatprep.subr.bf16.mxu0 %v963
    %1224 = vmatpush1.bf16.msra.mxu0 %v962
    %1225 = vmatprep.subr.bf16.mxu0 %v959
    %1226 = vmatpush1.bf16.msra.mxu0 %v958
    %1227 = vmatprep.subr.bf16.mxu0 %v955
    %1228 = vmatpush1.bf16.msra.mxu0 %v954
    %1229 = vmatprep.subr.bf16.mxu0 %v951
    %1230 = vmatpush1.bf16.msra.mxu0 %v950
    %1231 = vmatprep.subr.bf16.mxu0 %v1011
    %1232 = vmatpush2.bf16.msra.mxu0 %v1010
    %1233 = vmatprep.subr.bf16.mxu0 %v1007
    %1234 = vmatpush2.bf16.msra.mxu0 %v1006
    %1235 = vmatprep.subr.bf16.mxu0 %v1003
    %1236 = vmatpush2.bf16.msra.mxu0 %v1002
    %1237 = vmatprep.subr.bf16.mxu0 %v999
    %1238 = vmatpush2.bf16.msra.mxu0 %v998
    %1239 = vmatprep.subr.bf16.mxu0 %v995
    %1240 = vmatpush2.bf16.msra.mxu0 %v994
    %1241 = vmatprep.subr.bf16.mxu0 %v991
    %1242 = vmatpush2.bf16.msra.mxu0 %v990
    %1243 = vmatprep.subr.bf16.mxu0 %v987
    %1244 = vmatpush2.bf16.msra.mxu0 %v986
    %1245 = vmatprep.subr.bf16.mxu0 %v983
    %1246 = vmatpush2.bf16.msra.mxu0 %v982
    %1247 = vmatprep.mubr.bf16.mxu0 %v338
    %1248 = vmatmul.mubr.bf16.gmra.mxu0 %v337
    %v1249 = vpop.f32.mrf.mxu0
    %v1250 = vadd.f32 %v1177, %v1249
    %v1251 = vpop.f32.mrf.mxu0
    %v1252 = vadd.f32 %v1179, %v1251
    %v1253 = vpop.f32.mrf.mxu0
    %v1254 = vadd.f32 %v1181, %v1253
    %v1255 = vpop.f32.mrf.mxu0
    %v1256 = vadd.f32 %v1183, %v1255
    %1257 = vmatprep.mubr.bf16.mxu0 %v342
    %1258 = vmatmul.mubr.bf16.gmra.mxu0 %v341
    %v1259 = vpop.f32.mrf.mxu0
    %v1260 = vadd.f32 %v1187, %v1259
    %v1261 = vpop.f32.mrf.mxu0
    %v1262 = vadd.f32 %v1189, %v1261
    %v1263 = vpop.f32.mrf.mxu0
    %v1264 = vadd.f32 %v1191, %v1263
    %v1265 = vpop.f32.mrf.mxu0
    %v1266 = vadd.f32 %v1193, %v1265
    %1267 = vmatprep.mubr.bf16.mxu0 %v346
    %1268 = vmatmul.mubr.bf16.gmra.mxu0 %v345
    %v1269 = vpop.f32.mrf.mxu0
    %v1270 = vadd.f32 %v1197, %v1269
    %v1271 = vpop.f32.mrf.mxu0
    %v1272 = vadd.f32 %v1199, %v1271
    %v1273 = vpop.f32.mrf.mxu0
    %v1274 = vadd.f32 %v1201, %v1273
    %v1275 = vpop.f32.mrf.mxu0
    %v1276 = vadd.f32 %v1203, %v1275
    %1277 = vmatprep.mubr.bf16.mxu0 %v350
    %1278 = vmatmul.mubr.bf16.gmra.mxu0 %v349
    %v1279 = vpop.f32.mrf.mxu0
    %v1280 = vadd.f32 %v1207, %v1279
    %v1281 = vpop.f32.mrf.mxu0
    %v1282 = vadd.f32 %v1209, %v1281
    %v1283 = vpop.f32.mrf.mxu0
    %v1284 = vadd.f32 %v1211, %v1283
    %v1285 = vpop.f32.mrf.mxu0
    %v1286 = vadd.f32 %v1213, %v1285
    %1287 = vdwg.mxu0
    %1288 = vmatprep.subr.bf16.mxu0 %v917
    %1289 = vmatpush1.bf16.msra.mxu0 %v916
    %1290 = vmatprep.subr.bf16.mxu0 %v913
    %1291 = vmatpush1.bf16.msra.mxu0 %v912
    %1292 = vmatprep.subr.bf16.mxu0 %v909
    %1293 = vmatpush1.bf16.msra.mxu0 %v908
    %1294 = vmatprep.subr.bf16.mxu0 %v905
    %1295 = vmatpush1.bf16.msra.mxu0 %v904
    %1296 = vmatprep.subr.bf16.mxu0 %v901
    %1297 = vmatpush1.bf16.msra.mxu0 %v900
    %1298 = vmatprep.subr.bf16.mxu0 %v897
    %1299 = vmatpush1.bf16.msra.mxu0 %v896
    %1300 = vmatprep.subr.bf16.mxu0 %v893
    %1301 = vmatpush1.bf16.msra.mxu0 %v892
    %1302 = vmatprep.subr.bf16.mxu0 %v889
    %1303 = vmatpush1.bf16.msra.mxu0 %v888
    %1304 = vmatprep.subr.bf16.mxu0 %v949
    %1305 = vmatpush2.bf16.msra.mxu0 %v948
    %1306 = vmatprep.subr.bf16.mxu0 %v945
    %1307 = vmatpush2.bf16.msra.mxu0 %v944
    %1308 = vmatprep.subr.bf16.mxu0 %v941
    %1309 = vmatpush2.bf16.msra.mxu0 %v940
    %1310 = vmatprep.subr.bf16.mxu0 %v937
    %1311 = vmatpush2.bf16.msra.mxu0 %v936
    %1312 = vmatprep.subr.bf16.mxu0 %v933
    %1313 = vmatpush2.bf16.msra.mxu0 %v932
    %1314 = vmatprep.subr.bf16.mxu0 %v929
    %1315 = vmatpush2.bf16.msra.mxu0 %v928
    %1316 = vmatprep.subr.bf16.mxu0 %v925
    %1317 = vmatpush2.bf16.msra.mxu0 %v924
    %1318 = vmatprep.subr.bf16.mxu0 %v921
    %1319 = vmatpush2.bf16.msra.mxu0 %v920
    %1320 = vmatprep.mubr.bf16.mxu0 %v336
    %1321 = vmatmul.mubr.bf16.gmra.mxu0 %v335
    %v1322 = vpop.f32.mrf.mxu0
    %v1323 = vadd.f32 %v493, %v1322
    %v1324 = vpop.f32.mrf.mxu0
    %v1325 = vadd.f32 %v497, %v1324
    %v1326 = vpop.f32.mrf.mxu0
    %v1327 = vadd.f32 %v493, %v1326
    %v1328 = vpop.f32.mrf.mxu0
    %v1329 = vadd.f32 %v497, %v1328
    %1330 = vmatprep.mubr.bf16.mxu0 %v340
    %1331 = vmatmul.mubr.bf16.gmra.mxu0 %v339
    %v1332 = vpop.f32.mrf.mxu0
    %v1333 = vadd.f32 %v493, %v1332
    %v1334 = vpop.f32.mrf.mxu0
    %v1335 = vadd.f32 %v497, %v1334
    %v1336 = vpop.f32.mrf.mxu0
    %v1337 = vadd.f32 %v493, %v1336
    %v1338 = vpop.f32.mrf.mxu0
    %v1339 = vadd.f32 %v497, %v1338
    %1340 = vmatprep.mubr.bf16.mxu0 %v344
    %1341 = vmatmul.mubr.bf16.gmra.mxu0 %v343
    %v1342 = vpop.f32.mrf.mxu0
    %v1343 = vadd.f32 %v493, %v1342
    %v1344 = vpop.f32.mrf.mxu0
    %v1345 = vadd.f32 %v497, %v1344
    %v1346 = vpop.f32.mrf.mxu0
    %v1347 = vadd.f32 %v493, %v1346
    %v1348 = vpop.f32.mrf.mxu0
    %v1349 = vadd.f32 %v497, %v1348
    %1350 = vmatprep.mubr.bf16.mxu0 %v348
    %1351 = vmatmul.mubr.bf16.gmra.mxu0 %v347
    %v1352 = vpop.f32.mrf.mxu0
    %v1353 = vadd.f32 %v493, %v1352
    %v1354 = vpop.f32.mrf.mxu0
    %v1355 = vadd.f32 %v497, %v1354
    %v1356 = vpop.f32.mrf.mxu0
    %v1357 = vadd.f32 %v493, %v1356
    %v1358 = vpop.f32.mrf.mxu0
    %v1359 = vadd.f32 %v497, %v1358
    %1360 = vdwg.mxu0
    %1361 = vmatprep.subr.bf16.mxu0 %v981
    %1362 = vmatpush1.bf16.msra.mxu0 %v980
    %1363 = vmatprep.subr.bf16.mxu0 %v977
    %1364 = vmatpush1.bf16.msra.mxu0 %v976
    %1365 = vmatprep.subr.bf16.mxu0 %v973
    %1366 = vmatpush1.bf16.msra.mxu0 %v972
    %1367 = vmatprep.subr.bf16.mxu0 %v969
    %1368 = vmatpush1.bf16.msra.mxu0 %v968
    %1369 = vmatprep.subr.bf16.mxu0 %v965
    %1370 = vmatpush1.bf16.msra.mxu0 %v964
    %1371 = vmatprep.subr.bf16.mxu0 %v961
    %1372 = vmatpush1.bf16.msra.mxu0 %v960
    %1373 = vmatprep.subr.bf16.mxu0 %v957
    %1374 = vmatpush1.bf16.msra.mxu0 %v956
    %1375 = vmatprep.subr.bf16.mxu0 %v953
    %1376 = vmatpush1.bf16.msra.mxu0 %v952
    %1377 = vmatprep.subr.bf16.mxu0 %v1013
    %1378 = vmatpush2.bf16.msra.mxu0 %v1012
    %1379 = vmatprep.subr.bf16.mxu0 %v1009
    %1380 = vmatpush2.bf16.msra.mxu0 %v1008
    %1381 = vmatprep.subr.bf16.mxu0 %v1005
    %1382 = vmatpush2.bf16.msra.mxu0 %v1004
    %1383 = vmatprep.subr.bf16.mxu0 %v1001
    %1384 = vmatpush2.bf16.msra.mxu0 %v1000
    %1385 = vmatprep.subr.bf16.mxu0 %v997
    %1386 = vmatpush2.bf16.msra.mxu0 %v996
    %1387 = vmatprep.subr.bf16.mxu0 %v993
    %1388 = vmatpush2.bf16.msra.mxu0 %v992
    %1389 = vmatprep.subr.bf16.mxu0 %v989
    %1390 = vmatpush2.bf16.msra.mxu0 %v988
    %1391 = vmatprep.subr.bf16.mxu0 %v985
    %1392 = vmatpush2.bf16.msra.mxu0 %v984
    %1393 = vmatprep.mubr.bf16.mxu0 %v338
    %1394 = vmatmul.mubr.bf16.gmra.mxu0 %v337
    %v1395 = vpop.f32.mrf.mxu0
    %v1396 = vadd.f32 %v1323, %v1395
    %v1397 = vpop.f32.mrf.mxu0
    %v1398 = vadd.f32 %v1325, %v1397
    %v1399 = vpop.f32.mrf.mxu0
    %v1400 = vadd.f32 %v1327, %v1399
    %v1401 = vpop.f32.mrf.mxu0
    %v1402 = vadd.f32 %v1329, %v1401
    %1403 = vmatprep.mubr.bf16.mxu0 %v342
    %1404 = vmatmul.mubr.bf16.gmra.mxu0 %v341
    %v1405 = vpop.f32.mrf.mxu0
    %v1406 = vadd.f32 %v1333, %v1405
    %v1407 = vpop.f32.mrf.mxu0
    %v1408 = vadd.f32 %v1335, %v1407
    %v1409 = vpop.f32.mrf.mxu0
    %v1410 = vadd.f32 %v1337, %v1409
    %v1411 = vpop.f32.mrf.mxu0
    %v1412 = vadd.f32 %v1339, %v1411
    %1413 = vmatprep.mubr.bf16.mxu0 %v346
    %1414 = vmatmul.mubr.bf16.gmra.mxu0 %v345
    %v1415 = vpop.f32.mrf.mxu0
    %v1416 = vadd.f32 %v1343, %v1415
    %v1417 = vpop.f32.mrf.mxu0
    %v1418 = vadd.f32 %v1345, %v1417
    %v1419 = vpop.f32.mrf.mxu0
    %v1420 = vadd.f32 %v1347, %v1419
    %v1421 = vpop.f32.mrf.mxu0
    %v1422 = vadd.f32 %v1349, %v1421
    %1423 = vmatprep.mubr.bf16.mxu0 %v350
    %1424 = vmatmul.mubr.bf16.gmra.mxu0 %v349
    %v1425 = vpop.f32.mrf.mxu0
    %v1426 = vadd.f32 %v1353, %v1425
    %v1427 = vpop.f32.mrf.mxu0
    %v1428 = vadd.f32 %v1355, %v1427
    %v1429 = vpop.f32.mrf.mxu0
    %v1430 = vadd.f32 %v1357, %v1429
    %v1431 = vpop.f32.mrf.mxu0
    %v1432 = vadd.f32 %v1359, %v1431
    %1433 = vdwg.mxu0
    %v1434 = vmax.f32 %v1250, 0.0
    %v1435 = vmax.f32 %v1252, 0.0
    %v1436 = vmax.f32 %v1396, 0.0
    %v1437 = vmax.f32 %v1398, 0.0
    %v1438 = vmax.f32 %v1254, 0.0
    %v1439 = vmax.f32 %v1256, 0.0
    %v1440 = vmax.f32 %v1400, 0.0
    %v1441 = vmax.f32 %v1402, 0.0
    %v1442 = vmax.f32 %v1260, 0.0
    %v1443 = vmax.f32 %v1262, 0.0
    %v1444 = vmax.f32 %v1406, 0.0
    %v1445 = vmax.f32 %v1408, 0.0
    %v1446 = vmax.f32 %v1264, 0.0
    %v1447 = vmax.f32 %v1266, 0.0
    %v1448 = vmax.f32 %v1410, 0.0
    %v1449 = vmax.f32 %v1412, 0.0
    %v1450 = vmax.f32 %v1270, 0.0
    %v1451 = vmax.f32 %v1272, 0.0
    %v1452 = vmax.f32 %v1416, 0.0
    %v1453 = vmax.f32 %v1418, 0.0
    %v1454 = vmax.f32 %v1274, 0.0
    %v1455 = vmax.f32 %v1276, 0.0
    %v1456 = vmax.f32 %v1420, 0.0
    %v1457 = vmax.f32 %v1422, 0.0
    %v1458 = vmax.f32 %v1280, 0.0
    %v1459 = vmax.f32 %v1282, 0.0
    %v1460 = vmax.f32 %v1426, 0.0
    %v1461 = vmax.f32 %v1428, 0.0
    %v1462 = vmax.f32 %v1284, 0.0
    %v1463 = vmax.f32 %v1286, 0.0
    %v1464 = vmax.f32 %v1430, 0.0
    %v1465 = vmax.f32 %v1432, 0.0
    %v1466 = vpack.c.bf16 %v1438, %v1434
    %v1467 = vpack.c.bf16 %v1439, %v1435
    %v1468 = vpack.c.bf16 %v1440, %v1436
    %v1469 = vpack.c.bf16 %v1441, %v1437
    %v1470 = vpack.c.bf16 %v1446, %v1442
    %v1471 = vpack.c.bf16 %v1447, %v1443
    %v1472 = vpack.c.bf16 %v1448, %v1444
    %v1473 = vpack.c.bf16 %v1449, %v1445
    %v1474 = vpack.c.bf16 %v1454, %v1450
    %v1475 = vpack.c.bf16 %v1455, %v1451
    %v1476 = vpack.c.bf16 %v1456, %v1452
    %v1477 = vpack.c.bf16 %v1457, %v1453
    %v1478 = vpack.c.bf16 %v1462, %v1458
    %v1479 = vpack.c.bf16 %v1463, %v1459
    %v1480 = vpack.c.bf16 %v1464, %v1460
    %v1481 = vpack.c.bf16 %v1465, %v1461
    %s1482 = scalar_lea.vmem [#allocation6], 1024
    %v1483 = vld [vmem:[%s1482] sm:$0xff]
    %v1484 = vld [vmem:[%s1482 + $0x8] sm:$0xff]
    %v1485 = vld [vmem:[%s1482 + $0x10] sm:$0xff]
    %v1486 = vld [vmem:[%s1482 + $0x18] sm:$0xff]
    %v1487 = vld [vmem:[%s1482 + $0x20] sm:$0xff]
    %v1488 = vld [vmem:[%s1482 + $0x28] sm:$0xff]
    %v1489 = vld [vmem:[%s1482 + $0x30] sm:$0xff]
    %v1490 = vld [vmem:[%s1482 + $0x38] sm:$0xff]
    %v1491 = vld [vmem:[%s1482 + $0x40] sm:$0xff]
    %v1492 = vld [vmem:[%s1482 + $0x48] sm:$0xff]
    %v1493 = vld [vmem:[%s1482 + $0x50] sm:$0xff]
    %v1494 = vld [vmem:[%s1482 + $0x58] sm:$0xff]
    %v1495 = vld [vmem:[%s1482 + $0x60] sm:$0xff]
    %v1496 = vld [vmem:[%s1482 + $0x68] sm:$0xff]
    %v1497 = vld [vmem:[%s1482 + $0x70] sm:$0xff]
    %v1498 = vld [vmem:[%s1482 + $0x78] sm:$0xff]
    %v1499 = vld [vmem:[%s1482 + $0x80] sm:$0xff]
    %v1500 = vld [vmem:[%s1482 + $0x88] sm:$0xff]
    %v1501 = vld [vmem:[%s1482 + $0x90] sm:$0xff]
    %v1502 = vld [vmem:[%s1482 + $0x98] sm:$0xff]
    %v1503 = vld [vmem:[%s1482 + $0xa0] sm:$0xff]
    %v1504 = vld [vmem:[%s1482 + $0xa8] sm:$0xff]
    %v1505 = vld [vmem:[%s1482 + $0xb0] sm:$0xff]
    %v1506 = vld [vmem:[%s1482 + $0xb8] sm:$0xff]
    %v1507 = vld [vmem:[%s1482 + $0xc0] sm:$0xff]
    %v1508 = vld [vmem:[%s1482 + $0xc8] sm:$0xff]
    %v1509 = vld [vmem:[%s1482 + $0xd0] sm:$0xff]
    %v1510 = vld [vmem:[%s1482 + $0xd8] sm:$0xff]
    %v1511 = vld [vmem:[%s1482 + $0xe0] sm:$0xff]
    %v1512 = vld [vmem:[%s1482 + $0xe8] sm:$0xff]
    %v1513 = vld [vmem:[%s1482 + $0xf0] sm:$0xff]
    %v1514 = vld [vmem:[%s1482 + $0xf8] sm:$0xff]
    %v1515 = vld [vmem:[%s1482 + $0x100] sm:$0xff]
    %v1516 = vld [vmem:[%s1482 + $0x108] sm:$0xff]
    %v1517 = vld [vmem:[%s1482 + $0x110] sm:$0xff]
    %v1518 = vld [vmem:[%s1482 + $0x118] sm:$0xff]
    %v1519 = vld [vmem:[%s1482 + $0x120] sm:$0xff]
    %v1520 = vld [vmem:[%s1482 + $0x128] sm:$0xff]
    %v1521 = vld [vmem:[%s1482 + $0x130] sm:$0xff]
    %v1522 = vld [vmem:[%s1482 + $0x138] sm:$0xff]
    %v1523 = vld [vmem:[%s1482 + $0x140] sm:$0xff]
    %v1524 = vld [vmem:[%s1482 + $0x148] sm:$0xff]
    %v1525 = vld [vmem:[%s1482 + $0x150] sm:$0xff]
    %v1526 = vld [vmem:[%s1482 + $0x158] sm:$0xff]
    %v1527 = vld [vmem:[%s1482 + $0x160] sm:$0xff]
    %v1528 = vld [vmem:[%s1482 + $0x168] sm:$0xff]
    %v1529 = vld [vmem:[%s1482 + $0x170] sm:$0xff]
    %v1530 = vld [vmem:[%s1482 + $0x178] sm:$0xff]
    %v1531 = vld [vmem:[%s1482 + $0x180] sm:$0xff]
    %v1532 = vld [vmem:[%s1482 + $0x188] sm:$0xff]
    %v1533 = vld [vmem:[%s1482 + $0x190] sm:$0xff]
    %v1534 = vld [vmem:[%s1482 + $0x198] sm:$0xff]
    %v1535 = vld [vmem:[%s1482 + $0x1a0] sm:$0xff]
    %v1536 = vld [vmem:[%s1482 + $0x1a8] sm:$0xff]
    %v1537 = vld [vmem:[%s1482 + $0x1b0] sm:$0xff]
    %v1538 = vld [vmem:[%s1482 + $0x1b8] sm:$0xff]
    %v1539 = vld [vmem:[%s1482 + $0x1c0] sm:$0xff]
    %v1540 = vld [vmem:[%s1482 + $0x1c8] sm:$0xff]
    %v1541 = vld [vmem:[%s1482 + $0x1d0] sm:$0xff]
    %v1542 = vld [vmem:[%s1482 + $0x1d8] sm:$0xff]
    %v1543 = vld [vmem:[%s1482 + $0x1e0] sm:$0xff]
    %v1544 = vld [vmem:[%s1482 + $0x1e8] sm:$0xff]
    %v1545 = vld [vmem:[%s1482 + $0x1f0] sm:$0xff]
    %v1546 = vld [vmem:[%s1482 + $0x1f8] sm:$0xff]
    %v1547 = vld [vmem:[%s1482 + $0x200] sm:$0xff]
    %v1548 = vld [vmem:[%s1482 + $0x208] sm:$0xff]
    %v1549 = vld [vmem:[%s1482 + $0x210] sm:$0xff]
    %v1550 = vld [vmem:[%s1482 + $0x218] sm:$0xff]
    %v1551 = vld [vmem:[%s1482 + $0x220] sm:$0xff]
    %v1552 = vld [vmem:[%s1482 + $0x228] sm:$0xff]
    %v1553 = vld [vmem:[%s1482 + $0x230] sm:$0xff]
    %v1554 = vld [vmem:[%s1482 + $0x238] sm:$0xff]
    %v1555 = vld [vmem:[%s1482 + $0x240] sm:$0xff]
    %v1556 = vld [vmem:[%s1482 + $0x248] sm:$0xff]
    %v1557 = vld [vmem:[%s1482 + $0x250] sm:$0xff]
    %v1558 = vld [vmem:[%s1482 + $0x258] sm:$0xff]
    %v1559 = vld [vmem:[%s1482 + $0x260] sm:$0xff]
    %v1560 = vld [vmem:[%s1482 + $0x268] sm:$0xff]
    %v1561 = vld [vmem:[%s1482 + $0x270] sm:$0xff]
    %v1562 = vld [vmem:[%s1482 + $0x278] sm:$0xff]
    %v1563 = vld [vmem:[%s1482 + $0x280] sm:$0xff]
    %v1564 = vld [vmem:[%s1482 + $0x288] sm:$0xff]
    %v1565 = vld [vmem:[%s1482 + $0x290] sm:$0xff]
    %v1566 = vld [vmem:[%s1482 + $0x298] sm:$0xff]
    %v1567 = vld [vmem:[%s1482 + $0x2a0] sm:$0xff]
    %v1568 = vld [vmem:[%s1482 + $0x2a8] sm:$0xff]
    %v1569 = vld [vmem:[%s1482 + $0x2b0] sm:$0xff]
    %v1570 = vld [vmem:[%s1482 + $0x2b8] sm:$0xff]
    %v1571 = vld [vmem:[%s1482 + $0x2c0] sm:$0xff]
    %v1572 = vld [vmem:[%s1482 + $0x2c8] sm:$0xff]
    %v1573 = vld [vmem:[%s1482 + $0x2d0] sm:$0xff]
    %v1574 = vld [vmem:[%s1482 + $0x2d8] sm:$0xff]
    %v1575 = vld [vmem:[%s1482 + $0x2e0] sm:$0xff]
    %v1576 = vld [vmem:[%s1482 + $0x2e8] sm:$0xff]
    %v1577 = vld [vmem:[%s1482 + $0x2f0] sm:$0xff]
    %v1578 = vld [vmem:[%s1482 + $0x2f8] sm:$0xff]
    %v1579 = vld [vmem:[%s1482 + $0x300] sm:$0xff]
    %v1580 = vld [vmem:[%s1482 + $0x308] sm:$0xff]
    %v1581 = vld [vmem:[%s1482 + $0x310] sm:$0xff]
    %v1582 = vld [vmem:[%s1482 + $0x318] sm:$0xff]
    %v1583 = vld [vmem:[%s1482 + $0x320] sm:$0xff]
    %v1584 = vld [vmem:[%s1482 + $0x328] sm:$0xff]
    %v1585 = vld [vmem:[%s1482 + $0x330] sm:$0xff]
    %v1586 = vld [vmem:[%s1482 + $0x338] sm:$0xff]
    %v1587 = vld [vmem:[%s1482 + $0x340] sm:$0xff]
    %v1588 = vld [vmem:[%s1482 + $0x348] sm:$0xff]
    %v1589 = vld [vmem:[%s1482 + $0x350] sm:$0xff]
    %v1590 = vld [vmem:[%s1482 + $0x358] sm:$0xff]
    %v1591 = vld [vmem:[%s1482 + $0x360] sm:$0xff]
    %v1592 = vld [vmem:[%s1482 + $0x368] sm:$0xff]
    %v1593 = vld [vmem:[%s1482 + $0x370] sm:$0xff]
    %v1594 = vld [vmem:[%s1482 + $0x378] sm:$0xff]
    %v1595 = vld [vmem:[%s1482 + $0x380] sm:$0xff]
    %v1596 = vld [vmem:[%s1482 + $0x388] sm:$0xff]
    %v1597 = vld [vmem:[%s1482 + $0x390] sm:$0xff]
    %v1598 = vld [vmem:[%s1482 + $0x398] sm:$0xff]
    %v1599 = vld [vmem:[%s1482 + $0x3a0] sm:$0xff]
    %v1600 = vld [vmem:[%s1482 + $0x3a8] sm:$0xff]
    %v1601 = vld [vmem:[%s1482 + $0x3b0] sm:$0xff]
    %v1602 = vld [vmem:[%s1482 + $0x3b8] sm:$0xff]
    %v1603 = vld [vmem:[%s1482 + $0x3c0] sm:$0xff]
    %v1604 = vld [vmem:[%s1482 + $0x3c8] sm:$0xff]
    %v1605 = vld [vmem:[%s1482 + $0x3d0] sm:$0xff]
    %v1606 = vld [vmem:[%s1482 + $0x3d8] sm:$0xff]
    %v1607 = vld [vmem:[%s1482 + $0x3e0] sm:$0xff]
    %v1608 = vld [vmem:[%s1482 + $0x3e8] sm:$0xff]
    %v1609 = vld [vmem:[%s1482 + $0x3f0] sm:$0xff]
    %v1610 = vld [vmem:[%s1482 + $0x3f8] sm:$0xff]
    %s1611 = scalar_lea.vmem [#allocation9], 2
    %v1612 = vld [vmem:[%s1611] ss:$4 sm:$0xf]
    %v1614 = vlaneseq
    %v1615 = vshrl.u32 %v1614, 7
    %v1616 = vsub.s32 0, %v1615
    %v1617 = vrot.slane %v1612, %v1616
    %v1618 = vlaneseq
    %v1619 = vshrl.u32 %v1618, 7
    %v1620 = vsub.s32 1, %v1619
    %v1621 = vrot.slane %v1612, %v1620
    %v1622 = vlaneseq
    %v1623 = vshrl.u32 %v1622, 7
    %v1624 = vsub.s32 2, %v1623
    %v1625 = vrot.slane %v1612, %v1624
    %v1626 = vlaneseq
    %v1627 = vshrl.u32 %v1626, 7
    %v1628 = vsub.s32 3, %v1627
    %v1629 = vrot.slane %v1612, %v1628
    %v1762 = vunpack.c.l.b16 %v1483
    %v1763 = vunpack.c.h.b16 %v1483
    %v1764 = vunpack.c.l.b16 %v1484
    %v1765 = vunpack.c.h.b16 %v1484
    %v1766 = vunpack.c.l.b16 %v1485
    %v1767 = vunpack.c.h.b16 %v1485
    %v1768 = vunpack.c.l.b16 %v1486
    %v1769 = vunpack.c.h.b16 %v1486
    %v1770 = vunpack.c.l.b16 %v1487
    %v1771 = vunpack.c.h.b16 %v1487
    %v1772 = vunpack.c.l.b16 %v1488
    %v1773 = vunpack.c.h.b16 %v1488
    %v1774 = vunpack.c.l.b16 %v1489
    %v1775 = vunpack.c.h.b16 %v1489
    %v1776 = vunpack.c.l.b16 %v1490
    %v1777 = vunpack.c.h.b16 %v1490
    %v1778 = vunpack.c.l.b16 %v1491
    %v1779 = vunpack.c.h.b16 %v1491
    %v1780 = vunpack.c.l.b16 %v1492
    %v1781 = vunpack.c.h.b16 %v1492
    %v1782 = vunpack.c.l.b16 %v1493
    %v1783 = vunpack.c.h.b16 %v1493
    %v1784 = vunpack.c.l.b16 %v1494
    %v1785 = vunpack.c.h.b16 %v1494
    %v1786 = vunpack.c.l.b16 %v1495
    %v1787 = vunpack.c.h.b16 %v1495
    %v1788 = vunpack.c.l.b16 %v1496
    %v1789 = vunpack.c.h.b16 %v1496
    %v1790 = vunpack.c.l.b16 %v1497
    %v1791 = vunpack.c.h.b16 %v1497
    %v1792 = vunpack.c.l.b16 %v1498
    %v1793 = vunpack.c.h.b16 %v1498
    %v1794 = vunpack.c.l.b16 %v1499
    %v1795 = vunpack.c.h.b16 %v1499
    %v1796 = vunpack.c.l.b16 %v1500
    %v1797 = vunpack.c.h.b16 %v1500
    %v1798 = vunpack.c.l.b16 %v1501
    %v1799 = vunpack.c.h.b16 %v1501
    %v1800 = vunpack.c.l.b16 %v1502
    %v1801 = vunpack.c.h.b16 %v1502
    %v1802 = vunpack.c.l.b16 %v1503
    %v1803 = vunpack.c.h.b16 %v1503
    %v1804 = vunpack.c.l.b16 %v1504
    %v1805 = vunpack.c.h.b16 %v1504
    %v1806 = vunpack.c.l.b16 %v1505
    %v1807 = vunpack.c.h.b16 %v1505
    %v1808 = vunpack.c.l.b16 %v1506
    %v1809 = vunpack.c.h.b16 %v1506
    %v1810 = vunpack.c.l.b16 %v1507
    %v1811 = vunpack.c.h.b16 %v1507
    %v1812 = vunpack.c.l.b16 %v1508
    %v1813 = vunpack.c.h.b16 %v1508
    %v1814 = vunpack.c.l.b16 %v1509
    %v1815 = vunpack.c.h.b16 %v1509
    %v1816 = vunpack.c.l.b16 %v1510
    %v1817 = vunpack.c.h.b16 %v1510
    %v1818 = vunpack.c.l.b16 %v1511
    %v1819 = vunpack.c.h.b16 %v1511
    %v1820 = vunpack.c.l.b16 %v1512
    %v1821 = vunpack.c.h.b16 %v1512
    %v1822 = vunpack.c.l.b16 %v1513
    %v1823 = vunpack.c.h.b16 %v1513
    %v1824 = vunpack.c.l.b16 %v1514
    %v1825 = vunpack.c.h.b16 %v1514
    %v1826 = vunpack.c.l.b16 %v1515
    %v1827 = vunpack.c.h.b16 %v1515
    %v1828 = vunpack.c.l.b16 %v1516
    %v1829 = vunpack.c.h.b16 %v1516
    %v1830 = vunpack.c.l.b16 %v1517
    %v1831 = vunpack.c.h.b16 %v1517
    %v1832 = vunpack.c.l.b16 %v1518
    %v1833 = vunpack.c.h.b16 %v1518
    %v1834 = vunpack.c.l.b16 %v1519
    %v1835 = vunpack.c.h.b16 %v1519
    %v1836 = vunpack.c.l.b16 %v1520
    %v1837 = vunpack.c.h.b16 %v1520
    %v1838 = vunpack.c.l.b16 %v1521
    %v1839 = vunpack.c.h.b16 %v1521
    %v1840 = vunpack.c.l.b16 %v1522
    %v1841 = vunpack.c.h.b16 %v1522
    %v1842 = vunpack.c.l.b16 %v1523
    %v1843 = vunpack.c.h.b16 %v1523
    %v1844 = vunpack.c.l.b16 %v1524
    %v1845 = vunpack.c.h.b16 %v1524
    %v1846 = vunpack.c.l.b16 %v1525
    %v1847 = vunpack.c.h.b16 %v1525
    %v1848 = vunpack.c.l.b16 %v1526
    %v1849 = vunpack.c.h.b16 %v1526
    %v1850 = vunpack.c.l.b16 %v1527
    %v1851 = vunpack.c.h.b16 %v1527
    %v1852 = vunpack.c.l.b16 %v1528
    %v1853 = vunpack.c.h.b16 %v1528
    %v1854 = vunpack.c.l.b16 %v1529
    %v1855 = vunpack.c.h.b16 %v1529
    %v1856 = vunpack.c.l.b16 %v1530
    %v1857 = vunpack.c.h.b16 %v1530
    %v1858 = vunpack.c.l.b16 %v1531
    %v1859 = vunpack.c.h.b16 %v1531
    %v1860 = vunpack.c.l.b16 %v1532
    %v1861 = vunpack.c.h.b16 %v1532
    %v1862 = vunpack.c.l.b16 %v1533
    %v1863 = vunpack.c.h.b16 %v1533
    %v1864 = vunpack.c.l.b16 %v1534
    %v1865 = vunpack.c.h.b16 %v1534
    %v1866 = vunpack.c.l.b16 %v1535
    %v1867 = vunpack.c.h.b16 %v1535
    %v1868 = vunpack.c.l.b16 %v1536
    %v1869 = vunpack.c.h.b16 %v1536
    %v1870 = vunpack.c.l.b16 %v1537
    %v1871 = vunpack.c.h.b16 %v1537
    %v1872 = vunpack.c.l.b16 %v1538
    %v1873 = vunpack.c.h.b16 %v1538
    %v1874 = vunpack.c.l.b16 %v1539
    %v1875 = vunpack.c.h.b16 %v1539
    %v1876 = vunpack.c.l.b16 %v1540
    %v1877 = vunpack.c.h.b16 %v1540
    %v1878 = vunpack.c.l.b16 %v1541
    %v1879 = vunpack.c.h.b16 %v1541
    %v1880 = vunpack.c.l.b16 %v1542
    %v1881 = vunpack.c.h.b16 %v1542
    %v1882 = vunpack.c.l.b16 %v1543
    %v1883 = vunpack.c.h.b16 %v1543
    %v1884 = vunpack.c.l.b16 %v1544
    %v1885 = vunpack.c.h.b16 %v1544
    %v1886 = vunpack.c.l.b16 %v1545
    %v1887 = vunpack.c.h.b16 %v1545
    %v1888 = vunpack.c.l.b16 %v1546
    %v1889 = vunpack.c.h.b16 %v1546
    %v1890 = vunpack.c.l.b16 %v1547
    %v1891 = vunpack.c.h.b16 %v1547
    %v1892 = vunpack.c.l.b16 %v1548
    %v1893 = vunpack.c.h.b16 %v1548
    %v1894 = vunpack.c.l.b16 %v1549
    %v1895 = vunpack.c.h.b16 %v1549
    %v1896 = vunpack.c.l.b16 %v1550
    %v1897 = vunpack.c.h.b16 %v1550
    %v1898 = vunpack.c.l.b16 %v1551
    %v1899 = vunpack.c.h.b16 %v1551
    %v1900 = vunpack.c.l.b16 %v1552
    %v1901 = vunpack.c.h.b16 %v1552
    %v1902 = vunpack.c.l.b16 %v1553
    %v1903 = vunpack.c.h.b16 %v1553
    %v1904 = vunpack.c.l.b16 %v1554
    %v1905 = vunpack.c.h.b16 %v1554
    %v1906 = vunpack.c.l.b16 %v1555
    %v1907 = vunpack.c.h.b16 %v1555
    %v1908 = vunpack.c.l.b16 %v1556
    %v1909 = vunpack.c.h.b16 %v1556
    %v1910 = vunpack.c.l.b16 %v1557
    %v1911 = vunpack.c.h.b16 %v1557
    %v1912 = vunpack.c.l.b16 %v1558
    %v1913 = vunpack.c.h.b16 %v1558
    %v1914 = vunpack.c.l.b16 %v1559
    %v1915 = vunpack.c.h.b16 %v1559
    %v1916 = vunpack.c.l.b16 %v1560
    %v1917 = vunpack.c.h.b16 %v1560
    %v1918 = vunpack.c.l.b16 %v1561
    %v1919 = vunpack.c.h.b16 %v1561
    %v1920 = vunpack.c.l.b16 %v1562
    %v1921 = vunpack.c.h.b16 %v1562
    %v1922 = vunpack.c.l.b16 %v1563
    %v1923 = vunpack.c.h.b16 %v1563
    %v1924 = vunpack.c.l.b16 %v1564
    %v1925 = vunpack.c.h.b16 %v1564
    %v1926 = vunpack.c.l.b16 %v1565
    %v1927 = vunpack.c.h.b16 %v1565
    %v1928 = vunpack.c.l.b16 %v1566
    %v1929 = vunpack.c.h.b16 %v1566
    %v1930 = vunpack.c.l.b16 %v1567
    %v1931 = vunpack.c.h.b16 %v1567
    %v1932 = vunpack.c.l.b16 %v1568
    %v1933 = vunpack.c.h.b16 %v1568
    %v1934 = vunpack.c.l.b16 %v1569
    %v1935 = vunpack.c.h.b16 %v1569
    %v1936 = vunpack.c.l.b16 %v1570
    %v1937 = vunpack.c.h.b16 %v1570
    %v1938 = vunpack.c.l.b16 %v1571
    %v1939 = vunpack.c.h.b16 %v1571
    %v1940 = vunpack.c.l.b16 %v1572
    %v1941 = vunpack.c.h.b16 %v1572
    %v1942 = vunpack.c.l.b16 %v1573
    %v1943 = vunpack.c.h.b16 %v1573
    %v1944 = vunpack.c.l.b16 %v1574
    %v1945 = vunpack.c.h.b16 %v1574
    %v1946 = vunpack.c.l.b16 %v1575
    %v1947 = vunpack.c.h.b16 %v1575
    %v1948 = vunpack.c.l.b16 %v1576
    %v1949 = vunpack.c.h.b16 %v1576
    %v1950 = vunpack.c.l.b16 %v1577
    %v1951 = vunpack.c.h.b16 %v1577
    %v1952 = vunpack.c.l.b16 %v1578
    %v1953 = vunpack.c.h.b16 %v1578
    %v1954 = vunpack.c.l.b16 %v1579
    %v1955 = vunpack.c.h.b16 %v1579
    %v1956 = vunpack.c.l.b16 %v1580
    %v1957 = vunpack.c.h.b16 %v1580
    %v1958 = vunpack.c.l.b16 %v1581
    %v1959 = vunpack.c.h.b16 %v1581
    %v1960 = vunpack.c.l.b16 %v1582
    %v1961 = vunpack.c.h.b16 %v1582
    %v1962 = vunpack.c.l.b16 %v1583
    %v1963 = vunpack.c.h.b16 %v1583
    %v1964 = vunpack.c.l.b16 %v1584
    %v1965 = vunpack.c.h.b16 %v1584
    %v1966 = vunpack.c.l.b16 %v1585
    %v1967 = vunpack.c.h.b16 %v1585
    %v1968 = vunpack.c.l.b16 %v1586
    %v1969 = vunpack.c.h.b16 %v1586
    %v1970 = vunpack.c.l.b16 %v1587
    %v1971 = vunpack.c.h.b16 %v1587
    %v1972 = vunpack.c.l.b16 %v1588
    %v1973 = vunpack.c.h.b16 %v1588
    %v1974 = vunpack.c.l.b16 %v1589
    %v1975 = vunpack.c.h.b16 %v1589
    %v1976 = vunpack.c.l.b16 %v1590
    %v1977 = vunpack.c.h.b16 %v1590
    %v1978 = vunpack.c.l.b16 %v1591
    %v1979 = vunpack.c.h.b16 %v1591
    %v1980 = vunpack.c.l.b16 %v1592
    %v1981 = vunpack.c.h.b16 %v1592
    %v1982 = vunpack.c.l.b16 %v1593
    %v1983 = vunpack.c.h.b16 %v1593
    %v1984 = vunpack.c.l.b16 %v1594
    %v1985 = vunpack.c.h.b16 %v1594
    %v1986 = vunpack.c.l.b16 %v1595
    %v1987 = vunpack.c.h.b16 %v1595
    %v1988 = vunpack.c.l.b16 %v1596
    %v1989 = vunpack.c.h.b16 %v1596
    %v1990 = vunpack.c.l.b16 %v1597
    %v1991 = vunpack.c.h.b16 %v1597
    %v1992 = vunpack.c.l.b16 %v1598
    %v1993 = vunpack.c.h.b16 %v1598
    %v1994 = vunpack.c.l.b16 %v1599
    %v1995 = vunpack.c.h.b16 %v1599
    %v1996 = vunpack.c.l.b16 %v1600
    %v1997 = vunpack.c.h.b16 %v1600
    %v1998 = vunpack.c.l.b16 %v1601
    %v1999 = vunpack.c.h.b16 %v1601
    %v2000 = vunpack.c.l.b16 %v1602
    %v2001 = vunpack.c.h.b16 %v1602
    %v2002 = vunpack.c.l.b16 %v1603
    %v2003 = vunpack.c.h.b16 %v1603
    %v2004 = vunpack.c.l.b16 %v1604
    %v2005 = vunpack.c.h.b16 %v1604
    %v2006 = vunpack.c.l.b16 %v1605
    %v2007 = vunpack.c.h.b16 %v1605
    %v2008 = vunpack.c.l.b16 %v1606
    %v2009 = vunpack.c.h.b16 %v1606
    %v2010 = vunpack.c.l.b16 %v1607
    %v2011 = vunpack.c.h.b16 %v1607
    %v2012 = vunpack.c.l.b16 %v1608
    %v2013 = vunpack.c.h.b16 %v1608
    %v2014 = vunpack.c.l.b16 %v1609
    %v2015 = vunpack.c.h.b16 %v1609
    %v2016 = vunpack.c.l.b16 %v1610
    %v2017 = vunpack.c.h.b16 %v1610
    %v2018 = vpack.c.b16 %v1766, %v1762
    %v2019 = vpack.c.b16 %v1767, %v1763
    %v2020 = vpack.c.b16 %v1768, %v1764
    %v2021 = vpack.c.b16 %v1769, %v1765
    %v2022 = vpack.c.b16 %v1774, %v1770
    %v2023 = vpack.c.b16 %v1775, %v1771
    %v2024 = vpack.c.b16 %v1776, %v1772
    %v2025 = vpack.c.b16 %v1777, %v1773
    %v2026 = vpack.c.b16 %v1782, %v1778
    %v2027 = vpack.c.b16 %v1783, %v1779
    %v2028 = vpack.c.b16 %v1784, %v1780
    %v2029 = vpack.c.b16 %v1785, %v1781
    %v2030 = vpack.c.b16 %v1790, %v1786
    %v2031 = vpack.c.b16 %v1791, %v1787
    %v2032 = vpack.c.b16 %v1792, %v1788
    %v2033 = vpack.c.b16 %v1793, %v1789
    %v2034 = vpack.c.b16 %v1798, %v1794
    %v2035 = vpack.c.b16 %v1799, %v1795
    %v2036 = vpack.c.b16 %v1800, %v1796
    %v2037 = vpack.c.b16 %v1801, %v1797
    %v2038 = vpack.c.b16 %v1806, %v1802
    %v2039 = vpack.c.b16 %v1807, %v1803
    %v2040 = vpack.c.b16 %v1808, %v1804
    %v2041 = vpack.c.b16 %v1809, %v1805
    %v2042 = vpack.c.b16 %v1814, %v1810
    %v2043 = vpack.c.b16 %v1815, %v1811
    %v2044 = vpack.c.b16 %v1816, %v1812
    %v2045 = vpack.c.b16 %v1817, %v1813
    %v2046 = vpack.c.b16 %v1822, %v1818
    %v2047 = vpack.c.b16 %v1823, %v1819
    %v2048 = vpack.c.b16 %v1824, %v1820
    %v2049 = vpack.c.b16 %v1825, %v1821
    %v2050 = vpack.c.b16 %v1830, %v1826
    %v2051 = vpack.c.b16 %v1831, %v1827
    %v2052 = vpack.c.b16 %v1832, %v1828
    %v2053 = vpack.c.b16 %v1833, %v1829
    %v2054 = vpack.c.b16 %v1838, %v1834
    %v2055 = vpack.c.b16 %v1839, %v1835
    %v2056 = vpack.c.b16 %v1840, %v1836
    %v2057 = vpack.c.b16 %v1841, %v1837
    %v2058 = vpack.c.b16 %v1846, %v1842
    %v2059 = vpack.c.b16 %v1847, %v1843
    %v2060 = vpack.c.b16 %v1848, %v1844
    %v2061 = vpack.c.b16 %v1849, %v1845
    %v2062 = vpack.c.b16 %v1854, %v1850
    %v2063 = vpack.c.b16 %v1855, %v1851
    %v2064 = vpack.c.b16 %v1856, %v1852
    %v2065 = vpack.c.b16 %v1857, %v1853
    %v2066 = vpack.c.b16 %v1862, %v1858
    %v2067 = vpack.c.b16 %v1863, %v1859
    %v2068 = vpack.c.b16 %v1864, %v1860
    %v2069 = vpack.c.b16 %v1865, %v1861
    %v2070 = vpack.c.b16 %v1870, %v1866
    %v2071 = vpack.c.b16 %v1871, %v1867
    %v2072 = vpack.c.b16 %v1872, %v1868
    %v2073 = vpack.c.b16 %v1873, %v1869
    %v2074 = vpack.c.b16 %v1878, %v1874
    %v2075 = vpack.c.b16 %v1879, %v1875
    %v2076 = vpack.c.b16 %v1880, %v1876
    %v2077 = vpack.c.b16 %v1881, %v1877
    %v2078 = vpack.c.b16 %v1886, %v1882
    %v2079 = vpack.c.b16 %v1887, %v1883
    %v2080 = vpack.c.b16 %v1888, %v1884
    %v2081 = vpack.c.b16 %v1889, %v1885
    %v2082 = vpack.c.b16 %v1894, %v1890
    %v2083 = vpack.c.b16 %v1895, %v1891
    %v2084 = vpack.c.b16 %v1896, %v1892
    %v2085 = vpack.c.b16 %v1897, %v1893
    %v2086 = vpack.c.b16 %v1902, %v1898
    %v2087 = vpack.c.b16 %v1903, %v1899
    %v2088 = vpack.c.b16 %v1904, %v1900
    %v2089 = vpack.c.b16 %v1905, %v1901
    %v2090 = vpack.c.b16 %v1910, %v1906
    %v2091 = vpack.c.b16 %v1911, %v1907
    %v2092 = vpack.c.b16 %v1912, %v1908
    %v2093 = vpack.c.b16 %v1913, %v1909
    %v2094 = vpack.c.b16 %v1918, %v1914
    %v2095 = vpack.c.b16 %v1919, %v1915
    %v2096 = vpack.c.b16 %v1920, %v1916
    %v2097 = vpack.c.b16 %v1921, %v1917
    %v2098 = vpack.c.b16 %v1926, %v1922
    %v2099 = vpack.c.b16 %v1927, %v1923
    %v2100 = vpack.c.b16 %v1928, %v1924
    %v2101 = vpack.c.b16 %v1929, %v1925
    %v2102 = vpack.c.b16 %v1934, %v1930
    %v2103 = vpack.c.b16 %v1935, %v1931
    %v2104 = vpack.c.b16 %v1936, %v1932
    %v2105 = vpack.c.b16 %v1937, %v1933
    %v2106 = vpack.c.b16 %v1942, %v1938
    %v2107 = vpack.c.b16 %v1943, %v1939
    %v2108 = vpack.c.b16 %v1944, %v1940
    %v2109 = vpack.c.b16 %v1945, %v1941
    %v2110 = vpack.c.b16 %v1950, %v1946
    %v2111 = vpack.c.b16 %v1951, %v1947
    %v2112 = vpack.c.b16 %v1952, %v1948
    %v2113 = vpack.c.b16 %v1953, %v1949
    %v2114 = vpack.c.b16 %v1958, %v1954
    %v2115 = vpack.c.b16 %v1959, %v1955
    %v2116 = vpack.c.b16 %v1960, %v1956
    %v2117 = vpack.c.b16 %v1961, %v1957
    %v2118 = vpack.c.b16 %v1966, %v1962
    %v2119 = vpack.c.b16 %v1967, %v1963
    %v2120 = vpack.c.b16 %v1968, %v1964
    %v2121 = vpack.c.b16 %v1969, %v1965
    %v2122 = vpack.c.b16 %v1974, %v1970
    %v2123 = vpack.c.b16 %v1975, %v1971
    %v2124 = vpack.c.b16 %v1976, %v1972
    %v2125 = vpack.c.b16 %v1977, %v1973
    %v2126 = vpack.c.b16 %v1982, %v1978
    %v2127 = vpack.c.b16 %v1983, %v1979
    %v2128 = vpack.c.b16 %v1984, %v1980
    %v2129 = vpack.c.b16 %v1985, %v1981
    %v2130 = vpack.c.b16 %v1990, %v1986
    %v2131 = vpack.c.b16 %v1991, %v1987
    %v2132 = vpack.c.b16 %v1992, %v1988
    %v2133 = vpack.c.b16 %v1993, %v1989
    %v2134 = vpack.c.b16 %v1998, %v1994
    %v2135 = vpack.c.b16 %v1999, %v1995
    %v2136 = vpack.c.b16 %v2000, %v1996
    %v2137 = vpack.c.b16 %v2001, %v1997
    %v2138 = vpack.c.b16 %v2006, %v2002
    %v2139 = vpack.c.b16 %v2007, %v2003
    %v2140 = vpack.c.b16 %v2008, %v2004
    %v2141 = vpack.c.b16 %v2009, %v2005
    %v2142 = vpack.c.b16 %v2014, %v2010
    %v2143 = vpack.c.b16 %v2015, %v2011
    %v2144 = vpack.c.b16 %v2016, %v2012
    %v2145 = vpack.c.b16 %v2017, %v2013
    %2274 = vmatprep.subr.bf16.mxu0 %v2047
    %2275 = vmatpush1.bf16.msra.mxu0 %v2046
    %2276 = vmatprep.subr.bf16.mxu0 %v2043
    %2277 = vmatpush1.bf16.msra.mxu0 %v2042
    %2278 = vmatprep.subr.bf16.mxu0 %v2039
    %2279 = vmatpush1.bf16.msra.mxu0 %v2038
    %2280 = vmatprep.subr.bf16.mxu0 %v2035
    %2281 = vmatpush1.bf16.msra.mxu0 %v2034
    %2282 = vmatprep.subr.bf16.mxu0 %v2031
    %2283 = vmatpush1.bf16.msra.mxu0 %v2030
    %2284 = vmatprep.subr.bf16.mxu0 %v2027
    %2285 = vmatpush1.bf16.msra.mxu0 %v2026
    %2286 = vmatprep.subr.bf16.mxu0 %v2023
    %2287 = vmatpush1.bf16.msra.mxu0 %v2022
    %2288 = vmatprep.subr.bf16.mxu0 %v2019
    %2289 = vmatpush1.bf16.msra.mxu0 %v2018
    %2290 = vmatprep.subr.bf16.mxu0 %v2079
    %2291 = vmatpush2.bf16.msra.mxu0 %v2078
    %2292 = vmatprep.subr.bf16.mxu0 %v2075
    %2293 = vmatpush2.bf16.msra.mxu0 %v2074
    %2294 = vmatprep.subr.bf16.mxu0 %v2071
    %2295 = vmatpush2.bf16.msra.mxu0 %v2070
    %2296 = vmatprep.subr.bf16.mxu0 %v2067
    %2297 = vmatpush2.bf16.msra.mxu0 %v2066
    %2298 = vmatprep.subr.bf16.mxu0 %v2063
    %2299 = vmatpush2.bf16.msra.mxu0 %v2062
    %2300 = vmatprep.subr.bf16.mxu0 %v2059
    %2301 = vmatpush2.bf16.msra.mxu0 %v2058
    %2302 = vmatprep.subr.bf16.mxu0 %v2055
    %2303 = vmatpush2.bf16.msra.mxu0 %v2054
    %2304 = vmatprep.subr.bf16.mxu0 %v2051
    %2305 = vmatpush2.bf16.msra.mxu0 %v2050
    %2306 = vmatprep.mubr.bf16.mxu0 %v1467
    %2307 = vmatmul.mubr.bf16.gmra.mxu0 %v1466
    %v2308 = vpop.f32.mrf.mxu0
    %v2309 = vadd.f32 %v1617, %v2308
    %v2310 = vpop.f32.mrf.mxu0
    %v2311 = vadd.f32 %v1621, %v2310
    %v2312 = vpop.f32.mrf.mxu0
    %v2313 = vadd.f32 %v1617, %v2312
    %v2314 = vpop.f32.mrf.mxu0
    %v2315 = vadd.f32 %v1621, %v2314
    %2316 = vmatprep.mubr.bf16.mxu0 %v1471
    %2317 = vmatmul.mubr.bf16.gmra.mxu0 %v1470
    %v2318 = vpop.f32.mrf.mxu0
    %v2319 = vadd.f32 %v1617, %v2318
    %v2320 = vpop.f32.mrf.mxu0
    %v2321 = vadd.f32 %v1621, %v2320
    %v2322 = vpop.f32.mrf.mxu0
    %v2323 = vadd.f32 %v1617, %v2322
    %v2324 = vpop.f32.mrf.mxu0
    %v2325 = vadd.f32 %v1621, %v2324
    %2326 = vmatprep.mubr.bf16.mxu0 %v1475
    %2327 = vmatmul.mubr.bf16.gmra.mxu0 %v1474
    %v2328 = vpop.f32.mrf.mxu0
    %v2329 = vadd.f32 %v1617, %v2328
    %v2330 = vpop.f32.mrf.mxu0
    %v2331 = vadd.f32 %v1621, %v2330
    %v2332 = vpop.f32.mrf.mxu0
    %v2333 = vadd.f32 %v1617, %v2332
    %v2334 = vpop.f32.mrf.mxu0
    %v2335 = vadd.f32 %v1621, %v2334
    %2336 = vmatprep.mubr.bf16.mxu0 %v1479
    %2337 = vmatmul.mubr.bf16.gmra.mxu0 %v1478
    %v2338 = vpop.f32.mrf.mxu0
    %v2339 = vadd.f32 %v1617, %v2338
    %v2340 = vpop.f32.mrf.mxu0
    %v2341 = vadd.f32 %v1621, %v2340
    %v2342 = vpop.f32.mrf.mxu0
    %v2343 = vadd.f32 %v1617, %v2342
    %v2344 = vpop.f32.mrf.mxu0
    %v2345 = vadd.f32 %v1621, %v2344
    %2346 = vdwg.mxu0
    %2347 = vmatprep.subr.bf16.mxu0 %v2111
    %2348 = vmatpush1.bf16.msra.mxu0 %v2110
    %2349 = vmatprep.subr.bf16.mxu0 %v2107
    %2350 = vmatpush1.bf16.msra.mxu0 %v2106
    %2351 = vmatprep.subr.bf16.mxu0 %v2103
    %2352 = vmatpush1.bf16.msra.mxu0 %v2102
    %2353 = vmatprep.subr.bf16.mxu0 %v2099
    %2354 = vmatpush1.bf16.msra.mxu0 %v2098
    %2355 = vmatprep.subr.bf16.mxu0 %v2095
    %2356 = vmatpush1.bf16.msra.mxu0 %v2094
    %2357 = vmatprep.subr.bf16.mxu0 %v2091
    %2358 = vmatpush1.bf16.msra.mxu0 %v2090
    %2359 = vmatprep.subr.bf16.mxu0 %v2087
    %2360 = vmatpush1.bf16.msra.mxu0 %v2086
    %2361 = vmatprep.subr.bf16.mxu0 %v2083
    %2362 = vmatpush1.bf16.msra.mxu0 %v2082
    %2363 = vmatprep.subr.bf16.mxu0 %v2143
    %2364 = vmatpush2.bf16.msra.mxu0 %v2142
    %2365 = vmatprep.subr.bf16.mxu0 %v2139
    %2366 = vmatpush2.bf16.msra.mxu0 %v2138
    %2367 = vmatprep.subr.bf16.mxu0 %v2135
    %2368 = vmatpush2.bf16.msra.mxu0 %v2134
    %2369 = vmatprep.subr.bf16.mxu0 %v2131
    %2370 = vmatpush2.bf16.msra.mxu0 %v2130
    %2371 = vmatprep.subr.bf16.mxu0 %v2127
    %2372 = vmatpush2.bf16.msra.mxu0 %v2126
    %2373 = vmatprep.subr.bf16.mxu0 %v2123
    %2374 = vmatpush2.bf16.msra.mxu0 %v2122
    %2375 = vmatprep.subr.bf16.mxu0 %v2119
    %2376 = vmatpush2.bf16.msra.mxu0 %v2118
    %2377 = vmatprep.subr.bf16.mxu0 %v2115
    %2378 = vmatpush2.bf16.msra.mxu0 %v2114
    %2379 = vmatprep.mubr.bf16.mxu0 %v1469
    %2380 = vmatmul.mubr.bf16.gmra.mxu0 %v1468
    %v2381 = vpop.f32.mrf.mxu0
    %v2382 = vadd.f32 %v2309, %v2381
    %v2383 = vpop.f32.mrf.mxu0
    %v2384 = vadd.f32 %v2311, %v2383
    %v2385 = vpop.f32.mrf.mxu0
    %v2386 = vadd.f32 %v2313, %v2385
    %v2387 = vpop.f32.mrf.mxu0
    %v2388 = vadd.f32 %v2315, %v2387
    %2389 = vmatprep.mubr.bf16.mxu0 %v1473
    %2390 = vmatmul.mubr.bf16.gmra.mxu0 %v1472
    %v2391 = vpop.f32.mrf.mxu0
    %v2392 = vadd.f32 %v2319, %v2391
    %v2393 = vpop.f32.mrf.mxu0
    %v2394 = vadd.f32 %v2321, %v2393
    %v2395 = vpop.f32.mrf.mxu0
    %v2396 = vadd.f32 %v2323, %v2395
    %v2397 = vpop.f32.mrf.mxu0
    %v2398 = vadd.f32 %v2325, %v2397
    %2399 = vmatprep.mubr.bf16.mxu0 %v1477
    %2400 = vmatmul.mubr.bf16.gmra.mxu0 %v1476
    %v2401 = vpop.f32.mrf.mxu0
    %v2402 = vadd.f32 %v2329, %v2401
    %v2403 = vpop.f32.mrf.mxu0
    %v2404 = vadd.f32 %v2331, %v2403
    %v2405 = vpop.f32.mrf.mxu0
    %v2406 = vadd.f32 %v2333, %v2405
    %v2407 = vpop.f32.mrf.mxu0
    %v2408 = vadd.f32 %v2335, %v2407
    %2409 = vmatprep.mubr.bf16.mxu0 %v1481
    %2410 = vmatmul.mubr.bf16.gmra.mxu0 %v1480
    %v2411 = vpop.f32.mrf.mxu0
    %v2412 = vadd.f32 %v2339, %v2411
    %v2413 = vpop.f32.mrf.mxu0
    %v2414 = vadd.f32 %v2341, %v2413
    %v2415 = vpop.f32.mrf.mxu0
    %v2416 = vadd.f32 %v2343, %v2415
    %v2417 = vpop.f32.mrf.mxu0
    %v2418 = vadd.f32 %v2345, %v2417
    %2419 = vdwg.mxu0
    %2420 = vmatprep.subr.bf16.mxu0 %v2049
    %2421 = vmatpush1.bf16.msra.mxu0 %v2048
    %2422 = vmatprep.subr.bf16.mxu0 %v2045
    %2423 = vmatpush1.bf16.msra.mxu0 %v2044
    %2424 = vmatprep.subr.bf16.mxu0 %v2041
    %2425 = vmatpush1.bf16.msra.mxu0 %v2040
    %2426 = vmatprep.subr.bf16.mxu0 %v2037
    %2427 = vmatpush1.bf16.msra.mxu0 %v2036
    %2428 = vmatprep.subr.bf16.mxu0 %v2033
    %2429 = vmatpush1.bf16.msra.mxu0 %v2032
    %2430 = vmatprep.subr.bf16.mxu0 %v2029
    %2431 = vmatpush1.bf16.msra.mxu0 %v2028
    %2432 = vmatprep.subr.bf16.mxu0 %v2025
    %2433 = vmatpush1.bf16.msra.mxu0 %v2024
    %2434 = vmatprep.subr.bf16.mxu0 %v2021
    %2435 = vmatpush1.bf16.msra.mxu0 %v2020
    %2436 = vmatprep.subr.bf16.mxu0 %v2081
    %2437 = vmatpush2.bf16.msra.mxu0 %v2080
    %2438 = vmatprep.subr.bf16.mxu0 %v2077
    %2439 = vmatpush2.bf16.msra.mxu0 %v2076
    %2440 = vmatprep.subr.bf16.mxu0 %v2073
    %2441 = vmatpush2.bf16.msra.mxu0 %v2072
    %2442 = vmatprep.subr.bf16.mxu0 %v2069
    %2443 = vmatpush2.bf16.msra.mxu0 %v2068
    %2444 = vmatprep.subr.bf16.mxu0 %v2065
    %2445 = vmatpush2.bf16.msra.mxu0 %v2064
    %2446 = vmatprep.subr.bf16.mxu0 %v2061
    %2447 = vmatpush2.bf16.msra.mxu0 %v2060
    %2448 = vmatprep.subr.bf16.mxu0 %v2057
    %2449 = vmatpush2.bf16.msra.mxu0 %v2056
    %2450 = vmatprep.subr.bf16.mxu0 %v2053
    %2451 = vmatpush2.bf16.msra.mxu0 %v2052
    %2452 = vmatprep.mubr.bf16.mxu0 %v1467
    %2453 = vmatmul.mubr.bf16.gmra.mxu0 %v1466
    %v2454 = vpop.f32.mrf.mxu0
    %v2455 = vadd.f32 %v1625, %v2454
    %v2456 = vpop.f32.mrf.mxu0
    %v2457 = vadd.f32 %v1629, %v2456
    %v2458 = vpop.f32.mrf.mxu0
    %v2459 = vadd.f32 %v1625, %v2458
    %v2460 = vpop.f32.mrf.mxu0
    %v2461 = vadd.f32 %v1629, %v2460
    %2462 = vmatprep.mubr.bf16.mxu0 %v1471
    %2463 = vmatmul.mubr.bf16.gmra.mxu0 %v1470
    %v2464 = vpop.f32.mrf.mxu0
    %v2465 = vadd.f32 %v1625, %v2464
    %v2466 = vpop.f32.mrf.mxu0
    %v2467 = vadd.f32 %v1629, %v2466
    %v2468 = vpop.f32.mrf.mxu0
    %v2469 = vadd.f32 %v1625, %v2468
    %v2470 = vpop.f32.mrf.mxu0
    %v2471 = vadd.f32 %v1629, %v2470
    %2472 = vmatprep.mubr.bf16.mxu0 %v1475
    %2473 = vmatmul.mubr.bf16.gmra.mxu0 %v1474
    %v2474 = vpop.f32.mrf.mxu0
    %v2475 = vadd.f32 %v1625, %v2474
    %v2476 = vpop.f32.mrf.mxu0
    %v2477 = vadd.f32 %v1629, %v2476
    %v2478 = vpop.f32.mrf.mxu0
    %v2479 = vadd.f32 %v1625, %v2478
    %v2480 = vpop.f32.mrf.mxu0
    %v2481 = vadd.f32 %v1629, %v2480
    %2482 = vmatprep.mubr.bf16.mxu0 %v1479
    %2483 = vmatmul.mubr.bf16.gmra.mxu0 %v1478
    %v2484 = vpop.f32.mrf.mxu0
    %v2485 = vadd.f32 %v1625, %v2484
    %v2486 = vpop.f32.mrf.mxu0
    %v2487 = vadd.f32 %v1629, %v2486
    %v2488 = vpop.f32.mrf.mxu0
    %v2489 = vadd.f32 %v1625, %v2488
    %v2490 = vpop.f32.mrf.mxu0
    %v2491 = vadd.f32 %v1629, %v2490
    %2492 = vdwg.mxu0
    %2493 = vmatprep.subr.bf16.mxu0 %v2113
    %2494 = vmatpush1.bf16.msra.mxu0 %v2112
    %2495 = vmatprep.subr.bf16.mxu0 %v2109
    %2496 = vmatpush1.bf16.msra.mxu0 %v2108
    %2497 = vmatprep.subr.bf16.mxu0 %v2105
    %2498 = vmatpush1.bf16.msra.mxu0 %v2104
    %2499 = vmatprep.subr.bf16.mxu0 %v2101
    %2500 = vmatpush1.bf16.msra.mxu0 %v2100
    %2501 = vmatprep.subr.bf16.mxu0 %v2097
    %2502 = vmatpush1.bf16.msra.mxu0 %v2096
    %2503 = vmatprep.subr.bf16.mxu0 %v2093
    %2504 = vmatpush1.bf16.msra.mxu0 %v2092
    %2505 = vmatprep.subr.bf16.mxu0 %v2089
    %2506 = vmatpush1.bf16.msra.mxu0 %v2088
    %2507 = vmatprep.subr.bf16.mxu0 %v2085
    %2508 = vmatpush1.bf16.msra.mxu0 %v2084
    %2509 = vmatprep.subr.bf16.mxu0 %v2145
    %2510 = vmatpush2.bf16.msra.mxu0 %v2144
    %2511 = vmatprep.subr.bf16.mxu0 %v2141
    %2512 = vmatpush2.bf16.msra.mxu0 %v2140
    %2513 = vmatprep.subr.bf16.mxu0 %v2137
    %2514 = vmatpush2.bf16.msra.mxu0 %v2136
    %2515 = vmatprep.subr.bf16.mxu0 %v2133
    %2516 = vmatpush2.bf16.msra.mxu0 %v2132
    %2517 = vmatprep.subr.bf16.mxu0 %v2129
    %2518 = vmatpush2.bf16.msra.mxu0 %v2128
    %2519 = vmatprep.subr.bf16.mxu0 %v2125
    %2520 = vmatpush2.bf16.msra.mxu0 %v2124
    %2521 = vmatprep.subr.bf16.mxu0 %v2121
    %2522 = vmatpush2.bf16.msra.mxu0 %v2120
    %2523 = vmatprep.subr.bf16.mxu0 %v2117
    %2524 = vmatpush2.bf16.msra.mxu0 %v2116
    %2525 = vmatprep.mubr.bf16.mxu0 %v1469
    %2526 = vmatmul.mubr.bf16.gmra.mxu0 %v1468
    %v2527 = vpop.f32.mrf.mxu0
    %v2528 = vadd.f32 %v2455, %v2527
    %v2529 = vpop.f32.mrf.mxu0
    %v2530 = vadd.f32 %v2457, %v2529
    %v2531 = vpop.f32.mrf.mxu0
    %v2532 = vadd.f32 %v2459, %v2531
    %v2533 = vpop.f32.mrf.mxu0
    %v2534 = vadd.f32 %v2461, %v2533
    %2535 = vmatprep.mubr.bf16.mxu0 %v1473
    %2536 = vmatmul.mubr.bf16.gmra.mxu0 %v1472
    %v2537 = vpop.f32.mrf.mxu0
    %v2538 = vadd.f32 %v2465, %v2537
    %v2539 = vpop.f32.mrf.mxu0
    %v2540 = vadd.f32 %v2467, %v2539
    %v2541 = vpop.f32.mrf.mxu0
    %v2542 = vadd.f32 %v2469, %v2541
    %v2543 = vpop.f32.mrf.mxu0
    %v2544 = vadd.f32 %v2471, %v2543
    %2545 = vmatprep.mubr.bf16.mxu0 %v1477
    %2546 = vmatmul.mubr.bf16.gmra.mxu0 %v1476
    %v2547 = vpop.f32.mrf.mxu0
    %v2548 = vadd.f32 %v2475, %v2547
    %v2549 = vpop.f32.mrf.mxu0
    %v2550 = vadd.f32 %v2477, %v2549
    %v2551 = vpop.f32.mrf.mxu0
    %v2552 = vadd.f32 %v2479, %v2551
    %v2553 = vpop.f32.mrf.mxu0
    %v2554 = vadd.f32 %v2481, %v2553
    %2555 = vmatprep.mubr.bf16.mxu0 %v1481
    %2556 = vmatmul.mubr.bf16.gmra.mxu0 %v1480
    %v2557 = vpop.f32.mrf.mxu0
    %v2558 = vadd.f32 %v2485, %v2557
    %v2559 = vpop.f32.mrf.mxu0
    %v2560 = vadd.f32 %v2487, %v2559
    %v2561 = vpop.f32.mrf.mxu0
    %v2562 = vadd.f32 %v2489, %v2561
    %v2563 = vpop.f32.mrf.mxu0
    %v2564 = vadd.f32 %v2491, %v2563
    %2565 = vdwg.mxu0
    %v2566 = vmax.f32 %v2382, 0.0
    %v2567 = vmax.f32 %v2384, 0.0
    %v2568 = vmax.f32 %v2528, 0.0
    %v2569 = vmax.f32 %v2530, 0.0
    %v2570 = vmax.f32 %v2386, 0.0
    %v2571 = vmax.f32 %v2388, 0.0
    %v2572 = vmax.f32 %v2532, 0.0
    %v2573 = vmax.f32 %v2534, 0.0
    %v2574 = vmax.f32 %v2392, 0.0
    %v2575 = vmax.f32 %v2394, 0.0
    %v2576 = vmax.f32 %v2538, 0.0
    %v2577 = vmax.f32 %v2540, 0.0
    %v2578 = vmax.f32 %v2396, 0.0
    %v2579 = vmax.f32 %v2398, 0.0
    %v2580 = vmax.f32 %v2542, 0.0
    %v2581 = vmax.f32 %v2544, 0.0
    %v2582 = vmax.f32 %v2402, 0.0
    %v2583 = vmax.f32 %v2404, 0.0
    %v2584 = vmax.f32 %v2548, 0.0
    %v2585 = vmax.f32 %v2550, 0.0
    %v2586 = vmax.f32 %v2406, 0.0
    %v2587 = vmax.f32 %v2408, 0.0
    %v2588 = vmax.f32 %v2552, 0.0
    %v2589 = vmax.f32 %v2554, 0.0
    %v2590 = vmax.f32 %v2412, 0.0
    %v2591 = vmax.f32 %v2414, 0.0
    %v2592 = vmax.f32 %v2558, 0.0
    %v2593 = vmax.f32 %v2560, 0.0
    %v2594 = vmax.f32 %v2416, 0.0
    %v2595 = vmax.f32 %v2418, 0.0
    %v2596 = vmax.f32 %v2562, 0.0
    %v2597 = vmax.f32 %v2564, 0.0
    %v2598 = vpack.c.bf16 %v2570, %v2566
    %v2599 = vpack.c.bf16 %v2571, %v2567
    %v2600 = vpack.c.bf16 %v2572, %v2568
    %v2601 = vpack.c.bf16 %v2573, %v2569
    %v2602 = vpack.c.bf16 %v2578, %v2574
    %v2603 = vpack.c.bf16 %v2579, %v2575
    %v2604 = vpack.c.bf16 %v2580, %v2576
    %v2605 = vpack.c.bf16 %v2581, %v2577
    %v2606 = vpack.c.bf16 %v2586, %v2582
    %v2607 = vpack.c.bf16 %v2587, %v2583
    %v2608 = vpack.c.bf16 %v2588, %v2584
    %v2609 = vpack.c.bf16 %v2589, %v2585
    %v2610 = vpack.c.bf16 %v2594, %v2590
    %v2611 = vpack.c.bf16 %v2595, %v2591
    %v2612 = vpack.c.bf16 %v2596, %v2592
    %v2613 = vpack.c.bf16 %v2597, %v2593
    %s2614 = scalar_lea.vmem [#allocation6], 2048
    %v2615 = vld [vmem:[%s2614] sm:$0xff]
    %v2616 = vld [vmem:[%s2614 + $0x8] sm:$0xff]
    %v2617 = vld [vmem:[%s2614 + $0x10] sm:$0xff]
    %v2618 = vld [vmem:[%s2614 + $0x18] sm:$0xff]
    %v2619 = vld [vmem:[%s2614 + $0x20] sm:$0xff]
    %v2620 = vld [vmem:[%s2614 + $0x28] sm:$0xff]
    %v2621 = vld [vmem:[%s2614 + $0x30] sm:$0xff]
    %v2622 = vld [vmem:[%s2614 + $0x38] sm:$0xff]
    %v2623 = vld [vmem:[%s2614 + $0x40] sm:$0xff]
    %v2624 = vld [vmem:[%s2614 + $0x48] sm:$0xff]
    %v2625 = vld [vmem:[%s2614 + $0x50] sm:$0xff]
    %v2626 = vld [vmem:[%s2614 + $0x58] sm:$0xff]
    %v2627 = vld [vmem:[%s2614 + $0x60] sm:$0xff]
    %v2628 = vld [vmem:[%s2614 + $0x68] sm:$0xff]
    %v2629 = vld [vmem:[%s2614 + $0x70] sm:$0xff]
    %v2630 = vld [vmem:[%s2614 + $0x78] sm:$0xff]
    %v2631 = vld [vmem:[%s2614 + $0x80] sm:$0xff]
    %v2632 = vld [vmem:[%s2614 + $0x88] sm:$0xff]
    %v2633 = vld [vmem:[%s2614 + $0x90] sm:$0xff]
    %v2634 = vld [vmem:[%s2614 + $0x98] sm:$0xff]
    %v2635 = vld [vmem:[%s2614 + $0xa0] sm:$0xff]
    %v2636 = vld [vmem:[%s2614 + $0xa8] sm:$0xff]
    %v2637 = vld [vmem:[%s2614 + $0xb0] sm:$0xff]
    %v2638 = vld [vmem:[%s2614 + $0xb8] sm:$0xff]
    %v2639 = vld [vmem:[%s2614 + $0xc0] sm:$0xff]
    %v2640 = vld [vmem:[%s2614 + $0xc8] sm:$0xff]
    %v2641 = vld [vmem:[%s2614 + $0xd0] sm:$0xff]
    %v2642 = vld [vmem:[%s2614 + $0xd8] sm:$0xff]
    %v2643 = vld [vmem:[%s2614 + $0xe0] sm:$0xff]
    %v2644 = vld [vmem:[%s2614 + $0xe8] sm:$0xff]
    %v2645 = vld [vmem:[%s2614 + $0xf0] sm:$0xff]
    %v2646 = vld [vmem:[%s2614 + $0xf8] sm:$0xff]
    %v2647 = vld [vmem:[%s2614 + $0x100] sm:$0xff]
    %v2648 = vld [vmem:[%s2614 + $0x108] sm:$0xff]
    %v2649 = vld [vmem:[%s2614 + $0x110] sm:$0xff]
    %v2650 = vld [vmem:[%s2614 + $0x118] sm:$0xff]
    %v2651 = vld [vmem:[%s2614 + $0x120] sm:$0xff]
    %v2652 = vld [vmem:[%s2614 + $0x128] sm:$0xff]
    %v2653 = vld [vmem:[%s2614 + $0x130] sm:$0xff]
    %v2654 = vld [vmem:[%s2614 + $0x138] sm:$0xff]
    %v2655 = vld [vmem:[%s2614 + $0x140] sm:$0xff]
    %v2656 = vld [vmem:[%s2614 + $0x148] sm:$0xff]
    %v2657 = vld [vmem:[%s2614 + $0x150] sm:$0xff]
    %v2658 = vld [vmem:[%s2614 + $0x158] sm:$0xff]
    %v2659 = vld [vmem:[%s2614 + $0x160] sm:$0xff]
    %v2660 = vld [vmem:[%s2614 + $0x168] sm:$0xff]
    %v2661 = vld [vmem:[%s2614 + $0x170] sm:$0xff]
    %v2662 = vld [vmem:[%s2614 + $0x178] sm:$0xff]
    %v2663 = vld [vmem:[%s2614 + $0x180] sm:$0xff]
    %v2664 = vld [vmem:[%s2614 + $0x188] sm:$0xff]
    %v2665 = vld [vmem:[%s2614 + $0x190] sm:$0xff]
    %v2666 = vld [vmem:[%s2614 + $0x198] sm:$0xff]
    %v2667 = vld [vmem:[%s2614 + $0x1a0] sm:$0xff]
    %v2668 = vld [vmem:[%s2614 + $0x1a8] sm:$0xff]
    %v2669 = vld [vmem:[%s2614 + $0x1b0] sm:$0xff]
    %v2670 = vld [vmem:[%s2614 + $0x1b8] sm:$0xff]
    %v2671 = vld [vmem:[%s2614 + $0x1c0] sm:$0xff]
    %v2672 = vld [vmem:[%s2614 + $0x1c8] sm:$0xff]
    %v2673 = vld [vmem:[%s2614 + $0x1d0] sm:$0xff]
    %v2674 = vld [vmem:[%s2614 + $0x1d8] sm:$0xff]
    %v2675 = vld [vmem:[%s2614 + $0x1e0] sm:$0xff]
    %v2676 = vld [vmem:[%s2614 + $0x1e8] sm:$0xff]
    %v2677 = vld [vmem:[%s2614 + $0x1f0] sm:$0xff]
    %v2678 = vld [vmem:[%s2614 + $0x1f8] sm:$0xff]
    %v2679 = vld [vmem:[%s2614 + $0x200] sm:$0xff]
    %v2680 = vld [vmem:[%s2614 + $0x208] sm:$0xff]
    %v2681 = vld [vmem:[%s2614 + $0x210] sm:$0xff]
    %v2682 = vld [vmem:[%s2614 + $0x218] sm:$0xff]
    %v2683 = vld [vmem:[%s2614 + $0x220] sm:$0xff]
    %v2684 = vld [vmem:[%s2614 + $0x228] sm:$0xff]
    %v2685 = vld [vmem:[%s2614 + $0x230] sm:$0xff]
    %v2686 = vld [vmem:[%s2614 + $0x238] sm:$0xff]
    %v2687 = vld [vmem:[%s2614 + $0x240] sm:$0xff]
    %v2688 = vld [vmem:[%s2614 + $0x248] sm:$0xff]
    %v2689 = vld [vmem:[%s2614 + $0x250] sm:$0xff]
    %v2690 = vld [vmem:[%s2614 + $0x258] sm:$0xff]
    %v2691 = vld [vmem:[%s2614 + $0x260] sm:$0xff]
    %v2692 = vld [vmem:[%s2614 + $0x268] sm:$0xff]
    %v2693 = vld [vmem:[%s2614 + $0x270] sm:$0xff]
    %v2694 = vld [vmem:[%s2614 + $0x278] sm:$0xff]
    %v2695 = vld [vmem:[%s2614 + $0x280] sm:$0xff]
    %v2696 = vld [vmem:[%s2614 + $0x288] sm:$0xff]
    %v2697 = vld [vmem:[%s2614 + $0x290] sm:$0xff]
    %v2698 = vld [vmem:[%s2614 + $0x298] sm:$0xff]
    %v2699 = vld [vmem:[%s2614 + $0x2a0] sm:$0xff]
    %v2700 = vld [vmem:[%s2614 + $0x2a8] sm:$0xff]
    %v2701 = vld [vmem:[%s2614 + $0x2b0] sm:$0xff]
    %v2702 = vld [vmem:[%s2614 + $0x2b8] sm:$0xff]
    %v2703 = vld [vmem:[%s2614 + $0x2c0] sm:$0xff]
    %v2704 = vld [vmem:[%s2614 + $0x2c8] sm:$0xff]
    %v2705 = vld [vmem:[%s2614 + $0x2d0] sm:$0xff]
    %v2706 = vld [vmem:[%s2614 + $0x2d8] sm:$0xff]
    %v2707 = vld [vmem:[%s2614 + $0x2e0] sm:$0xff]
    %v2708 = vld [vmem:[%s2614 + $0x2e8] sm:$0xff]
    %v2709 = vld [vmem:[%s2614 + $0x2f0] sm:$0xff]
    %v2710 = vld [vmem:[%s2614 + $0x2f8] sm:$0xff]
    %v2711 = vld [vmem:[%s2614 + $0x300] sm:$0xff]
    %v2712 = vld [vmem:[%s2614 + $0x308] sm:$0xff]
    %v2713 = vld [vmem:[%s2614 + $0x310] sm:$0xff]
    %v2714 = vld [vmem:[%s2614 + $0x318] sm:$0xff]
    %v2715 = vld [vmem:[%s2614 + $0x320] sm:$0xff]
    %v2716 = vld [vmem:[%s2614 + $0x328] sm:$0xff]
    %v2717 = vld [vmem:[%s2614 + $0x330] sm:$0xff]
    %v2718 = vld [vmem:[%s2614 + $0x338] sm:$0xff]
    %v2719 = vld [vmem:[%s2614 + $0x340] sm:$0xff]
    %v2720 = vld [vmem:[%s2614 + $0x348] sm:$0xff]
    %v2721 = vld [vmem:[%s2614 + $0x350] sm:$0xff]
    %v2722 = vld [vmem:[%s2614 + $0x358] sm:$0xff]
    %v2723 = vld [vmem:[%s2614 + $0x360] sm:$0xff]
    %v2724 = vld [vmem:[%s2614 + $0x368] sm:$0xff]
    %v2725 = vld [vmem:[%s2614 + $0x370] sm:$0xff]
    %v2726 = vld [vmem:[%s2614 + $0x378] sm:$0xff]
    %v2727 = vld [vmem:[%s2614 + $0x380] sm:$0xff]
    %v2728 = vld [vmem:[%s2614 + $0x388] sm:$0xff]
    %v2729 = vld [vmem:[%s2614 + $0x390] sm:$0xff]
    %v2730 = vld [vmem:[%s2614 + $0x398] sm:$0xff]
    %v2731 = vld [vmem:[%s2614 + $0x3a0] sm:$0xff]
    %v2732 = vld [vmem:[%s2614 + $0x3a8] sm:$0xff]
    %v2733 = vld [vmem:[%s2614 + $0x3b0] sm:$0xff]
    %v2734 = vld [vmem:[%s2614 + $0x3b8] sm:$0xff]
    %v2735 = vld [vmem:[%s2614 + $0x3c0] sm:$0xff]
    %v2736 = vld [vmem:[%s2614 + $0x3c8] sm:$0xff]
    %v2737 = vld [vmem:[%s2614 + $0x3d0] sm:$0xff]
    %v2738 = vld [vmem:[%s2614 + $0x3d8] sm:$0xff]
    %v2739 = vld [vmem:[%s2614 + $0x3e0] sm:$0xff]
    %v2740 = vld [vmem:[%s2614 + $0x3e8] sm:$0xff]
    %v2741 = vld [vmem:[%s2614 + $0x3f0] sm:$0xff]
    %v2742 = vld [vmem:[%s2614 + $0x3f8] sm:$0xff]
    %s2743 = scalar_lea.vmem [#allocation9], 3
    %v2744 = vld [vmem:[%s2743] ss:$4 sm:$0xf]
    %v2746 = vlaneseq
    %v2747 = vshrl.u32 %v2746, 7
    %v2748 = vsub.s32 0, %v2747
    %v2749 = vrot.slane %v2744, %v2748
    %v2750 = vlaneseq
    %v2751 = vshrl.u32 %v2750, 7
    %v2752 = vsub.s32 1, %v2751
    %v2753 = vrot.slane %v2744, %v2752
    %v2754 = vlaneseq
    %v2755 = vshrl.u32 %v2754, 7
    %v2756 = vsub.s32 2, %v2755
    %v2757 = vrot.slane %v2744, %v2756
    %v2758 = vlaneseq
    %v2759 = vshrl.u32 %v2758, 7
    %v2760 = vsub.s32 3, %v2759
    %v2761 = vrot.slane %v2744, %v2760
    %v2894 = vunpack.c.l.b16 %v2615
    %v2895 = vunpack.c.h.b16 %v2615
    %v2896 = vunpack.c.l.b16 %v2616
    %v2897 = vunpack.c.h.b16 %v2616
    %v2898 = vunpack.c.l.b16 %v2617
    %v2899 = vunpack.c.h.b16 %v2617
    %v2900 = vunpack.c.l.b16 %v2618
    %v2901 = vunpack.c.h.b16 %v2618
    %v2902 = vunpack.c.l.b16 %v2619
    %v2903 = vunpack.c.h.b16 %v2619
    %v2904 = vunpack.c.l.b16 %v2620
    %v2905 = vunpack.c.h.b16 %v2620
    %v2906 = vunpack.c.l.b16 %v2621
    %v2907 = vunpack.c.h.b16 %v2621
    %v2908 = vunpack.c.l.b16 %v2622
    %v2909 = vunpack.c.h.b16 %v2622
    %v2910 = vunpack.c.l.b16 %v2623
    %v2911 = vunpack.c.h.b16 %v2623
    %v2912 = vunpack.c.l.b16 %v2624
    %v2913 = vunpack.c.h.b16 %v2624
    %v2914 = vunpack.c.l.b16 %v2625
    %v2915 = vunpack.c.h.b16 %v2625
    %v2916 = vunpack.c.l.b16 %v2626
    %v2917 = vunpack.c.h.b16 %v2626
    %v2918 = vunpack.c.l.b16 %v2627
    %v2919 = vunpack.c.h.b16 %v2627
    %v2920 = vunpack.c.l.b16 %v2628
    %v2921 = vunpack.c.h.b16 %v2628
    %v2922 = vunpack.c.l.b16 %v2629
    %v2923 = vunpack.c.h.b16 %v2629
    %v2924 = vunpack.c.l.b16 %v2630
    %v2925 = vunpack.c.h.b16 %v2630
    %v2926 = vunpack.c.l.b16 %v2631
    %v2927 = vunpack.c.h.b16 %v2631
    %v2928 = vunpack.c.l.b16 %v2632
    %v2929 = vunpack.c.h.b16 %v2632
    %v2930 = vunpack.c.l.b16 %v2633
    %v2931 = vunpack.c.h.b16 %v2633
    %v2932 = vunpack.c.l.b16 %v2634
    %v2933 = vunpack.c.h.b16 %v2634
    %v2934 = vunpack.c.l.b16 %v2635
    %v2935 = vunpack.c.h.b16 %v2635
    %v2936 = vunpack.c.l.b16 %v2636
    %v2937 = vunpack.c.h.b16 %v2636
    %v2938 = vunpack.c.l.b16 %v2637
    %v2939 = vunpack.c.h.b16 %v2637
    %v2940 = vunpack.c.l.b16 %v2638
    %v2941 = vunpack.c.h.b16 %v2638
    %v2942 = vunpack.c.l.b16 %v2639
    %v2943 = vunpack.c.h.b16 %v2639
    %v2944 = vunpack.c.l.b16 %v2640
    %v2945 = vunpack.c.h.b16 %v2640
    %v2946 = vunpack.c.l.b16 %v2641
    %v2947 = vunpack.c.h.b16 %v2641
    %v2948 = vunpack.c.l.b16 %v2642
    %v2949 = vunpack.c.h.b16 %v2642
    %v2950 = vunpack.c.l.b16 %v2643
    %v2951 = vunpack.c.h.b16 %v2643
    %v2952 = vunpack.c.l.b16 %v2644
    %v2953 = vunpack.c.h.b16 %v2644
    %v2954 = vunpack.c.l.b16 %v2645
    %v2955 = vunpack.c.h.b16 %v2645
    %v2956 = vunpack.c.l.b16 %v2646
    %v2957 = vunpack.c.h.b16 %v2646
    %v2958 = vunpack.c.l.b16 %v2647
    %v2959 = vunpack.c.h.b16 %v2647
    %v2960 = vunpack.c.l.b16 %v2648
    %v2961 = vunpack.c.h.b16 %v2648
    %v2962 = vunpack.c.l.b16 %v2649
    %v2963 = vunpack.c.h.b16 %v2649
    %v2964 = vunpack.c.l.b16 %v2650
    %v2965 = vunpack.c.h.b16 %v2650
    %v2966 = vunpack.c.l.b16 %v2651
    %v2967 = vunpack.c.h.b16 %v2651
    %v2968 = vunpack.c.l.b16 %v2652
    %v2969 = vunpack.c.h.b16 %v2652
    %v2970 = vunpack.c.l.b16 %v2653
    %v2971 = vunpack.c.h.b16 %v2653
    %v2972 = vunpack.c.l.b16 %v2654
    %v2973 = vunpack.c.h.b16 %v2654
    %v2974 = vunpack.c.l.b16 %v2655
    %v2975 = vunpack.c.h.b16 %v2655
    %v2976 = vunpack.c.l.b16 %v2656
    %v2977 = vunpack.c.h.b16 %v2656
    %v2978 = vunpack.c.l.b16 %v2657
    %v2979 = vunpack.c.h.b16 %v2657
    %v2980 = vunpack.c.l.b16 %v2658
    %v2981 = vunpack.c.h.b16 %v2658
    %v2982 = vunpack.c.l.b16 %v2659
    %v2983 = vunpack.c.h.b16 %v2659
    %v2984 = vunpack.c.l.b16 %v2660
    %v2985 = vunpack.c.h.b16 %v2660
    %v2986 = vunpack.c.l.b16 %v2661
    %v2987 = vunpack.c.h.b16 %v2661
    %v2988 = vunpack.c.l.b16 %v2662
    %v2989 = vunpack.c.h.b16 %v2662
    %v2990 = vunpack.c.l.b16 %v2663
    %v2991 = vunpack.c.h.b16 %v2663
    %v2992 = vunpack.c.l.b16 %v2664
    %v2993 = vunpack.c.h.b16 %v2664
    %v2994 = vunpack.c.l.b16 %v2665
    %v2995 = vunpack.c.h.b16 %v2665
    %v2996 = vunpack.c.l.b16 %v2666
    %v2997 = vunpack.c.h.b16 %v2666
    %v2998 = vunpack.c.l.b16 %v2667
    %v2999 = vunpack.c.h.b16 %v2667
    %v3000 = vunpack.c.l.b16 %v2668
    %v3001 = vunpack.c.h.b16 %v2668
    %v3002 = vunpack.c.l.b16 %v2669
    %v3003 = vunpack.c.h.b16 %v2669
    %v3004 = vunpack.c.l.b16 %v2670
    %v3005 = vunpack.c.h.b16 %v2670
    %v3006 = vunpack.c.l.b16 %v2671
    %v3007 = vunpack.c.h.b16 %v2671
    %v3008 = vunpack.c.l.b16 %v2672
    %v3009 = vunpack.c.h.b16 %v2672
    %v3010 = vunpack.c.l.b16 %v2673
    %v3011 = vunpack.c.h.b16 %v2673
    %v3012 = vunpack.c.l.b16 %v2674
    %v3013 = vunpack.c.h.b16 %v2674
    %v3014 = vunpack.c.l.b16 %v2675
    %v3015 = vunpack.c.h.b16 %v2675
    %v3016 = vunpack.c.l.b16 %v2676
    %v3017 = vunpack.c.h.b16 %v2676
    %v3018 = vunpack.c.l.b16 %v2677
    %v3019 = vunpack.c.h.b16 %v2677
    %v3020 = vunpack.c.l.b16 %v2678
    %v3021 = vunpack.c.h.b16 %v2678
    %v3022 = vunpack.c.l.b16 %v2679
    %v3023 = vunpack.c.h.b16 %v2679
    %v3024 = vunpack.c.l.b16 %v2680
    %v3025 = vunpack.c.h.b16 %v2680
    %v3026 = vunpack.c.l.b16 %v2681
    %v3027 = vunpack.c.h.b16 %v2681
    %v3028 = vunpack.c.l.b16 %v2682
    %v3029 = vunpack.c.h.b16 %v2682
    %v3030 = vunpack.c.l.b16 %v2683
    %v3031 = vunpack.c.h.b16 %v2683
    %v3032 = vunpack.c.l.b16 %v2684
    %v3033 = vunpack.c.h.b16 %v2684
    %v3034 = vunpack.c.l.b16 %v2685
    %v3035 = vunpack.c.h.b16 %v2685
    %v3036 = vunpack.c.l.b16 %v2686
    %v3037 = vunpack.c.h.b16 %v2686
    %v3038 = vunpack.c.l.b16 %v2687
    %v3039 = vunpack.c.h.b16 %v2687
    %v3040 = vunpack.c.l.b16 %v2688
    %v3041 = vunpack.c.h.b16 %v2688
    %v3042 = vunpack.c.l.b16 %v2689
    %v3043 = vunpack.c.h.b16 %v2689
    %v3044 = vunpack.c.l.b16 %v2690
    %v3045 = vunpack.c.h.b16 %v2690
    %v3046 = vunpack.c.l.b16 %v2691
    %v3047 = vunpack.c.h.b16 %v2691
    %v3048 = vunpack.c.l.b16 %v2692
    %v3049 = vunpack.c.h.b16 %v2692
    %v3050 = vunpack.c.l.b16 %v2693
    %v3051 = vunpack.c.h.b16 %v2693
    %v3052 = vunpack.c.l.b16 %v2694
    %v3053 = vunpack.c.h.b16 %v2694
    %v3054 = vunpack.c.l.b16 %v2695
    %v3055 = vunpack.c.h.b16 %v2695
    %v3056 = vunpack.c.l.b16 %v2696
    %v3057 = vunpack.c.h.b16 %v2696
    %v3058 = vunpack.c.l.b16 %v2697
    %v3059 = vunpack.c.h.b16 %v2697
    %v3060 = vunpack.c.l.b16 %v2698
    %v3061 = vunpack.c.h.b16 %v2698
    %v3062 = vunpack.c.l.b16 %v2699
    %v3063 = vunpack.c.h.b16 %v2699
    %v3064 = vunpack.c.l.b16 %v2700
    %v3065 = vunpack.c.h.b16 %v2700
    %v3066 = vunpack.c.l.b16 %v2701
    %v3067 = vunpack.c.h.b16 %v2701
    %v3068 = vunpack.c.l.b16 %v2702
    %v3069 = vunpack.c.h.b16 %v2702
    %v3070 = vunpack.c.l.b16 %v2703
    %v3071 = vunpack.c.h.b16 %v2703
    %v3072 = vunpack.c.l.b16 %v2704
    %v3073 = vunpack.c.h.b16 %v2704
    %v3074 = vunpack.c.l.b16 %v2705
    %v3075 = vunpack.c.h.b16 %v2705
    %v3076 = vunpack.c.l.b16 %v2706
    %v3077 = vunpack.c.h.b16 %v2706
    %v3078 = vunpack.c.l.b16 %v2707
    %v3079 = vunpack.c.h.b16 %v2707
    %v3080 = vunpack.c.l.b16 %v2708
    %v3081 = vunpack.c.h.b16 %v2708
    %v3082 = vunpack.c.l.b16 %v2709
    %v3083 = vunpack.c.h.b16 %v2709
    %v3084 = vunpack.c.l.b16 %v2710
    %v3085 = vunpack.c.h.b16 %v2710
    %v3086 = vunpack.c.l.b16 %v2711
    %v3087 = vunpack.c.h.b16 %v2711
    %v3088 = vunpack.c.l.b16 %v2712
    %v3089 = vunpack.c.h.b16 %v2712
    %v3090 = vunpack.c.l.b16 %v2713
    %v3091 = vunpack.c.h.b16 %v2713
    %v3092 = vunpack.c.l.b16 %v2714
    %v3093 = vunpack.c.h.b16 %v2714
    %v3094 = vunpack.c.l.b16 %v2715
    %v3095 = vunpack.c.h.b16 %v2715
    %v3096 = vunpack.c.l.b16 %v2716
    %v3097 = vunpack.c.h.b16 %v2716
    %v3098 = vunpack.c.l.b16 %v2717
    %v3099 = vunpack.c.h.b16 %v2717
    %v3100 = vunpack.c.l.b16 %v2718
    %v3101 = vunpack.c.h.b16 %v2718
    %v3102 = vunpack.c.l.b16 %v2719
    %v3103 = vunpack.c.h.b16 %v2719
    %v3104 = vunpack.c.l.b16 %v2720
    %v3105 = vunpack.c.h.b16 %v2720
    %v3106 = vunpack.c.l.b16 %v2721
    %v3107 = vunpack.c.h.b16 %v2721
    %v3108 = vunpack.c.l.b16 %v2722
    %v3109 = vunpack.c.h.b16 %v2722
    %v3110 = vunpack.c.l.b16 %v2723
    %v3111 = vunpack.c.h.b16 %v2723
    %v3112 = vunpack.c.l.b16 %v2724
    %v3113 = vunpack.c.h.b16 %v2724
    %v3114 = vunpack.c.l.b16 %v2725
    %v3115 = vunpack.c.h.b16 %v2725
    %v3116 = vunpack.c.l.b16 %v2726
    %v3117 = vunpack.c.h.b16 %v2726
    %v3118 = vunpack.c.l.b16 %v2727
    %v3119 = vunpack.c.h.b16 %v2727
    %v3120 = vunpack.c.l.b16 %v2728
    %v3121 = vunpack.c.h.b16 %v2728
    %v3122 = vunpack.c.l.b16 %v2729
    %v3123 = vunpack.c.h.b16 %v2729
    %v3124 = vunpack.c.l.b16 %v2730
    %v3125 = vunpack.c.h.b16 %v2730
    %v3126 = vunpack.c.l.b16 %v2731
    %v3127 = vunpack.c.h.b16 %v2731
    %v3128 = vunpack.c.l.b16 %v2732
    %v3129 = vunpack.c.h.b16 %v2732
    %v3130 = vunpack.c.l.b16 %v2733
    %v3131 = vunpack.c.h.b16 %v2733
    %v3132 = vunpack.c.l.b16 %v2734
    %v3133 = vunpack.c.h.b16 %v2734
    %v3134 = vunpack.c.l.b16 %v2735
    %v3135 = vunpack.c.h.b16 %v2735
    %v3136 = vunpack.c.l.b16 %v2736
    %v3137 = vunpack.c.h.b16 %v2736
    %v3138 = vunpack.c.l.b16 %v2737
    %v3139 = vunpack.c.h.b16 %v2737
    %v3140 = vunpack.c.l.b16 %v2738
    %v3141 = vunpack.c.h.b16 %v2738
    %v3142 = vunpack.c.l.b16 %v2739
    %v3143 = vunpack.c.h.b16 %v2739
    %v3144 = vunpack.c.l.b16 %v2740
    %v3145 = vunpack.c.h.b16 %v2740
    %v3146 = vunpack.c.l.b16 %v2741
    %v3147 = vunpack.c.h.b16 %v2741
    %v3148 = vunpack.c.l.b16 %v2742
    %v3149 = vunpack.c.h.b16 %v2742
    %v3150 = vpack.c.b16 %v2898, %v2894
    %v3151 = vpack.c.b16 %v2899, %v2895
    %v3152 = vpack.c.b16 %v2900, %v2896
    %v3153 = vpack.c.b16 %v2901, %v2897
    %v3154 = vpack.c.b16 %v2906, %v2902
    %v3155 = vpack.c.b16 %v2907, %v2903
    %v3156 = vpack.c.b16 %v2908, %v2904
    %v3157 = vpack.c.b16 %v2909, %v2905
    %v3158 = vpack.c.b16 %v2914, %v2910
    %v3159 = vpack.c.b16 %v2915, %v2911
    %v3160 = vpack.c.b16 %v2916, %v2912
    %v3161 = vpack.c.b16 %v2917, %v2913
    %v3162 = vpack.c.b16 %v2922, %v2918
    %v3163 = vpack.c.b16 %v2923, %v2919
    %v3164 = vpack.c.b16 %v2924, %v2920
    %v3165 = vpack.c.b16 %v2925, %v2921
    %v3166 = vpack.c.b16 %v2930, %v2926
    %v3167 = vpack.c.b16 %v2931, %v2927
    %v3168 = vpack.c.b16 %v2932, %v2928
    %v3169 = vpack.c.b16 %v2933, %v2929
    %v3170 = vpack.c.b16 %v2938, %v2934
    %v3171 = vpack.c.b16 %v2939, %v2935
    %v3172 = vpack.c.b16 %v2940, %v2936
    %v3173 = vpack.c.b16 %v2941, %v2937
    %v3174 = vpack.c.b16 %v2946, %v2942
    %v3175 = vpack.c.b16 %v2947, %v2943
    %v3176 = vpack.c.b16 %v2948, %v2944
    %v3177 = vpack.c.b16 %v2949, %v2945
    %v3178 = vpack.c.b16 %v2954, %v2950
    %v3179 = vpack.c.b16 %v2955, %v2951
    %v3180 = vpack.c.b16 %v2956, %v2952
    %v3181 = vpack.c.b16 %v2957, %v2953
    %v3182 = vpack.c.b16 %v2962, %v2958
    %v3183 = vpack.c.b16 %v2963, %v2959
    %v3184 = vpack.c.b16 %v2964, %v2960
    %v3185 = vpack.c.b16 %v2965, %v2961
    %v3186 = vpack.c.b16 %v2970, %v2966
    %v3187 = vpack.c.b16 %v2971, %v2967
    %v3188 = vpack.c.b16 %v2972, %v2968
    %v3189 = vpack.c.b16 %v2973, %v2969
    %v3190 = vpack.c.b16 %v2978, %v2974
    %v3191 = vpack.c.b16 %v2979, %v2975
    %v3192 = vpack.c.b16 %v2980, %v2976
    %v3193 = vpack.c.b16 %v2981, %v2977
    %v3194 = vpack.c.b16 %v2986, %v2982
    %v3195 = vpack.c.b16 %v2987, %v2983
    %v3196 = vpack.c.b16 %v2988, %v2984
    %v3197 = vpack.c.b16 %v2989, %v2985
    %v3198 = vpack.c.b16 %v2994, %v2990
    %v3199 = vpack.c.b16 %v2995, %v2991
    %v3200 = vpack.c.b16 %v2996, %v2992
    %v3201 = vpack.c.b16 %v2997, %v2993
    %v3202 = vpack.c.b16 %v3002, %v2998
    %v3203 = vpack.c.b16 %v3003, %v2999
    %v3204 = vpack.c.b16 %v3004, %v3000
    %v3205 = vpack.c.b16 %v3005, %v3001
    %v3206 = vpack.c.b16 %v3010, %v3006
    %v3207 = vpack.c.b16 %v3011, %v3007
    %v3208 = vpack.c.b16 %v3012, %v3008
    %v3209 = vpack.c.b16 %v3013, %v3009
    %v3210 = vpack.c.b16 %v3018, %v3014
    %v3211 = vpack.c.b16 %v3019, %v3015
    %v3212 = vpack.c.b16 %v3020, %v3016
    %v3213 = vpack.c.b16 %v3021, %v3017
    %v3214 = vpack.c.b16 %v3026, %v3022
    %v3215 = vpack.c.b16 %v3027, %v3023
    %v3216 = vpack.c.b16 %v3028, %v3024
    %v3217 = vpack.c.b16 %v3029, %v3025
    %v3218 = vpack.c.b16 %v3034, %v3030
    %v3219 = vpack.c.b16 %v3035, %v3031
    %v3220 = vpack.c.b16 %v3036, %v3032
    %v3221 = vpack.c.b16 %v3037, %v3033
    %v3222 = vpack.c.b16 %v3042, %v3038
    %v3223 = vpack.c.b16 %v3043, %v3039
    %v3224 = vpack.c.b16 %v3044, %v3040
    %v3225 = vpack.c.b16 %v3045, %v3041
    %v3226 = vpack.c.b16 %v3050, %v3046
    %v3227 = vpack.c.b16 %v3051, %v3047
    %v3228 = vpack.c.b16 %v3052, %v3048
    %v3229 = vpack.c.b16 %v3053, %v3049
    %v3230 = vpack.c.b16 %v3058, %v3054
    %v3231 = vpack.c.b16 %v3059, %v3055
    %v3232 = vpack.c.b16 %v3060, %v3056
    %v3233 = vpack.c.b16 %v3061, %v3057
    %v3234 = vpack.c.b16 %v3066, %v3062
    %v3235 = vpack.c.b16 %v3067, %v3063
    %v3236 = vpack.c.b16 %v3068, %v3064
    %v3237 = vpack.c.b16 %v3069, %v3065
    %v3238 = vpack.c.b16 %v3074, %v3070
    %v3239 = vpack.c.b16 %v3075, %v3071
    %v3240 = vpack.c.b16 %v3076, %v3072
    %v3241 = vpack.c.b16 %v3077, %v3073
    %v3242 = vpack.c.b16 %v3082, %v3078
    %v3243 = vpack.c.b16 %v3083, %v3079
    %v3244 = vpack.c.b16 %v3084, %v3080
    %v3245 = vpack.c.b16 %v3085, %v3081
    %v3246 = vpack.c.b16 %v3090, %v3086
    %v3247 = vpack.c.b16 %v3091, %v3087
    %v3248 = vpack.c.b16 %v3092, %v3088
    %v3249 = vpack.c.b16 %v3093, %v3089
    %v3250 = vpack.c.b16 %v3098, %v3094
    %v3251 = vpack.c.b16 %v3099, %v3095
    %v3252 = vpack.c.b16 %v3100, %v3096
    %v3253 = vpack.c.b16 %v3101, %v3097
    %v3254 = vpack.c.b16 %v3106, %v3102
    %v3255 = vpack.c.b16 %v3107, %v3103
    %v3256 = vpack.c.b16 %v3108, %v3104
    %v3257 = vpack.c.b16 %v3109, %v3105
    %v3258 = vpack.c.b16 %v3114, %v3110
    %v3259 = vpack.c.b16 %v3115, %v3111
    %v3260 = vpack.c.b16 %v3116, %v3112
    %v3261 = vpack.c.b16 %v3117, %v3113
    %v3262 = vpack.c.b16 %v3122, %v3118
    %v3263 = vpack.c.b16 %v3123, %v3119
    %v3264 = vpack.c.b16 %v3124, %v3120
    %v3265 = vpack.c.b16 %v3125, %v3121
    %v3266 = vpack.c.b16 %v3130, %v3126
    %v3267 = vpack.c.b16 %v3131, %v3127
    %v3268 = vpack.c.b16 %v3132, %v3128
    %v3269 = vpack.c.b16 %v3133, %v3129
    %v3270 = vpack.c.b16 %v3138, %v3134
    %v3271 = vpack.c.b16 %v3139, %v3135
    %v3272 = vpack.c.b16 %v3140, %v3136
    %v3273 = vpack.c.b16 %v3141, %v3137
    %v3274 = vpack.c.b16 %v3146, %v3142
    %v3275 = vpack.c.b16 %v3147, %v3143
    %v3276 = vpack.c.b16 %v3148, %v3144
    %v3277 = vpack.c.b16 %v3149, %v3145
    %3406 = vmatprep.subr.bf16.mxu0 %v3179
    %3407 = vmatpush1.bf16.msra.mxu0 %v3178
    %3408 = vmatprep.subr.bf16.mxu0 %v3175
    %3409 = vmatpush1.bf16.msra.mxu0 %v3174
    %3410 = vmatprep.subr.bf16.mxu0 %v3171
    %3411 = vmatpush1.bf16.msra.mxu0 %v3170
    %3412 = vmatprep.subr.bf16.mxu0 %v3167
    %3413 = vmatpush1.bf16.msra.mxu0 %v3166
    %3414 = vmatprep.subr.bf16.mxu0 %v3163
    %3415 = vmatpush1.bf16.msra.mxu0 %v3162
    %3416 = vmatprep.subr.bf16.mxu0 %v3159
    %3417 = vmatpush1.bf16.msra.mxu0 %v3158
    %3418 = vmatprep.subr.bf16.mxu0 %v3155
    %3419 = vmatpush1.bf16.msra.mxu0 %v3154
    %3420 = vmatprep.subr.bf16.mxu0 %v3151
    %3421 = vmatpush1.bf16.msra.mxu0 %v3150
    %3422 = vmatprep.subr.bf16.mxu0 %v3211
    %3423 = vmatpush2.bf16.msra.mxu0 %v3210
    %3424 = vmatprep.subr.bf16.mxu0 %v3207
    %3425 = vmatpush2.bf16.msra.mxu0 %v3206
    %3426 = vmatprep.subr.bf16.mxu0 %v3203
    %3427 = vmatpush2.bf16.msra.mxu0 %v3202
    %3428 = vmatprep.subr.bf16.mxu0 %v3199
    %3429 = vmatpush2.bf16.msra.mxu0 %v3198
    %3430 = vmatprep.subr.bf16.mxu0 %v3195
    %3431 = vmatpush2.bf16.msra.mxu0 %v3194
    %3432 = vmatprep.subr.bf16.mxu0 %v3191
    %3433 = vmatpush2.bf16.msra.mxu0 %v3190
    %3434 = vmatprep.subr.bf16.mxu0 %v3187
    %3435 = vmatpush2.bf16.msra.mxu0 %v3186
    %3436 = vmatprep.subr.bf16.mxu0 %v3183
    %3437 = vmatpush2.bf16.msra.mxu0 %v3182
    %3438 = vmatprep.mubr.bf16.mxu0 %v2599
    %3439 = vmatmul.mubr.bf16.gmra.mxu0 %v2598
    %v3440 = vpop.f32.mrf.mxu0
    %v3441 = vadd.f32 %v2749, %v3440
    %v3442 = vpop.f32.mrf.mxu0
    %v3443 = vadd.f32 %v2753, %v3442
    %v3444 = vpop.f32.mrf.mxu0
    %v3445 = vadd.f32 %v2749, %v3444
    %v3446 = vpop.f32.mrf.mxu0
    %v3447 = vadd.f32 %v2753, %v3446
    %3448 = vmatprep.mubr.bf16.mxu0 %v2603
    %3449 = vmatmul.mubr.bf16.gmra.mxu0 %v2602
    %v3450 = vpop.f32.mrf.mxu0
    %v3451 = vadd.f32 %v2749, %v3450
    %v3452 = vpop.f32.mrf.mxu0
    %v3453 = vadd.f32 %v2753, %v3452
    %v3454 = vpop.f32.mrf.mxu0
    %v3455 = vadd.f32 %v2749, %v3454
    %v3456 = vpop.f32.mrf.mxu0
    %v3457 = vadd.f32 %v2753, %v3456
    %3458 = vmatprep.mubr.bf16.mxu0 %v2607
    %3459 = vmatmul.mubr.bf16.gmra.mxu0 %v2606
    %v3460 = vpop.f32.mrf.mxu0
    %v3461 = vadd.f32 %v2749, %v3460
    %v3462 = vpop.f32.mrf.mxu0
    %v3463 = vadd.f32 %v2753, %v3462
    %v3464 = vpop.f32.mrf.mxu0
    %v3465 = vadd.f32 %v2749, %v3464
    %v3466 = vpop.f32.mrf.mxu0
    %v3467 = vadd.f32 %v2753, %v3466
    %3468 = vmatprep.mubr.bf16.mxu0 %v2611
    %3469 = vmatmul.mubr.bf16.gmra.mxu0 %v2610
    %v3470 = vpop.f32.mrf.mxu0
    %v3471 = vadd.f32 %v2749, %v3470
    %v3472 = vpop.f32.mrf.mxu0
    %v3473 = vadd.f32 %v2753, %v3472
    %v3474 = vpop.f32.mrf.mxu0
    %v3475 = vadd.f32 %v2749, %v3474
    %v3476 = vpop.f32.mrf.mxu0
    %v3477 = vadd.f32 %v2753, %v3476
    %3478 = vdwg.mxu0
    %3479 = vmatprep.subr.bf16.mxu0 %v3243
    %3480 = vmatpush1.bf16.msra.mxu0 %v3242
    %3481 = vmatprep.subr.bf16.mxu0 %v3239
    %3482 = vmatpush1.bf16.msra.mxu0 %v3238
    %3483 = vmatprep.subr.bf16.mxu0 %v3235
    %3484 = vmatpush1.bf16.msra.mxu0 %v3234
    %3485 = vmatprep.subr.bf16.mxu0 %v3231
    %3486 = vmatpush1.bf16.msra.mxu0 %v3230
    %3487 = vmatprep.subr.bf16.mxu0 %v3227
    %3488 = vmatpush1.bf16.msra.mxu0 %v3226
    %3489 = vmatprep.subr.bf16.mxu0 %v3223
    %3490 = vmatpush1.bf16.msra.mxu0 %v3222
    %3491 = vmatprep.subr.bf16.mxu0 %v3219
    %3492 = vmatpush1.bf16.msra.mxu0 %v3218
    %3493 = vmatprep.subr.bf16.mxu0 %v3215
    %3494 = vmatpush1.bf16.msra.mxu0 %v3214
    %3495 = vmatprep.subr.bf16.mxu0 %v3275
    %3496 = vmatpush2.bf16.msra.mxu0 %v3274
    %3497 = vmatprep.subr.bf16.mxu0 %v3271
    %3498 = vmatpush2.bf16.msra.mxu0 %v3270
    %3499 = vmatprep.subr.bf16.mxu0 %v3267
    %3500 = vmatpush2.bf16.msra.mxu0 %v3266
    %3501 = vmatprep.subr.bf16.mxu0 %v3263
    %3502 = vmatpush2.bf16.msra.mxu0 %v3262
    %3503 = vmatprep.subr.bf16.mxu0 %v3259
    %3504 = vmatpush2.bf16.msra.mxu0 %v3258
    %3505 = vmatprep.subr.bf16.mxu0 %v3255
    %3506 = vmatpush2.bf16.msra.mxu0 %v3254
    %3507 = vmatprep.subr.bf16.mxu0 %v3251
    %3508 = vmatpush2.bf16.msra.mxu0 %v3250
    %3509 = vmatprep.subr.bf16.mxu0 %v3247
    %3510 = vmatpush2.bf16.msra.mxu0 %v3246
    %3511 = vmatprep.mubr.bf16.mxu0 %v2601
    %3512 = vmatmul.mubr.bf16.gmra.mxu0 %v2600
    %v3513 = vpop.f32.mrf.mxu0
    %v3514 = vadd.f32 %v3441, %v3513
    %v3515 = vpop.f32.mrf.mxu0
    %v3516 = vadd.f32 %v3443, %v3515
    %v3517 = vpop.f32.mrf.mxu0
    %v3518 = vadd.f32 %v3445, %v3517
    %v3519 = vpop.f32.mrf.mxu0
    %v3520 = vadd.f32 %v3447, %v3519
    %3521 = vmatprep.mubr.bf16.mxu0 %v2605
    %3522 = vmatmul.mubr.bf16.gmra.mxu0 %v2604
    %v3523 = vpop.f32.mrf.mxu0
    %v3524 = vadd.f32 %v3451, %v3523
    %v3525 = vpop.f32.mrf.mxu0
    %v3526 = vadd.f32 %v3453, %v3525
    %v3527 = vpop.f32.mrf.mxu0
    %v3528 = vadd.f32 %v3455, %v3527
    %v3529 = vpop.f32.mrf.mxu0
    %v3530 = vadd.f32 %v3457, %v3529
    %3531 = vmatprep.mubr.bf16.mxu0 %v2609
    %3532 = vmatmul.mubr.bf16.gmra.mxu0 %v2608
    %v3533 = vpop.f32.mrf.mxu0
    %v3534 = vadd.f32 %v3461, %v3533
    %v3535 = vpop.f32.mrf.mxu0
    %v3536 = vadd.f32 %v3463, %v3535
    %v3537 = vpop.f32.mrf.mxu0
    %v3538 = vadd.f32 %v3465, %v3537
    %v3539 = vpop.f32.mrf.mxu0
    %v3540 = vadd.f32 %v3467, %v3539
    %3541 = vmatprep.mubr.bf16.mxu0 %v2613
    %3542 = vmatmul.mubr.bf16.gmra.mxu0 %v2612
    %v3543 = vpop.f32.mrf.mxu0
    %v3544 = vadd.f32 %v3471, %v3543
    %v3545 = vpop.f32.mrf.mxu0
    %v3546 = vadd.f32 %v3473, %v3545
    %v3547 = vpop.f32.mrf.mxu0
    %v3548 = vadd.f32 %v3475, %v3547
    %v3549 = vpop.f32.mrf.mxu0
    %v3550 = vadd.f32 %v3477, %v3549
    %3551 = vdwg.mxu0
    %3552 = vmatprep.subr.bf16.mxu0 %v3181
    %3553 = vmatpush1.bf16.msra.mxu0 %v3180
    %3554 = vmatprep.subr.bf16.mxu0 %v3177
    %3555 = vmatpush1.bf16.msra.mxu0 %v3176
    %3556 = vmatprep.subr.bf16.mxu0 %v3173
    %3557 = vmatpush1.bf16.msra.mxu0 %v3172
    %3558 = vmatprep.subr.bf16.mxu0 %v3169
    %3559 = vmatpush1.bf16.msra.mxu0 %v3168
    %3560 = vmatprep.subr.bf16.mxu0 %v3165
    %3561 = vmatpush1.bf16.msra.mxu0 %v3164
    %3562 = vmatprep.subr.bf16.mxu0 %v3161
    %3563 = vmatpush1.bf16.msra.mxu0 %v3160
    %3564 = vmatprep.subr.bf16.mxu0 %v3157
    %3565 = vmatpush1.bf16.msra.mxu0 %v3156
    %3566 = vmatprep.subr.bf16.mxu0 %v3153
    %3567 = vmatpush1.bf16.msra.mxu0 %v3152
    %3568 = vmatprep.subr.bf16.mxu0 %v3213
    %3569 = vmatpush2.bf16.msra.mxu0 %v3212
    %3570 = vmatprep.subr.bf16.mxu0 %v3209
    %3571 = vmatpush2.bf16.msra.mxu0 %v3208
    %3572 = vmatprep.subr.bf16.mxu0 %v3205
    %3573 = vmatpush2.bf16.msra.mxu0 %v3204
    %3574 = vmatprep.subr.bf16.mxu0 %v3201
    %3575 = vmatpush2.bf16.msra.mxu0 %v3200
    %3576 = vmatprep.subr.bf16.mxu0 %v3197
    %3577 = vmatpush2.bf16.msra.mxu0 %v3196
    %3578 = vmatprep.subr.bf16.mxu0 %v3193
    %3579 = vmatpush2.bf16.msra.mxu0 %v3192
    %3580 = vmatprep.subr.bf16.mxu0 %v3189
    %3581 = vmatpush2.bf16.msra.mxu0 %v3188
    %3582 = vmatprep.subr.bf16.mxu0 %v3185
    %3583 = vmatpush2.bf16.msra.mxu0 %v3184
    %3584 = vmatprep.mubr.bf16.mxu0 %v2599
    %3585 = vmatmul.mubr.bf16.gmra.mxu0 %v2598
    %v3586 = vpop.f32.mrf.mxu0
    %v3587 = vadd.f32 %v2757, %v3586
    %v3588 = vpop.f32.mrf.mxu0
    %v3589 = vadd.f32 %v2761, %v3588
    %v3590 = vpop.f32.mrf.mxu0
    %v3591 = vadd.f32 %v2757, %v3590
    %v3592 = vpop.f32.mrf.mxu0
    %v3593 = vadd.f32 %v2761, %v3592
    %3594 = vmatprep.mubr.bf16.mxu0 %v2603
    %3595 = vmatmul.mubr.bf16.gmra.mxu0 %v2602
    %v3596 = vpop.f32.mrf.mxu0
    %v3597 = vadd.f32 %v2757, %v3596
    %v3598 = vpop.f32.mrf.mxu0
    %v3599 = vadd.f32 %v2761, %v3598
    %v3600 = vpop.f32.mrf.mxu0
    %v3601 = vadd.f32 %v2757, %v3600
    %v3602 = vpop.f32.mrf.mxu0
    %v3603 = vadd.f32 %v2761, %v3602
    %3604 = vmatprep.mubr.bf16.mxu0 %v2607
    %3605 = vmatmul.mubr.bf16.gmra.mxu0 %v2606
    %v3606 = vpop.f32.mrf.mxu0
    %v3607 = vadd.f32 %v2757, %v3606
    %v3608 = vpop.f32.mrf.mxu0
    %v3609 = vadd.f32 %v2761, %v3608
    %v3610 = vpop.f32.mrf.mxu0
    %v3611 = vadd.f32 %v2757, %v3610
    %v3612 = vpop.f32.mrf.mxu0
    %v3613 = vadd.f32 %v2761, %v3612
    %3614 = vmatprep.mubr.bf16.mxu0 %v2611
    %3615 = vmatmul.mubr.bf16.gmra.mxu0 %v2610
    %v3616 = vpop.f32.mrf.mxu0
    %v3617 = vadd.f32 %v2757, %v3616
    %v3618 = vpop.f32.mrf.mxu0
    %v3619 = vadd.f32 %v2761, %v3618
    %v3620 = vpop.f32.mrf.mxu0
    %v3621 = vadd.f32 %v2757, %v3620
    %v3622 = vpop.f32.mrf.mxu0
    %v3623 = vadd.f32 %v2761, %v3622
    %3624 = vdwg.mxu0
    %3625 = vmatprep.subr.bf16.mxu0 %v3245
    %3626 = vmatpush1.bf16.msra.mxu0 %v3244
    %3627 = vmatprep.subr.bf16.mxu0 %v3241
    %3628 = vmatpush1.bf16.msra.mxu0 %v3240
    %3629 = vmatprep.subr.bf16.mxu0 %v3237
    %3630 = vmatpush1.bf16.msra.mxu0 %v3236
    %3631 = vmatprep.subr.bf16.mxu0 %v3233
    %3632 = vmatpush1.bf16.msra.mxu0 %v3232
    %3633 = vmatprep.subr.bf16.mxu0 %v3229
    %3634 = vmatpush1.bf16.msra.mxu0 %v3228
    %3635 = vmatprep.subr.bf16.mxu0 %v3225
    %3636 = vmatpush1.bf16.msra.mxu0 %v3224
    %3637 = vmatprep.subr.bf16.mxu0 %v3221
    %3638 = vmatpush1.bf16.msra.mxu0 %v3220
    %3639 = vmatprep.subr.bf16.mxu0 %v3217
    %3640 = vmatpush1.bf16.msra.mxu0 %v3216
    %3641 = vmatprep.subr.bf16.mxu0 %v3277
    %3642 = vmatpush2.bf16.msra.mxu0 %v3276
    %3643 = vmatprep.subr.bf16.mxu0 %v3273
    %3644 = vmatpush2.bf16.msra.mxu0 %v3272
    %3645 = vmatprep.subr.bf16.mxu0 %v3269
    %3646 = vmatpush2.bf16.msra.mxu0 %v3268
    %3647 = vmatprep.subr.bf16.mxu0 %v3265
    %3648 = vmatpush2.bf16.msra.mxu0 %v3264
    %3649 = vmatprep.subr.bf16.mxu0 %v3261
    %3650 = vmatpush2.bf16.msra.mxu0 %v3260
    %3651 = vmatprep.subr.bf16.mxu0 %v3257
    %3652 = vmatpush2.bf16.msra.mxu0 %v3256
    %3653 = vmatprep.subr.bf16.mxu0 %v3253
    %3654 = vmatpush2.bf16.msra.mxu0 %v3252
    %3655 = vmatprep.subr.bf16.mxu0 %v3249
    %3656 = vmatpush2.bf16.msra.mxu0 %v3248
    %3657 = vmatprep.mubr.bf16.mxu0 %v2601
    %3658 = vmatmul.mubr.bf16.gmra.mxu0 %v2600
    %v3659 = vpop.f32.mrf.mxu0
    %v3660 = vadd.f32 %v3587, %v3659
    %v3661 = vpop.f32.mrf.mxu0
    %v3662 = vadd.f32 %v3589, %v3661
    %v3663 = vpop.f32.mrf.mxu0
    %v3664 = vadd.f32 %v3591, %v3663
    %v3665 = vpop.f32.mrf.mxu0
    %v3666 = vadd.f32 %v3593, %v3665
    %3667 = vmatprep.mubr.bf16.mxu0 %v2605
    %3668 = vmatmul.mubr.bf16.gmra.mxu0 %v2604
    %v3669 = vpop.f32.mrf.mxu0
    %v3670 = vadd.f32 %v3597, %v3669
    %v3671 = vpop.f32.mrf.mxu0
    %v3672 = vadd.f32 %v3599, %v3671
    %v3673 = vpop.f32.mrf.mxu0
    %v3674 = vadd.f32 %v3601, %v3673
    %v3675 = vpop.f32.mrf.mxu0
    %v3676 = vadd.f32 %v3603, %v3675
    %3677 = vmatprep.mubr.bf16.mxu0 %v2609
    %3678 = vmatmul.mubr.bf16.gmra.mxu0 %v2608
    %v3679 = vpop.f32.mrf.mxu0
    %v3680 = vadd.f32 %v3607, %v3679
    %v3681 = vpop.f32.mrf.mxu0
    %v3682 = vadd.f32 %v3609, %v3681
    %v3683 = vpop.f32.mrf.mxu0
    %v3684 = vadd.f32 %v3611, %v3683
    %v3685 = vpop.f32.mrf.mxu0
    %v3686 = vadd.f32 %v3613, %v3685
    %3687 = vmatprep.mubr.bf16.mxu0 %v2613
    %3688 = vmatmul.mubr.bf16.gmra.mxu0 %v2612
    %v3689 = vpop.f32.mrf.mxu0
    %v3690 = vadd.f32 %v3617, %v3689
    %v3691 = vpop.f32.mrf.mxu0
    %v3692 = vadd.f32 %v3619, %v3691
    %v3693 = vpop.f32.mrf.mxu0
    %v3694 = vadd.f32 %v3621, %v3693
    %v3695 = vpop.f32.mrf.mxu0
    %v3696 = vadd.f32 %v3623, %v3695
    %3697 = vdwg.mxu0
    %v3698 = vmax.f32 %v3514, 0.0
    %v3699 = vmax.f32 %v3516, 0.0
    %v3700 = vmax.f32 %v3660, 0.0
    %v3701 = vmax.f32 %v3662, 0.0
    %v3702 = vmax.f32 %v3518, 0.0
    %v3703 = vmax.f32 %v3520, 0.0
    %v3704 = vmax.f32 %v3664, 0.0
    %v3705 = vmax.f32 %v3666, 0.0
    %v3706 = vmax.f32 %v3524, 0.0
    %v3707 = vmax.f32 %v3526, 0.0
    %v3708 = vmax.f32 %v3670, 0.0
    %v3709 = vmax.f32 %v3672, 0.0
    %v3710 = vmax.f32 %v3528, 0.0
    %v3711 = vmax.f32 %v3530, 0.0
    %v3712 = vmax.f32 %v3674, 0.0
    %v3713 = vmax.f32 %v3676, 0.0
    %v3714 = vmax.f32 %v3534, 0.0
    %v3715 = vmax.f32 %v3536, 0.0
    %v3716 = vmax.f32 %v3680, 0.0
    %v3717 = vmax.f32 %v3682, 0.0
    %v3718 = vmax.f32 %v3538, 0.0
    %v3719 = vmax.f32 %v3540, 0.0
    %v3720 = vmax.f32 %v3684, 0.0
    %v3721 = vmax.f32 %v3686, 0.0
    %v3722 = vmax.f32 %v3544, 0.0
    %v3723 = vmax.f32 %v3546, 0.0
    %v3724 = vmax.f32 %v3690, 0.0
    %v3725 = vmax.f32 %v3692, 0.0
    %v3726 = vmax.f32 %v3548, 0.0
    %v3727 = vmax.f32 %v3550, 0.0
    %v3728 = vmax.f32 %v3694, 0.0
    %v3729 = vmax.f32 %v3696, 0.0
    %v3730 = vpack.c.bf16 %v3702, %v3698
    %v3731 = vpack.c.bf16 %v3703, %v3699
    %v3732 = vpack.c.bf16 %v3704, %v3700
    %v3733 = vpack.c.bf16 %v3705, %v3701
    %v3734 = vpack.c.bf16 %v3710, %v3706
    %v3735 = vpack.c.bf16 %v3711, %v3707
    %v3736 = vpack.c.bf16 %v3712, %v3708
    %v3737 = vpack.c.bf16 %v3713, %v3709
    %v3738 = vpack.c.bf16 %v3718, %v3714
    %v3739 = vpack.c.bf16 %v3719, %v3715
    %v3740 = vpack.c.bf16 %v3720, %v3716
    %v3741 = vpack.c.bf16 %v3721, %v3717
    %v3742 = vpack.c.bf16 %v3726, %v3722
    %v3743 = vpack.c.bf16 %v3727, %v3723
    %v3744 = vpack.c.bf16 %v3728, %v3724
    %v3745 = vpack.c.bf16 %v3729, %v3725
    %v3746 = vld [vmem:[#allocation8] sm:$0xf]
    %s3747 = sld [smem:[#allocation2]]
    %v3748 = vstv %s3747
    %v3751 = vunpack.c.l.s4 1966171168
    %v3752 = vunpack.c.0.s8 %v3751
    %v3753 = vlaneseq
    %v3754 = vshrl.u32 %v3753, 7
    %v3755 = vsub.s32 %v3752, %v3754
    %v3756 = vrot.slane %v3746, %v3755
    %v3757 = vcombine.high %v3756, %v3756
    %v3759 = vunpack.c.l.s4 1966171168
    %v3760 = vunpack.c.0.s8 %v3759
    %v3761 = vlaneseq
    %v3762 = vshrl.u32 %v3761, 7
    %v3763 = vsub.s32 %v3760, %v3762
    %v3764 = vrot.slane %v3756, %v3763
    %v3766 = vunpack.c.l.s4 1966171168
    %v3767 = vunpack.c.0.s8 %v3766
    %v3768 = vlaneseq
    %v3769 = vshrl.u32 %v3768, 7
    %v3770 = vsub.s32 %v3767, %v3769
    %v3771 = vrot.slane %v3757, %v3770
    %v3772 = vcombine.high %v3764, %v3764
    %v3773 = vcombine.high %v3771, %v3771
    %3778 = vmatprep.subr.bf16.mxu0 0
    %3779 = vmatpush1.bf16.xpose.msra.mxu0 0
    %3780 = vmatprep.subr.bf16.mxu0 0
    %3781 = vmatpush1.bf16.xpose.msra.mxu0 0
    %3782 = vmatprep.subr.bf16.mxu0 0
    %3783 = vmatpush1.bf16.xpose.msra.mxu0 0
    %3784 = vmatprep.subr.bf16.mxu0 0
    %3785 = vmatpush1.bf16.xpose.msra.mxu0 0
    %3786 = vmatprep.subr.bf16.mxu0 %v3743
    %3787 = vmatpush1.bf16.xpose.msra.mxu0 %v3742
    %3788 = vmatprep.subr.bf16.mxu0 %v3739
    %3789 = vmatpush1.bf16.xpose.msra.mxu0 %v3738
    %3790 = vmatprep.subr.bf16.mxu0 %v3735
    %3791 = vmatpush1.bf16.xpose.msra.mxu0 %v3734
    %3792 = vmatprep.subr.bf16.mxu0 %v3731
    %3793 = vmatpush1.bf16.xpose.msra.mxu0 %v3730
    %3794 = vmatprep.subr.bf16.mxu0 0
    %3795 = vmatpush2.bf16.xpose.msra.mxu0 0
    %3796 = vmatprep.subr.bf16.mxu0 0
    %3797 = vmatpush2.bf16.xpose.msra.mxu0 0
    %3798 = vmatprep.subr.bf16.mxu0 0
    %3799 = vmatpush2.bf16.xpose.msra.mxu0 0
    %3800 = vmatprep.subr.bf16.mxu0 0
    %3801 = vmatpush2.bf16.xpose.msra.mxu0 0
    %3802 = vmatprep.subr.bf16.mxu0 0
    %3803 = vmatpush2.bf16.xpose.msra.mxu0 0
    %3804 = vmatprep.subr.bf16.mxu0 0
    %3805 = vmatpush2.bf16.xpose.msra.mxu0 0
    %3806 = vmatprep.subr.bf16.mxu0 0
    %3807 = vmatpush2.bf16.xpose.msra.mxu0 0
    %3808 = vmatprep.subr.bf16.mxu0 0
    %3809 = vmatpush2.bf16.xpose.msra.mxu0 0
    %3810 = vmatprep.mubr.bf16.mxu0 %v3771
    %3811 = vmatmul.mubr.bf16.gmra.mxu0 %v3764
    %v3812 = vpop.f32.mrf.mxu0
    %v3813 = vadd.f32 %v3748, %v3812
    %v3814 = vpop.f32.mrf.mxu0
    %v3815 = vpop.f32.mrf.mxu0
    %v3816 = vpop.f32.mrf.mxu0
    %3817 = vdwg.mxu0
    %3818 = vmatprep.subr.bf16.mxu0 0
    %3819 = vmatpush1.bf16.xpose.msra.mxu0 0
    %3820 = vmatprep.subr.bf16.mxu0 0
    %3821 = vmatpush1.bf16.xpose.msra.mxu0 0
    %3822 = vmatprep.subr.bf16.mxu0 0
    %3823 = vmatpush1.bf16.xpose.msra.mxu0 0
    %3824 = vmatprep.subr.bf16.mxu0 0
    %3825 = vmatpush1.bf16.xpose.msra.mxu0 0
    %3826 = vmatprep.subr.bf16.mxu0 %v3745
    %3827 = vmatpush1.bf16.xpose.msra.mxu0 %v3744
    %3828 = vmatprep.subr.bf16.mxu0 %v3741
    %3829 = vmatpush1.bf16.xpose.msra.mxu0 %v3740
    %3830 = vmatprep.subr.bf16.mxu0 %v3737
    %3831 = vmatpush1.bf16.xpose.msra.mxu0 %v3736
    %3832 = vmatprep.subr.bf16.mxu0 %v3733
    %3833 = vmatpush1.bf16.xpose.msra.mxu0 %v3732
    %3834 = vmatprep.subr.bf16.mxu0 0
    %3835 = vmatpush2.bf16.xpose.msra.mxu0 0
    %3836 = vmatprep.subr.bf16.mxu0 0
    %3837 = vmatpush2.bf16.xpose.msra.mxu0 0
    %3838 = vmatprep.subr.bf16.mxu0 0
    %3839 = vmatpush2.bf16.xpose.msra.mxu0 0
    %3840 = vmatprep.subr.bf16.mxu0 0
    %3841 = vmatpush2.bf16.xpose.msra.mxu0 0
    %3842 = vmatprep.subr.bf16.mxu0 0
    %3843 = vmatpush2.bf16.xpose.msra.mxu0 0
    %3844 = vmatprep.subr.bf16.mxu0 0
    %3845 = vmatpush2.bf16.xpose.msra.mxu0 0
    %3846 = vmatprep.subr.bf16.mxu0 0
    %3847 = vmatpush2.bf16.xpose.msra.mxu0 0
    %3848 = vmatprep.subr.bf16.mxu0 0
    %3849 = vmatpush2.bf16.xpose.msra.mxu0 0
    %3850 = vmatprep.mubr.bf16.mxu0 %v3773
    %3851 = vmatmul.mubr.bf16.gmra.mxu0 %v3772
    %v3852 = vpop.f32.mrf.mxu0
    %v3853 = vadd.f32 %v3813, %v3852
    %v3854 = vpop.f32.mrf.mxu0
    %v3855 = vpop.f32.mrf.mxu0
    %v3856 = vpop.f32.mrf.mxu0
    %3857 = vdwg.mxu0
    %v3858 = vsub.f32 0.0, %v3853
    %v3859 = vmul.f32 %v3858, 1.442695
    %v3860 = vpow.pop %v3859
    %v3861 = vadd.f32 %v3860, 1.0
    %v3862 = vrcp.pop %v3861
    %v3863 = vmul.f32 1.0, %v3862
    %vm3864 = vcmask 516096
    %3865 = vst.msk [vmem:[#allocation11] sm:$0x1] %vm3864, %v3863
    // Predicated region
    $region42: #{tpu_custom_call.1} parent=1 // pred_check
      _
    $region43: #{tpu_custom_call.1} parent=1 // pred_check_branch
      %3867 = sbr.rel (0) target = $region45
    $region44: #{tpu_custom_call.1} parent=1 // pred_region
      %s3869 = ssub.s32 16, 16
      %3870 = vsyncadd [#allocation5], %s3869
      %s3872 = sshll.u32 [#allocation11], 4
      %s3873 = int_to_ptr.vmem [resolvable:$true] %s3872
      %3875 = dma.vmem_to_hbm [thread:$0]  %s3873, 16, %s6, [#allocation5]
    $region45: #{tpu_custom_call.1} parent=1 // pred_fallthru
      _
    // Predicated region
    $region46: #{tpu_custom_call.1} parent=1 // pred_check
      _
    $region47: #{tpu_custom_call.1} parent=1 // pred_check_branch
      %3877 = sbr.rel (0) target = $region49
    $region48: #{tpu_custom_call.1} parent=1 // pred_region
      %3878 = dma.done [#allocation5], 16
    $region49: #{tpu_custom_call.1} parent=1 // pred_fallthru
      _
    %3879 = vsyncpa [#allocation4], 1
    %3880 = vsyncpa [#allocation7], 1
    %3881 = vsyncpa [#allocation10], 1
    %3882 = vsyncpa [#allocation5], 1

</llo_original>
